<compile_context>
chip_gen: v7x
topology: tpu7x:2x2x1
jax: 0.10.0
libtpu: 0.0.40
codegen_flags: <defaults>
</compile_context>

<pallas_src>
import functools

import jax
import jax.numpy as jnp
from jax import lax
from jax.experimental import pallas as pl
from jax.experimental.pallas import tpu as pltpu


# ----------------------------------------------------------------------------
# Fused kernel: runs ALL layers on one image per grid step.
#   x_ref   : (1, HW, Cp)      activations (f32)
#   w1_ref  : (L, 9*Cp, Cp)    conv1 weights, one (Cp, Cp) slab per 3x3 tap
#   w2_ref  : (L, 9*Cp, Cp)    conv2 weights
#   aff_ref : (L, 4, Cp)       [s1, b1, s2*g, b2*g] folded BN(+gate) affines
#   o_ref   : (1, HW, Cp)
# ----------------------------------------------------------------------------
def _fused_layers_kernel(x_ref, w1_ref, w2_ref, aff_ref, o_ref, *, H, W, Cp, L):
    HW = H * W

    # Column-of-image index of every flattened row (computed once).
    col = lax.broadcasted_iota(jnp.int32, (HW, Cp), 0) % W
    # Mask-before-shift equivalents of the output-side border masks:
    #   dx == 0 tap: a source pixel in the last image column would wrap into
    #                the next row's column 0 -> zero sources with col == W-1.
    #   dx == 2 tap: symmetric -> zero sources with col == 0.
    m_dx0 = (col != (W - 1)).astype(jnp.bfloat16)
    m_dx2 = (col != 0).astype(jnp.bfloat16)

    def shift_rows(v, delta):
        """result[r] = v[r + delta], zero-filled at the ends (static shift).

        Zero fill handles the top/bottom image borders exactly (the block is
        one full image)."""
        if delta == 0:
            return v
        pad = jnp.zeros((abs(delta), Cp), v.dtype)
        if delta > 0:
            return jnp.concatenate([v[delta:, :], pad], axis=0)
        return jnp.concatenate([pad, v[:HW + delta, :]], axis=0)

    def conv3x3(src_f32, w_flat):
        """3x3 conv, stride 1, pad 1, as ONE MXU matmul with K = 9*Cp."""
        src16 = src_f32.astype(jnp.bfloat16)          # hoisted: 1 cast / conv
        variants = (src16 * m_dx0, src16, src16 * m_dx2)  # hoisted: 2 masks
        taps = []
        for t in range(9):
            dy, dx = divmod(t, 3)
            delta = (dy - 1) * W + (dx - 1)
            taps.append(shift_rows(variants[dx], delta))
        patches = jnp.concatenate(taps, axis=1)       # (HW, 9*Cp) bf16
        return jnp.dot(patches, w_flat, preferred_element_type=jnp.float32)

    x_cur = x_ref[0].astype(jnp.float32)              # (HW, Cp) residual/f32

    # Layer loop (L is static -> unrolled); intermediates never touch HBM.
    for l in range(L):
        aff = aff_ref[l]                              # (4, Cp) f32
        # conv1 + folded-BN affine + ReLU.
        h = conv3x3(x_cur, w1_ref[l])
        h = jnp.maximum(h * aff[0:1, :] + aff[1:2, :], 0.0)
        # conv2 + folded-BN affine (gate pre-folded) + residual + ReLU.
        y = conv3x3(h, w2_ref[l])
        y = y * aff[2:3, :] + aff[3:4, :]
        x_cur = jnp.maximum(y + x_cur, 0.0)

    o_ref[0] = x_cur.astype(o_ref.dtype)


# ----------------------------------------------------------------------------
# Wrapper: ONE pallas_call for the whole LayerModule.
# ----------------------------------------------------------------------------
def _prep_layer(params, c, cp, use_info_filt):
    def pad_w(w):
        w = w.reshape(9, c, c).astype(jnp.float32)
        w = jnp.pad(w, ((0, 0), (0, cp - c), (0, cp - c)))
        return w.reshape(9 * cp, cp).astype(jnp.bfloat16)

    w1 = pad_w(params["w1"])
    w2 = pad_w(params["w2"])

    if use_info_filt:
        g = jax.nn.sigmoid(params["gate"].astype(jnp.float32))
    else:
        g = jnp.ones((c,), jnp.float32)
    aff = jnp.stack([
        params["s1"].astype(jnp.float32),
        params["b1"].astype(jnp.float32),
        params["s2"].astype(jnp.float32) * g,
        params["b2"].astype(jnp.float32) * g,
    ])                                                 # (4, c)
    aff = jnp.pad(aff, ((0, 0), (0, cp - c)))          # padded channels -> 0
    return w1, w2, aff


def layer_module_forward(x, layer_params_list, use_info_filt=True):
    """Equivalent of LayerModule.forward: apply each layer in sequence,
    fully fused into a single Pallas kernel."""
    n, h, w, c = x.shape
    hw = h * w
    num_layers = len(layer_params_list)
    cp = ((c + 127) // 128) * 128                      # lane-dense channels

    preps = [_prep_layer(p, c, cp, use_info_filt) for p in layer_params_list]
    w1_all = jnp.stack([p[0] for p in preps])          # (L, 9*cp, cp) bf16
    w2_all = jnp.stack([p[1] for p in preps])          # (L, 9*cp, cp) bf16
    aff_all = jnp.stack([p[2] for p in preps])         # (L, 4, cp)    f32

    xp = jnp.pad(x, ((0, 0), (0, 0), (0, 0), (0, cp - c))).reshape(n, hw, cp)

    kernel = functools.partial(_fused_layers_kernel,
                               H=h, W=w, Cp=cp, L=num_layers)

    out = pl.pallas_call(
        kernel,
        out_shape=jax.ShapeDtypeStruct((n, hw, cp), x.dtype),
        grid_spec=pltpu.PrefetchScalarGridSpec(
            num_scalar_prefetch=0,
            grid=(n,),
            in_specs=[
                pl.BlockSpec((1, hw, cp), lambda b: (b, 0, 0)),         # acts
                pl.BlockSpec((num_layers, 9 * cp, cp), lambda b: (0, 0, 0)),
                pl.BlockSpec((num_layers, 9 * cp, cp), lambda b: (0, 0, 0)),
                pl.BlockSpec((num_layers, 4, cp), lambda b: (0, 0, 0)),
            ],
            out_specs=pl.BlockSpec((1, hw, cp), lambda b: (b, 0, 0)),
        ),
        compiler_params=pltpu.CompilerParams(
            dimension_semantics=("parallel",)),
    )(xp, w1_all, w2_all, aff_all)

    return out.reshape(n, h, w, cp)[..., :c]


# ----------------------------------------------------------------------------
# Parameter init + pure-JAX reference (correctness check in __main__).
# ----------------------------------------------------------------------------
def init_basic_block_params(key, channels):
    k1, k2, k3, k4, k5 = jax.random.split(key, 5)
    fan_in = 9 * channels
    std = (2.0 / fan_in) ** 0.5
    return {
        "w1": std * jax.random.normal(k1, (3, 3, channels, channels),
                                      jnp.float32),
        "s1": 1.0 + 0.05 * jax.random.normal(k2, (channels,), jnp.float32),
        "b1": 0.05 * jax.random.normal(k3, (channels,), jnp.float32),
        "w2": std * jax.random.normal(k4, (3, 3, channels, channels),
                                      jnp.float32),
        "s2": 1.0 + 0.05 * jax.random.normal(k5, (channels,), jnp.float32),
        "b2": jnp.zeros((channels,), jnp.float32),
        "gate": 0.5 * jnp.ones((channels,), jnp.float32),
    }


def _reference_basic_block(x, params, use_info_filt=True):
    dn = ("NHWC", "HWIO", "NHWC")

    def conv(z, w_hwio):
        return lax.conv_general_dilated(z, w_hwio, (1, 1), ((1, 1), (1, 1)),
                                        dimension_numbers=dn)

    h = jnp.maximum(conv(x, params["w1"]) * params["s1"] + params["b1"], 0.0)
    y = conv(h, params["w2"]) * params["s2"] + params["b2"]
    if use_info_filt:
        y = jax.nn.sigmoid(params["gate"]) * y
    return jnp.maximum(y + x, 0.0)


if __name__ == "__main__":
    key = jax.random.PRNGKey(0)
    kx, kp = jax.random.split(key)

    # Small shapes: batch=2, spatial=16x16, channels=8 (NHWC).
    n, h, w, c = 2, 16, 16, 8
    x = jax.random.normal(kx, (n, h, w, c), jnp.float32)

    num_layers = 2
    layer_keys = jax.random.split(kp, num_layers)
    layers = [init_basic_block_params(lk, c) for lk in layer_keys]

    fwd = jax.jit(lambda xx, ps: layer_module_forward(xx, ps,
                                                      use_info_filt=True))
    out = jax.block_until_ready(fwd(x, layers))
    assert out.shape == (n, h, w, c) and out.dtype == jnp.float32

    # Correctness check vs. pure-JAX reference (bf16 MXU operands -> loose tol)
    ref = x
    for p in layers:
        ref = _reference_basic_block(ref, p, use_info_filt=True)
    ref = jax.block_until_ready(ref)
    max_err = float(jnp.max(jnp.abs(out - ref)))
    assert max_err < 0.2, f"kernel mismatch vs reference: {max_err}"

    print("KERNEL_OK")
</pallas_src>

<mosaic_0001>
module attributes {stable_mosaic.version = 11 : i64} {
  func.func @_fused_layers_kernel(%arg0: i32, %arg1: memref<1x256x128xf32, #tpu.memory_space<vmem>>, %arg2: memref<2x1152x128xbf16, #tpu.memory_space<vmem>>, %arg3: memref<2x1152x128xbf16, #tpu.memory_space<vmem>>, %arg4: memref<2x4x128xf32, #tpu.memory_space<vmem>>, %arg5: memref<1x256x128xf32, #tpu.memory_space<vmem>>) attributes {dimension_semantics = [#tpu.dimension_semantics<parallel>], iteration_bounds = array<i64: 2>, scalar_prefetch = 0 : i64, scratch_operands = 0 : i64, tpu.core_type = #tpu.core_type<tc>, window_params = [{transform_indices = @transform_0, window_bounds = array<i64: 1, 256, 128>}, {pipeline_mode = #tpu.pipeline_mode<synchronous>, transform_indices = @transform_1, window_bounds = array<i64: 2, 1152, 128>}, {pipeline_mode = #tpu.pipeline_mode<synchronous>, transform_indices = @transform_2, window_bounds = array<i64: 2, 1152, 128>}, {pipeline_mode = #tpu.pipeline_mode<synchronous>, transform_indices = @transform_3, window_bounds = array<i64: 2, 4, 128>}, {transform_indices = @transform_4, window_bounds = array<i64: 1, 256, 128>}]} {
    %0 = tpu.iota {dimensions = array<i32: 0>} : vector<256x128xi32>
    %c16_i32 = arith.constant 16 : i32
    %c0_i32 = arith.constant 0 : i32
    %1 = arith.cmpi eq, %c16_i32, %c0_i32 : i32
    %c1_i32 = arith.constant 1 : i32
    %2 = arith.select %1, %c1_i32, %c16_i32 : i32
    %3 = vector.broadcast %2 : i32 to vector<256x128xi32>
    %4 = arith.remsi %0, %3 : vector<256x128xi32>
    %c0_i32_0 = arith.constant 0 : i32
    %5 = vector.broadcast %c0_i32_0 : i32 to vector<256x128xi32>
    %6 = arith.cmpi ne, %4, %5 : vector<256x128xi32>
    %c0_i32_1 = arith.constant 0 : i32
    %7 = vector.broadcast %c0_i32_1 : i32 to vector<256x128xi32>
    %8 = arith.cmpi slt, %4, %7 : vector<256x128xi32>
    %c0_i32_2 = arith.constant 0 : i32
    %9 = arith.cmpi slt, %2, %c0_i32_2 : i32
    %10 = vector.broadcast %9 : i1 to vector<256x128xi1>
    %11 = vector.broadcast %10 : vector<256x128xi1> to vector<256x128xi1>
    %12 = arith.xori %8, %11 : vector<256x128xi1>
    %13 = arith.andi %12, %6 : vector<256x128xi1>
    %14 = vector.broadcast %2 : i32 to vector<256x128xi32>
    %15 = arith.addi %4, %14 : vector<256x128xi32>
    %16 = arith.select %13, %15, %4 : vector<256x128xi1>, vector<256x128xi32>
    %c15_i32 = arith.constant 15 : i32
    %17 = vector.broadcast %c15_i32 : i32 to vector<256x128xi32>
    %18 = arith.cmpi ne, %16, %17 : vector<256x128xi32>
    %19 = arith.extui %18 : vector<256x128xi1> to vector<256x128xi32>
    %20 = arith.sitofp %19 : vector<256x128xi32> to vector<256x128xf32>
    %21 = arith.truncf %20 : vector<256x128xf32> to vector<256x128xbf16>
    %c0_i32_3 = arith.constant 0 : i32
    %22 = vector.broadcast %c0_i32_3 : i32 to vector<256x128xi32>
    %23 = arith.cmpi ne, %16, %22 : vector<256x128xi32>
    %24 = arith.extui %23 : vector<256x128xi1> to vector<256x128xi32>
    %25 = arith.sitofp %24 : vector<256x128xi32> to vector<256x128xf32>
    %26 = arith.truncf %25 : vector<256x128xf32> to vector<256x128xbf16>
    %c0 = arith.constant 0 : index
    %c0_4 = arith.constant 0 : index
    %c0_5 = arith.constant 0 : index
    %27 = vector.load %arg1[%c0, %c0_4, %c0_5] : memref<1x256x128xf32, #tpu.memory_space<vmem>>, vector<1x256x128xf32>
    %28 = vector.shape_cast %27 : vector<1x256x128xf32> to vector<256x128xf32>
    %c0_6 = arith.constant 0 : index
    %c0_7 = arith.constant 0 : index
    %c0_8 = arith.constant 0 : index
    %29 = vector.load %arg4[%c0_6, %c0_7, %c0_8] : memref<2x4x128xf32, #tpu.memory_space<vmem>>, vector<1x4x128xf32>
    %30 = vector.shape_cast %29 : vector<1x4x128xf32> to vector<4x128xf32>
    %c0_9 = arith.constant 0 : index
    %c0_10 = arith.constant 0 : index
    %c0_11 = arith.constant 0 : index
    %31 = vector.load %arg2[%c0_9, %c0_10, %c0_11] : memref<2x1152x128xbf16, #tpu.memory_space<vmem>>, vector<1x1152x128xbf16>
    %32 = vector.shape_cast %31 : vector<1x1152x128xbf16> to vector<1152x128xbf16>
    %33 = arith.truncf %28 : vector<256x128xf32> to vector<256x128xbf16>
    %34 = arith.mulf %33, %21 : vector<256x128xbf16>
    %35 = arith.mulf %33, %26 : vector<256x128xbf16>
    %cst = arith.constant 0.000000e+00 : bf16
    %36 = vector.broadcast %cst : bf16 to vector<17x128xbf16>
    %37 = vector.extract_strided_slice %34 {offsets = [0, 0], sizes = [239, 128], strides = [1, 1]} : vector<256x128xbf16> to vector<239x128xbf16>
    %38 = tpu.concatenate %36, %37 in 0 : vector<17x128xbf16>, vector<239x128xbf16> -> vector<256x128xbf16>
    %cst_12 = arith.constant 0.000000e+00 : bf16
    %39 = vector.broadcast %cst_12 : bf16 to vector<16x128xbf16>
    %40 = vector.extract_strided_slice %33 {offsets = [0, 0], sizes = [240, 128], strides = [1, 1]} : vector<256x128xbf16> to vector<240x128xbf16>
    %41 = tpu.concatenate %39, %40 in 0 : vector<16x128xbf16>, vector<240x128xbf16> -> vector<256x128xbf16>
    %cst_13 = arith.constant 0.000000e+00 : bf16
    %42 = vector.broadcast %cst_13 : bf16 to vector<15x128xbf16>
    %43 = vector.extract_strided_slice %35 {offsets = [0, 0], sizes = [241, 128], strides = [1, 1]} : vector<256x128xbf16> to vector<241x128xbf16>
    %44 = tpu.concatenate %42, %43 in 0 : vector<15x128xbf16>, vector<241x128xbf16> -> vector<256x128xbf16>
    %cst_14 = arith.constant 0.000000e+00 : bf16
    %45 = vector.broadcast %cst_14 : bf16 to vector<1x128xbf16>
    %46 = vector.extract_strided_slice %34 {offsets = [0, 0], sizes = [255, 128], strides = [1, 1]} : vector<256x128xbf16> to vector<255x128xbf16>
    %47 = tpu.concatenate %45, %46 in 0 : vector<1x128xbf16>, vector<255x128xbf16> -> vector<256x128xbf16>
    %cst_15 = arith.constant 0.000000e+00 : bf16
    %48 = vector.broadcast %cst_15 : bf16 to vector<1x128xbf16>
    %49 = vector.extract_strided_slice %35 {offsets = [1, 0], sizes = [255, 128], strides = [1, 1]} : vector<256x128xbf16> to vector<255x128xbf16>
    %50 = tpu.concatenate %49, %48 in 0 : vector<255x128xbf16>, vector<1x128xbf16> -> vector<256x128xbf16>
    %cst_16 = arith.constant 0.000000e+00 : bf16
    %51 = vector.broadcast %cst_16 : bf16 to vector<15x128xbf16>
    %52 = vector.extract_strided_slice %34 {offsets = [15, 0], sizes = [241, 128], strides = [1, 1]} : vector<256x128xbf16> to vector<241x128xbf16>
    %53 = tpu.concatenate %52, %51 in 0 : vector<241x128xbf16>, vector<15x128xbf16> -> vector<256x128xbf16>
    %cst_17 = arith.constant 0.000000e+00 : bf16
    %54 = vector.broadcast %cst_17 : bf16 to vector<16x128xbf16>
    %55 = vector.extract_strided_slice %33 {offsets = [16, 0], sizes = [240, 128], strides = [1, 1]} : vector<256x128xbf16> to vector<240x128xbf16>
    %56 = tpu.concatenate %55, %54 in 0 : vector<240x128xbf16>, vector<16x128xbf16> -> vector<256x128xbf16>
    %cst_18 = arith.constant 0.000000e+00 : bf16
    %57 = vector.broadcast %cst_18 : bf16 to vector<17x128xbf16>
    %58 = vector.extract_strided_slice %35 {offsets = [17, 0], sizes = [239, 128], strides = [1, 1]} : vector<256x128xbf16> to vector<239x128xbf16>
    %59 = tpu.concatenate %58, %57 in 0 : vector<239x128xbf16>, vector<17x128xbf16> -> vector<256x128xbf16>
    %60 = tpu.concatenate %38, %41, %44, %47, %33, %50, %53, %56, %59 in 1 : vector<256x128xbf16>, vector<256x128xbf16>, vector<256x128xbf16>, vector<256x128xbf16>, vector<256x128xbf16>, vector<256x128xbf16>, vector<256x128xbf16>, vector<256x128xbf16>, vector<256x128xbf16> -> vector<256x1152xbf16>
    %cst_19 = arith.constant dense<0.000000e+00> : vector<256x128xf32>
    %61 = tpu.matmul %60, %32, %cst_19 {dimension_numbers = #tpu.dot_dimension_numbers<[1], [0], [0], [1], [0, 0, 1, 1], [], []>} : vector<256x1152xbf16>, vector<1152x128xbf16>, vector<256x128xf32> -> vector<256x128xf32>
    %62 = vector.extract_strided_slice %30 {offsets = [0, 0], sizes = [1, 128], strides = [1, 1]} : vector<4x128xf32> to vector<1x128xf32>
    %63 = vector.broadcast %62 : vector<1x128xf32> to vector<256x128xf32>
    %64 = arith.mulf %61, %63 : vector<256x128xf32>
    %65 = vector.extract_strided_slice %30 {offsets = [1, 0], sizes = [1, 128], strides = [1, 1]} : vector<4x128xf32> to vector<1x128xf32>
    %66 = vector.broadcast %65 : vector<1x128xf32> to vector<256x128xf32>
    %67 = arith.addf %64, %66 : vector<256x128xf32>
    %cst_20 = arith.constant 0.000000e+00 : f32
    %68 = vector.broadcast %cst_20 : f32 to vector<256x128xf32>
    %69 = arith.maximumf %67, %68 : vector<256x128xf32>
    %c0_21 = arith.constant 0 : index
    %c0_22 = arith.constant 0 : index
    %c0_23 = arith.constant 0 : index
    %70 = vector.load %arg3[%c0_21, %c0_22, %c0_23] : memref<2x1152x128xbf16, #tpu.memory_space<vmem>>, vector<1x1152x128xbf16>
    %71 = vector.shape_cast %70 : vector<1x1152x128xbf16> to vector<1152x128xbf16>
    %72 = arith.truncf %69 : vector<256x128xf32> to vector<256x128xbf16>
    %73 = arith.mulf %72, %21 : vector<256x128xbf16>
    %74 = arith.mulf %72, %26 : vector<256x128xbf16>
    %cst_24 = arith.constant 0.000000e+00 : bf16
    %75 = vector.broadcast %cst_24 : bf16 to vector<17x128xbf16>
    %76 = vector.extract_strided_slice %73 {offsets = [0, 0], sizes = [239, 128], strides = [1, 1]} : vector<256x128xbf16> to vector<239x128xbf16>
    %77 = tpu.concatenate %75, %76 in 0 : vector<17x128xbf16>, vector<239x128xbf16> -> vector<256x128xbf16>
    %cst_25 = arith.constant 0.000000e+00 : bf16
    %78 = vector.broadcast %cst_25 : bf16 to vector<16x128xbf16>
    %79 = vector.extract_strided_slice %72 {offsets = [0, 0], sizes = [240, 128], strides = [1, 1]} : vector<256x128xbf16> to vector<240x128xbf16>
    %80 = tpu.concatenate %78, %79 in 0 : vector<16x128xbf16>, vector<240x128xbf16> -> vector<256x128xbf16>
    %cst_26 = arith.constant 0.000000e+00 : bf16
    %81 = vector.broadcast %cst_26 : bf16 to vector<15x128xbf16>
    %82 = vector.extract_strided_slice %74 {offsets = [0, 0], sizes = [241, 128], strides = [1, 1]} : vector<256x128xbf16> to vector<241x128xbf16>
    %83 = tpu.concatenate %81, %82 in 0 : vector<15x128xbf16>, vector<241x128xbf16> -> vector<256x128xbf16>
    %cst_27 = arith.constant 0.000000e+00 : bf16
    %84 = vector.broadcast %cst_27 : bf16 to vector<1x128xbf16>
    %85 = vector.extract_strided_slice %73 {offsets = [0, 0], sizes = [255, 128], strides = [1, 1]} : vector<256x128xbf16> to vector<255x128xbf16>
    %86 = tpu.concatenate %84, %85 in 0 : vector<1x128xbf16>, vector<255x128xbf16> -> vector<256x128xbf16>
    %cst_28 = arith.constant 0.000000e+00 : bf16
    %87 = vector.broadcast %cst_28 : bf16 to vector<1x128xbf16>
    %88 = vector.extract_strided_slice %74 {offsets = [1, 0], sizes = [255, 128], strides = [1, 1]} : vector<256x128xbf16> to vector<255x128xbf16>
    %89 = tpu.concatenate %88, %87 in 0 : vector<255x128xbf16>, vector<1x128xbf16> -> vector<256x128xbf16>
    %cst_29 = arith.constant 0.000000e+00 : bf16
    %90 = vector.broadcast %cst_29 : bf16 to vector<15x128xbf16>
    %91 = vector.extract_strided_slice %73 {offsets = [15, 0], sizes = [241, 128], strides = [1, 1]} : vector<256x128xbf16> to vector<241x128xbf16>
    %92 = tpu.concatenate %91, %90 in 0 : vector<241x128xbf16>, vector<15x128xbf16> -> vector<256x128xbf16>
    %cst_30 = arith.constant 0.000000e+00 : bf16
    %93 = vector.broadcast %cst_30 : bf16 to vector<16x128xbf16>
    %94 = vector.extract_strided_slice %72 {offsets = [16, 0], sizes = [240, 128], strides = [1, 1]} : vector<256x128xbf16> to vector<240x128xbf16>
    %95 = tpu.concatenate %94, %93 in 0 : vector<240x128xbf16>, vector<16x128xbf16> -> vector<256x128xbf16>
    %cst_31 = arith.constant 0.000000e+00 : bf16
    %96 = vector.broadcast %cst_31 : bf16 to vector<17x128xbf16>
    %97 = vector.extract_strided_slice %74 {offsets = [17, 0], sizes = [239, 128], strides = [1, 1]} : vector<256x128xbf16> to vector<239x128xbf16>
    %98 = tpu.concatenate %97, %96 in 0 : vector<239x128xbf16>, vector<17x128xbf16> -> vector<256x128xbf16>
    %99 = tpu.concatenate %77, %80, %83, %86, %72, %89, %92, %95, %98 in 1 : vector<256x128xbf16>, vector<256x128xbf16>, vector<256x128xbf16>, vector<256x128xbf16>, vector<256x128xbf16>, vector<256x128xbf16>, vector<256x128xbf16>, vector<256x128xbf16>, vector<256x128xbf16> -> vector<256x1152xbf16>
    %cst_32 = arith.constant dense<0.000000e+00> : vector<256x128xf32>
    %100 = tpu.matmul %99, %71, %cst_32 {dimension_numbers = #tpu.dot_dimension_numbers<[1], [0], [0], [1], [0, 0, 1, 1], [], []>} : vector<256x1152xbf16>, vector<1152x128xbf16>, vector<256x128xf32> -> vector<256x128xf32>
    %101 = vector.extract_strided_slice %30 {offsets = [2, 0], sizes = [1, 128], strides = [1, 1]} : vector<4x128xf32> to vector<1x128xf32>
    %102 = vector.broadcast %101 : vector<1x128xf32> to vector<256x128xf32>
    %103 = arith.mulf %100, %102 : vector<256x128xf32>
    %104 = vector.extract_strided_slice %30 {offsets = [3, 0], sizes = [1, 128], strides = [1, 1]} : vector<4x128xf32> to vector<1x128xf32>
    %105 = vector.broadcast %104 : vector<1x128xf32> to vector<256x128xf32>
    %106 = arith.addf %103, %105 : vector<256x128xf32>
    %107 = arith.addf %106, %28 : vector<256x128xf32>
    %cst_33 = arith.constant 0.000000e+00 : f32
    %108 = vector.broadcast %cst_33 : f32 to vector<256x128xf32>
    %109 = arith.maximumf %107, %108 : vector<256x128xf32>
    %c1 = arith.constant 1 : index
    %c0_34 = arith.constant 0 : index
    %c0_35 = arith.constant 0 : index
    %110 = vector.load %arg4[%c1, %c0_34, %c0_35] : memref<2x4x128xf32, #tpu.memory_space<vmem>>, vector<1x4x128xf32>
    %111 = vector.shape_cast %110 : vector<1x4x128xf32> to vector<4x128xf32>
    %c1_36 = arith.constant 1 : index
    %c0_37 = arith.constant 0 : index
    %c0_38 = arith.constant 0 : index
    %112 = vector.load %arg2[%c1_36, %c0_37, %c0_38] : memref<2x1152x128xbf16, #tpu.memory_space<vmem>>, vector<1x1152x128xbf16>
    %113 = vector.shape_cast %112 : vector<1x1152x128xbf16> to vector<1152x128xbf16>
    %114 = arith.truncf %109 : vector<256x128xf32> to vector<256x128xbf16>
    %115 = arith.mulf %114, %21 : vector<256x128xbf16>
    %116 = arith.mulf %114, %26 : vector<256x128xbf16>
    %cst_39 = arith.constant 0.000000e+00 : bf16
    %117 = vector.broadcast %cst_39 : bf16 to vector<17x128xbf16>
    %118 = vector.extract_strided_slice %115 {offsets = [0, 0], sizes = [239, 128], strides = [1, 1]} : vector<256x128xbf16> to vector<239x128xbf16>
    %119 = tpu.concatenate %117, %118 in 0 : vector<17x128xbf16>, vector<239x128xbf16> -> vector<256x128xbf16>
    %cst_40 = arith.constant 0.000000e+00 : bf16
    %120 = vector.broadcast %cst_40 : bf16 to vector<16x128xbf16>
    %121 = vector.extract_strided_slice %114 {offsets = [0, 0], sizes = [240, 128], strides = [1, 1]} : vector<256x128xbf16> to vector<240x128xbf16>
    %122 = tpu.concatenate %120, %121 in 0 : vector<16x128xbf16>, vector<240x128xbf16> -> vector<256x128xbf16>
    %cst_41 = arith.constant 0.000000e+00 : bf16
    %123 = vector.broadcast %cst_41 : bf16 to vector<15x128xbf16>
    %124 = vector.extract_strided_slice %116 {offsets = [0, 0], sizes = [241, 128], strides = [1, 1]} : vector<256x128xbf16> to vector<241x128xbf16>
    %125 = tpu.concatenate %123, %124 in 0 : vector<15x128xbf16>, vector<241x128xbf16> -> vector<256x128xbf16>
    %cst_42 = arith.constant 0.000000e+00 : bf16
    %126 = vector.broadcast %cst_42 : bf16 to vector<1x128xbf16>
    %127 = vector.extract_strided_slice %115 {offsets = [0, 0], sizes = [255, 128], strides = [1, 1]} : vector<256x128xbf16> to vector<255x128xbf16>
    %128 = tpu.concatenate %126, %127 in 0 : vector<1x128xbf16>, vector<255x128xbf16> -> vector<256x128xbf16>
    %cst_43 = arith.constant 0.000000e+00 : bf16
    %129 = vector.broadcast %cst_43 : bf16 to vector<1x128xbf16>
    %130 = vector.extract_strided_slice %116 {offsets = [1, 0], sizes = [255, 128], strides = [1, 1]} : vector<256x128xbf16> to vector<255x128xbf16>
    %131 = tpu.concatenate %130, %129 in 0 : vector<255x128xbf16>, vector<1x128xbf16> -> vector<256x128xbf16>
    %cst_44 = arith.constant 0.000000e+00 : bf16
    %132 = vector.broadcast %cst_44 : bf16 to vector<15x128xbf16>
    %133 = vector.extract_strided_slice %115 {offsets = [15, 0], sizes = [241, 128], strides = [1, 1]} : vector<256x128xbf16> to vector<241x128xbf16>
    %134 = tpu.concatenate %133, %132 in 0 : vector<241x128xbf16>, vector<15x128xbf16> -> vector<256x128xbf16>
    %cst_45 = arith.constant 0.000000e+00 : bf16
    %135 = vector.broadcast %cst_45 : bf16 to vector<16x128xbf16>
    %136 = vector.extract_strided_slice %114 {offsets = [16, 0], sizes = [240, 128], strides = [1, 1]} : vector<256x128xbf16> to vector<240x128xbf16>
    %137 = tpu.concatenate %136, %135 in 0 : vector<240x128xbf16>, vector<16x128xbf16> -> vector<256x128xbf16>
    %cst_46 = arith.constant 0.000000e+00 : bf16
    %138 = vector.broadcast %cst_46 : bf16 to vector<17x128xbf16>
    %139 = vector.extract_strided_slice %116 {offsets = [17, 0], sizes = [239, 128], strides = [1, 1]} : vector<256x128xbf16> to vector<239x128xbf16>
    %140 = tpu.concatenate %139, %138 in 0 : vector<239x128xbf16>, vector<17x128xbf16> -> vector<256x128xbf16>
    %141 = tpu.concatenate %119, %122, %125, %128, %114, %131, %134, %137, %140 in 1 : vector<256x128xbf16>, vector<256x128xbf16>, vector<256x128xbf16>, vector<256x128xbf16>, vector<256x128xbf16>, vector<256x128xbf16>, vector<256x128xbf16>, vector<256x128xbf16>, vector<256x128xbf16> -> vector<256x1152xbf16>
    %cst_47 = arith.constant dense<0.000000e+00> : vector<256x128xf32>
    %142 = tpu.matmul %141, %113, %cst_47 {dimension_numbers = #tpu.dot_dimension_numbers<[1], [0], [0], [1], [0, 0, 1, 1], [], []>} : vector<256x1152xbf16>, vector<1152x128xbf16>, vector<256x128xf32> -> vector<256x128xf32>
    %143 = vector.extract_strided_slice %111 {offsets = [0, 0], sizes = [1, 128], strides = [1, 1]} : vector<4x128xf32> to vector<1x128xf32>
    %144 = vector.broadcast %143 : vector<1x128xf32> to vector<256x128xf32>
    %145 = arith.mulf %142, %144 : vector<256x128xf32>
    %146 = vector.extract_strided_slice %111 {offsets = [1, 0], sizes = [1, 128], strides = [1, 1]} : vector<4x128xf32> to vector<1x128xf32>
    %147 = vector.broadcast %146 : vector<1x128xf32> to vector<256x128xf32>
    %148 = arith.addf %145, %147 : vector<256x128xf32>
    %cst_48 = arith.constant 0.000000e+00 : f32
    %149 = vector.broadcast %cst_48 : f32 to vector<256x128xf32>
    %150 = arith.maximumf %148, %149 : vector<256x128xf32>
    %c1_49 = arith.constant 1 : index
    %c0_50 = arith.constant 0 : index
    %c0_51 = arith.constant 0 : index
    %151 = vector.load %arg3[%c1_49, %c0_50, %c0_51] : memref<2x1152x128xbf16, #tpu.memory_space<vmem>>, vector<1x1152x128xbf16>
    %152 = vector.shape_cast %151 : vector<1x1152x128xbf16> to vector<1152x128xbf16>
    %153 = arith.truncf %150 : vector<256x128xf32> to vector<256x128xbf16>
    %154 = arith.mulf %153, %21 : vector<256x128xbf16>
    %155 = arith.mulf %153, %26 : vector<256x128xbf16>
    %cst_52 = arith.constant 0.000000e+00 : bf16
    %156 = vector.broadcast %cst_52 : bf16 to vector<17x128xbf16>
    %157 = vector.extract_strided_slice %154 {offsets = [0, 0], sizes = [239, 128], strides = [1, 1]} : vector<256x128xbf16> to vector<239x128xbf16>
    %158 = tpu.concatenate %156, %157 in 0 : vector<17x128xbf16>, vector<239x128xbf16> -> vector<256x128xbf16>
    %cst_53 = arith.constant 0.000000e+00 : bf16
    %159 = vector.broadcast %cst_53 : bf16 to vector<16x128xbf16>
    %160 = vector.extract_strided_slice %153 {offsets = [0, 0], sizes = [240, 128], strides = [1, 1]} : vector<256x128xbf16> to vector<240x128xbf16>
    %161 = tpu.concatenate %159, %160 in 0 : vector<16x128xbf16>, vector<240x128xbf16> -> vector<256x128xbf16>
    %cst_54 = arith.constant 0.000000e+00 : bf16
    %162 = vector.broadcast %cst_54 : bf16 to vector<15x128xbf16>
    %163 = vector.extract_strided_slice %155 {offsets = [0, 0], sizes = [241, 128], strides = [1, 1]} : vector<256x128xbf16> to vector<241x128xbf16>
    %164 = tpu.concatenate %162, %163 in 0 : vector<15x128xbf16>, vector<241x128xbf16> -> vector<256x128xbf16>
    %cst_55 = arith.constant 0.000000e+00 : bf16
    %165 = vector.broadcast %cst_55 : bf16 to vector<1x128xbf16>
    %166 = vector.extract_strided_slice %154 {offsets = [0, 0], sizes = [255, 128], strides = [1, 1]} : vector<256x128xbf16> to vector<255x128xbf16>
    %167 = tpu.concatenate %165, %166 in 0 : vector<1x128xbf16>, vector<255x128xbf16> -> vector<256x128xbf16>
    %cst_56 = arith.constant 0.000000e+00 : bf16
    %168 = vector.broadcast %cst_56 : bf16 to vector<1x128xbf16>
    %169 = vector.extract_strided_slice %155 {offsets = [1, 0], sizes = [255, 128], strides = [1, 1]} : vector<256x128xbf16> to vector<255x128xbf16>
    %170 = tpu.concatenate %169, %168 in 0 : vector<255x128xbf16>, vector<1x128xbf16> -> vector<256x128xbf16>
    %cst_57 = arith.constant 0.000000e+00 : bf16
    %171 = vector.broadcast %cst_57 : bf16 to vector<15x128xbf16>
    %172 = vector.extract_strided_slice %154 {offsets = [15, 0], sizes = [241, 128], strides = [1, 1]} : vector<256x128xbf16> to vector<241x128xbf16>
    %173 = tpu.concatenate %172, %171 in 0 : vector<241x128xbf16>, vector<15x128xbf16> -> vector<256x128xbf16>
    %cst_58 = arith.constant 0.000000e+00 : bf16
    %174 = vector.broadcast %cst_58 : bf16 to vector<16x128xbf16>
    %175 = vector.extract_strided_slice %153 {offsets = [16, 0], sizes = [240, 128], strides = [1, 1]} : vector<256x128xbf16> to vector<240x128xbf16>
    %176 = tpu.concatenate %175, %174 in 0 : vector<240x128xbf16>, vector<16x128xbf16> -> vector<256x128xbf16>
    %cst_59 = arith.constant 0.000000e+00 : bf16
    %177 = vector.broadcast %cst_59 : bf16 to vector<17x128xbf16>
    %178 = vector.extract_strided_slice %155 {offsets = [17, 0], sizes = [239, 128], strides = [1, 1]} : vector<256x128xbf16> to vector<239x128xbf16>
    %179 = tpu.concatenate %178, %177 in 0 : vector<239x128xbf16>, vector<17x128xbf16> -> vector<256x128xbf16>
    %180 = tpu.concatenate %158, %161, %164, %167, %153, %170, %173, %176, %179 in 1 : vector<256x128xbf16>, vector<256x128xbf16>, vector<256x128xbf16>, vector<256x128xbf16>, vector<256x128xbf16>, vector<256x128xbf16>, vector<256x128xbf16>, vector<256x128xbf16>, vector<256x128xbf16> -> vector<256x1152xbf16>
    %cst_60 = arith.constant dense<0.000000e+00> : vector<256x128xf32>
    %181 = tpu.matmul %180, %152, %cst_60 {dimension_numbers = #tpu.dot_dimension_numbers<[1], [0], [0], [1], [0, 0, 1, 1], [], []>} : vector<256x1152xbf16>, vector<1152x128xbf16>, vector<256x128xf32> -> vector<256x128xf32>
    %182 = vector.extract_strided_slice %111 {offsets = [2, 0], sizes = [1, 128], strides = [1, 1]} : vector<4x128xf32> to vector<1x128xf32>
    %183 = vector.broadcast %182 : vector<1x128xf32> to vector<256x128xf32>
    %184 = arith.mulf %181, %183 : vector<256x128xf32>
    %185 = vector.extract_strided_slice %111 {offsets = [3, 0], sizes = [1, 128], strides = [1, 1]} : vector<4x128xf32> to vector<1x128xf32>
    %186 = vector.broadcast %185 : vector<1x128xf32> to vector<256x128xf32>
    %187 = arith.addf %184, %186 : vector<256x128xf32>
    %188 = arith.addf %187, %109 : vector<256x128xf32>
    %cst_61 = arith.constant 0.000000e+00 : f32
    %189 = vector.broadcast %cst_61 : f32 to vector<256x128xf32>
    %190 = arith.maximumf %188, %189 : vector<256x128xf32>
    %c0_62 = arith.constant 0 : index
    %c0_63 = arith.constant 0 : index
    %c0_64 = arith.constant 0 : index
    %191 = vector.load %arg5[%c0_62, %c0_63, %c0_64] : memref<1x256x128xf32, #tpu.memory_space<vmem>>, vector<1x256x128xf32>
    %192 = vector.shape_cast %191 : vector<1x256x128xf32> to vector<256x128xf32>
    %193 = vector.shape_cast %190 : vector<256x128xf32> to vector<1x256x128xf32>
    tpu.vector_store %arg5[%c0_62, %c0_63, %c0_64], %193 {strides = array<i32>} : memref<1x256x128xf32, #tpu.memory_space<vmem>>, vector<1x256x128xf32>,
    return
  }
  func.func @transform_0(%arg0: i32) -> (i32, i32, i32) {
    %c0_i32 = arith.constant 0 : i32
    %c0_i32_0 = arith.constant 0 : i32
    %c0_i32_1 = arith.constant 0 : i32
    return %arg0, %c0_i32, %c0_i32_0 : i32, i32, i32
  }
  func.func @transform_1(%arg0: i32) -> (i32, i32, i32) {
    %c0_i32 = arith.constant 0 : i32
    %c0_i32_0 = arith.constant 0 : i32
    %c0_i32_1 = arith.constant 0 : i32
    %c0_i32_2 = arith.constant 0 : i32
    return %c0_i32, %c0_i32_0, %c0_i32_1 : i32, i32, i32
  }
  func.func @transform_2(%arg0: i32) -> (i32, i32, i32) {
    %c0_i32 = arith.constant 0 : i32
    %c0_i32_0 = arith.constant 0 : i32
    %c0_i32_1 = arith.constant 0 : i32
    %c0_i32_2 = arith.constant 0 : i32
    return %c0_i32, %c0_i32_0, %c0_i32_1 : i32, i32, i32
  }
  func.func @transform_3(%arg0: i32) -> (i32, i32, i32) {
    %c0_i32 = arith.constant 0 : i32
    %c0_i32_0 = arith.constant 0 : i32
    %c0_i32_1 = arith.constant 0 : i32
    %c0_i32_2 = arith.constant 0 : i32
    return %c0_i32, %c0_i32_0, %c0_i32_1 : i32, i32, i32
  }
  func.func @transform_4(%arg0: i32) -> (i32, i32, i32) {
    %c0_i32 = arith.constant 0 : i32
    %c0_i32_0 = arith.constant 0 : i32
    %c0_i32_1 = arith.constant 0 : i32
    return %arg0, %c0_i32, %c0_i32_0 : i32, i32, i32
  }
}

</mosaic_0001>

<llo_original>
// kernel: _lambda_.1
$region0: #{_lambda_.1}
  #allocation0 [shape = 'u32[]', space=smem, size = 0x4, offset = 0x4, fixed_abs, tag = 'smem constant byte address 0x4 - core index']
  #allocation1 [shape = 'u32[144,128]{1,0:T(1,128)}', space=vmem, size = 0x12000, scoped, tag = 'internal scratch']
  %s0 = inlined_call_operand.vmem [shape: f32[2,256,128], index: 0, kind: input, shape index: {}]
  %s1 = inlined_call_operand.vmem [shape: bf16[2,1152,128], index: 1, kind: input, shape index: {}]
  %s2 = inlined_call_operand.vmem [shape: bf16[2,1152,128], index: 2, kind: input, shape index: {}]
  %s3 = inlined_call_operand.vmem [shape: f32[2,4,128], index: 3, kind: input, shape index: {}]
  %s4 = inlined_call_operand.vmem [shape: f32[2,256,128], index: 4, kind: output, shape index: {}]
  %s5 = sld [smem:[#allocation0]]
  $region49: #{_lambda_.1} parent=0
    _
  %s7 = ssub.s32 1, %s5
  %s8 = scalar_select 0, %s7, %s5
  loop: start=0, step=1, limit=4
  $region2: #{_lambda_.1} parent=0 // loop_pre_header
    _
  $region3: #{_lambda_.1} parent=0 // loop_header
    %s10 = sphi 0, %s14
    %p11 = scmp.ge.s32.totalorder %s10, 4
    %s20 = sphi 0, %s22
    %s23 = sphi 0, %s20
    %s24 = sphi 0, %s23
    %s40 = sphi 0, %s24
    %s44 = sphi 0, %s44
    %s46 = sphi 0, %s44
    %s47 = sphi 0, %s46
    %s61 = sphi 0, %s47
    %s65 = sphi 0, %s65
    %s67 = sphi 0, %s65
    %s68 = sphi 0, %s67
    %s82 = sphi 0, %s68
    %s86 = sphi 0, %s86
    %s88 = sphi 0, %s86
    %s89 = sphi 0, %s88
    %s103 = sphi 0, %s89
    %s109 = sphi 0, %s111
    %s112 = sphi 0, %s109
    %s113 = sphi 0, %s112
    %s129 = sphi 0, %s113
  $region4: #{_lambda_.1} parent=0 // loop_header_branch
    %13 = sbr.rel (%p11) target = $region8
  $region5: #{_lambda_.1} parent=0 // loop_body
    %s15 = ssub.s32 %s10, 1
    %s16 = ssub.s32 %s10, 2
    %s17 = sadd.s32 %s10, 1
    %s18 = ssub.s32 %s10, %s17
    %p19 = scmp.eq.s32.totalorder %s18, 0
    %s21 = sadd.s32 %s20, 1
    %s22 = scalar_select %p19, %s20, %s21
    %p25 = pneg %p19
    %p26 = scmp.eq.s32.totalorder %s10, 1
    %p27 = por %p25, %p26
    %p28 = scmp.ne.s32.totalorder %s20, %s23
    %p29 = scmp.eq.s32.totalorder %s10, 0
    %p30 = por %p28, %p29
    %p31 = scmp.ne.s32.totalorder %s20, %s23
    %p32 = scmp.eq.s32.totalorder %s15, 1
    %p33 = por %p31, %p32
    %p34 = scmp.ne.s32.totalorder %s23, %s24
    %p35 = scmp.eq.s32.totalorder %s15, 0
    %p36 = por %p34, %p35
    %p37 = scmp.ne.s32.totalorder %s23, %s24
    %p38 = scmp.eq.s32.totalorder %s16, 1
    %p39 = por %p37, %p38
    %p41 = scmp.ne.s32.totalorder %s24, %s40
    %p42 = scmp.eq.s32.totalorder %s16, 0
    %p43 = por %p41, %p42
    %s45 = sadd.s32 %s44, 1
    %p48 = scmp.eq.s32.totalorder %s10, 1
    %p49 = scmp.ne.s32.totalorder %s44, %s46
    %p50 = scmp.eq.s32.totalorder %s10, 0
    %p51 = por %p49, %p50
    %p52 = scmp.ne.s32.totalorder %s44, %s46
    %p53 = scmp.eq.s32.totalorder %s15, 1
    %p54 = por %p52, %p53
    %p55 = scmp.ne.s32.totalorder %s46, %s47
    %p56 = scmp.eq.s32.totalorder %s15, 0
    %p57 = por %p55, %p56
    %p58 = scmp.ne.s32.totalorder %s46, %s47
    %p59 = scmp.eq.s32.totalorder %s16, 1
    %p60 = por %p58, %p59
    %p62 = scmp.ne.s32.totalorder %s47, %s61
    %p63 = scmp.eq.s32.totalorder %s16, 0
    %p64 = por %p62, %p63
    %s66 = sadd.s32 %s65, 1
    %p69 = scmp.eq.s32.totalorder %s10, 1
    %p70 = scmp.ne.s32.totalorder %s65, %s67
    %p71 = scmp.eq.s32.totalorder %s10, 0
    %p72 = por %p70, %p71
    %p73 = scmp.ne.s32.totalorder %s65, %s67
    %p74 = scmp.eq.s32.totalorder %s15, 1
    %p75 = por %p73, %p74
    %p76 = scmp.ne.s32.totalorder %s67, %s68
    %p77 = scmp.eq.s32.totalorder %s15, 0
    %p78 = por %p76, %p77
    %p79 = scmp.ne.s32.totalorder %s67, %s68
    %p80 = scmp.eq.s32.totalorder %s16, 1
    %p81 = por %p79, %p80
    %p83 = scmp.ne.s32.totalorder %s68, %s82
    %p84 = scmp.eq.s32.totalorder %s16, 0
    %p85 = por %p83, %p84
    %s87 = sadd.s32 %s86, 1
    %p90 = scmp.eq.s32.totalorder %s10, 1
    %p91 = scmp.ne.s32.totalorder %s86, %s88
    %p92 = scmp.eq.s32.totalorder %s10, 0
    %p93 = por %p91, %p92
    %p94 = scmp.ne.s32.totalorder %s86, %s88
    %p95 = scmp.eq.s32.totalorder %s15, 1
    %p96 = por %p94, %p95
    %p97 = scmp.ne.s32.totalorder %s88, %s89
    %p98 = scmp.eq.s32.totalorder %s15, 0
    %p99 = por %p97, %p98
    %p100 = scmp.ne.s32.totalorder %s88, %s89
    %p101 = scmp.eq.s32.totalorder %s16, 1
    %p102 = por %p100, %p101
    %p104 = scmp.ne.s32.totalorder %s89, %s103
    %p105 = scmp.eq.s32.totalorder %s16, 0
    %p106 = por %p104, %p105
    %s107 = ssub.s32 %s10, %s17
    %p108 = scmp.eq.s32.totalorder %s107, 0
    %s110 = sadd.s32 %s109, 1
    %s111 = scalar_select %p108, %s109, %s110
    %p114 = pneg %p108
    %p115 = scmp.eq.s32.totalorder %s10, 1
    %p116 = por %p114, %p115
    %p117 = scmp.ne.s32.totalorder %s109, %s112
    %p118 = scmp.eq.s32.totalorder %s10, 0
    %p119 = por %p117, %p118
    %p120 = scmp.ne.s32.totalorder %s109, %s112
    %p121 = scmp.eq.s32.totalorder %s15, 1
    %p122 = por %p120, %p121
    %p123 = scmp.ne.s32.totalorder %s112, %s113
    %p124 = scmp.eq.s32.totalorder %s15, 0
    %p125 = por %p123, %p124
    %p126 = scmp.ne.s32.totalorder %s112, %s113
    %p127 = scmp.eq.s32.totalorder %s16, 1
    %p128 = por %p126, %p127
    %p130 = scmp.ne.s32.totalorder %s113, %s129
    %p131 = scmp.eq.s32.totalorder %s16, 0
    %p132 = por %p130, %p131
    %p133 = scmp.le.s32.totalorder 1, %s10
    %p134 = scmp.lt.s32.totalorder %s10, 3
    %p135 = pnand %p133, %p134
    %p136 = pneg %p135
    // Predicated region
    $region9: #{_lambda_.1} parent=5 // pred_check
      _
    $region10: #{_lambda_.1} parent=5 // pred_check_branch
      %138 = sbr.rel (%p135) target = $region12
    $region11: #{_lambda_.1} parent=5 // pred_region
      %s139 = ssub.s32 %s10, 1
      // Predicated region
      $region13: #{_lambda_.1} parent=11 // pred_check
        %p140 = pneg %p57
      $region14: #{_lambda_.1} parent=11 // pred_check_branch
        %142 = sbr.rel (%p140) target = $region16
      $region15: #{_lambda_.1} parent=11 // pred_region
        _
      $region16: #{_lambda_.1} parent=11 // pred_fallthru
        _
      // Predicated region
      $region17: #{_lambda_.1} parent=11 // pred_check
        %p143 = pneg %p78
      $region18: #{_lambda_.1} parent=11 // pred_check_branch
        %145 = sbr.rel (%p143) target = $region20
      $region19: #{_lambda_.1} parent=11 // pred_region
        _
      $region20: #{_lambda_.1} parent=11 // pred_fallthru
        _
      // Predicated region
      $region21: #{_lambda_.1} parent=11 // pred_check
        %p146 = pneg %p99
      $region22: #{_lambda_.1} parent=11 // pred_check_branch
        %148 = sbr.rel (%p146) target = $region24
      $region23: #{_lambda_.1} parent=11 // pred_region
        _
      $region24: #{_lambda_.1} parent=11 // pred_fallthru
        _
    $region12: #{_lambda_.1} parent=5 // pred_fallthru
      _
    %p149 = scmp.lt.s32.totalorder %s10, 2
    // Predicated region
    $region25: #{_lambda_.1} parent=5 // pred_check
      %p150 = pneg %p149
    $region26: #{_lambda_.1} parent=5 // pred_check_branch
      %152 = sbr.rel (%p150) target = $region28
    $region27: #{_lambda_.1} parent=5 // pred_region
      // Predicated region
      $region29: #{_lambda_.1} parent=27 // pred_check
        %p153 = pneg %p30
      $region30: #{_lambda_.1} parent=27 // pred_check_branch
        %155 = sbr.rel (%p153) target = $region32
      $region31: #{_lambda_.1} parent=27 // pred_region
        %p156 = scmp.lt.s32.totalorder %s10, 1
        %s157 = scalar_select %p156, %s10, 1
        %s158 = smul.addr %s157, 32
        %s159 = smul.addr %s158, 8
        %s160 = scalar_lea.vmem %s0, %s159
      $region32: #{_lambda_.1} parent=27 // pred_fallthru
        _
    $region28: #{_lambda_.1} parent=5 // pred_fallthru
      _
    %p161 = scmp.le.s32.totalorder 1, %s10
    %p162 = scmp.lt.s32.totalorder %s10, 3
    %p163 = pnand %p161, %p162
    %p164 = pneg %p163
    // Predicated region
    $region33: #{_lambda_.1} parent=5 // pred_check
      _
    $region34: #{_lambda_.1} parent=5 // pred_check_branch
      %166 = sbr.rel (%p163) target = $region36
    $region35: #{_lambda_.1} parent=5 // pred_region
      %s167 = ssub.s32 %s10, 1
      %p168 = scmp.lt.s32.totalorder %s15, 1
      %s169 = scalar_select %p168, %s15, 1
      %s170 = smul.addr %s169, 32
      %s171 = smul.addr %s170, 8
      %s172 = scalar_lea.vmem %s0, %s171
      %p173 = pneg %p36
      %p174 = pneg %p33
      %p175 = pneg %p57
      %p176 = pneg %p54
      %p177 = pneg %p78
      %p178 = pneg %p75
      %p179 = pneg %p99
      %p180 = pneg %p96
      %p181 = pneg %p125
      %p182 = pneg %p122
      %p183 = scmp.lt.s32.totalorder %s15, 1
      %s184 = scalar_select %p183, %s15, 1
      %s185 = smul.addr %s184, 32
      %s186 = smul.addr %s185, 8
      %s187 = scalar_lea.vmem %s4, %s186
      %p188 = scmp.lt.s32.totalorder %s15, 1
      %s189 = scalar_select %p188, %s15, 1
      %s190 = smul.addr %s189, 32
      %s191 = smul.addr %s190, 8
      %s192 = scalar_lea.vmem %s0, %s191
      %p193 = scmp.lt.s32.totalorder %s15, 1
      %s194 = scalar_select %p193, %s15, 1
      %s195 = smul.addr %s194, 32
      %s196 = smul.addr %s195, 8
      %s197 = scalar_lea.vmem %s4, %s196
      %v199 = vlaneseq
      %v200 = vshrl.u32 %v199, 7
      %v201 = vadd.s32 %v200, 8
      %v202 = vadd.s32 %v200, 16
      %v203 = vadd.s32 %v200, 24
      %v204 = vadd.s32 %v200, 32
      %v205 = vadd.s32 %v200, 40
      %v206 = vadd.s32 %v200, 48
      %v207 = vadd.s32 %v200, 56
      %v208 = vadd.s32 %v200, 64
      %v209 = vadd.s32 %v200, 72
      %v210 = vadd.s32 %v200, 80
      %v211 = vadd.s32 %v200, 88
      %v212 = vadd.s32 %v200, 96
      %v213 = vadd.s32 %v200, 104
      %v214 = vadd.s32 %v200, 112
      %v215 = vadd.s32 %v200, 120
      %v216 = vadd.s32 %v200, 128
      %v217 = vadd.s32 %v200, 136
      %v218 = vadd.s32 %v200, 144
      %v219 = vadd.s32 %v200, 152
      %v220 = vadd.s32 %v200, 160
      %v221 = vadd.s32 %v200, 168
      %v222 = vadd.s32 %v200, 176
      %v223 = vadd.s32 %v200, 184
      %v224 = vadd.s32 %v200, 192
      %v225 = vadd.s32 %v200, 200
      %v226 = vadd.s32 %v200, 208
      %v227 = vadd.s32 %v200, 216
      %v228 = vadd.s32 %v200, 224
      %v229 = vadd.s32 %v200, 232
      %v230 = vadd.s32 %v200, 240
      %v231 = vadd.s32 %v200, 248
      %vm232 = vcmp.lt.s32.totalorder %v200, 0
      %v233 = vsub.s32 0, %v200
      %v234 = vsel %vm232, %v233, %v200
      %v235 = vshrl.u32 %v234, 4
      %v236 = vand.u32 %v234, 15
      %v237 = vsub.s32 0, %v236
      %v238 = vsel %vm232, %v237, %v236
      %vm239 = vcmp.lt.s32.totalorder %v201, 0
      %v240 = vsub.s32 0, %v201
      %v241 = vsel %vm239, %v240, %v201
      %v242 = vshrl.u32 %v241, 4
      %v243 = vand.u32 %v241, 15
      %v244 = vsub.s32 0, %v243
      %v245 = vsel %vm239, %v244, %v243
      %vm246 = vcmp.lt.s32.totalorder %v202, 0
      %v247 = vsub.s32 0, %v202
      %v248 = vsel %vm246, %v247, %v202
      %v249 = vshrl.u32 %v248, 4
      %v250 = vand.u32 %v248, 15
      %v251 = vsub.s32 0, %v250
      %v252 = vsel %vm246, %v251, %v250
      %vm253 = vcmp.lt.s32.totalorder %v203, 0
      %v254 = vsub.s32 0, %v203
      %v255 = vsel %vm253, %v254, %v203
      %v256 = vshrl.u32 %v255, 4
      %v257 = vand.u32 %v255, 15
      %v258 = vsub.s32 0, %v257
      %v259 = vsel %vm253, %v258, %v257
      %vm260 = vcmp.lt.s32.totalorder %v204, 0
      %v261 = vsub.s32 0, %v204
      %v262 = vsel %vm260, %v261, %v204
      %v263 = vshrl.u32 %v262, 4
      %v264 = vand.u32 %v262, 15
      %v265 = vsub.s32 0, %v264
      %v266 = vsel %vm260, %v265, %v264
      %vm267 = vcmp.lt.s32.totalorder %v205, 0
      %v268 = vsub.s32 0, %v205
      %v269 = vsel %vm267, %v268, %v205
      %v270 = vshrl.u32 %v269, 4
      %v271 = vand.u32 %v269, 15
      %v272 = vsub.s32 0, %v271
      %v273 = vsel %vm267, %v272, %v271
      %vm274 = vcmp.lt.s32.totalorder %v206, 0
      %v275 = vsub.s32 0, %v206
      %v276 = vsel %vm274, %v275, %v206
      %v277 = vshrl.u32 %v276, 4
      %v278 = vand.u32 %v276, 15
      %v279 = vsub.s32 0, %v278
      %v280 = vsel %vm274, %v279, %v278
      %vm281 = vcmp.lt.s32.totalorder %v207, 0
      %v282 = vsub.s32 0, %v207
      %v283 = vsel %vm281, %v282, %v207
      %v284 = vshrl.u32 %v283, 4
      %v285 = vand.u32 %v283, 15
      %v286 = vsub.s32 0, %v285
      %v287 = vsel %vm281, %v286, %v285
      %vm288 = vcmp.lt.s32.totalorder %v208, 0
      %v289 = vsub.s32 0, %v208
      %v290 = vsel %vm288, %v289, %v208
      %v291 = vshrl.u32 %v290, 4
      %v292 = vand.u32 %v290, 15
      %v293 = vsub.s32 0, %v292
      %v294 = vsel %vm288, %v293, %v292
      %vm295 = vcmp.lt.s32.totalorder %v209, 0
      %v296 = vsub.s32 0, %v209
      %v297 = vsel %vm295, %v296, %v209
      %v298 = vshrl.u32 %v297, 4
      %v299 = vand.u32 %v297, 15
      %v300 = vsub.s32 0, %v299
      %v301 = vsel %vm295, %v300, %v299
      %vm302 = vcmp.lt.s32.totalorder %v210, 0
      %v303 = vsub.s32 0, %v210
      %v304 = vsel %vm302, %v303, %v210
      %v305 = vshrl.u32 %v304, 4
      %v306 = vand.u32 %v304, 15
      %v307 = vsub.s32 0, %v306
      %v308 = vsel %vm302, %v307, %v306
      %vm309 = vcmp.lt.s32.totalorder %v211, 0
      %v310 = vsub.s32 0, %v211
      %v311 = vsel %vm309, %v310, %v211
      %v312 = vshrl.u32 %v311, 4
      %v313 = vand.u32 %v311, 15
      %v314 = vsub.s32 0, %v313
      %v315 = vsel %vm309, %v314, %v313
      %vm316 = vcmp.lt.s32.totalorder %v212, 0
      %v317 = vsub.s32 0, %v212
      %v318 = vsel %vm316, %v317, %v212
      %v319 = vshrl.u32 %v318, 4
      %v320 = vand.u32 %v318, 15
      %v321 = vsub.s32 0, %v320
      %v322 = vsel %vm316, %v321, %v320
      %vm323 = vcmp.lt.s32.totalorder %v213, 0
      %v324 = vsub.s32 0, %v213
      %v325 = vsel %vm323, %v324, %v213
      %v326 = vshrl.u32 %v325, 4
      %v327 = vand.u32 %v325, 15
      %v328 = vsub.s32 0, %v327
      %v329 = vsel %vm323, %v328, %v327
      %vm330 = vcmp.lt.s32.totalorder %v214, 0
      %v331 = vsub.s32 0, %v214
      %v332 = vsel %vm330, %v331, %v214
      %v333 = vshrl.u32 %v332, 4
      %v334 = vand.u32 %v332, 15
      %v335 = vsub.s32 0, %v334
      %v336 = vsel %vm330, %v335, %v334
      %vm337 = vcmp.lt.s32.totalorder %v215, 0
      %v338 = vsub.s32 0, %v215
      %v339 = vsel %vm337, %v338, %v215
      %v340 = vshrl.u32 %v339, 4
      %v341 = vand.u32 %v339, 15
      %v342 = vsub.s32 0, %v341
      %v343 = vsel %vm337, %v342, %v341
      %vm344 = vcmp.lt.s32.totalorder %v216, 0
      %v345 = vsub.s32 0, %v216
      %v346 = vsel %vm344, %v345, %v216
      %v347 = vshrl.u32 %v346, 4
      %v348 = vand.u32 %v346, 15
      %v349 = vsub.s32 0, %v348
      %v350 = vsel %vm344, %v349, %v348
      %vm351 = vcmp.lt.s32.totalorder %v217, 0
      %v352 = vsub.s32 0, %v217
      %v353 = vsel %vm351, %v352, %v217
      %v354 = vshrl.u32 %v353, 4
      %v355 = vand.u32 %v353, 15
      %v356 = vsub.s32 0, %v355
      %v357 = vsel %vm351, %v356, %v355
      %vm358 = vcmp.lt.s32.totalorder %v218, 0
      %v359 = vsub.s32 0, %v218
      %v360 = vsel %vm358, %v359, %v218
      %v361 = vshrl.u32 %v360, 4
      %v362 = vand.u32 %v360, 15
      %v363 = vsub.s32 0, %v362
      %v364 = vsel %vm358, %v363, %v362
      %vm365 = vcmp.lt.s32.totalorder %v219, 0
      %v366 = vsub.s32 0, %v219
      %v367 = vsel %vm365, %v366, %v219
      %v368 = vshrl.u32 %v367, 4
      %v369 = vand.u32 %v367, 15
      %v370 = vsub.s32 0, %v369
      %v371 = vsel %vm365, %v370, %v369
      %vm372 = vcmp.lt.s32.totalorder %v220, 0
      %v373 = vsub.s32 0, %v220
      %v374 = vsel %vm372, %v373, %v220
      %v375 = vshrl.u32 %v374, 4
      %v376 = vand.u32 %v374, 15
      %v377 = vsub.s32 0, %v376
      %v378 = vsel %vm372, %v377, %v376
      %vm379 = vcmp.lt.s32.totalorder %v221, 0
      %v380 = vsub.s32 0, %v221
      %v381 = vsel %vm379, %v380, %v221
      %v382 = vshrl.u32 %v381, 4
      %v383 = vand.u32 %v381, 15
      %v384 = vsub.s32 0, %v383
      %v385 = vsel %vm379, %v384, %v383
      %vm386 = vcmp.lt.s32.totalorder %v222, 0
      %v387 = vsub.s32 0, %v222
      %v388 = vsel %vm386, %v387, %v222
      %v389 = vshrl.u32 %v388, 4
      %v390 = vand.u32 %v388, 15
      %v391 = vsub.s32 0, %v390
      %v392 = vsel %vm386, %v391, %v390
      %vm393 = vcmp.lt.s32.totalorder %v223, 0
      %v394 = vsub.s32 0, %v223
      %v395 = vsel %vm393, %v394, %v223
      %v396 = vshrl.u32 %v395, 4
      %v397 = vand.u32 %v395, 15
      %v398 = vsub.s32 0, %v397
      %v399 = vsel %vm393, %v398, %v397
      %vm400 = vcmp.lt.s32.totalorder %v224, 0
      %v401 = vsub.s32 0, %v224
      %v402 = vsel %vm400, %v401, %v224
      %v403 = vshrl.u32 %v402, 4
      %v404 = vand.u32 %v402, 15
      %v405 = vsub.s32 0, %v404
      %v406 = vsel %vm400, %v405, %v404
      %vm407 = vcmp.lt.s32.totalorder %v225, 0
      %v408 = vsub.s32 0, %v225
      %v409 = vsel %vm407, %v408, %v225
      %v410 = vshrl.u32 %v409, 4
      %v411 = vand.u32 %v409, 15
      %v412 = vsub.s32 0, %v411
      %v413 = vsel %vm407, %v412, %v411
      %vm414 = vcmp.lt.s32.totalorder %v226, 0
      %v415 = vsub.s32 0, %v226
      %v416 = vsel %vm414, %v415, %v226
      %v417 = vshrl.u32 %v416, 4
      %v418 = vand.u32 %v416, 15
      %v419 = vsub.s32 0, %v418
      %v420 = vsel %vm414, %v419, %v418
      %vm421 = vcmp.lt.s32.totalorder %v227, 0
      %v422 = vsub.s32 0, %v227
      %v423 = vsel %vm421, %v422, %v227
      %v424 = vshrl.u32 %v423, 4
      %v425 = vand.u32 %v423, 15
      %v426 = vsub.s32 0, %v425
      %v427 = vsel %vm421, %v426, %v425
      %vm428 = vcmp.lt.s32.totalorder %v228, 0
      %v429 = vsub.s32 0, %v228
      %v430 = vsel %vm428, %v429, %v228
      %v431 = vshrl.u32 %v430, 4
      %v432 = vand.u32 %v430, 15
      %v433 = vsub.s32 0, %v432
      %v434 = vsel %vm428, %v433, %v432
      %vm435 = vcmp.lt.s32.totalorder %v229, 0
      %v436 = vsub.s32 0, %v229
      %v437 = vsel %vm435, %v436, %v229
      %v438 = vshrl.u32 %v437, 4
      %v439 = vand.u32 %v437, 15
      %v440 = vsub.s32 0, %v439
      %v441 = vsel %vm435, %v440, %v439
      %vm442 = vcmp.lt.s32.totalorder %v230, 0
      %v443 = vsub.s32 0, %v230
      %v444 = vsel %vm442, %v443, %v230
      %v445 = vshrl.u32 %v444, 4
      %v446 = vand.u32 %v444, 15
      %v447 = vsub.s32 0, %v446
      %v448 = vsel %vm442, %v447, %v446
      %vm449 = vcmp.lt.s32.totalorder %v231, 0
      %v450 = vsub.s32 0, %v231
      %v451 = vsel %vm449, %v450, %v231
      %v452 = vshrl.u32 %v451, 4
      %v453 = vand.u32 %v451, 15
      %v454 = vsub.s32 0, %v453
      %v455 = vsel %vm449, %v454, %v453
      %vm456 = vcmp.ne.s32.totalorder %v238, 0
      %vm457 = vcmp.ne.s32.totalorder %v245, 0
      %vm458 = vcmp.ne.s32.totalorder %v252, 0
      %vm459 = vcmp.ne.s32.totalorder %v259, 0
      %vm460 = vcmp.ne.s32.totalorder %v266, 0
      %vm461 = vcmp.ne.s32.totalorder %v273, 0
      %vm462 = vcmp.ne.s32.totalorder %v280, 0
      %vm463 = vcmp.ne.s32.totalorder %v287, 0
      %vm464 = vcmp.ne.s32.totalorder %v294, 0
      %vm465 = vcmp.ne.s32.totalorder %v301, 0
      %vm466 = vcmp.ne.s32.totalorder %v308, 0
      %vm467 = vcmp.ne.s32.totalorder %v315, 0
      %vm468 = vcmp.ne.s32.totalorder %v322, 0
      %vm469 = vcmp.ne.s32.totalorder %v329, 0
      %vm470 = vcmp.ne.s32.totalorder %v336, 0
      %vm471 = vcmp.ne.s32.totalorder %v343, 0
      %vm472 = vcmp.ne.s32.totalorder %v350, 0
      %vm473 = vcmp.ne.s32.totalorder %v357, 0
      %vm474 = vcmp.ne.s32.totalorder %v364, 0
      %vm475 = vcmp.ne.s32.totalorder %v371, 0
      %vm476 = vcmp.ne.s32.totalorder %v378, 0
      %vm477 = vcmp.ne.s32.totalorder %v385, 0
      %vm478 = vcmp.ne.s32.totalorder %v392, 0
      %vm479 = vcmp.ne.s32.totalorder %v399, 0
      %vm480 = vcmp.ne.s32.totalorder %v406, 0
      %vm481 = vcmp.ne.s32.totalorder %v413, 0
      %vm482 = vcmp.ne.s32.totalorder %v420, 0
      %vm483 = vcmp.ne.s32.totalorder %v427, 0
      %vm484 = vcmp.ne.s32.totalorder %v434, 0
      %vm485 = vcmp.ne.s32.totalorder %v441, 0
      %vm486 = vcmp.ne.s32.totalorder %v448, 0
      %vm487 = vcmp.ne.s32.totalorder %v455, 0
      %vm488 = vcmp.lt.s32.totalorder %v238, 0
      %vm489 = vcmp.lt.s32.totalorder %v245, 0
      %vm490 = vcmp.lt.s32.totalorder %v252, 0
      %vm491 = vcmp.lt.s32.totalorder %v259, 0
      %vm492 = vcmp.lt.s32.totalorder %v266, 0
      %vm493 = vcmp.lt.s32.totalorder %v273, 0
      %vm494 = vcmp.lt.s32.totalorder %v280, 0
      %vm495 = vcmp.lt.s32.totalorder %v287, 0
      %vm496 = vcmp.lt.s32.totalorder %v294, 0
      %vm497 = vcmp.lt.s32.totalorder %v301, 0
      %vm498 = vcmp.lt.s32.totalorder %v308, 0
      %vm499 = vcmp.lt.s32.totalorder %v315, 0
      %vm500 = vcmp.lt.s32.totalorder %v322, 0
      %vm501 = vcmp.lt.s32.totalorder %v329, 0
      %vm502 = vcmp.lt.s32.totalorder %v336, 0
      %vm503 = vcmp.lt.s32.totalorder %v343, 0
      %vm504 = vcmp.lt.s32.totalorder %v350, 0
      %vm505 = vcmp.lt.s32.totalorder %v357, 0
      %vm506 = vcmp.lt.s32.totalorder %v364, 0
      %vm507 = vcmp.lt.s32.totalorder %v371, 0
      %vm508 = vcmp.lt.s32.totalorder %v378, 0
      %vm509 = vcmp.lt.s32.totalorder %v385, 0
      %vm510 = vcmp.lt.s32.totalorder %v392, 0
      %vm511 = vcmp.lt.s32.totalorder %v399, 0
      %vm512 = vcmp.lt.s32.totalorder %v406, 0
      %vm513 = vcmp.lt.s32.totalorder %v413, 0
      %vm514 = vcmp.lt.s32.totalorder %v420, 0
      %vm515 = vcmp.lt.s32.totalorder %v427, 0
      %vm516 = vcmp.lt.s32.totalorder %v434, 0
      %vm517 = vcmp.lt.s32.totalorder %v441, 0
      %vm518 = vcmp.lt.s32.totalorder %v448, 0
      %vm519 = vcmp.lt.s32.totalorder %v455, 0
      %vm520 = vmand %vm488, %vm456
      %vm521 = vmand %vm489, %vm457
      %vm522 = vmand %vm490, %vm458
      %vm523 = vmand %vm491, %vm459
      %vm524 = vmand %vm492, %vm460
      %vm525 = vmand %vm493, %vm461
      %vm526 = vmand %vm494, %vm462
      %vm527 = vmand %vm495, %vm463
      %vm528 = vmand %vm496, %vm464
      %vm529 = vmand %vm497, %vm465
      %vm530 = vmand %vm498, %vm466
      %vm531 = vmand %vm499, %vm467
      %vm532 = vmand %vm500, %vm468
      %vm533 = vmand %vm501, %vm469
      %vm534 = vmand %vm502, %vm470
      %vm535 = vmand %vm503, %vm471
      %vm536 = vmand %vm504, %vm472
      %vm537 = vmand %vm505, %vm473
      %vm538 = vmand %vm506, %vm474
      %vm539 = vmand %vm507, %vm475
      %vm540 = vmand %vm508, %vm476
      %vm541 = vmand %vm509, %vm477
      %vm542 = vmand %vm510, %vm478
      %vm543 = vmand %vm511, %vm479
      %vm544 = vmand %vm512, %vm480
      %vm545 = vmand %vm513, %vm481
      %vm546 = vmand %vm514, %vm482
      %vm547 = vmand %vm515, %vm483
      %vm548 = vmand %vm516, %vm484
      %vm549 = vmand %vm517, %vm485
      %vm550 = vmand %vm518, %vm486
      %vm551 = vmand %vm519, %vm487
      %v552 = vadd.s32 %v238, 16
      %v553 = vadd.s32 %v245, 16
      %v554 = vadd.s32 %v252, 16
      %v555 = vadd.s32 %v259, 16
      %v556 = vadd.s32 %v266, 16
      %v557 = vadd.s32 %v273, 16
      %v558 = vadd.s32 %v280, 16
      %v559 = vadd.s32 %v287, 16
      %v560 = vadd.s32 %v294, 16
      %v561 = vadd.s32 %v301, 16
      %v562 = vadd.s32 %v308, 16
      %v563 = vadd.s32 %v315, 16
      %v564 = vadd.s32 %v322, 16
      %v565 = vadd.s32 %v329, 16
      %v566 = vadd.s32 %v336, 16
      %v567 = vadd.s32 %v343, 16
      %v568 = vadd.s32 %v350, 16
      %v569 = vadd.s32 %v357, 16
      %v570 = vadd.s32 %v364, 16
      %v571 = vadd.s32 %v371, 16
      %v572 = vadd.s32 %v378, 16
      %v573 = vadd.s32 %v385, 16
      %v574 = vadd.s32 %v392, 16
      %v575 = vadd.s32 %v399, 16
      %v576 = vadd.s32 %v406, 16
      %v577 = vadd.s32 %v413, 16
      %v578 = vadd.s32 %v420, 16
      %v579 = vadd.s32 %v427, 16
      %v580 = vadd.s32 %v434, 16
      %v581 = vadd.s32 %v441, 16
      %v582 = vadd.s32 %v448, 16
      %v583 = vadd.s32 %v455, 16
      %v584 = vsel %vm520, %v552, %v238
      %v585 = vsel %vm521, %v553, %v245
      %v586 = vsel %vm522, %v554, %v252
      %v587 = vsel %vm523, %v555, %v259
      %v588 = vsel %vm524, %v556, %v266
      %v589 = vsel %vm525, %v557, %v273
      %v590 = vsel %vm526, %v558, %v280
      %v591 = vsel %vm527, %v559, %v287
      %v592 = vsel %vm528, %v560, %v294
      %v593 = vsel %vm529, %v561, %v301
      %v594 = vsel %vm530, %v562, %v308
      %v595 = vsel %vm531, %v563, %v315
      %v596 = vsel %vm532, %v564, %v322
      %v597 = vsel %vm533, %v565, %v329
      %v598 = vsel %vm534, %v566, %v336
      %v599 = vsel %vm535, %v567, %v343
      %v600 = vsel %vm536, %v568, %v350
      %v601 = vsel %vm537, %v569, %v357
      %v602 = vsel %vm538, %v570, %v364
      %v603 = vsel %vm539, %v571, %v371
      %v604 = vsel %vm540, %v572, %v378
      %v605 = vsel %vm541, %v573, %v385
      %v606 = vsel %vm542, %v574, %v392
      %v607 = vsel %vm543, %v575, %v399
      %v608 = vsel %vm544, %v576, %v406
      %v609 = vsel %vm545, %v577, %v413
      %v610 = vsel %vm546, %v578, %v420
      %v611 = vsel %vm547, %v579, %v427
      %v612 = vsel %vm548, %v580, %v434
      %v613 = vsel %vm549, %v581, %v441
      %v614 = vsel %vm550, %v582, %v448
      %v615 = vsel %vm551, %v583, %v455
      %vm616 = vcmp.ne.s32.totalorder %v584, 15
      %vm617 = vcmp.ne.s32.totalorder %v585, 15
      %vm618 = vcmp.ne.s32.totalorder %v586, 15
      %vm619 = vcmp.ne.s32.totalorder %v587, 15
      %vm620 = vcmp.ne.s32.totalorder %v588, 15
      %vm621 = vcmp.ne.s32.totalorder %v589, 15
      %vm622 = vcmp.ne.s32.totalorder %v590, 15
      %vm623 = vcmp.ne.s32.totalorder %v591, 15
      %vm624 = vcmp.ne.s32.totalorder %v592, 15
      %vm625 = vcmp.ne.s32.totalorder %v593, 15
      %vm626 = vcmp.ne.s32.totalorder %v594, 15
      %vm627 = vcmp.ne.s32.totalorder %v595, 15
      %vm628 = vcmp.ne.s32.totalorder %v596, 15
      %vm629 = vcmp.ne.s32.totalorder %v597, 15
      %vm630 = vcmp.ne.s32.totalorder %v598, 15
      %vm631 = vcmp.ne.s32.totalorder %v599, 15
      %vm632 = vcmp.ne.s32.totalorder %v600, 15
      %vm633 = vcmp.ne.s32.totalorder %v601, 15
      %vm634 = vcmp.ne.s32.totalorder %v602, 15
      %vm635 = vcmp.ne.s32.totalorder %v603, 15
      %vm636 = vcmp.ne.s32.totalorder %v604, 15
      %vm637 = vcmp.ne.s32.totalorder %v605, 15
      %vm638 = vcmp.ne.s32.totalorder %v606, 15
      %vm639 = vcmp.ne.s32.totalorder %v607, 15
      %vm640 = vcmp.ne.s32.totalorder %v608, 15
      %vm641 = vcmp.ne.s32.totalorder %v609, 15
      %vm642 = vcmp.ne.s32.totalorder %v610, 15
      %vm643 = vcmp.ne.s32.totalorder %v611, 15
      %vm644 = vcmp.ne.s32.totalorder %v612, 15
      %vm645 = vcmp.ne.s32.totalorder %v613, 15
      %vm646 = vcmp.ne.s32.totalorder %v614, 15
      %vm647 = vcmp.ne.s32.totalorder %v615, 15
      %v648 = vsel %vm616, 1, 0
      %v649 = vsel %vm617, 1, 0
      %v650 = vsel %vm618, 1, 0
      %v651 = vsel %vm619, 1, 0
      %v652 = vsel %vm620, 1, 0
      %v653 = vsel %vm621, 1, 0
      %v654 = vsel %vm622, 1, 0
      %v655 = vsel %vm623, 1, 0
      %v656 = vsel %vm624, 1, 0
      %v657 = vsel %vm625, 1, 0
      %v658 = vsel %vm626, 1, 0
      %v659 = vsel %vm627, 1, 0
      %v660 = vsel %vm628, 1, 0
      %v661 = vsel %vm629, 1, 0
      %v662 = vsel %vm630, 1, 0
      %v663 = vsel %vm631, 1, 0
      %v664 = vsel %vm632, 1, 0
      %v665 = vsel %vm633, 1, 0
      %v666 = vsel %vm634, 1, 0
      %v667 = vsel %vm635, 1, 0
      %v668 = vsel %vm636, 1, 0
      %v669 = vsel %vm637, 1, 0
      %v670 = vsel %vm638, 1, 0
      %v671 = vsel %vm639, 1, 0
      %v672 = vsel %vm640, 1, 0
      %v673 = vsel %vm641, 1, 0
      %v674 = vsel %vm642, 1, 0
      %v675 = vsel %vm643, 1, 0
      %v676 = vsel %vm644, 1, 0
      %v677 = vsel %vm645, 1, 0
      %v678 = vsel %vm646, 1, 0
      %v679 = vsel %vm647, 1, 0
      %v680 = vcvt.s32.f32 %v648
      %v681 = vcvt.s32.f32 %v649
      %v682 = vcvt.s32.f32 %v650
      %v683 = vcvt.s32.f32 %v651
      %v684 = vcvt.s32.f32 %v652
      %v685 = vcvt.s32.f32 %v653
      %v686 = vcvt.s32.f32 %v654
      %v687 = vcvt.s32.f32 %v655
      %v688 = vcvt.s32.f32 %v656
      %v689 = vcvt.s32.f32 %v657
      %v690 = vcvt.s32.f32 %v658
      %v691 = vcvt.s32.f32 %v659
      %v692 = vcvt.s32.f32 %v660
      %v693 = vcvt.s32.f32 %v661
      %v694 = vcvt.s32.f32 %v662
      %v695 = vcvt.s32.f32 %v663
      %v696 = vcvt.s32.f32 %v664
      %v697 = vcvt.s32.f32 %v665
      %v698 = vcvt.s32.f32 %v666
      %v699 = vcvt.s32.f32 %v667
      %v700 = vcvt.s32.f32 %v668
      %v701 = vcvt.s32.f32 %v669
      %v702 = vcvt.s32.f32 %v670
      %v703 = vcvt.s32.f32 %v671
      %v704 = vcvt.s32.f32 %v672
      %v705 = vcvt.s32.f32 %v673
      %v706 = vcvt.s32.f32 %v674
      %v707 = vcvt.s32.f32 %v675
      %v708 = vcvt.s32.f32 %v676
      %v709 = vcvt.s32.f32 %v677
      %v710 = vcvt.s32.f32 %v678
      %v711 = vcvt.s32.f32 %v679
      %v712 = vpack.c.bf16 %v681, %v680
      %v713 = vpack.c.bf16 %v683, %v682
      %v714 = vpack.c.bf16 %v685, %v684
      %v715 = vpack.c.bf16 %v687, %v686
      %v716 = vpack.c.bf16 %v689, %v688
      %v717 = vpack.c.bf16 %v691, %v690
      %v718 = vpack.c.bf16 %v693, %v692
      %v719 = vpack.c.bf16 %v695, %v694
      %v720 = vpack.c.bf16 %v697, %v696
      %v721 = vpack.c.bf16 %v699, %v698
      %v722 = vpack.c.bf16 %v701, %v700
      %v723 = vpack.c.bf16 %v703, %v702
      %v724 = vpack.c.bf16 %v705, %v704
      %v725 = vpack.c.bf16 %v707, %v706
      %v726 = vpack.c.bf16 %v709, %v708
      %v727 = vpack.c.bf16 %v711, %v710
      %vm728 = vcmp.ne.s32.totalorder %v584, 0
      %vm729 = vcmp.ne.s32.totalorder %v585, 0
      %vm730 = vcmp.ne.s32.totalorder %v586, 0
      %vm731 = vcmp.ne.s32.totalorder %v587, 0
      %vm732 = vcmp.ne.s32.totalorder %v588, 0
      %vm733 = vcmp.ne.s32.totalorder %v589, 0
      %vm734 = vcmp.ne.s32.totalorder %v590, 0
      %vm735 = vcmp.ne.s32.totalorder %v591, 0
      %vm736 = vcmp.ne.s32.totalorder %v592, 0
      %vm737 = vcmp.ne.s32.totalorder %v593, 0
      %vm738 = vcmp.ne.s32.totalorder %v594, 0
      %vm739 = vcmp.ne.s32.totalorder %v595, 0
      %vm740 = vcmp.ne.s32.totalorder %v596, 0
      %vm741 = vcmp.ne.s32.totalorder %v597, 0
      %vm742 = vcmp.ne.s32.totalorder %v598, 0
      %vm743 = vcmp.ne.s32.totalorder %v599, 0
      %vm744 = vcmp.ne.s32.totalorder %v600, 0
      %vm745 = vcmp.ne.s32.totalorder %v601, 0
      %vm746 = vcmp.ne.s32.totalorder %v602, 0
      %vm747 = vcmp.ne.s32.totalorder %v603, 0
      %vm748 = vcmp.ne.s32.totalorder %v604, 0
      %vm749 = vcmp.ne.s32.totalorder %v605, 0
      %vm750 = vcmp.ne.s32.totalorder %v606, 0
      %vm751 = vcmp.ne.s32.totalorder %v607, 0
      %vm752 = vcmp.ne.s32.totalorder %v608, 0
      %vm753 = vcmp.ne.s32.totalorder %v609, 0
      %vm754 = vcmp.ne.s32.totalorder %v610, 0
      %vm755 = vcmp.ne.s32.totalorder %v611, 0
      %vm756 = vcmp.ne.s32.totalorder %v612, 0
      %vm757 = vcmp.ne.s32.totalorder %v613, 0
      %vm758 = vcmp.ne.s32.totalorder %v614, 0
      %vm759 = vcmp.ne.s32.totalorder %v615, 0
      %v760 = vsel %vm728, 1, 0
      %v761 = vsel %vm729, 1, 0
      %v762 = vsel %vm730, 1, 0
      %v763 = vsel %vm731, 1, 0
      %v764 = vsel %vm732, 1, 0
      %v765 = vsel %vm733, 1, 0
      %v766 = vsel %vm734, 1, 0
      %v767 = vsel %vm735, 1, 0
      %v768 = vsel %vm736, 1, 0
      %v769 = vsel %vm737, 1, 0
      %v770 = vsel %vm738, 1, 0
      %v771 = vsel %vm739, 1, 0
      %v772 = vsel %vm740, 1, 0
      %v773 = vsel %vm741, 1, 0
      %v774 = vsel %vm742, 1, 0
      %v775 = vsel %vm743, 1, 0
      %v776 = vsel %vm744, 1, 0
      %v777 = vsel %vm745, 1, 0
      %v778 = vsel %vm746, 1, 0
      %v779 = vsel %vm747, 1, 0
      %v780 = vsel %vm748, 1, 0
      %v781 = vsel %vm749, 1, 0
      %v782 = vsel %vm750, 1, 0
      %v783 = vsel %vm751, 1, 0
      %v784 = vsel %vm752, 1, 0
      %v785 = vsel %vm753, 1, 0
      %v786 = vsel %vm754, 1, 0
      %v787 = vsel %vm755, 1, 0
      %v788 = vsel %vm756, 1, 0
      %v789 = vsel %vm757, 1, 0
      %v790 = vsel %vm758, 1, 0
      %v791 = vsel %vm759, 1, 0
      %v792 = vcvt.s32.f32 %v760
      %v793 = vcvt.s32.f32 %v761
      %v794 = vcvt.s32.f32 %v762
      %v795 = vcvt.s32.f32 %v763
      %v796 = vcvt.s32.f32 %v764
      %v797 = vcvt.s32.f32 %v765
      %v798 = vcvt.s32.f32 %v766
      %v799 = vcvt.s32.f32 %v767
      %v800 = vcvt.s32.f32 %v768
      %v801 = vcvt.s32.f32 %v769
      %v802 = vcvt.s32.f32 %v770
      %v803 = vcvt.s32.f32 %v771
      %v804 = vcvt.s32.f32 %v772
      %v805 = vcvt.s32.f32 %v773
      %v806 = vcvt.s32.f32 %v774
      %v807 = vcvt.s32.f32 %v775
      %v808 = vcvt.s32.f32 %v776
      %v809 = vcvt.s32.f32 %v777
      %v810 = vcvt.s32.f32 %v778
      %v811 = vcvt.s32.f32 %v779
      %v812 = vcvt.s32.f32 %v780
      %v813 = vcvt.s32.f32 %v781
      %v814 = vcvt.s32.f32 %v782
      %v815 = vcvt.s32.f32 %v783
      %v816 = vcvt.s32.f32 %v784
      %v817 = vcvt.s32.f32 %v785
      %v818 = vcvt.s32.f32 %v786
      %v819 = vcvt.s32.f32 %v787
      %v820 = vcvt.s32.f32 %v788
      %v821 = vcvt.s32.f32 %v789
      %v822 = vcvt.s32.f32 %v790
      %v823 = vcvt.s32.f32 %v791
      %v824 = vpack.c.bf16 %v793, %v792
      %v825 = vpack.c.bf16 %v795, %v794
      %v826 = vpack.c.bf16 %v797, %v796
      %v827 = vpack.c.bf16 %v799, %v798
      %v828 = vpack.c.bf16 %v801, %v800
      %v829 = vpack.c.bf16 %v803, %v802
      %v830 = vpack.c.bf16 %v805, %v804
      %v831 = vpack.c.bf16 %v807, %v806
      %v832 = vpack.c.bf16 %v809, %v808
      %v833 = vpack.c.bf16 %v811, %v810
      %v834 = vpack.c.bf16 %v813, %v812
      %v835 = vpack.c.bf16 %v815, %v814
      %v836 = vpack.c.bf16 %v817, %v816
      %v837 = vpack.c.bf16 %v819, %v818
      %v838 = vpack.c.bf16 %v821, %v820
      %v839 = vpack.c.bf16 %v823, %v822
      %v840 = vld [vmem:[%s192] sm:$0xff]
      %v841 = vld [vmem:[%s192 + $0x8] sm:$0xff]
      %v842 = vld [vmem:[%s192 + $0x10] sm:$0xff]
      %v843 = vld [vmem:[%s192 + $0x18] sm:$0xff]
      %v844 = vld [vmem:[%s192 + $0x20] sm:$0xff]
      %v845 = vld [vmem:[%s192 + $0x28] sm:$0xff]
      %v846 = vld [vmem:[%s192 + $0x30] sm:$0xff]
      %v847 = vld [vmem:[%s192 + $0x38] sm:$0xff]
      %v848 = vld [vmem:[%s192 + $0x40] sm:$0xff]
      %v849 = vld [vmem:[%s192 + $0x48] sm:$0xff]
      %v850 = vld [vmem:[%s192 + $0x50] sm:$0xff]
      %v851 = vld [vmem:[%s192 + $0x58] sm:$0xff]
      %v852 = vld [vmem:[%s192 + $0x60] sm:$0xff]
      %v853 = vld [vmem:[%s192 + $0x68] sm:$0xff]
      %v854 = vld [vmem:[%s192 + $0x70] sm:$0xff]
      %v855 = vld [vmem:[%s192 + $0x78] sm:$0xff]
      %v856 = vld [vmem:[%s192 + $0x80] sm:$0xff]
      %v857 = vld [vmem:[%s192 + $0x88] sm:$0xff]
      %v858 = vld [vmem:[%s192 + $0x90] sm:$0xff]
      %v859 = vld [vmem:[%s192 + $0x98] sm:$0xff]
      %v860 = vld [vmem:[%s192 + $0xa0] sm:$0xff]
      %v861 = vld [vmem:[%s192 + $0xa8] sm:$0xff]
      %v862 = vld [vmem:[%s192 + $0xb0] sm:$0xff]
      %v863 = vld [vmem:[%s192 + $0xb8] sm:$0xff]
      %v864 = vld [vmem:[%s192 + $0xc0] sm:$0xff]
      %v865 = vld [vmem:[%s192 + $0xc8] sm:$0xff]
      %v866 = vld [vmem:[%s192 + $0xd0] sm:$0xff]
      %v867 = vld [vmem:[%s192 + $0xd8] sm:$0xff]
      %v868 = vld [vmem:[%s192 + $0xe0] sm:$0xff]
      %v869 = vld [vmem:[%s192 + $0xe8] sm:$0xff]
      %v870 = vld [vmem:[%s192 + $0xf0] sm:$0xff]
      %v871 = vld [vmem:[%s192 + $0xf8] sm:$0xff]
      %v872 = vld [vmem:[%s3] sm:$0xf]
      %v873 = vld [vmem:[%s1] sm:$0xf]
      %v874 = vld [vmem:[%s1 + $0x4] sm:$0xf]
      %v875 = vld [vmem:[%s1 + $0x8] sm:$0xf]
      %v876 = vld [vmem:[%s1 + $0xc] sm:$0xf]
      %v877 = vld [vmem:[%s1 + $0x10] sm:$0xf]
      %v878 = vld [vmem:[%s1 + $0x14] sm:$0xf]
      %v879 = vld [vmem:[%s1 + $0x18] sm:$0xf]
      %v880 = vld [vmem:[%s1 + $0x1c] sm:$0xf]
      %v881 = vld [vmem:[%s1 + $0x20] sm:$0xf]
      %v882 = vld [vmem:[%s1 + $0x24] sm:$0xf]
      %v883 = vld [vmem:[%s1 + $0x28] sm:$0xf]
      %v884 = vld [vmem:[%s1 + $0x2c] sm:$0xf]
      %v885 = vld [vmem:[%s1 + $0x30] sm:$0xf]
      %v886 = vld [vmem:[%s1 + $0x34] sm:$0xf]
      %v887 = vld [vmem:[%s1 + $0x38] sm:$0xf]
      %v888 = vld [vmem:[%s1 + $0x3c] sm:$0xf]
      %v889 = vld [vmem:[%s1 + $0x40] sm:$0xf]
      %v890 = vld [vmem:[%s1 + $0x44] sm:$0xf]
      %v891 = vld [vmem:[%s1 + $0x48] sm:$0xf]
      %v892 = vld [vmem:[%s1 + $0x4c] sm:$0xf]
      %v893 = vld [vmem:[%s1 + $0x50] sm:$0xf]
      %v894 = vld [vmem:[%s1 + $0x54] sm:$0xf]
      %v895 = vld [vmem:[%s1 + $0x58] sm:$0xf]
      %v896 = vld [vmem:[%s1 + $0x5c] sm:$0xf]
      %v897 = vld [vmem:[%s1 + $0x60] sm:$0xf]
      %v898 = vld [vmem:[%s1 + $0x64] sm:$0xf]
      %v899 = vld [vmem:[%s1 + $0x68] sm:$0xf]
      %v900 = vld [vmem:[%s1 + $0x6c] sm:$0xf]
      %v901 = vld [vmem:[%s1 + $0x70] sm:$0xf]
      %v902 = vld [vmem:[%s1 + $0x74] sm:$0xf]
      %v903 = vld [vmem:[%s1 + $0x78] sm:$0xf]
      %v904 = vld [vmem:[%s1 + $0x7c] sm:$0xf]
      %v905 = vld [vmem:[%s1 + $0x80] sm:$0xf]
      %v906 = vld [vmem:[%s1 + $0x84] sm:$0xf]
      %v907 = vld [vmem:[%s1 + $0x88] sm:$0xf]
      %v908 = vld [vmem:[%s1 + $0x8c] sm:$0xf]
      %v909 = vld [vmem:[%s1 + $0x90] sm:$0xf]
      %v910 = vld [vmem:[%s1 + $0x94] sm:$0xf]
      %v911 = vld [vmem:[%s1 + $0x98] sm:$0xf]
      %v912 = vld [vmem:[%s1 + $0x9c] sm:$0xf]
      %v913 = vld [vmem:[%s1 + $0xa0] sm:$0xf]
      %v914 = vld [vmem:[%s1 + $0xa4] sm:$0xf]
      %v915 = vld [vmem:[%s1 + $0xa8] sm:$0xf]
      %v916 = vld [vmem:[%s1 + $0xac] sm:$0xf]
      %v917 = vld [vmem:[%s1 + $0xb0] sm:$0xf]
      %v918 = vld [vmem:[%s1 + $0xb4] sm:$0xf]
      %v919 = vld [vmem:[%s1 + $0xb8] sm:$0xf]
      %v920 = vld [vmem:[%s1 + $0xbc] sm:$0xf]
      %v921 = vld [vmem:[%s1 + $0xc0] sm:$0xf]
      %v922 = vld [vmem:[%s1 + $0xc4] sm:$0xf]
      %v923 = vld [vmem:[%s1 + $0xc8] sm:$0xf]
      %v924 = vld [vmem:[%s1 + $0xcc] sm:$0xf]
      %v925 = vld [vmem:[%s1 + $0xd0] sm:$0xf]
      %v926 = vld [vmem:[%s1 + $0xd4] sm:$0xf]
      %v927 = vld [vmem:[%s1 + $0xd8] sm:$0xf]
      %v928 = vld [vmem:[%s1 + $0xdc] sm:$0xf]
      %v929 = vld [vmem:[%s1 + $0xe0] sm:$0xf]
      %v930 = vld [vmem:[%s1 + $0xe4] sm:$0xf]
      %v931 = vld [vmem:[%s1 + $0xe8] sm:$0xf]
      %v932 = vld [vmem:[%s1 + $0xec] sm:$0xf]
      %v933 = vld [vmem:[%s1 + $0xf0] sm:$0xf]
      %v934 = vld [vmem:[%s1 + $0xf4] sm:$0xf]
      %v935 = vld [vmem:[%s1 + $0xf8] sm:$0xf]
      %v936 = vld [vmem:[%s1 + $0xfc] sm:$0xf]
      %v937 = vld [vmem:[%s1 + $0x100] sm:$0xf]
      %v938 = vld [vmem:[%s1 + $0x104] sm:$0xf]
      %v939 = vld [vmem:[%s1 + $0x108] sm:$0xf]
      %v940 = vld [vmem:[%s1 + $0x10c] sm:$0xf]
      %v941 = vld [vmem:[%s1 + $0x110] sm:$0xf]
      %v942 = vld [vmem:[%s1 + $0x114] sm:$0xf]
      %v943 = vld [vmem:[%s1 + $0x118] sm:$0xf]
      %v944 = vld [vmem:[%s1 + $0x11c] sm:$0xf]
      %v945 = vld [vmem:[%s1 + $0x120] sm:$0xf]
      %v946 = vld [vmem:[%s1 + $0x124] sm:$0xf]
      %v947 = vld [vmem:[%s1 + $0x128] sm:$0xf]
      %v948 = vld [vmem:[%s1 + $0x12c] sm:$0xf]
      %v949 = vld [vmem:[%s1 + $0x130] sm:$0xf]
      %v950 = vld [vmem:[%s1 + $0x134] sm:$0xf]
      %v951 = vld [vmem:[%s1 + $0x138] sm:$0xf]
      %v952 = vld [vmem:[%s1 + $0x13c] sm:$0xf]
      %v953 = vld [vmem:[%s1 + $0x140] sm:$0xf]
      %v954 = vld [vmem:[%s1 + $0x144] sm:$0xf]
      %v955 = vld [vmem:[%s1 + $0x148] sm:$0xf]
      %v956 = vld [vmem:[%s1 + $0x14c] sm:$0xf]
      %v957 = vld [vmem:[%s1 + $0x150] sm:$0xf]
      %v958 = vld [vmem:[%s1 + $0x154] sm:$0xf]
      %v959 = vld [vmem:[%s1 + $0x158] sm:$0xf]
      %v960 = vld [vmem:[%s1 + $0x15c] sm:$0xf]
      %v961 = vld [vmem:[%s1 + $0x160] sm:$0xf]
      %v962 = vld [vmem:[%s1 + $0x164] sm:$0xf]
      %v963 = vld [vmem:[%s1 + $0x168] sm:$0xf]
      %v964 = vld [vmem:[%s1 + $0x16c] sm:$0xf]
      %v965 = vld [vmem:[%s1 + $0x170] sm:$0xf]
      %v966 = vld [vmem:[%s1 + $0x174] sm:$0xf]
      %v967 = vld [vmem:[%s1 + $0x178] sm:$0xf]
      %v968 = vld [vmem:[%s1 + $0x17c] sm:$0xf]
      %v969 = vld [vmem:[%s1 + $0x180] sm:$0xf]
      %v970 = vld [vmem:[%s1 + $0x184] sm:$0xf]
      %v971 = vld [vmem:[%s1 + $0x188] sm:$0xf]
      %v972 = vld [vmem:[%s1 + $0x18c] sm:$0xf]
      %v973 = vld [vmem:[%s1 + $0x190] sm:$0xf]
      %v974 = vld [vmem:[%s1 + $0x194] sm:$0xf]
      %v975 = vld [vmem:[%s1 + $0x198] sm:$0xf]
      %v976 = vld [vmem:[%s1 + $0x19c] sm:$0xf]
      %v977 = vld [vmem:[%s1 + $0x1a0] sm:$0xf]
      %v978 = vld [vmem:[%s1 + $0x1a4] sm:$0xf]
      %v979 = vld [vmem:[%s1 + $0x1a8] sm:$0xf]
      %v980 = vld [vmem:[%s1 + $0x1ac] sm:$0xf]
      %v981 = vld [vmem:[%s1 + $0x1b0] sm:$0xf]
      %v982 = vld [vmem:[%s1 + $0x1b4] sm:$0xf]
      %v983 = vld [vmem:[%s1 + $0x1b8] sm:$0xf]
      %v984 = vld [vmem:[%s1 + $0x1bc] sm:$0xf]
      %v985 = vld [vmem:[%s1 + $0x1c0] sm:$0xf]
      %v986 = vld [vmem:[%s1 + $0x1c4] sm:$0xf]
      %v987 = vld [vmem:[%s1 + $0x1c8] sm:$0xf]
      %v988 = vld [vmem:[%s1 + $0x1cc] sm:$0xf]
      %v989 = vld [vmem:[%s1 + $0x1d0] sm:$0xf]
      %v990 = vld [vmem:[%s1 + $0x1d4] sm:$0xf]
      %v991 = vld [vmem:[%s1 + $0x1d8] sm:$0xf]
      %v992 = vld [vmem:[%s1 + $0x1dc] sm:$0xf]
      %v993 = vld [vmem:[%s1 + $0x1e0] sm:$0xf]
      %v994 = vld [vmem:[%s1 + $0x1e4] sm:$0xf]
      %v995 = vld [vmem:[%s1 + $0x1e8] sm:$0xf]
      %v996 = vld [vmem:[%s1 + $0x1ec] sm:$0xf]
      %v997 = vld [vmem:[%s1 + $0x1f0] sm:$0xf]
      %v998 = vld [vmem:[%s1 + $0x1f4] sm:$0xf]
      %v999 = vld [vmem:[%s1 + $0x1f8] sm:$0xf]
      %v1000 = vld [vmem:[%s1 + $0x1fc] sm:$0xf]
      %v1001 = vld [vmem:[%s1 + $0x200] sm:$0xf]
      %v1002 = vld [vmem:[%s1 + $0x204] sm:$0xf]
      %v1003 = vld [vmem:[%s1 + $0x208] sm:$0xf]
      %v1004 = vld [vmem:[%s1 + $0x20c] sm:$0xf]
      %v1005 = vld [vmem:[%s1 + $0x210] sm:$0xf]
      %v1006 = vld [vmem:[%s1 + $0x214] sm:$0xf]
      %v1007 = vld [vmem:[%s1 + $0x218] sm:$0xf]
      %v1008 = vld [vmem:[%s1 + $0x21c] sm:$0xf]
      %v1009 = vld [vmem:[%s1 + $0x220] sm:$0xf]
      %v1010 = vld [vmem:[%s1 + $0x224] sm:$0xf]
      %v1011 = vld [vmem:[%s1 + $0x228] sm:$0xf]
      %v1012 = vld [vmem:[%s1 + $0x22c] sm:$0xf]
      %v1013 = vld [vmem:[%s1 + $0x230] sm:$0xf]
      %v1014 = vld [vmem:[%s1 + $0x234] sm:$0xf]
      %v1015 = vld [vmem:[%s1 + $0x238] sm:$0xf]
      %v1016 = vld [vmem:[%s1 + $0x23c] sm:$0xf]
      %v1017 = vpack.c.bf16 %v841, %v840
      %v1018 = vpack.c.bf16 %v843, %v842
      %v1019 = vpack.c.bf16 %v845, %v844
      %v1020 = vpack.c.bf16 %v847, %v846
      %v1021 = vpack.c.bf16 %v849, %v848
      %v1022 = vpack.c.bf16 %v851, %v850
      %v1023 = vpack.c.bf16 %v853, %v852
      %v1024 = vpack.c.bf16 %v855, %v854
      %v1025 = vpack.c.bf16 %v857, %v856
      %v1026 = vpack.c.bf16 %v859, %v858
      %v1027 = vpack.c.bf16 %v861, %v860
      %v1028 = vpack.c.bf16 %v863, %v862
      %v1029 = vpack.c.bf16 %v865, %v864
      %v1030 = vpack.c.bf16 %v867, %v866
      %v1031 = vpack.c.bf16 %v869, %v868
      %v1032 = vpack.c.bf16 %v871, %v870
      %v1033 = vmul.bf16 %v1017, %v712
      %v1034 = vmul.bf16 %v1018, %v713
      %v1035 = vmul.bf16 %v1019, %v714
      %v1036 = vmul.bf16 %v1020, %v715
      %v1037 = vmul.bf16 %v1021, %v716
      %v1038 = vmul.bf16 %v1022, %v717
      %v1039 = vmul.bf16 %v1023, %v718
      %v1040 = vmul.bf16 %v1024, %v719
      %v1041 = vmul.bf16 %v1025, %v720
      %v1042 = vmul.bf16 %v1026, %v721
      %v1043 = vmul.bf16 %v1027, %v722
      %v1044 = vmul.bf16 %v1028, %v723
      %v1045 = vmul.bf16 %v1029, %v724
      %v1046 = vmul.bf16 %v1030, %v725
      %v1047 = vmul.bf16 %v1031, %v726
      %v1048 = vmul.bf16 %v1032, %v727
      %v1049 = vmul.bf16 %v1017, %v824
      %v1050 = vmul.bf16 %v1018, %v825
      %v1051 = vmul.bf16 %v1019, %v826
      %v1052 = vmul.bf16 %v1020, %v827
      %v1053 = vmul.bf16 %v1021, %v828
      %v1054 = vmul.bf16 %v1022, %v829
      %v1055 = vmul.bf16 %v1023, %v830
      %v1056 = vmul.bf16 %v1024, %v831
      %v1057 = vmul.bf16 %v1025, %v832
      %v1058 = vmul.bf16 %v1026, %v833
      %v1059 = vmul.bf16 %v1027, %v834
      %v1060 = vmul.bf16 %v1028, %v835
      %v1061 = vmul.bf16 %v1029, %v836
      %v1062 = vmul.bf16 %v1030, %v837
      %v1063 = vmul.bf16 %v1031, %v838
      %v1064 = vmul.bf16 %v1032, %v839
      %vm1065 = vsmask.f32 256
      %v1067 = vshrl.u32 %v1033, 16
      %v1069 = vrot.slane %v1067, 7
      %v1070 = vshll.u32 %v1033, 16
      %v1072 = vor.u32 %v1069, %v1070
      %v1074 = vshrl.u32 %v1034, 16
      %v1076 = vrot.slane %v1074, 7
      %v1077 = vshll.u32 %v1034, 16
      %v1079 = vor.u32 %v1076, %v1077
      %v1080 = vsel %vm1065, %v1069, %v1079
      %v1082 = vshrl.u32 %v1035, 16
      %v1084 = vrot.slane %v1082, 7
      %v1085 = vshll.u32 %v1035, 16
      %v1087 = vor.u32 %v1084, %v1085
      %v1088 = vsel %vm1065, %v1076, %v1087
      %v1090 = vshrl.u32 %v1036, 16
      %v1092 = vrot.slane %v1090, 7
      %v1093 = vshll.u32 %v1036, 16
      %v1095 = vor.u32 %v1092, %v1093
      %v1096 = vsel %vm1065, %v1084, %v1095
      %v1098 = vshrl.u32 %v1037, 16
      %v1100 = vrot.slane %v1098, 7
      %v1101 = vshll.u32 %v1037, 16
      %v1103 = vor.u32 %v1100, %v1101
      %v1104 = vsel %vm1065, %v1092, %v1103
      %v1106 = vshrl.u32 %v1038, 16
      %v1108 = vrot.slane %v1106, 7
      %v1109 = vshll.u32 %v1038, 16
      %v1111 = vor.u32 %v1108, %v1109
      %v1112 = vsel %vm1065, %v1100, %v1111
      %v1114 = vshrl.u32 %v1039, 16
      %v1116 = vrot.slane %v1114, 7
      %v1117 = vshll.u32 %v1039, 16
      %v1119 = vor.u32 %v1116, %v1117
      %v1120 = vsel %vm1065, %v1108, %v1119
      %v1122 = vshrl.u32 %v1040, 16
      %v1124 = vrot.slane %v1122, 7
      %v1125 = vshll.u32 %v1040, 16
      %v1127 = vor.u32 %v1124, %v1125
      %v1128 = vsel %vm1065, %v1116, %v1127
      %v1130 = vshrl.u32 %v1041, 16
      %v1132 = vrot.slane %v1130, 7
      %v1133 = vshll.u32 %v1041, 16
      %v1135 = vor.u32 %v1132, %v1133
      %v1136 = vsel %vm1065, %v1124, %v1135
      %v1138 = vshrl.u32 %v1042, 16
      %v1140 = vrot.slane %v1138, 7
      %v1141 = vshll.u32 %v1042, 16
      %v1143 = vor.u32 %v1140, %v1141
      %v1144 = vsel %vm1065, %v1132, %v1143
      %v1146 = vshrl.u32 %v1043, 16
      %v1148 = vrot.slane %v1146, 7
      %v1149 = vshll.u32 %v1043, 16
      %v1151 = vor.u32 %v1148, %v1149
      %v1152 = vsel %vm1065, %v1140, %v1151
      %v1154 = vshrl.u32 %v1044, 16
      %v1156 = vrot.slane %v1154, 7
      %v1157 = vshll.u32 %v1044, 16
      %v1159 = vor.u32 %v1156, %v1157
      %v1160 = vsel %vm1065, %v1148, %v1159
      %v1162 = vshrl.u32 %v1045, 16
      %v1164 = vrot.slane %v1162, 7
      %v1165 = vshll.u32 %v1045, 16
      %v1167 = vor.u32 %v1164, %v1165
      %v1168 = vsel %vm1065, %v1156, %v1167
      %v1170 = vshrl.u32 %v1046, 16
      %v1172 = vrot.slane %v1170, 7
      %v1173 = vshll.u32 %v1046, 16
      %v1175 = vor.u32 %v1172, %v1173
      %v1176 = vsel %vm1065, %v1164, %v1175
      %v1178 = vshrl.u32 %v1047, 16
      %v1180 = vrot.slane %v1178, 7
      %v1181 = vshll.u32 %v1047, 16
      %v1183 = vor.u32 %v1180, %v1181
      %v1184 = vsel %vm1065, %v1172, %v1183
      %vm1200 = vcmask 1040384
      %vm1201 = vmand %vm1200, %vm1065
      %v1202 = vsel %vm1201, 0, %v1072
      %vm1203 = vsmask.f32 7424
      %v1205 = vshll.u32 %v1049, 16
      %v1207 = vrot.slane %v1205, 1
      %v1208 = vshrl.u32 %v1049, 16
      %v1210 = vor.u32 %v1208, %v1207
      %v1212 = vshll.u32 %v1050, 16
      %v1214 = vrot.slane %v1212, 1
      %v1215 = vsel %vm1203, %v1210, %v1214
      %v1216 = vshrl.u32 %v1050, 16
      %v1218 = vor.u32 %v1216, %v1214
      %v1220 = vshll.u32 %v1051, 16
      %v1222 = vrot.slane %v1220, 1
      %v1223 = vsel %vm1203, %v1218, %v1222
      %v1224 = vshrl.u32 %v1051, 16
      %v1226 = vor.u32 %v1224, %v1222
      %v1228 = vshll.u32 %v1052, 16
      %v1230 = vrot.slane %v1228, 1
      %v1231 = vsel %vm1203, %v1226, %v1230
      %v1232 = vshrl.u32 %v1052, 16
      %v1234 = vor.u32 %v1232, %v1230
      %v1236 = vshll.u32 %v1053, 16
      %v1238 = vrot.slane %v1236, 1
      %v1239 = vsel %vm1203, %v1234, %v1238
      %v1240 = vshrl.u32 %v1053, 16
      %v1242 = vor.u32 %v1240, %v1238
      %v1244 = vshll.u32 %v1054, 16
      %v1246 = vrot.slane %v1244, 1
      %v1247 = vsel %vm1203, %v1242, %v1246
      %v1248 = vshrl.u32 %v1054, 16
      %v1250 = vor.u32 %v1248, %v1246
      %v1252 = vshll.u32 %v1055, 16
      %v1254 = vrot.slane %v1252, 1
      %v1255 = vsel %vm1203, %v1250, %v1254
      %v1256 = vshrl.u32 %v1055, 16
      %v1258 = vor.u32 %v1256, %v1254
      %v1260 = vshll.u32 %v1056, 16
      %v1262 = vrot.slane %v1260, 1
      %v1263 = vsel %vm1203, %v1258, %v1262
      %v1264 = vshrl.u32 %v1056, 16
      %v1266 = vor.u32 %v1264, %v1262
      %v1268 = vshll.u32 %v1057, 16
      %v1270 = vrot.slane %v1268, 1
      %v1271 = vsel %vm1203, %v1266, %v1270
      %v1272 = vshrl.u32 %v1057, 16
      %v1274 = vor.u32 %v1272, %v1270
      %v1276 = vshll.u32 %v1058, 16
      %v1278 = vrot.slane %v1276, 1
      %v1279 = vsel %vm1203, %v1274, %v1278
      %v1280 = vshrl.u32 %v1058, 16
      %v1282 = vor.u32 %v1280, %v1278
      %v1284 = vshll.u32 %v1059, 16
      %v1286 = vrot.slane %v1284, 1
      %v1287 = vsel %vm1203, %v1282, %v1286
      %v1288 = vshrl.u32 %v1059, 16
      %v1290 = vor.u32 %v1288, %v1286
      %v1292 = vshll.u32 %v1060, 16
      %v1294 = vrot.slane %v1292, 1
      %v1295 = vsel %vm1203, %v1290, %v1294
      %v1296 = vshrl.u32 %v1060, 16
      %v1298 = vor.u32 %v1296, %v1294
      %v1300 = vshll.u32 %v1061, 16
      %v1302 = vrot.slane %v1300, 1
      %v1303 = vsel %vm1203, %v1298, %v1302
      %v1304 = vshrl.u32 %v1061, 16
      %v1306 = vor.u32 %v1304, %v1302
      %v1308 = vshll.u32 %v1062, 16
      %v1310 = vrot.slane %v1308, 1
      %v1311 = vsel %vm1203, %v1306, %v1310
      %v1312 = vshrl.u32 %v1062, 16
      %v1314 = vor.u32 %v1312, %v1310
      %v1316 = vshll.u32 %v1063, 16
      %v1318 = vrot.slane %v1316, 1
      %v1319 = vsel %vm1203, %v1314, %v1318
      %v1320 = vshrl.u32 %v1063, 16
      %v1322 = vor.u32 %v1320, %v1318
      %v1324 = vshll.u32 %v1064, 16
      %v1326 = vrot.slane %v1324, 1
      %v1327 = vsel %vm1203, %v1322, %v1326
      %vm1344 = vcmask 1047552
      %vm1345 = vmand %vm1344, %vm1203
      %v1346 = vsel %vm1345, 0, %v1207
      %v1348 = vshrl.u32 %v1048, 16
      %v1350 = vrot.slane %v1348, 7
      %v1351 = vshll.u32 %v1048, 16
      %v1353 = vor.u32 %v1350, %v1351
      %v1354 = vsel %vm1065, %v1180, %v1353
      %v1356 = vshrl.u32 %v1064, 16
      %v1358 = vor.u32 %v1356, %v1326
      %v1360 = vsel %vm1345, %v1358, 0
      %v1362 = vsel %vm1201, %v1350, 0
      %v1507 = vunpack.c.l.b16 %v873
      %v1508 = vunpack.c.l.b16 %v874
      %v1509 = vunpack.c.l.b16 %v875
      %v1510 = vunpack.c.l.b16 %v876
      %v1511 = vunpack.c.l.b16 %v877
      %v1512 = vunpack.c.l.b16 %v878
      %v1513 = vunpack.c.l.b16 %v879
      %v1514 = vunpack.c.l.b16 %v880
      %v1515 = vunpack.c.l.b16 %v881
      %v1516 = vunpack.c.l.b16 %v882
      %v1517 = vunpack.c.l.b16 %v883
      %v1518 = vunpack.c.l.b16 %v884
      %v1519 = vunpack.c.l.b16 %v885
      %v1520 = vunpack.c.l.b16 %v886
      %v1521 = vunpack.c.l.b16 %v887
      %v1522 = vunpack.c.l.b16 %v888
      %v1523 = vunpack.c.l.b16 %v889
      %v1524 = vunpack.c.l.b16 %v890
      %v1525 = vunpack.c.l.b16 %v891
      %v1526 = vunpack.c.l.b16 %v892
      %v1527 = vunpack.c.l.b16 %v893
      %v1528 = vunpack.c.l.b16 %v894
      %v1529 = vunpack.c.l.b16 %v895
      %v1530 = vunpack.c.l.b16 %v896
      %v1531 = vunpack.c.l.b16 %v897
      %v1532 = vunpack.c.l.b16 %v898
      %v1533 = vunpack.c.l.b16 %v899
      %v1534 = vunpack.c.l.b16 %v900
      %v1535 = vunpack.c.l.b16 %v901
      %v1536 = vunpack.c.l.b16 %v902
      %v1537 = vunpack.c.l.b16 %v903
      %v1538 = vunpack.c.l.b16 %v904
      %v1539 = vunpack.c.l.b16 %v905
      %v1540 = vunpack.c.l.b16 %v906
      %v1541 = vunpack.c.l.b16 %v907
      %v1542 = vunpack.c.l.b16 %v908
      %v1543 = vunpack.c.l.b16 %v909
      %v1544 = vunpack.c.l.b16 %v910
      %v1545 = vunpack.c.l.b16 %v911
      %v1546 = vunpack.c.l.b16 %v912
      %v1547 = vunpack.c.l.b16 %v913
      %v1548 = vunpack.c.l.b16 %v914
      %v1549 = vunpack.c.l.b16 %v915
      %v1550 = vunpack.c.l.b16 %v916
      %v1551 = vunpack.c.l.b16 %v917
      %v1552 = vunpack.c.l.b16 %v918
      %v1553 = vunpack.c.l.b16 %v919
      %v1554 = vunpack.c.l.b16 %v920
      %v1555 = vunpack.c.l.b16 %v921
      %v1556 = vunpack.c.l.b16 %v922
      %v1557 = vunpack.c.l.b16 %v923
      %v1558 = vunpack.c.l.b16 %v924
      %v1559 = vunpack.c.l.b16 %v925
      %v1560 = vunpack.c.l.b16 %v926
      %v1561 = vunpack.c.l.b16 %v927
      %v1562 = vunpack.c.l.b16 %v928
      %v1563 = vunpack.c.l.b16 %v929
      %v1564 = vunpack.c.l.b16 %v930
      %v1565 = vunpack.c.l.b16 %v931
      %v1566 = vunpack.c.l.b16 %v932
      %v1567 = vunpack.c.l.b16 %v933
      %v1568 = vunpack.c.l.b16 %v934
      %v1569 = vunpack.c.l.b16 %v935
      %v1570 = vunpack.c.l.b16 %v936
      %v1571 = vunpack.c.l.b16 %v937
      %v1572 = vunpack.c.l.b16 %v938
      %v1573 = vunpack.c.l.b16 %v939
      %v1574 = vunpack.c.l.b16 %v940
      %v1575 = vunpack.c.l.b16 %v941
      %v1576 = vunpack.c.l.b16 %v942
      %v1577 = vunpack.c.l.b16 %v943
      %v1578 = vunpack.c.l.b16 %v944
      %v1579 = vunpack.c.l.b16 %v945
      %v1580 = vunpack.c.l.b16 %v946
      %v1581 = vunpack.c.l.b16 %v947
      %v1582 = vunpack.c.l.b16 %v948
      %v1583 = vunpack.c.l.b16 %v949
      %v1584 = vunpack.c.l.b16 %v950
      %v1585 = vunpack.c.l.b16 %v951
      %v1586 = vunpack.c.l.b16 %v952
      %v1587 = vunpack.c.l.b16 %v953
      %v1588 = vunpack.c.l.b16 %v954
      %v1589 = vunpack.c.l.b16 %v955
      %v1590 = vunpack.c.l.b16 %v956
      %v1591 = vunpack.c.l.b16 %v957
      %v1592 = vunpack.c.l.b16 %v958
      %v1593 = vunpack.c.l.b16 %v959
      %v1594 = vunpack.c.l.b16 %v960
      %v1595 = vunpack.c.l.b16 %v961
      %v1596 = vunpack.c.l.b16 %v962
      %v1597 = vunpack.c.l.b16 %v963
      %v1598 = vunpack.c.l.b16 %v964
      %v1599 = vunpack.c.l.b16 %v965
      %v1600 = vunpack.c.l.b16 %v966
      %v1601 = vunpack.c.l.b16 %v967
      %v1602 = vunpack.c.l.b16 %v968
      %v1603 = vunpack.c.l.b16 %v969
      %v1604 = vunpack.c.l.b16 %v970
      %v1605 = vunpack.c.l.b16 %v971
      %v1606 = vunpack.c.l.b16 %v972
      %v1607 = vunpack.c.l.b16 %v973
      %v1608 = vunpack.c.l.b16 %v974
      %v1609 = vunpack.c.l.b16 %v975
      %v1610 = vunpack.c.l.b16 %v976
      %v1611 = vunpack.c.l.b16 %v977
      %v1612 = vunpack.c.l.b16 %v978
      %v1613 = vunpack.c.l.b16 %v979
      %v1614 = vunpack.c.l.b16 %v980
      %v1615 = vunpack.c.l.b16 %v981
      %v1616 = vunpack.c.l.b16 %v982
      %v1617 = vunpack.c.l.b16 %v983
      %v1618 = vunpack.c.l.b16 %v984
      %v1619 = vunpack.c.l.b16 %v985
      %v1620 = vunpack.c.l.b16 %v986
      %v1621 = vunpack.c.l.b16 %v987
      %v1622 = vunpack.c.l.b16 %v988
      %v1623 = vunpack.c.l.b16 %v989
      %v1624 = vunpack.c.l.b16 %v990
      %v1625 = vunpack.c.l.b16 %v991
      %v1626 = vunpack.c.l.b16 %v992
      %v1627 = vunpack.c.l.b16 %v993
      %v1628 = vunpack.c.l.b16 %v994
      %v1629 = vunpack.c.l.b16 %v995
      %v1630 = vunpack.c.l.b16 %v996
      %v1631 = vunpack.c.l.b16 %v997
      %v1632 = vunpack.c.l.b16 %v998
      %v1633 = vunpack.c.l.b16 %v999
      %v1634 = vunpack.c.l.b16 %v1000
      %v1635 = vunpack.c.l.b16 %v1001
      %v1636 = vunpack.c.l.b16 %v1002
      %v1637 = vunpack.c.l.b16 %v1003
      %v1638 = vunpack.c.l.b16 %v1004
      %v1639 = vunpack.c.l.b16 %v1005
      %v1640 = vunpack.c.l.b16 %v1006
      %v1641 = vunpack.c.l.b16 %v1007
      %v1642 = vunpack.c.l.b16 %v1008
      %v1643 = vunpack.c.l.b16 %v1009
      %v1644 = vunpack.c.l.b16 %v1010
      %v1645 = vunpack.c.l.b16 %v1011
      %v1646 = vunpack.c.l.b16 %v1012
      %v1647 = vunpack.c.l.b16 %v1013
      %v1648 = vunpack.c.l.b16 %v1014
      %v1649 = vunpack.c.l.b16 %v1015
      %v1650 = vunpack.c.l.b16 %v1016
      %v1651 = vpack.c.b16 %v1508, %v1507
      %v1652 = vpack.c.b16 %v1510, %v1509
      %v1653 = vpack.c.b16 %v1512, %v1511
      %v1654 = vpack.c.b16 %v1514, %v1513
      %v1655 = vpack.c.b16 %v1516, %v1515
      %v1656 = vpack.c.b16 %v1518, %v1517
      %v1657 = vpack.c.b16 %v1520, %v1519
      %v1658 = vpack.c.b16 %v1522, %v1521
      %v1659 = vpack.c.b16 %v1524, %v1523
      %v1660 = vpack.c.b16 %v1526, %v1525
      %v1661 = vpack.c.b16 %v1528, %v1527
      %v1662 = vpack.c.b16 %v1530, %v1529
      %v1663 = vpack.c.b16 %v1532, %v1531
      %v1664 = vpack.c.b16 %v1534, %v1533
      %v1665 = vpack.c.b16 %v1536, %v1535
      %v1666 = vpack.c.b16 %v1538, %v1537
      %v1667 = vpack.c.b16 %v1540, %v1539
      %v1668 = vpack.c.b16 %v1542, %v1541
      %v1669 = vpack.c.b16 %v1544, %v1543
      %v1670 = vpack.c.b16 %v1546, %v1545
      %v1671 = vpack.c.b16 %v1548, %v1547
      %v1672 = vpack.c.b16 %v1550, %v1549
      %v1673 = vpack.c.b16 %v1552, %v1551
      %v1674 = vpack.c.b16 %v1554, %v1553
      %v1675 = vpack.c.b16 %v1556, %v1555
      %v1676 = vpack.c.b16 %v1558, %v1557
      %v1677 = vpack.c.b16 %v1560, %v1559
      %v1678 = vpack.c.b16 %v1562, %v1561
      %v1679 = vpack.c.b16 %v1564, %v1563
      %v1680 = vpack.c.b16 %v1566, %v1565
      %v1681 = vpack.c.b16 %v1568, %v1567
      %v1682 = vpack.c.b16 %v1570, %v1569
      %v1683 = vpack.c.b16 %v1572, %v1571
      %v1684 = vpack.c.b16 %v1574, %v1573
      %v1685 = vpack.c.b16 %v1576, %v1575
      %v1686 = vpack.c.b16 %v1578, %v1577
      %v1687 = vpack.c.b16 %v1580, %v1579
      %v1688 = vpack.c.b16 %v1582, %v1581
      %v1689 = vpack.c.b16 %v1584, %v1583
      %v1690 = vpack.c.b16 %v1586, %v1585
      %v1691 = vpack.c.b16 %v1588, %v1587
      %v1692 = vpack.c.b16 %v1590, %v1589
      %v1693 = vpack.c.b16 %v1592, %v1591
      %v1694 = vpack.c.b16 %v1594, %v1593
      %v1695 = vpack.c.b16 %v1596, %v1595
      %v1696 = vpack.c.b16 %v1598, %v1597
      %v1697 = vpack.c.b16 %v1600, %v1599
      %v1698 = vpack.c.b16 %v1602, %v1601
      %v1699 = vpack.c.b16 %v1604, %v1603
      %v1700 = vpack.c.b16 %v1606, %v1605
      %v1701 = vpack.c.b16 %v1608, %v1607
      %v1702 = vpack.c.b16 %v1610, %v1609
      %v1703 = vpack.c.b16 %v1612, %v1611
      %v1704 = vpack.c.b16 %v1614, %v1613
      %v1705 = vpack.c.b16 %v1616, %v1615
      %v1706 = vpack.c.b16 %v1618, %v1617
      %v1707 = vpack.c.b16 %v1620, %v1619
      %v1708 = vpack.c.b16 %v1622, %v1621
      %v1709 = vpack.c.b16 %v1624, %v1623
      %v1710 = vpack.c.b16 %v1626, %v1625
      %v1711 = vpack.c.b16 %v1628, %v1627
      %v1712 = vpack.c.b16 %v1630, %v1629
      %v1713 = vpack.c.b16 %v1632, %v1631
      %v1714 = vpack.c.b16 %v1634, %v1633
      %v1715 = vpack.c.b16 %v1636, %v1635
      %v1716 = vpack.c.b16 %v1638, %v1637
      %v1717 = vpack.c.b16 %v1640, %v1639
      %v1718 = vpack.c.b16 %v1642, %v1641
      %v1719 = vpack.c.b16 %v1644, %v1643
      %v1720 = vpack.c.b16 %v1646, %v1645
      %v1721 = vpack.c.b16 %v1648, %v1647
      %v1722 = vpack.c.b16 %v1650, %v1649
      %1795 = vmatprep.subr.bf16.mxu0 0
      %1796 = vmatpush1.bf16.msra.mxu0 %v1651
      %1797 = vmatprep.subr.bf16.mxu0 0
      %1798 = vmatpush1.bf16.msra.mxu0 %v1652
      %1799 = vmatprep.subr.bf16.mxu0 0
      %1800 = vmatpush1.bf16.msra.mxu0 %v1653
      %1801 = vmatprep.subr.bf16.mxu0 0
      %1802 = vmatpush1.bf16.msra.mxu0 %v1654
      %1803 = vmatprep.subr.bf16.mxu0 0
      %1804 = vmatpush1.bf16.msra.mxu0 %v1655
      %1805 = vmatprep.subr.bf16.mxu0 0
      %1806 = vmatpush1.bf16.msra.mxu0 %v1656
      %1807 = vmatprep.subr.bf16.mxu0 0
      %1808 = vmatpush1.bf16.msra.mxu0 %v1657
      %1809 = vmatprep.subr.bf16.mxu0 0
      %1810 = vmatpush1.bf16.msra.mxu0 %v1658
      %1811 = vmatprep.subr.bf16.mxu0 0
      %1812 = vmatpush1.bf16.msra.mxu0 %v1659
      %1813 = vmatprep.subr.bf16.mxu0 0
      %1814 = vmatpush1.bf16.msra.mxu0 %v1660
      %1815 = vmatprep.subr.bf16.mxu0 0
      %1816 = vmatpush1.bf16.msra.mxu0 %v1661
      %1817 = vmatprep.subr.bf16.mxu0 0
      %1818 = vmatpush1.bf16.msra.mxu0 %v1662
      %1819 = vmatprep.subr.bf16.mxu0 0
      %1820 = vmatpush1.bf16.msra.mxu0 %v1663
      %1821 = vmatprep.subr.bf16.mxu0 0
      %1822 = vmatpush1.bf16.msra.mxu0 %v1664
      %1823 = vmatprep.subr.bf16.mxu0 0
      %1824 = vmatpush1.bf16.msra.mxu0 %v1665
      %1825 = vmatprep.subr.bf16.mxu0 0
      %1826 = vmatpush1.bf16.msra.mxu0 %v1666
      %1827 = vmatprep.mubr.bf16.mxu0 0
      %1828 = vmatmul.mubr.bf16.gmra.mrb[0].mxu0 0
      %v1829 = vpop.f32.mrb[0].mxu0
      %v1830 = vadd.f32 0.0, %v1829
      %v1831 = vpop.f32.mrb[0].mxu0
      %v1832 = vpop.f32.mrb[0].mxu0
      %v1833 = vadd.f32 0.0, %v1832
      %v1834 = vpop.f32.mrb[0].mxu0
      %1835 = vmatprep.mubr.bf16.mxu0 %v1017
      %1836 = vmatmul.mubr.bf16.gmra.mrb[0].mxu0 %v1202
      %v1837 = vpop.f32.mrb[0].mxu0
      %v1838 = vadd.f32 0.0, %v1837
      %v1839 = vpop.f32.mrb[0].mxu0
      %v1840 = vpop.f32.mrb[0].mxu0
      %v1841 = vadd.f32 0.0, %v1840
      %v1842 = vpop.f32.mrb[0].mxu0
      %1843 = vmatprep.mubr.bf16.mxu0 %v1018
      %1844 = vmatmul.mubr.bf16.gmra.mrb[0].mxu0 %v1080
      %v1845 = vpop.f32.mrb[0].mxu0
      %v1846 = vadd.f32 0.0, %v1845
      %v1847 = vpop.f32.mrb[0].mxu0
      %v1848 = vpop.f32.mrb[0].mxu0
      %v1849 = vadd.f32 0.0, %v1848
      %v1850 = vpop.f32.mrb[0].mxu0
      %1851 = vmatprep.mubr.bf16.mxu0 %v1019
      %1852 = vmatmul.mubr.bf16.gmra.mrb[0].mxu0 %v1088
      %v1853 = vpop.f32.mrb[0].mxu0
      %v1854 = vadd.f32 0.0, %v1853
      %v1855 = vpop.f32.mrb[0].mxu0
      %v1856 = vpop.f32.mrb[0].mxu0
      %v1857 = vadd.f32 0.0, %v1856
      %v1858 = vpop.f32.mrb[0].mxu0
      %1859 = vmatprep.mubr.bf16.mxu0 %v1020
      %1860 = vmatmul.mubr.bf16.gmra.mrb[0].mxu0 %v1096
      %v1861 = vpop.f32.mrb[0].mxu0
      %v1862 = vadd.f32 0.0, %v1861
      %v1863 = vpop.f32.mrb[0].mxu0
      %v1864 = vpop.f32.mrb[0].mxu0
      %v1865 = vadd.f32 0.0, %v1864
      %v1866 = vpop.f32.mrb[0].mxu0
      %1867 = vmatprep.mubr.bf16.mxu0 %v1021
      %1868 = vmatmul.mubr.bf16.gmra.mrb[0].mxu0 %v1104
      %v1869 = vpop.f32.mrb[0].mxu0
      %v1870 = vadd.f32 0.0, %v1869
      %v1871 = vpop.f32.mrb[0].mxu0
      %v1872 = vpop.f32.mrb[0].mxu0
      %v1873 = vadd.f32 0.0, %v1872
      %v1874 = vpop.f32.mrb[0].mxu0
      %1875 = vmatprep.mubr.bf16.mxu0 %v1022
      %1876 = vmatmul.mubr.bf16.gmra.mrb[0].mxu0 %v1112
      %v1877 = vpop.f32.mrb[0].mxu0
      %v1878 = vadd.f32 0.0, %v1877
      %v1879 = vpop.f32.mrb[0].mxu0
      %v1880 = vpop.f32.mrb[0].mxu0
      %v1881 = vadd.f32 0.0, %v1880
      %v1882 = vpop.f32.mrb[0].mxu0
      %1883 = vmatprep.mubr.bf16.mxu0 %v1023
      %1884 = vmatmul.mubr.bf16.gmra.mrb[0].mxu0 %v1120
      %v1885 = vpop.f32.mrb[0].mxu0
      %v1886 = vadd.f32 0.0, %v1885
      %v1887 = vpop.f32.mrb[0].mxu0
      %v1888 = vpop.f32.mrb[0].mxu0
      %v1889 = vadd.f32 0.0, %v1888
      %v1890 = vpop.f32.mrb[0].mxu0
      %1891 = vmatprep.mubr.bf16.mxu0 %v1024
      %1892 = vmatmul.mubr.bf16.gmra.mrb[0].mxu0 %v1128
      %v1893 = vpop.f32.mrb[0].mxu0
      %v1894 = vadd.f32 0.0, %v1893
      %v1895 = vpop.f32.mrb[0].mxu0
      %v1896 = vpop.f32.mrb[0].mxu0
      %v1897 = vadd.f32 0.0, %v1896
      %v1898 = vpop.f32.mrb[0].mxu0
      %1899 = vmatprep.mubr.bf16.mxu0 %v1025
      %1900 = vmatmul.mubr.bf16.gmra.mrb[0].mxu0 %v1136
      %v1901 = vpop.f32.mrb[0].mxu0
      %v1902 = vadd.f32 0.0, %v1901
      %v1903 = vpop.f32.mrb[0].mxu0
      %v1904 = vpop.f32.mrb[0].mxu0
      %v1905 = vadd.f32 0.0, %v1904
      %v1906 = vpop.f32.mrb[0].mxu0
      %1907 = vmatprep.mubr.bf16.mxu0 %v1026
      %1908 = vmatmul.mubr.bf16.gmra.mrb[0].mxu0 %v1144
      %v1909 = vpop.f32.mrb[0].mxu0
      %v1910 = vadd.f32 0.0, %v1909
      %v1911 = vpop.f32.mrb[0].mxu0
      %v1912 = vpop.f32.mrb[0].mxu0
      %v1913 = vadd.f32 0.0, %v1912
      %v1914 = vpop.f32.mrb[0].mxu0
      %1915 = vmatprep.mubr.bf16.mxu0 %v1027
      %1916 = vmatmul.mubr.bf16.gmra.mrb[0].mxu0 %v1152
      %v1917 = vpop.f32.mrb[0].mxu0
      %v1918 = vadd.f32 0.0, %v1917
      %v1919 = vpop.f32.mrb[0].mxu0
      %v1920 = vpop.f32.mrb[0].mxu0
      %v1921 = vadd.f32 0.0, %v1920
      %v1922 = vpop.f32.mrb[0].mxu0
      %1923 = vmatprep.mubr.bf16.mxu0 %v1028
      %1924 = vmatmul.mubr.bf16.gmra.mrb[0].mxu0 %v1160
      %v1925 = vpop.f32.mrb[0].mxu0
      %v1926 = vadd.f32 0.0, %v1925
      %v1927 = vpop.f32.mrb[0].mxu0
      %v1928 = vpop.f32.mrb[0].mxu0
      %v1929 = vadd.f32 0.0, %v1928
      %v1930 = vpop.f32.mrb[0].mxu0
      %1931 = vmatprep.mubr.bf16.mxu0 %v1029
      %1932 = vmatmul.mubr.bf16.gmra.mrb[0].mxu0 %v1168
      %v1933 = vpop.f32.mrb[0].mxu0
      %v1934 = vadd.f32 0.0, %v1933
      %v1935 = vpop.f32.mrb[0].mxu0
      %v1936 = vpop.f32.mrb[0].mxu0
      %v1937 = vadd.f32 0.0, %v1936
      %v1938 = vpop.f32.mrb[0].mxu0
      %1939 = vmatprep.mubr.bf16.mxu0 %v1030
      %1940 = vmatmul.mubr.bf16.gmra.mrb[0].mxu0 %v1176
      %v1941 = vpop.f32.mrb[0].mxu0
      %v1942 = vadd.f32 0.0, %v1941
      %v1943 = vpop.f32.mrb[0].mxu0
      %v1944 = vpop.f32.mrb[0].mxu0
      %v1945 = vadd.f32 0.0, %v1944
      %v1946 = vpop.f32.mrb[0].mxu0
      %1947 = vmatprep.mubr.bf16.mxu0 %v1031
      %1948 = vmatmul.mubr.bf16.gmra.mrb[0].mxu0 %v1184
      %v1949 = vpop.f32.mrb[0].mxu0
      %v1950 = vadd.f32 0.0, %v1949
      %v1951 = vpop.f32.mrb[0].mxu0
      %v1952 = vpop.f32.mrb[0].mxu0
      %v1953 = vadd.f32 0.0, %v1952
      %v1954 = vpop.f32.mrb[0].mxu0
      %1955 = vdwg.mxu0
      %1956 = vmatprep.subr.bf16.mxu0 0
      %1957 = vmatpush1.bf16.msra.mxu0 %v1667
      %1958 = vmatprep.subr.bf16.mxu0 0
      %1959 = vmatpush1.bf16.msra.mxu0 %v1668
      %1960 = vmatprep.subr.bf16.mxu0 0
      %1961 = vmatpush1.bf16.msra.mxu0 %v1669
      %1962 = vmatprep.subr.bf16.mxu0 0
      %1963 = vmatpush1.bf16.msra.mxu0 %v1670
      %1964 = vmatprep.subr.bf16.mxu0 0
      %1965 = vmatpush1.bf16.msra.mxu0 %v1671
      %1966 = vmatprep.subr.bf16.mxu0 0
      %1967 = vmatpush1.bf16.msra.mxu0 %v1672
      %1968 = vmatprep.subr.bf16.mxu0 0
      %1969 = vmatpush1.bf16.msra.mxu0 %v1673
      %1970 = vmatprep.subr.bf16.mxu0 0
      %1971 = vmatpush1.bf16.msra.mxu0 %v1674
      %1972 = vmatprep.subr.bf16.mxu0 0
      %1973 = vmatpush1.bf16.msra.mxu0 %v1675
      %1974 = vmatprep.subr.bf16.mxu0 0
      %1975 = vmatpush1.bf16.msra.mxu0 %v1676
      %1976 = vmatprep.subr.bf16.mxu0 0
      %1977 = vmatpush1.bf16.msra.mxu0 %v1677
      %1978 = vmatprep.subr.bf16.mxu0 0
      %1979 = vmatpush1.bf16.msra.mxu0 %v1678
      %1980 = vmatprep.subr.bf16.mxu0 0
      %1981 = vmatpush1.bf16.msra.mxu0 %v1679
      %1982 = vmatprep.subr.bf16.mxu0 0
      %1983 = vmatpush1.bf16.msra.mxu0 %v1680
      %1984 = vmatprep.subr.bf16.mxu0 0
      %1985 = vmatpush1.bf16.msra.mxu0 %v1681
      %1986 = vmatprep.subr.bf16.mxu0 0
      %1987 = vmatpush1.bf16.msra.mxu0 %v1682
      %1988 = vmatprep.mubr.bf16.mxu0 %v1202
      %1989 = vmatmul.mubr.bf16.gmra.mrb[0].mxu0 %v1346
      %v1990 = vpop.f32.mrb[0].mxu0
      %v1991 = vadd.f32 %v1830, %v1990
      %v1992 = vpop.f32.mrb[0].mxu0
      %v1993 = vpop.f32.mrb[0].mxu0
      %v1994 = vadd.f32 %v1833, %v1993
      %v1995 = vpop.f32.mrb[0].mxu0
      %1996 = vmatprep.mubr.bf16.mxu0 %v1080
      %1997 = vmatmul.mubr.bf16.gmra.mrb[0].mxu0 %v1215
      %v1998 = vpop.f32.mrb[0].mxu0
      %v1999 = vadd.f32 %v1838, %v1998
      %v2000 = vpop.f32.mrb[0].mxu0
      %v2001 = vpop.f32.mrb[0].mxu0
      %v2002 = vadd.f32 %v1841, %v2001
      %v2003 = vpop.f32.mrb[0].mxu0
      %2004 = vmatprep.mubr.bf16.mxu0 %v1088
      %2005 = vmatmul.mubr.bf16.gmra.mrb[0].mxu0 %v1223
      %v2006 = vpop.f32.mrb[0].mxu0
      %v2007 = vadd.f32 %v1846, %v2006
      %v2008 = vpop.f32.mrb[0].mxu0
      %v2009 = vpop.f32.mrb[0].mxu0
      %v2010 = vadd.f32 %v1849, %v2009
      %v2011 = vpop.f32.mrb[0].mxu0
      %2012 = vmatprep.mubr.bf16.mxu0 %v1096
      %2013 = vmatmul.mubr.bf16.gmra.mrb[0].mxu0 %v1231
      %v2014 = vpop.f32.mrb[0].mxu0
      %v2015 = vadd.f32 %v1854, %v2014
      %v2016 = vpop.f32.mrb[0].mxu0
      %v2017 = vpop.f32.mrb[0].mxu0
      %v2018 = vadd.f32 %v1857, %v2017
      %v2019 = vpop.f32.mrb[0].mxu0
      %2020 = vmatprep.mubr.bf16.mxu0 %v1104
      %2021 = vmatmul.mubr.bf16.gmra.mrb[0].mxu0 %v1239
      %v2022 = vpop.f32.mrb[0].mxu0
      %v2023 = vadd.f32 %v1862, %v2022
      %v2024 = vpop.f32.mrb[0].mxu0
      %v2025 = vpop.f32.mrb[0].mxu0
      %v2026 = vadd.f32 %v1865, %v2025
      %v2027 = vpop.f32.mrb[0].mxu0
      %2028 = vmatprep.mubr.bf16.mxu0 %v1112
      %2029 = vmatmul.mubr.bf16.gmra.mrb[0].mxu0 %v1247
      %v2030 = vpop.f32.mrb[0].mxu0
      %v2031 = vadd.f32 %v1870, %v2030
      %v2032 = vpop.f32.mrb[0].mxu0
      %v2033 = vpop.f32.mrb[0].mxu0
      %v2034 = vadd.f32 %v1873, %v2033
      %v2035 = vpop.f32.mrb[0].mxu0
      %2036 = vmatprep.mubr.bf16.mxu0 %v1120
      %2037 = vmatmul.mubr.bf16.gmra.mrb[0].mxu0 %v1255
      %v2038 = vpop.f32.mrb[0].mxu0
      %v2039 = vadd.f32 %v1878, %v2038
      %v2040 = vpop.f32.mrb[0].mxu0
      %v2041 = vpop.f32.mrb[0].mxu0
      %v2042 = vadd.f32 %v1881, %v2041
      %v2043 = vpop.f32.mrb[0].mxu0
      %2044 = vmatprep.mubr.bf16.mxu0 %v1128
      %2045 = vmatmul.mubr.bf16.gmra.mrb[0].mxu0 %v1263
      %v2046 = vpop.f32.mrb[0].mxu0
      %v2047 = vadd.f32 %v1886, %v2046
      %v2048 = vpop.f32.mrb[0].mxu0
      %v2049 = vpop.f32.mrb[0].mxu0
      %v2050 = vadd.f32 %v1889, %v2049
      %v2051 = vpop.f32.mrb[0].mxu0
      %2052 = vmatprep.mubr.bf16.mxu0 %v1136
      %2053 = vmatmul.mubr.bf16.gmra.mrb[0].mxu0 %v1271
      %v2054 = vpop.f32.mrb[0].mxu0
      %v2055 = vadd.f32 %v1894, %v2054
      %v2056 = vpop.f32.mrb[0].mxu0
      %v2057 = vpop.f32.mrb[0].mxu0
      %v2058 = vadd.f32 %v1897, %v2057
      %v2059 = vpop.f32.mrb[0].mxu0
      %2060 = vmatprep.mubr.bf16.mxu0 %v1144
      %2061 = vmatmul.mubr.bf16.gmra.mrb[0].mxu0 %v1279
      %v2062 = vpop.f32.mrb[0].mxu0
      %v2063 = vadd.f32 %v1902, %v2062
      %v2064 = vpop.f32.mrb[0].mxu0
      %v2065 = vpop.f32.mrb[0].mxu0
      %v2066 = vadd.f32 %v1905, %v2065
      %v2067 = vpop.f32.mrb[0].mxu0
      %2068 = vmatprep.mubr.bf16.mxu0 %v1152
      %2069 = vmatmul.mubr.bf16.gmra.mrb[0].mxu0 %v1287
      %v2070 = vpop.f32.mrb[0].mxu0
      %v2071 = vadd.f32 %v1910, %v2070
      %v2072 = vpop.f32.mrb[0].mxu0
      %v2073 = vpop.f32.mrb[0].mxu0
      %v2074 = vadd.f32 %v1913, %v2073
      %v2075 = vpop.f32.mrb[0].mxu0
      %2076 = vmatprep.mubr.bf16.mxu0 %v1160
      %2077 = vmatmul.mubr.bf16.gmra.mrb[0].mxu0 %v1295
      %v2078 = vpop.f32.mrb[0].mxu0
      %v2079 = vadd.f32 %v1918, %v2078
      %v2080 = vpop.f32.mrb[0].mxu0
      %v2081 = vpop.f32.mrb[0].mxu0
      %v2082 = vadd.f32 %v1921, %v2081
      %v2083 = vpop.f32.mrb[0].mxu0
      %2084 = vmatprep.mubr.bf16.mxu0 %v1168
      %2085 = vmatmul.mubr.bf16.gmra.mrb[0].mxu0 %v1303
      %v2086 = vpop.f32.mrb[0].mxu0
      %v2087 = vadd.f32 %v1926, %v2086
      %v2088 = vpop.f32.mrb[0].mxu0
      %v2089 = vpop.f32.mrb[0].mxu0
      %v2090 = vadd.f32 %v1929, %v2089
      %v2091 = vpop.f32.mrb[0].mxu0
      %2092 = vmatprep.mubr.bf16.mxu0 %v1176
      %2093 = vmatmul.mubr.bf16.gmra.mrb[0].mxu0 %v1311
      %v2094 = vpop.f32.mrb[0].mxu0
      %v2095 = vadd.f32 %v1934, %v2094
      %v2096 = vpop.f32.mrb[0].mxu0
      %v2097 = vpop.f32.mrb[0].mxu0
      %v2098 = vadd.f32 %v1937, %v2097
      %v2099 = vpop.f32.mrb[0].mxu0
      %2100 = vmatprep.mubr.bf16.mxu0 %v1184
      %2101 = vmatmul.mubr.bf16.gmra.mrb[0].mxu0 %v1319
      %v2102 = vpop.f32.mrb[0].mxu0
      %v2103 = vadd.f32 %v1942, %v2102
      %v2104 = vpop.f32.mrb[0].mxu0
      %v2105 = vpop.f32.mrb[0].mxu0
      %v2106 = vadd.f32 %v1945, %v2105
      %v2107 = vpop.f32.mrb[0].mxu0
      %2108 = vmatprep.mubr.bf16.mxu0 %v1354
      %2109 = vmatmul.mubr.bf16.gmra.mrb[0].mxu0 %v1327
      %v2110 = vpop.f32.mrb[0].mxu0
      %v2111 = vadd.f32 %v1950, %v2110
      %v2112 = vpop.f32.mrb[0].mxu0
      %v2113 = vpop.f32.mrb[0].mxu0
      %v2114 = vadd.f32 %v1953, %v2113
      %v2115 = vpop.f32.mrb[0].mxu0
      %2116 = vdwg.mxu0
      %2117 = vmatprep.subr.bf16.mxu0 0
      %2118 = vmatpush1.bf16.msra.mxu0 %v1683
      %2119 = vmatprep.subr.bf16.mxu0 0
      %2120 = vmatpush1.bf16.msra.mxu0 %v1684
      %2121 = vmatprep.subr.bf16.mxu0 0
      %2122 = vmatpush1.bf16.msra.mxu0 %v1685
      %2123 = vmatprep.subr.bf16.mxu0 0
      %2124 = vmatpush1.bf16.msra.mxu0 %v1686
      %2125 = vmatprep.subr.bf16.mxu0 0
      %2126 = vmatpush1.bf16.msra.mxu0 %v1687
      %2127 = vmatprep.subr.bf16.mxu0 0
      %2128 = vmatpush1.bf16.msra.mxu0 %v1688
      %2129 = vmatprep.subr.bf16.mxu0 0
      %2130 = vmatpush1.bf16.msra.mxu0 %v1689
      %2131 = vmatprep.subr.bf16.mxu0 0
      %2132 = vmatpush1.bf16.msra.mxu0 %v1690
      %2133 = vmatprep.subr.bf16.mxu0 0
      %2134 = vmatpush1.bf16.msra.mxu0 %v1691
      %2135 = vmatprep.subr.bf16.mxu0 0
      %2136 = vmatpush1.bf16.msra.mxu0 %v1692
      %2137 = vmatprep.subr.bf16.mxu0 0
      %2138 = vmatpush1.bf16.msra.mxu0 %v1693
      %2139 = vmatprep.subr.bf16.mxu0 0
      %2140 = vmatpush1.bf16.msra.mxu0 %v1694
      %2141 = vmatprep.subr.bf16.mxu0 0
      %2142 = vmatpush1.bf16.msra.mxu0 %v1695
      %2143 = vmatprep.subr.bf16.mxu0 0
      %2144 = vmatpush1.bf16.msra.mxu0 %v1696
      %2145 = vmatprep.subr.bf16.mxu0 0
      %2146 = vmatpush1.bf16.msra.mxu0 %v1697
      %2147 = vmatprep.subr.bf16.mxu0 0
      %2148 = vmatpush1.bf16.msra.mxu0 %v1698
      %2149 = vmatprep.mubr.bf16.mxu0 %v1215
      %2150 = vmatmul.mubr.bf16.gmra.mrb[0].mxu0 %v1017
      %v2151 = vpop.f32.mrb[0].mxu0
      %v2152 = vadd.f32 %v1991, %v2151
      %v2153 = vpop.f32.mrb[0].mxu0
      %v2154 = vpop.f32.mrb[0].mxu0
      %v2155 = vadd.f32 %v1994, %v2154
      %v2156 = vpop.f32.mrb[0].mxu0
      %2157 = vmatprep.mubr.bf16.mxu0 %v1223
      %2158 = vmatmul.mubr.bf16.gmra.mrb[0].mxu0 %v1018
      %v2159 = vpop.f32.mrb[0].mxu0
      %v2160 = vadd.f32 %v1999, %v2159
      %v2161 = vpop.f32.mrb[0].mxu0
      %v2162 = vpop.f32.mrb[0].mxu0
      %v2163 = vadd.f32 %v2002, %v2162
      %v2164 = vpop.f32.mrb[0].mxu0
      %2165 = vmatprep.mubr.bf16.mxu0 %v1231
      %2166 = vmatmul.mubr.bf16.gmra.mrb[0].mxu0 %v1019
      %v2167 = vpop.f32.mrb[0].mxu0
      %v2168 = vadd.f32 %v2007, %v2167
      %v2169 = vpop.f32.mrb[0].mxu0
      %v2170 = vpop.f32.mrb[0].mxu0
      %v2171 = vadd.f32 %v2010, %v2170
      %v2172 = vpop.f32.mrb[0].mxu0
      %2173 = vmatprep.mubr.bf16.mxu0 %v1239
      %2174 = vmatmul.mubr.bf16.gmra.mrb[0].mxu0 %v1020
      %v2175 = vpop.f32.mrb[0].mxu0
      %v2176 = vadd.f32 %v2015, %v2175
      %v2177 = vpop.f32.mrb[0].mxu0
      %v2178 = vpop.f32.mrb[0].mxu0
      %v2179 = vadd.f32 %v2018, %v2178
      %v2180 = vpop.f32.mrb[0].mxu0
      %2181 = vmatprep.mubr.bf16.mxu0 %v1247
      %2182 = vmatmul.mubr.bf16.gmra.mrb[0].mxu0 %v1021
      %v2183 = vpop.f32.mrb[0].mxu0
      %v2184 = vadd.f32 %v2023, %v2183
      %v2185 = vpop.f32.mrb[0].mxu0
      %v2186 = vpop.f32.mrb[0].mxu0
      %v2187 = vadd.f32 %v2026, %v2186
      %v2188 = vpop.f32.mrb[0].mxu0
      %2189 = vmatprep.mubr.bf16.mxu0 %v1255
      %2190 = vmatmul.mubr.bf16.gmra.mrb[0].mxu0 %v1022
      %v2191 = vpop.f32.mrb[0].mxu0
      %v2192 = vadd.f32 %v2031, %v2191
      %v2193 = vpop.f32.mrb[0].mxu0
      %v2194 = vpop.f32.mrb[0].mxu0
      %v2195 = vadd.f32 %v2034, %v2194
      %v2196 = vpop.f32.mrb[0].mxu0
      %2197 = vmatprep.mubr.bf16.mxu0 %v1263
      %2198 = vmatmul.mubr.bf16.gmra.mrb[0].mxu0 %v1023
      %v2199 = vpop.f32.mrb[0].mxu0
      %v2200 = vadd.f32 %v2039, %v2199
      %v2201 = vpop.f32.mrb[0].mxu0
      %v2202 = vpop.f32.mrb[0].mxu0
      %v2203 = vadd.f32 %v2042, %v2202
      %v2204 = vpop.f32.mrb[0].mxu0
      %2205 = vmatprep.mubr.bf16.mxu0 %v1271
      %2206 = vmatmul.mubr.bf16.gmra.mrb[0].mxu0 %v1024
      %v2207 = vpop.f32.mrb[0].mxu0
      %v2208 = vadd.f32 %v2047, %v2207
      %v2209 = vpop.f32.mrb[0].mxu0
      %v2210 = vpop.f32.mrb[0].mxu0
      %v2211 = vadd.f32 %v2050, %v2210
      %v2212 = vpop.f32.mrb[0].mxu0
      %2213 = vmatprep.mubr.bf16.mxu0 %v1279
      %2214 = vmatmul.mubr.bf16.gmra.mrb[0].mxu0 %v1025
      %v2215 = vpop.f32.mrb[0].mxu0
      %v2216 = vadd.f32 %v2055, %v2215
      %v2217 = vpop.f32.mrb[0].mxu0
      %v2218 = vpop.f32.mrb[0].mxu0
      %v2219 = vadd.f32 %v2058, %v2218
      %v2220 = vpop.f32.mrb[0].mxu0
      %2221 = vmatprep.mubr.bf16.mxu0 %v1287
      %2222 = vmatmul.mubr.bf16.gmra.mrb[0].mxu0 %v1026
      %v2223 = vpop.f32.mrb[0].mxu0
      %v2224 = vadd.f32 %v2063, %v2223
      %v2225 = vpop.f32.mrb[0].mxu0
      %v2226 = vpop.f32.mrb[0].mxu0
      %v2227 = vadd.f32 %v2066, %v2226
      %v2228 = vpop.f32.mrb[0].mxu0
      %2229 = vmatprep.mubr.bf16.mxu0 %v1295
      %2230 = vmatmul.mubr.bf16.gmra.mrb[0].mxu0 %v1027
      %v2231 = vpop.f32.mrb[0].mxu0
      %v2232 = vadd.f32 %v2071, %v2231
      %v2233 = vpop.f32.mrb[0].mxu0
      %v2234 = vpop.f32.mrb[0].mxu0
      %v2235 = vadd.f32 %v2074, %v2234
      %v2236 = vpop.f32.mrb[0].mxu0
      %2237 = vmatprep.mubr.bf16.mxu0 %v1303
      %2238 = vmatmul.mubr.bf16.gmra.mrb[0].mxu0 %v1028
      %v2239 = vpop.f32.mrb[0].mxu0
      %v2240 = vadd.f32 %v2079, %v2239
      %v2241 = vpop.f32.mrb[0].mxu0
      %v2242 = vpop.f32.mrb[0].mxu0
      %v2243 = vadd.f32 %v2082, %v2242
      %v2244 = vpop.f32.mrb[0].mxu0
      %2245 = vmatprep.mubr.bf16.mxu0 %v1311
      %2246 = vmatmul.mubr.bf16.gmra.mrb[0].mxu0 %v1029
      %v2247 = vpop.f32.mrb[0].mxu0
      %v2248 = vadd.f32 %v2087, %v2247
      %v2249 = vpop.f32.mrb[0].mxu0
      %v2250 = vpop.f32.mrb[0].mxu0
      %v2251 = vadd.f32 %v2090, %v2250
      %v2252 = vpop.f32.mrb[0].mxu0
      %2253 = vmatprep.mubr.bf16.mxu0 %v1319
      %2254 = vmatmul.mubr.bf16.gmra.mrb[0].mxu0 %v1030
      %v2255 = vpop.f32.mrb[0].mxu0
      %v2256 = vadd.f32 %v2095, %v2255
      %v2257 = vpop.f32.mrb[0].mxu0
      %v2258 = vpop.f32.mrb[0].mxu0
      %v2259 = vadd.f32 %v2098, %v2258
      %v2260 = vpop.f32.mrb[0].mxu0
      %2261 = vmatprep.mubr.bf16.mxu0 %v1327
      %2262 = vmatmul.mubr.bf16.gmra.mrb[0].mxu0 %v1031
      %v2263 = vpop.f32.mrb[0].mxu0
      %v2264 = vadd.f32 %v2103, %v2263
      %v2265 = vpop.f32.mrb[0].mxu0
      %v2266 = vpop.f32.mrb[0].mxu0
      %v2267 = vadd.f32 %v2106, %v2266
      %v2268 = vpop.f32.mrb[0].mxu0
      %2269 = vmatprep.mubr.bf16.mxu0 %v1360
      %2270 = vmatmul.mubr.bf16.gmra.mrb[0].mxu0 %v1032
      %v2271 = vpop.f32.mrb[0].mxu0
      %v2272 = vadd.f32 %v2111, %v2271
      %v2273 = vpop.f32.mrb[0].mxu0
      %v2274 = vpop.f32.mrb[0].mxu0
      %v2275 = vadd.f32 %v2114, %v2274
      %v2276 = vpop.f32.mrb[0].mxu0
      %2277 = vdwg.mxu0
      %2278 = vmatprep.subr.bf16.mxu0 0
      %2279 = vmatpush1.bf16.msra.mxu0 %v1699
      %2280 = vmatprep.subr.bf16.mxu0 0
      %2281 = vmatpush1.bf16.msra.mxu0 %v1700
      %2282 = vmatprep.subr.bf16.mxu0 0
      %2283 = vmatpush1.bf16.msra.mxu0 %v1701
      %2284 = vmatprep.subr.bf16.mxu0 0
      %2285 = vmatpush1.bf16.msra.mxu0 %v1702
      %2286 = vmatprep.subr.bf16.mxu0 0
      %2287 = vmatpush1.bf16.msra.mxu0 %v1703
      %2288 = vmatprep.subr.bf16.mxu0 0
      %2289 = vmatpush1.bf16.msra.mxu0 %v1704
      %2290 = vmatprep.subr.bf16.mxu0 0
      %2291 = vmatpush1.bf16.msra.mxu0 %v1705
      %2292 = vmatprep.subr.bf16.mxu0 0
      %2293 = vmatpush1.bf16.msra.mxu0 %v1706
      %2294 = vmatprep.subr.bf16.mxu0 0
      %2295 = vmatpush1.bf16.msra.mxu0 %v1707
      %2296 = vmatprep.subr.bf16.mxu0 0
      %2297 = vmatpush1.bf16.msra.mxu0 %v1708
      %2298 = vmatprep.subr.bf16.mxu0 0
      %2299 = vmatpush1.bf16.msra.mxu0 %v1709
      %2300 = vmatprep.subr.bf16.mxu0 0
      %2301 = vmatpush1.bf16.msra.mxu0 %v1710
      %2302 = vmatprep.subr.bf16.mxu0 0
      %2303 = vmatpush1.bf16.msra.mxu0 %v1711
      %2304 = vmatprep.subr.bf16.mxu0 0
      %2305 = vmatpush1.bf16.msra.mxu0 %v1712
      %2306 = vmatprep.subr.bf16.mxu0 0
      %2307 = vmatpush1.bf16.msra.mxu0 %v1713
      %2308 = vmatprep.subr.bf16.mxu0 0
      %2309 = vmatpush1.bf16.msra.mxu0 %v1714
      %2310 = vmatprep.mubr.bf16.mxu0 %v1018
      %2311 = vmatmul.mubr.bf16.gmra.mrb[0].mxu0 %v1080
      %v2312 = vpop.f32.mrb[0].mxu0
      %v2313 = vadd.f32 %v2152, %v2312
      %v2314 = vpop.f32.mrb[0].mxu0
      %v2315 = vpop.f32.mrb[0].mxu0
      %v2316 = vadd.f32 %v2155, %v2315
      %v2317 = vpop.f32.mrb[0].mxu0
      %2318 = vmatprep.mubr.bf16.mxu0 %v1019
      %2319 = vmatmul.mubr.bf16.gmra.mrb[0].mxu0 %v1088
      %v2320 = vpop.f32.mrb[0].mxu0
      %v2321 = vadd.f32 %v2160, %v2320
      %v2322 = vpop.f32.mrb[0].mxu0
      %v2323 = vpop.f32.mrb[0].mxu0
      %v2324 = vadd.f32 %v2163, %v2323
      %v2325 = vpop.f32.mrb[0].mxu0
      %2326 = vmatprep.mubr.bf16.mxu0 %v1020
      %2327 = vmatmul.mubr.bf16.gmra.mrb[0].mxu0 %v1096
      %v2328 = vpop.f32.mrb[0].mxu0
      %v2329 = vadd.f32 %v2168, %v2328
      %v2330 = vpop.f32.mrb[0].mxu0
      %v2331 = vpop.f32.mrb[0].mxu0
      %v2332 = vadd.f32 %v2171, %v2331
      %v2333 = vpop.f32.mrb[0].mxu0
      %2334 = vmatprep.mubr.bf16.mxu0 %v1021
      %2335 = vmatmul.mubr.bf16.gmra.mrb[0].mxu0 %v1104
      %v2336 = vpop.f32.mrb[0].mxu0
      %v2337 = vadd.f32 %v2176, %v2336
      %v2338 = vpop.f32.mrb[0].mxu0
      %v2339 = vpop.f32.mrb[0].mxu0
      %v2340 = vadd.f32 %v2179, %v2339
      %v2341 = vpop.f32.mrb[0].mxu0
      %2342 = vmatprep.mubr.bf16.mxu0 %v1022
      %2343 = vmatmul.mubr.bf16.gmra.mrb[0].mxu0 %v1112
      %v2344 = vpop.f32.mrb[0].mxu0
      %v2345 = vadd.f32 %v2184, %v2344
      %v2346 = vpop.f32.mrb[0].mxu0
      %v2347 = vpop.f32.mrb[0].mxu0
      %v2348 = vadd.f32 %v2187, %v2347
      %v2349 = vpop.f32.mrb[0].mxu0
      %2350 = vmatprep.mubr.bf16.mxu0 %v1023
      %2351 = vmatmul.mubr.bf16.gmra.mrb[0].mxu0 %v1120
      %v2352 = vpop.f32.mrb[0].mxu0
      %v2353 = vadd.f32 %v2192, %v2352
      %v2354 = vpop.f32.mrb[0].mxu0
      %v2355 = vpop.f32.mrb[0].mxu0
      %v2356 = vadd.f32 %v2195, %v2355
      %v2357 = vpop.f32.mrb[0].mxu0
      %2358 = vmatprep.mubr.bf16.mxu0 %v1024
      %2359 = vmatmul.mubr.bf16.gmra.mrb[0].mxu0 %v1128
      %v2360 = vpop.f32.mrb[0].mxu0
      %v2361 = vadd.f32 %v2200, %v2360
      %v2362 = vpop.f32.mrb[0].mxu0
      %v2363 = vpop.f32.mrb[0].mxu0
      %v2364 = vadd.f32 %v2203, %v2363
      %v2365 = vpop.f32.mrb[0].mxu0
      %2366 = vmatprep.mubr.bf16.mxu0 %v1025
      %2367 = vmatmul.mubr.bf16.gmra.mrb[0].mxu0 %v1136
      %v2368 = vpop.f32.mrb[0].mxu0
      %v2369 = vadd.f32 %v2208, %v2368
      %v2370 = vpop.f32.mrb[0].mxu0
      %v2371 = vpop.f32.mrb[0].mxu0
      %v2372 = vadd.f32 %v2211, %v2371
      %v2373 = vpop.f32.mrb[0].mxu0
      %2374 = vmatprep.mubr.bf16.mxu0 %v1026
      %2375 = vmatmul.mubr.bf16.gmra.mrb[0].mxu0 %v1144
      %v2376 = vpop.f32.mrb[0].mxu0
      %v2377 = vadd.f32 %v2216, %v2376
      %v2378 = vpop.f32.mrb[0].mxu0
      %v2379 = vpop.f32.mrb[0].mxu0
      %v2380 = vadd.f32 %v2219, %v2379
      %v2381 = vpop.f32.mrb[0].mxu0
      %2382 = vmatprep.mubr.bf16.mxu0 %v1027
      %2383 = vmatmul.mubr.bf16.gmra.mrb[0].mxu0 %v1152
      %v2384 = vpop.f32.mrb[0].mxu0
      %v2385 = vadd.f32 %v2224, %v2384
      %v2386 = vpop.f32.mrb[0].mxu0
      %v2387 = vpop.f32.mrb[0].mxu0
      %v2388 = vadd.f32 %v2227, %v2387
      %v2389 = vpop.f32.mrb[0].mxu0
      %2390 = vmatprep.mubr.bf16.mxu0 %v1028
      %2391 = vmatmul.mubr.bf16.gmra.mrb[0].mxu0 %v1160
      %v2392 = vpop.f32.mrb[0].mxu0
      %v2393 = vadd.f32 %v2232, %v2392
      %v2394 = vpop.f32.mrb[0].mxu0
      %v2395 = vpop.f32.mrb[0].mxu0
      %v2396 = vadd.f32 %v2235, %v2395
      %v2397 = vpop.f32.mrb[0].mxu0
      %2398 = vmatprep.mubr.bf16.mxu0 %v1029
      %2399 = vmatmul.mubr.bf16.gmra.mrb[0].mxu0 %v1168
      %v2400 = vpop.f32.mrb[0].mxu0
      %v2401 = vadd.f32 %v2240, %v2400
      %v2402 = vpop.f32.mrb[0].mxu0
      %v2403 = vpop.f32.mrb[0].mxu0
      %v2404 = vadd.f32 %v2243, %v2403
      %v2405 = vpop.f32.mrb[0].mxu0
      %2406 = vmatprep.mubr.bf16.mxu0 %v1030
      %2407 = vmatmul.mubr.bf16.gmra.mrb[0].mxu0 %v1176
      %v2408 = vpop.f32.mrb[0].mxu0
      %v2409 = vadd.f32 %v2248, %v2408
      %v2410 = vpop.f32.mrb[0].mxu0
      %v2411 = vpop.f32.mrb[0].mxu0
      %v2412 = vadd.f32 %v2251, %v2411
      %v2413 = vpop.f32.mrb[0].mxu0
      %2414 = vmatprep.mubr.bf16.mxu0 %v1031
      %2415 = vmatmul.mubr.bf16.gmra.mrb[0].mxu0 %v1184
      %v2416 = vpop.f32.mrb[0].mxu0
      %v2417 = vadd.f32 %v2256, %v2416
      %v2418 = vpop.f32.mrb[0].mxu0
      %v2419 = vpop.f32.mrb[0].mxu0
      %v2420 = vadd.f32 %v2259, %v2419
      %v2421 = vpop.f32.mrb[0].mxu0
      %2422 = vmatprep.mubr.bf16.mxu0 %v1032
      %2423 = vmatmul.mubr.bf16.gmra.mrb[0].mxu0 %v1354
      %v2424 = vpop.f32.mrb[0].mxu0
      %v2425 = vadd.f32 %v2264, %v2424
      %v2426 = vpop.f32.mrb[0].mxu0
      %v2427 = vpop.f32.mrb[0].mxu0
      %v2428 = vadd.f32 %v2267, %v2427
      %v2429 = vpop.f32.mrb[0].mxu0
      %2430 = vmatprep.mubr.bf16.mxu0 0
      %2431 = vmatmul.mubr.bf16.gmra.mrb[0].mxu0 %v1362
      %v2432 = vpop.f32.mrb[0].mxu0
      %v2433 = vadd.f32 %v2272, %v2432
      %v2434 = vpop.f32.mrb[0].mxu0
      %v2435 = vpop.f32.mrb[0].mxu0
      %v2436 = vadd.f32 %v2275, %v2435
      %v2437 = vpop.f32.mrb[0].mxu0
      %2438 = vdwg.mxu0
      %2439 = vmatprep.subr.bf16.mxu0 0
      %2440 = vmatpush1.bf16.msra.mxu0 %v1715
      %2441 = vmatprep.subr.bf16.mxu0 0
      %2442 = vmatpush1.bf16.msra.mxu0 %v1716
      %2443 = vmatprep.subr.bf16.mxu0 0
      %2444 = vmatpush1.bf16.msra.mxu0 %v1717
      %2445 = vmatprep.subr.bf16.mxu0 0
      %2446 = vmatpush1.bf16.msra.mxu0 %v1718
      %2447 = vmatprep.subr.bf16.mxu0 0
      %2448 = vmatpush1.bf16.msra.mxu0 %v1719
      %2449 = vmatprep.subr.bf16.mxu0 0
      %2450 = vmatpush1.bf16.msra.mxu0 %v1720
      %2451 = vmatprep.subr.bf16.mxu0 0
      %2452 = vmatpush1.bf16.msra.mxu0 %v1721
      %2453 = vmatprep.subr.bf16.mxu0 0
      %2454 = vmatpush1.bf16.msra.mxu0 %v1722
      %2455 = vmatprep.subr.bf16.mxu0 0
      %2456 = vmatpush1.bf16.msra.mxu0 0
      %2457 = vmatprep.subr.bf16.mxu0 0
      %2458 = vmatpush1.bf16.msra.mxu0 0
      %2459 = vmatprep.subr.bf16.mxu0 0
      %2460 = vmatpush1.bf16.msra.mxu0 0
      %2461 = vmatprep.subr.bf16.mxu0 0
      %2462 = vmatpush1.bf16.msra.mxu0 0
      %2463 = vmatprep.subr.bf16.mxu0 0
      %2464 = vmatpush1.bf16.msra.mxu0 0
      %2465 = vmatprep.subr.bf16.mxu0 0
      %2466 = vmatpush1.bf16.msra.mxu0 0
      %2467 = vmatprep.subr.bf16.mxu0 0
      %2468 = vmatpush1.bf16.msra.mxu0 0
      %2469 = vmatprep.subr.bf16.mxu0 0
      %2470 = vmatpush1.bf16.msra.mxu0 0
      %2471 = vmatprep.mubr.bf16.mxu0 0
      %2472 = vmatmul.mubr.bf16.gmra.mrb[0].mxu0 %v1223
      %v2473 = vpop.f32.mrb[0].mxu0
      %v2474 = vadd.f32 %v2313, %v2473
      %v2475 = vpop.f32.mrb[0].mxu0
      %v2476 = vpop.f32.mrb[0].mxu0
      %v2477 = vadd.f32 %v2316, %v2476
      %v2478 = vpop.f32.mrb[0].mxu0
      %2479 = vmatprep.mubr.bf16.mxu0 0
      %2480 = vmatmul.mubr.bf16.gmra.mrb[0].mxu0 %v1231
      %v2481 = vpop.f32.mrb[0].mxu0
      %v2482 = vadd.f32 %v2321, %v2481
      %v2483 = vpop.f32.mrb[0].mxu0
      %v2484 = vpop.f32.mrb[0].mxu0
      %v2485 = vadd.f32 %v2324, %v2484
      %v2486 = vpop.f32.mrb[0].mxu0
      %2487 = vmatprep.mubr.bf16.mxu0 0
      %2488 = vmatmul.mubr.bf16.gmra.mrb[0].mxu0 %v1239
      %v2489 = vpop.f32.mrb[0].mxu0
      %v2490 = vadd.f32 %v2329, %v2489
      %v2491 = vpop.f32.mrb[0].mxu0
      %v2492 = vpop.f32.mrb[0].mxu0
      %v2493 = vadd.f32 %v2332, %v2492
      %v2494 = vpop.f32.mrb[0].mxu0
      %2495 = vmatprep.mubr.bf16.mxu0 0
      %2496 = vmatmul.mubr.bf16.gmra.mrb[0].mxu0 %v1247
      %v2497 = vpop.f32.mrb[0].mxu0
      %v2498 = vadd.f32 %v2337, %v2497
      %v2499 = vpop.f32.mrb[0].mxu0
      %v2500 = vpop.f32.mrb[0].mxu0
      %v2501 = vadd.f32 %v2340, %v2500
      %v2502 = vpop.f32.mrb[0].mxu0
      %2503 = vmatprep.mubr.bf16.mxu0 0
      %2504 = vmatmul.mubr.bf16.gmra.mrb[0].mxu0 %v1255
      %v2505 = vpop.f32.mrb[0].mxu0
      %v2506 = vadd.f32 %v2345, %v2505
      %v2507 = vpop.f32.mrb[0].mxu0
      %v2508 = vpop.f32.mrb[0].mxu0
      %v2509 = vadd.f32 %v2348, %v2508
      %v2510 = vpop.f32.mrb[0].mxu0
      %2511 = vmatprep.mubr.bf16.mxu0 0
      %2512 = vmatmul.mubr.bf16.gmra.mrb[0].mxu0 %v1263
      %v2513 = vpop.f32.mrb[0].mxu0
      %v2514 = vadd.f32 %v2353, %v2513
      %v2515 = vpop.f32.mrb[0].mxu0
      %v2516 = vpop.f32.mrb[0].mxu0
      %v2517 = vadd.f32 %v2356, %v2516
      %v2518 = vpop.f32.mrb[0].mxu0
      %2519 = vmatprep.mubr.bf16.mxu0 0
      %2520 = vmatmul.mubr.bf16.gmra.mrb[0].mxu0 %v1271
      %v2521 = vpop.f32.mrb[0].mxu0
      %v2522 = vadd.f32 %v2361, %v2521
      %v2523 = vpop.f32.mrb[0].mxu0
      %v2524 = vpop.f32.mrb[0].mxu0
      %v2525 = vadd.f32 %v2364, %v2524
      %v2526 = vpop.f32.mrb[0].mxu0
      %2527 = vmatprep.mubr.bf16.mxu0 0
      %2528 = vmatmul.mubr.bf16.gmra.mrb[0].mxu0 %v1279
      %v2529 = vpop.f32.mrb[0].mxu0
      %v2530 = vadd.f32 %v2369, %v2529
      %v2531 = vpop.f32.mrb[0].mxu0
      %v2532 = vpop.f32.mrb[0].mxu0
      %v2533 = vadd.f32 %v2372, %v2532
      %v2534 = vpop.f32.mrb[0].mxu0
      %2535 = vmatprep.mubr.bf16.mxu0 0
      %2536 = vmatmul.mubr.bf16.gmra.mrb[0].mxu0 %v1287
      %v2537 = vpop.f32.mrb[0].mxu0
      %v2538 = vadd.f32 %v2377, %v2537
      %v2539 = vpop.f32.mrb[0].mxu0
      %v2540 = vpop.f32.mrb[0].mxu0
      %v2541 = vadd.f32 %v2380, %v2540
      %v2542 = vpop.f32.mrb[0].mxu0
      %2543 = vmatprep.mubr.bf16.mxu0 0
      %2544 = vmatmul.mubr.bf16.gmra.mrb[0].mxu0 %v1295
      %v2545 = vpop.f32.mrb[0].mxu0
      %v2546 = vadd.f32 %v2385, %v2545
      %v2547 = vpop.f32.mrb[0].mxu0
      %v2548 = vpop.f32.mrb[0].mxu0
      %v2549 = vadd.f32 %v2388, %v2548
      %v2550 = vpop.f32.mrb[0].mxu0
      %2551 = vmatprep.mubr.bf16.mxu0 0
      %2552 = vmatmul.mubr.bf16.gmra.mrb[0].mxu0 %v1303
      %v2553 = vpop.f32.mrb[0].mxu0
      %v2554 = vadd.f32 %v2393, %v2553
      %v2555 = vpop.f32.mrb[0].mxu0
      %v2556 = vpop.f32.mrb[0].mxu0
      %v2557 = vadd.f32 %v2396, %v2556
      %v2558 = vpop.f32.mrb[0].mxu0
      %2559 = vmatprep.mubr.bf16.mxu0 0
      %2560 = vmatmul.mubr.bf16.gmra.mrb[0].mxu0 %v1311
      %v2561 = vpop.f32.mrb[0].mxu0
      %v2562 = vadd.f32 %v2401, %v2561
      %v2563 = vpop.f32.mrb[0].mxu0
      %v2564 = vpop.f32.mrb[0].mxu0
      %v2565 = vadd.f32 %v2404, %v2564
      %v2566 = vpop.f32.mrb[0].mxu0
      %2567 = vmatprep.mubr.bf16.mxu0 0
      %2568 = vmatmul.mubr.bf16.gmra.mrb[0].mxu0 %v1319
      %v2569 = vpop.f32.mrb[0].mxu0
      %v2570 = vadd.f32 %v2409, %v2569
      %v2571 = vpop.f32.mrb[0].mxu0
      %v2572 = vpop.f32.mrb[0].mxu0
      %v2573 = vadd.f32 %v2412, %v2572
      %v2574 = vpop.f32.mrb[0].mxu0
      %2575 = vmatprep.mubr.bf16.mxu0 0
      %2576 = vmatmul.mubr.bf16.gmra.mrb[0].mxu0 %v1327
      %v2577 = vpop.f32.mrb[0].mxu0
      %v2578 = vadd.f32 %v2417, %v2577
      %v2579 = vpop.f32.mrb[0].mxu0
      %v2580 = vpop.f32.mrb[0].mxu0
      %v2581 = vadd.f32 %v2420, %v2580
      %v2582 = vpop.f32.mrb[0].mxu0
      %2583 = vmatprep.mubr.bf16.mxu0 0
      %2584 = vmatmul.mubr.bf16.gmra.mrb[0].mxu0 %v1360
      %v2585 = vpop.f32.mrb[0].mxu0
      %v2586 = vadd.f32 %v2425, %v2585
      %v2587 = vpop.f32.mrb[0].mxu0
      %v2588 = vpop.f32.mrb[0].mxu0
      %v2589 = vadd.f32 %v2428, %v2588
      %v2590 = vpop.f32.mrb[0].mxu0
      %2591 = vmatprep.mubr.bf16.mxu0 0
      %2592 = vmatmul.mubr.bf16.gmra.mrb[0].mxu0 0
      %v2593 = vpop.f32.mrb[0].mxu0
      %v2594 = vadd.f32 %v2433, %v2593
      %v2595 = vpop.f32.mrb[0].mxu0
      %v2596 = vpop.f32.mrb[0].mxu0
      %v2597 = vadd.f32 %v2436, %v2596
      %v2598 = vpop.f32.mrb[0].mxu0
      %2599 = vdwg.mxu0
      %v2600 = vlaneseq
      %v2601 = vshrl.u32 %v2600, 7
      %v2602 = vsub.s32 0, %v2601
      %v2603 = vrot.slane %v872, %v2602
      %v2604 = vmul.f32 %v2474, %v2603
      %v2605 = vmul.f32 %v2477, %v2603
      %v2606 = vmul.f32 %v2482, %v2603
      %v2607 = vmul.f32 %v2485, %v2603
      %v2608 = vmul.f32 %v2490, %v2603
      %v2609 = vmul.f32 %v2493, %v2603
      %v2610 = vmul.f32 %v2498, %v2603
      %v2611 = vmul.f32 %v2501, %v2603
      %v2612 = vmul.f32 %v2506, %v2603
      %v2613 = vmul.f32 %v2509, %v2603
      %v2614 = vmul.f32 %v2514, %v2603
      %v2615 = vmul.f32 %v2517, %v2603
      %v2616 = vmul.f32 %v2522, %v2603
      %v2617 = vmul.f32 %v2525, %v2603
      %v2618 = vmul.f32 %v2530, %v2603
      %v2619 = vmul.f32 %v2533, %v2603
      %v2620 = vmul.f32 %v2538, %v2603
      %v2621 = vmul.f32 %v2541, %v2603
      %v2622 = vmul.f32 %v2546, %v2603
      %v2623 = vmul.f32 %v2549, %v2603
      %v2624 = vmul.f32 %v2554, %v2603
      %v2625 = vmul.f32 %v2557, %v2603
      %v2626 = vmul.f32 %v2562, %v2603
      %v2627 = vmul.f32 %v2565, %v2603
      %v2628 = vmul.f32 %v2570, %v2603
      %v2629 = vmul.f32 %v2573, %v2603
      %v2630 = vmul.f32 %v2578, %v2603
      %v2631 = vmul.f32 %v2581, %v2603
      %v2632 = vmul.f32 %v2586, %v2603
      %v2633 = vmul.f32 %v2589, %v2603
      %v2634 = vmul.f32 %v2594, %v2603
      %v2635 = vmul.f32 %v2597, %v2603
      %v2636 = vlaneseq
      %v2637 = vshrl.u32 %v2636, 7
      %v2638 = vsub.s32 1, %v2637
      %v2639 = vrot.slane %v872, %v2638
      %v2640 = vadd.f32 %v2604, %v2639
      %v2641 = vadd.f32 %v2605, %v2639
      %v2642 = vadd.f32 %v2606, %v2639
      %v2643 = vadd.f32 %v2607, %v2639
      %v2644 = vadd.f32 %v2608, %v2639
      %v2645 = vadd.f32 %v2609, %v2639
      %v2646 = vadd.f32 %v2610, %v2639
      %v2647 = vadd.f32 %v2611, %v2639
      %v2648 = vadd.f32 %v2612, %v2639
      %v2649 = vadd.f32 %v2613, %v2639
      %v2650 = vadd.f32 %v2614, %v2639
      %v2651 = vadd.f32 %v2615, %v2639
      %v2652 = vadd.f32 %v2616, %v2639
      %v2653 = vadd.f32 %v2617, %v2639
      %v2654 = vadd.f32 %v2618, %v2639
      %v2655 = vadd.f32 %v2619, %v2639
      %v2656 = vadd.f32 %v2620, %v2639
      %v2657 = vadd.f32 %v2621, %v2639
      %v2658 = vadd.f32 %v2622, %v2639
      %v2659 = vadd.f32 %v2623, %v2639
      %v2660 = vadd.f32 %v2624, %v2639
      %v2661 = vadd.f32 %v2625, %v2639
      %v2662 = vadd.f32 %v2626, %v2639
      %v2663 = vadd.f32 %v2627, %v2639
      %v2664 = vadd.f32 %v2628, %v2639
      %v2665 = vadd.f32 %v2629, %v2639
      %v2666 = vadd.f32 %v2630, %v2639
      %v2667 = vadd.f32 %v2631, %v2639
      %v2668 = vadd.f32 %v2632, %v2639
      %v2669 = vadd.f32 %v2633, %v2639
      %v2670 = vadd.f32 %v2634, %v2639
      %v2671 = vadd.f32 %v2635, %v2639
      %v2672 = vmax.f32 %v2640, 0.0
      %v2673 = vmax.f32 %v2641, 0.0
      %v2674 = vmax.f32 %v2642, 0.0
      %v2675 = vmax.f32 %v2643, 0.0
      %v2676 = vmax.f32 %v2644, 0.0
      %v2677 = vmax.f32 %v2645, 0.0
      %v2678 = vmax.f32 %v2646, 0.0
      %v2679 = vmax.f32 %v2647, 0.0
      %v2680 = vmax.f32 %v2648, 0.0
      %v2681 = vmax.f32 %v2649, 0.0
      %v2682 = vmax.f32 %v2650, 0.0
      %v2683 = vmax.f32 %v2651, 0.0
      %v2684 = vmax.f32 %v2652, 0.0
      %v2685 = vmax.f32 %v2653, 0.0
      %v2686 = vmax.f32 %v2654, 0.0
      %v2687 = vmax.f32 %v2655, 0.0
      %v2688 = vmax.f32 %v2656, 0.0
      %v2689 = vmax.f32 %v2657, 0.0
      %v2690 = vmax.f32 %v2658, 0.0
      %v2691 = vmax.f32 %v2659, 0.0
      %v2692 = vmax.f32 %v2660, 0.0
      %v2693 = vmax.f32 %v2661, 0.0
      %v2694 = vmax.f32 %v2662, 0.0
      %v2695 = vmax.f32 %v2663, 0.0
      %v2696 = vmax.f32 %v2664, 0.0
      %v2697 = vmax.f32 %v2665, 0.0
      %v2698 = vmax.f32 %v2666, 0.0
      %v2699 = vmax.f32 %v2667, 0.0
      %v2700 = vmax.f32 %v2668, 0.0
      %v2701 = vmax.f32 %v2669, 0.0
      %v2702 = vmax.f32 %v2670, 0.0
      %v2703 = vmax.f32 %v2671, 0.0
      %v2704 = vld [vmem:[%s2] sm:$0xf]
      %v2705 = vld [vmem:[%s2 + $0x4] sm:$0xf]
      %v2706 = vld [vmem:[%s2 + $0x8] sm:$0xf]
      %v2707 = vld [vmem:[%s2 + $0xc] sm:$0xf]
      %v2708 = vld [vmem:[%s2 + $0x10] sm:$0xf]
      %v2709 = vld [vmem:[%s2 + $0x14] sm:$0xf]
      %v2710 = vld [vmem:[%s2 + $0x18] sm:$0xf]
      %v2711 = vld [vmem:[%s2 + $0x1c] sm:$0xf]
      %v2712 = vld [vmem:[%s2 + $0x20] sm:$0xf]
      %v2713 = vld [vmem:[%s2 + $0x24] sm:$0xf]
      %v2714 = vld [vmem:[%s2 + $0x28] sm:$0xf]
      %v2715 = vld [vmem:[%s2 + $0x2c] sm:$0xf]
      %v2716 = vld [vmem:[%s2 + $0x30] sm:$0xf]
      %v2717 = vld [vmem:[%s2 + $0x34] sm:$0xf]
      %v2718 = vld [vmem:[%s2 + $0x38] sm:$0xf]
      %v2719 = vld [vmem:[%s2 + $0x3c] sm:$0xf]
      %v2720 = vld [vmem:[%s2 + $0x40] sm:$0xf]
      %v2721 = vld [vmem:[%s2 + $0x44] sm:$0xf]
      %v2722 = vld [vmem:[%s2 + $0x48] sm:$0xf]
      %v2723 = vld [vmem:[%s2 + $0x4c] sm:$0xf]
      %v2724 = vld [vmem:[%s2 + $0x50] sm:$0xf]
      %v2725 = vld [vmem:[%s2 + $0x54] sm:$0xf]
      %v2726 = vld [vmem:[%s2 + $0x58] sm:$0xf]
      %v2727 = vld [vmem:[%s2 + $0x5c] sm:$0xf]
      %v2728 = vld [vmem:[%s2 + $0x60] sm:$0xf]
      %v2729 = vld [vmem:[%s2 + $0x64] sm:$0xf]
      %v2730 = vld [vmem:[%s2 + $0x68] sm:$0xf]
      %v2731 = vld [vmem:[%s2 + $0x6c] sm:$0xf]
      %v2732 = vld [vmem:[%s2 + $0x70] sm:$0xf]
      %v2733 = vld [vmem:[%s2 + $0x74] sm:$0xf]
      %v2734 = vld [vmem:[%s2 + $0x78] sm:$0xf]
      %v2735 = vld [vmem:[%s2 + $0x7c] sm:$0xf]
      %v2736 = vld [vmem:[%s2 + $0x80] sm:$0xf]
      %v2737 = vld [vmem:[%s2 + $0x84] sm:$0xf]
      %v2738 = vld [vmem:[%s2 + $0x88] sm:$0xf]
      %v2739 = vld [vmem:[%s2 + $0x8c] sm:$0xf]
      %v2740 = vld [vmem:[%s2 + $0x90] sm:$0xf]
      %v2741 = vld [vmem:[%s2 + $0x94] sm:$0xf]
      %v2742 = vld [vmem:[%s2 + $0x98] sm:$0xf]
      %v2743 = vld [vmem:[%s2 + $0x9c] sm:$0xf]
      %v2744 = vld [vmem:[%s2 + $0xa0] sm:$0xf]
      %v2745 = vld [vmem:[%s2 + $0xa4] sm:$0xf]
      %v2746 = vld [vmem:[%s2 + $0xa8] sm:$0xf]
      %v2747 = vld [vmem:[%s2 + $0xac] sm:$0xf]
      %v2748 = vld [vmem:[%s2 + $0xb0] sm:$0xf]
      %v2749 = vld [vmem:[%s2 + $0xb4] sm:$0xf]
      %v2750 = vld [vmem:[%s2 + $0xb8] sm:$0xf]
      %v2751 = vld [vmem:[%s2 + $0xbc] sm:$0xf]
      %v2752 = vld [vmem:[%s2 + $0xc0] sm:$0xf]
      %v2753 = vld [vmem:[%s2 + $0xc4] sm:$0xf]
      %v2754 = vld [vmem:[%s2 + $0xc8] sm:$0xf]
      %v2755 = vld [vmem:[%s2 + $0xcc] sm:$0xf]
      %v2756 = vld [vmem:[%s2 + $0xd0] sm:$0xf]
      %v2757 = vld [vmem:[%s2 + $0xd4] sm:$0xf]
      %v2758 = vld [vmem:[%s2 + $0xd8] sm:$0xf]
      %v2759 = vld [vmem:[%s2 + $0xdc] sm:$0xf]
      %v2760 = vld [vmem:[%s2 + $0xe0] sm:$0xf]
      %v2761 = vld [vmem:[%s2 + $0xe4] sm:$0xf]
      %v2762 = vld [vmem:[%s2 + $0xe8] sm:$0xf]
      %v2763 = vld [vmem:[%s2 + $0xec] sm:$0xf]
      %v2764 = vld [vmem:[%s2 + $0xf0] sm:$0xf]
      %v2765 = vld [vmem:[%s2 + $0xf4] sm:$0xf]
      %v2766 = vld [vmem:[%s2 + $0xf8] sm:$0xf]
      %v2767 = vld [vmem:[%s2 + $0xfc] sm:$0xf]
      %v2768 = vld [vmem:[%s2 + $0x100] sm:$0xf]
      %v2769 = vld [vmem:[%s2 + $0x104] sm:$0xf]
      %v2770 = vld [vmem:[%s2 + $0x108] sm:$0xf]
      %v2771 = vld [vmem:[%s2 + $0x10c] sm:$0xf]
      %v2772 = vld [vmem:[%s2 + $0x110] sm:$0xf]
      %v2773 = vld [vmem:[%s2 + $0x114] sm:$0xf]
      %v2774 = vld [vmem:[%s2 + $0x118] sm:$0xf]
      %v2775 = vld [vmem:[%s2 + $0x11c] sm:$0xf]
      %v2776 = vld [vmem:[%s2 + $0x120] sm:$0xf]
      %v2777 = vld [vmem:[%s2 + $0x124] sm:$0xf]
      %v2778 = vld [vmem:[%s2 + $0x128] sm:$0xf]
      %v2779 = vld [vmem:[%s2 + $0x12c] sm:$0xf]
      %v2780 = vld [vmem:[%s2 + $0x130] sm:$0xf]
      %v2781 = vld [vmem:[%s2 + $0x134] sm:$0xf]
      %v2782 = vld [vmem:[%s2 + $0x138] sm:$0xf]
      %v2783 = vld [vmem:[%s2 + $0x13c] sm:$0xf]
      %v2784 = vld [vmem:[%s2 + $0x140] sm:$0xf]
      %v2785 = vld [vmem:[%s2 + $0x144] sm:$0xf]
      %v2786 = vld [vmem:[%s2 + $0x148] sm:$0xf]
      %v2787 = vld [vmem:[%s2 + $0x14c] sm:$0xf]
      %v2788 = vld [vmem:[%s2 + $0x150] sm:$0xf]
      %v2789 = vld [vmem:[%s2 + $0x154] sm:$0xf]
      %v2790 = vld [vmem:[%s2 + $0x158] sm:$0xf]
      %v2791 = vld [vmem:[%s2 + $0x15c] sm:$0xf]
      %v2792 = vld [vmem:[%s2 + $0x160] sm:$0xf]
      %v2793 = vld [vmem:[%s2 + $0x164] sm:$0xf]
      %v2794 = vld [vmem:[%s2 + $0x168] sm:$0xf]
      %v2795 = vld [vmem:[%s2 + $0x16c] sm:$0xf]
      %v2796 = vld [vmem:[%s2 + $0x170] sm:$0xf]
      %v2797 = vld [vmem:[%s2 + $0x174] sm:$0xf]
      %v2798 = vld [vmem:[%s2 + $0x178] sm:$0xf]
      %v2799 = vld [vmem:[%s2 + $0x17c] sm:$0xf]
      %v2800 = vld [vmem:[%s2 + $0x180] sm:$0xf]
      %v2801 = vld [vmem:[%s2 + $0x184] sm:$0xf]
      %v2802 = vld [vmem:[%s2 + $0x188] sm:$0xf]
      %v2803 = vld [vmem:[%s2 + $0x18c] sm:$0xf]
      %v2804 = vld [vmem:[%s2 + $0x190] sm:$0xf]
      %v2805 = vld [vmem:[%s2 + $0x194] sm:$0xf]
      %v2806 = vld [vmem:[%s2 + $0x198] sm:$0xf]
      %v2807 = vld [vmem:[%s2 + $0x19c] sm:$0xf]
      %v2808 = vld [vmem:[%s2 + $0x1a0] sm:$0xf]
      %v2809 = vld [vmem:[%s2 + $0x1a4] sm:$0xf]
      %v2810 = vld [vmem:[%s2 + $0x1a8] sm:$0xf]
      %v2811 = vld [vmem:[%s2 + $0x1ac] sm:$0xf]
      %v2812 = vld [vmem:[%s2 + $0x1b0] sm:$0xf]
      %v2813 = vld [vmem:[%s2 + $0x1b4] sm:$0xf]
      %v2814 = vld [vmem:[%s2 + $0x1b8] sm:$0xf]
      %v2815 = vld [vmem:[%s2 + $0x1bc] sm:$0xf]
      %v2816 = vld [vmem:[%s2 + $0x1c0] sm:$0xf]
      %v2817 = vld [vmem:[%s2 + $0x1c4] sm:$0xf]
      %v2818 = vld [vmem:[%s2 + $0x1c8] sm:$0xf]
      %v2819 = vld [vmem:[%s2 + $0x1cc] sm:$0xf]
      %v2820 = vld [vmem:[%s2 + $0x1d0] sm:$0xf]
      %v2821 = vld [vmem:[%s2 + $0x1d4] sm:$0xf]
      %v2822 = vld [vmem:[%s2 + $0x1d8] sm:$0xf]
      %v2823 = vld [vmem:[%s2 + $0x1dc] sm:$0xf]
      %v2824 = vld [vmem:[%s2 + $0x1e0] sm:$0xf]
      %v2825 = vld [vmem:[%s2 + $0x1e4] sm:$0xf]
      %v2826 = vld [vmem:[%s2 + $0x1e8] sm:$0xf]
      %v2827 = vld [vmem:[%s2 + $0x1ec] sm:$0xf]
      %v2828 = vld [vmem:[%s2 + $0x1f0] sm:$0xf]
      %v2829 = vld [vmem:[%s2 + $0x1f4] sm:$0xf]
      %v2830 = vld [vmem:[%s2 + $0x1f8] sm:$0xf]
      %v2831 = vld [vmem:[%s2 + $0x1fc] sm:$0xf]
      %v2832 = vld [vmem:[%s2 + $0x200] sm:$0xf]
      %v2833 = vld [vmem:[%s2 + $0x204] sm:$0xf]
      %v2834 = vld [vmem:[%s2 + $0x208] sm:$0xf]
      %v2835 = vld [vmem:[%s2 + $0x20c] sm:$0xf]
      %v2836 = vld [vmem:[%s2 + $0x210] sm:$0xf]
      %v2837 = vld [vmem:[%s2 + $0x214] sm:$0xf]
      %v2838 = vld [vmem:[%s2 + $0x218] sm:$0xf]
      %v2839 = vld [vmem:[%s2 + $0x21c] sm:$0xf]
      %v2840 = vld [vmem:[%s2 + $0x220] sm:$0xf]
      %v2841 = vld [vmem:[%s2 + $0x224] sm:$0xf]
      %v2842 = vld [vmem:[%s2 + $0x228] sm:$0xf]
      %v2843 = vld [vmem:[%s2 + $0x22c] sm:$0xf]
      %v2844 = vld [vmem:[%s2 + $0x230] sm:$0xf]
      %v2845 = vld [vmem:[%s2 + $0x234] sm:$0xf]
      %v2846 = vld [vmem:[%s2 + $0x238] sm:$0xf]
      %v2847 = vld [vmem:[%s2 + $0x23c] sm:$0xf]
      %v2848 = vpack.c.bf16 %v2673, %v2672
      %v2849 = vpack.c.bf16 %v2675, %v2674
      %v2850 = vpack.c.bf16 %v2677, %v2676
      %v2851 = vpack.c.bf16 %v2679, %v2678
      %v2852 = vpack.c.bf16 %v2681, %v2680
      %v2853 = vpack.c.bf16 %v2683, %v2682
      %v2854 = vpack.c.bf16 %v2685, %v2684
      %v2855 = vpack.c.bf16 %v2687, %v2686
      %v2856 = vpack.c.bf16 %v2689, %v2688
      %v2857 = vpack.c.bf16 %v2691, %v2690
      %v2858 = vpack.c.bf16 %v2693, %v2692
      %v2859 = vpack.c.bf16 %v2695, %v2694
      %v2860 = vpack.c.bf16 %v2697, %v2696
      %v2861 = vpack.c.bf16 %v2699, %v2698
      %v2862 = vpack.c.bf16 %v2701, %v2700
      %v2863 = vpack.c.bf16 %v2703, %v2702
      %v2864 = vmul.bf16 %v2848, %v712
      %v2865 = vmul.bf16 %v2849, %v713
      %v2866 = vmul.bf16 %v2850, %v714
      %v2867 = vmul.bf16 %v2851, %v715
      %v2868 = vmul.bf16 %v2852, %v716
      %v2869 = vmul.bf16 %v2853, %v717
      %v2870 = vmul.bf16 %v2854, %v718
      %v2871 = vmul.bf16 %v2855, %v719
      %v2872 = vmul.bf16 %v2856, %v720
      %v2873 = vmul.bf16 %v2857, %v721
      %v2874 = vmul.bf16 %v2858, %v722
      %v2875 = vmul.bf16 %v2859, %v723
      %v2876 = vmul.bf16 %v2860, %v724
      %v2877 = vmul.bf16 %v2861, %v725
      %v2878 = vmul.bf16 %v2862, %v726
      %v2879 = vmul.bf16 %v2863, %v727
      %v2880 = vmul.bf16 %v2848, %v824
      %v2881 = vmul.bf16 %v2849, %v825
      %v2882 = vmul.bf16 %v2850, %v826
      %v2883 = vmul.bf16 %v2851, %v827
      %v2884 = vmul.bf16 %v2852, %v828
      %v2885 = vmul.bf16 %v2853, %v829
      %v2886 = vmul.bf16 %v2854, %v830
      %v2887 = vmul.bf16 %v2855, %v831
      %v2888 = vmul.bf16 %v2856, %v832
      %v2889 = vmul.bf16 %v2857, %v833
      %v2890 = vmul.bf16 %v2858, %v834
      %v2891 = vmul.bf16 %v2859, %v835
      %v2892 = vmul.bf16 %v2860, %v836
      %v2893 = vmul.bf16 %v2861, %v837
      %v2894 = vmul.bf16 %v2862, %v838
      %v2895 = vmul.bf16 %v2863, %v839
      %v2897 = vshrl.u32 %v2864, 16
      %v2899 = vrot.slane %v2897, 7
      %v2900 = vshll.u32 %v2864, 16
      %v2902 = vor.u32 %v2899, %v2900
      %v2904 = vshrl.u32 %v2865, 16
      %v2906 = vrot.slane %v2904, 7
      %v2907 = vshll.u32 %v2865, 16
      %v2909 = vor.u32 %v2906, %v2907
      %v2910 = vsel %vm1065, %v2899, %v2909
      %v2912 = vshrl.u32 %v2866, 16
      %v2914 = vrot.slane %v2912, 7
      %v2915 = vshll.u32 %v2866, 16
      %v2917 = vor.u32 %v2914, %v2915
      %v2918 = vsel %vm1065, %v2906, %v2917
      %v2920 = vshrl.u32 %v2867, 16
      %v2922 = vrot.slane %v2920, 7
      %v2923 = vshll.u32 %v2867, 16
      %v2925 = vor.u32 %v2922, %v2923
      %v2926 = vsel %vm1065, %v2914, %v2925
      %v2928 = vshrl.u32 %v2868, 16
      %v2930 = vrot.slane %v2928, 7
      %v2931 = vshll.u32 %v2868, 16
      %v2933 = vor.u32 %v2930, %v2931
      %v2934 = vsel %vm1065, %v2922, %v2933
      %v2936 = vshrl.u32 %v2869, 16
      %v2938 = vrot.slane %v2936, 7
      %v2939 = vshll.u32 %v2869, 16
      %v2941 = vor.u32 %v2938, %v2939
      %v2942 = vsel %vm1065, %v2930, %v2941
      %v2944 = vshrl.u32 %v2870, 16
      %v2946 = vrot.slane %v2944, 7
      %v2947 = vshll.u32 %v2870, 16
      %v2949 = vor.u32 %v2946, %v2947
      %v2950 = vsel %vm1065, %v2938, %v2949
      %v2952 = vshrl.u32 %v2871, 16
      %v2954 = vrot.slane %v2952, 7
      %v2955 = vshll.u32 %v2871, 16
      %v2957 = vor.u32 %v2954, %v2955
      %v2958 = vsel %vm1065, %v2946, %v2957
      %v2960 = vshrl.u32 %v2872, 16
      %v2962 = vrot.slane %v2960, 7
      %v2963 = vshll.u32 %v2872, 16
      %v2965 = vor.u32 %v2962, %v2963
      %v2966 = vsel %vm1065, %v2954, %v2965
      %v2968 = vshrl.u32 %v2873, 16
      %v2970 = vrot.slane %v2968, 7
      %v2971 = vshll.u32 %v2873, 16
      %v2973 = vor.u32 %v2970, %v2971
      %v2974 = vsel %vm1065, %v2962, %v2973
      %v2976 = vshrl.u32 %v2874, 16
      %v2978 = vrot.slane %v2976, 7
      %v2979 = vshll.u32 %v2874, 16
      %v2981 = vor.u32 %v2978, %v2979
      %v2982 = vsel %vm1065, %v2970, %v2981
      %v2984 = vshrl.u32 %v2875, 16
      %v2986 = vrot.slane %v2984, 7
      %v2987 = vshll.u32 %v2875, 16
      %v2989 = vor.u32 %v2986, %v2987
      %v2990 = vsel %vm1065, %v2978, %v2989
      %v2992 = vshrl.u32 %v2876, 16
      %v2994 = vrot.slane %v2992, 7
      %v2995 = vshll.u32 %v2876, 16
      %v2997 = vor.u32 %v2994, %v2995
      %v2998 = vsel %vm1065, %v2986, %v2997
      %v3000 = vshrl.u32 %v2877, 16
      %v3002 = vrot.slane %v3000, 7
      %v3003 = vshll.u32 %v2877, 16
      %v3005 = vor.u32 %v3002, %v3003
      %v3006 = vsel %vm1065, %v2994, %v3005
      %v3008 = vshrl.u32 %v2878, 16
      %v3010 = vrot.slane %v3008, 7
      %v3011 = vshll.u32 %v2878, 16
      %v3013 = vor.u32 %v3010, %v3011
      %v3014 = vsel %vm1065, %v3002, %v3013
      %v3030 = vsel %vm1201, 0, %v2902
      %v3032 = vshll.u32 %v2880, 16
      %v3034 = vrot.slane %v3032, 1
      %v3035 = vshrl.u32 %v2880, 16
      %v3037 = vor.u32 %v3035, %v3034
      %v3039 = vshll.u32 %v2881, 16
      %v3041 = vrot.slane %v3039, 1
      %v3042 = vsel %vm1203, %v3037, %v3041
      %v3043 = vshrl.u32 %v2881, 16
      %v3045 = vor.u32 %v3043, %v3041
      %v3047 = vshll.u32 %v2882, 16
      %v3049 = vrot.slane %v3047, 1
      %v3050 = vsel %vm1203, %v3045, %v3049
      %v3051 = vshrl.u32 %v2882, 16
      %v3053 = vor.u32 %v3051, %v3049
      %v3055 = vshll.u32 %v2883, 16
      %v3057 = vrot.slane %v3055, 1
      %v3058 = vsel %vm1203, %v3053, %v3057
      %v3059 = vshrl.u32 %v2883, 16
      %v3061 = vor.u32 %v3059, %v3057
      %v3063 = vshll.u32 %v2884, 16
      %v3065 = vrot.slane %v3063, 1
      %v3066 = vsel %vm1203, %v3061, %v3065
      %v3067 = vshrl.u32 %v2884, 16
      %v3069 = vor.u32 %v3067, %v3065
      %v3071 = vshll.u32 %v2885, 16
      %v3073 = vrot.slane %v3071, 1
      %v3074 = vsel %vm1203, %v3069, %v3073
      %v3075 = vshrl.u32 %v2885, 16
      %v3077 = vor.u32 %v3075, %v3073
      %v3079 = vshll.u32 %v2886, 16
      %v3081 = vrot.slane %v3079, 1
      %v3082 = vsel %vm1203, %v3077, %v3081
      %v3083 = vshrl.u32 %v2886, 16
      %v3085 = vor.u32 %v3083, %v3081
      %v3087 = vshll.u32 %v2887, 16
      %v3089 = vrot.slane %v3087, 1
      %v3090 = vsel %vm1203, %v3085, %v3089
      %v3091 = vshrl.u32 %v2887, 16
      %v3093 = vor.u32 %v3091, %v3089
      %v3095 = vshll.u32 %v2888, 16
      %v3097 = vrot.slane %v3095, 1
      %v3098 = vsel %vm1203, %v3093, %v3097
      %v3099 = vshrl.u32 %v2888, 16
      %v3101 = vor.u32 %v3099, %v3097
      %v3103 = vshll.u32 %v2889, 16
      %v3105 = vrot.slane %v3103, 1
      %v3106 = vsel %vm1203, %v3101, %v3105
      %v3107 = vshrl.u32 %v2889, 16
      %v3109 = vor.u32 %v3107, %v3105
      %v3111 = vshll.u32 %v2890, 16
      %v3113 = vrot.slane %v3111, 1
      %v3114 = vsel %vm1203, %v3109, %v3113
      %v3115 = vshrl.u32 %v2890, 16
      %v3117 = vor.u32 %v3115, %v3113
      %v3119 = vshll.u32 %v2891, 16
      %v3121 = vrot.slane %v3119, 1
      %v3122 = vsel %vm1203, %v3117, %v3121
      %v3123 = vshrl.u32 %v2891, 16
      %v3125 = vor.u32 %v3123, %v3121
      %v3127 = vshll.u32 %v2892, 16
      %v3129 = vrot.slane %v3127, 1
      %v3130 = vsel %vm1203, %v3125, %v3129
      %v3131 = vshrl.u32 %v2892, 16
      %v3133 = vor.u32 %v3131, %v3129
      %v3135 = vshll.u32 %v2893, 16
      %v3137 = vrot.slane %v3135, 1
      %v3138 = vsel %vm1203, %v3133, %v3137
      %v3139 = vshrl.u32 %v2893, 16
      %v3141 = vor.u32 %v3139, %v3137
      %v3143 = vshll.u32 %v2894, 16
      %v3145 = vrot.slane %v3143, 1
      %v3146 = vsel %vm1203, %v3141, %v3145
      %v3147 = vshrl.u32 %v2894, 16
      %v3149 = vor.u32 %v3147, %v3145
      %v3151 = vshll.u32 %v2895, 16
      %v3153 = vrot.slane %v3151, 1
      %v3154 = vsel %vm1203, %v3149, %v3153
      %v3171 = vsel %vm1345, 0, %v3034
      %v3173 = vshrl.u32 %v2879, 16
      %v3175 = vrot.slane %v3173, 7
      %v3176 = vshll.u32 %v2879, 16
      %v3178 = vor.u32 %v3175, %v3176
      %v3179 = vsel %vm1065, %v3010, %v3178
      %v3181 = vshrl.u32 %v2895, 16
      %v3183 = vor.u32 %v3181, %v3153
      %v3185 = vsel %vm1345, %v3183, 0
      %v3187 = vsel %vm1201, %v3175, 0
      %v3332 = vunpack.c.l.b16 %v2704
      %v3333 = vunpack.c.l.b16 %v2705
      %v3334 = vunpack.c.l.b16 %v2706
      %v3335 = vunpack.c.l.b16 %v2707
      %v3336 = vunpack.c.l.b16 %v2708
      %v3337 = vunpack.c.l.b16 %v2709
      %v3338 = vunpack.c.l.b16 %v2710
      %v3339 = vunpack.c.l.b16 %v2711
      %v3340 = vunpack.c.l.b16 %v2712
      %v3341 = vunpack.c.l.b16 %v2713
      %v3342 = vunpack.c.l.b16 %v2714
      %v3343 = vunpack.c.l.b16 %v2715
      %v3344 = vunpack.c.l.b16 %v2716
      %v3345 = vunpack.c.l.b16 %v2717
      %v3346 = vunpack.c.l.b16 %v2718
      %v3347 = vunpack.c.l.b16 %v2719
      %v3348 = vunpack.c.l.b16 %v2720
      %v3349 = vunpack.c.l.b16 %v2721
      %v3350 = vunpack.c.l.b16 %v2722
      %v3351 = vunpack.c.l.b16 %v2723
      %v3352 = vunpack.c.l.b16 %v2724
      %v3353 = vunpack.c.l.b16 %v2725
      %v3354 = vunpack.c.l.b16 %v2726
      %v3355 = vunpack.c.l.b16 %v2727
      %v3356 = vunpack.c.l.b16 %v2728
      %v3357 = vunpack.c.l.b16 %v2729
      %v3358 = vunpack.c.l.b16 %v2730
      %v3359 = vunpack.c.l.b16 %v2731
      %v3360 = vunpack.c.l.b16 %v2732
      %v3361 = vunpack.c.l.b16 %v2733
      %v3362 = vunpack.c.l.b16 %v2734
      %v3363 = vunpack.c.l.b16 %v2735
      %v3364 = vunpack.c.l.b16 %v2736
      %v3365 = vunpack.c.l.b16 %v2737
      %v3366 = vunpack.c.l.b16 %v2738
      %v3367 = vunpack.c.l.b16 %v2739
      %v3368 = vunpack.c.l.b16 %v2740
      %v3369 = vunpack.c.l.b16 %v2741
      %v3370 = vunpack.c.l.b16 %v2742
      %v3371 = vunpack.c.l.b16 %v2743
      %v3372 = vunpack.c.l.b16 %v2744
      %v3373 = vunpack.c.l.b16 %v2745
      %v3374 = vunpack.c.l.b16 %v2746
      %v3375 = vunpack.c.l.b16 %v2747
      %v3376 = vunpack.c.l.b16 %v2748
      %v3377 = vunpack.c.l.b16 %v2749
      %v3378 = vunpack.c.l.b16 %v2750
      %v3379 = vunpack.c.l.b16 %v2751
      %v3380 = vunpack.c.l.b16 %v2752
      %v3381 = vunpack.c.l.b16 %v2753
      %v3382 = vunpack.c.l.b16 %v2754
      %v3383 = vunpack.c.l.b16 %v2755
      %v3384 = vunpack.c.l.b16 %v2756
      %v3385 = vunpack.c.l.b16 %v2757
      %v3386 = vunpack.c.l.b16 %v2758
      %v3387 = vunpack.c.l.b16 %v2759
      %v3388 = vunpack.c.l.b16 %v2760
      %v3389 = vunpack.c.l.b16 %v2761
      %v3390 = vunpack.c.l.b16 %v2762
      %v3391 = vunpack.c.l.b16 %v2763
      %v3392 = vunpack.c.l.b16 %v2764
      %v3393 = vunpack.c.l.b16 %v2765
      %v3394 = vunpack.c.l.b16 %v2766
      %v3395 = vunpack.c.l.b16 %v2767
      %v3396 = vunpack.c.l.b16 %v2768
      %v3397 = vunpack.c.l.b16 %v2769
      %v3398 = vunpack.c.l.b16 %v2770
      %v3399 = vunpack.c.l.b16 %v2771
      %v3400 = vunpack.c.l.b16 %v2772
      %v3401 = vunpack.c.l.b16 %v2773
      %v3402 = vunpack.c.l.b16 %v2774
      %v3403 = vunpack.c.l.b16 %v2775
      %v3404 = vunpack.c.l.b16 %v2776
      %v3405 = vunpack.c.l.b16 %v2777
      %v3406 = vunpack.c.l.b16 %v2778
      %v3407 = vunpack.c.l.b16 %v2779
      %v3408 = vunpack.c.l.b16 %v2780
      %v3409 = vunpack.c.l.b16 %v2781
      %v3410 = vunpack.c.l.b16 %v2782
      %v3411 = vunpack.c.l.b16 %v2783
      %v3412 = vunpack.c.l.b16 %v2784
      %v3413 = vunpack.c.l.b16 %v2785
      %v3414 = vunpack.c.l.b16 %v2786
      %v3415 = vunpack.c.l.b16 %v2787
      %v3416 = vunpack.c.l.b16 %v2788
      %v3417 = vunpack.c.l.b16 %v2789
      %v3418 = vunpack.c.l.b16 %v2790
      %v3419 = vunpack.c.l.b16 %v2791
      %v3420 = vunpack.c.l.b16 %v2792
      %v3421 = vunpack.c.l.b16 %v2793
      %v3422 = vunpack.c.l.b16 %v2794
      %v3423 = vunpack.c.l.b16 %v2795
      %v3424 = vunpack.c.l.b16 %v2796
      %v3425 = vunpack.c.l.b16 %v2797
      %v3426 = vunpack.c.l.b16 %v2798
      %v3427 = vunpack.c.l.b16 %v2799
      %v3428 = vunpack.c.l.b16 %v2800
      %v3429 = vunpack.c.l.b16 %v2801
      %v3430 = vunpack.c.l.b16 %v2802
      %v3431 = vunpack.c.l.b16 %v2803
      %v3432 = vunpack.c.l.b16 %v2804
      %v3433 = vunpack.c.l.b16 %v2805
      %v3434 = vunpack.c.l.b16 %v2806
      %v3435 = vunpack.c.l.b16 %v2807
      %v3436 = vunpack.c.l.b16 %v2808
      %v3437 = vunpack.c.l.b16 %v2809
      %v3438 = vunpack.c.l.b16 %v2810
      %v3439 = vunpack.c.l.b16 %v2811
      %v3440 = vunpack.c.l.b16 %v2812
      %v3441 = vunpack.c.l.b16 %v2813
      %v3442 = vunpack.c.l.b16 %v2814
      %v3443 = vunpack.c.l.b16 %v2815
      %v3444 = vunpack.c.l.b16 %v2816
      %v3445 = vunpack.c.l.b16 %v2817
      %v3446 = vunpack.c.l.b16 %v2818
      %v3447 = vunpack.c.l.b16 %v2819
      %v3448 = vunpack.c.l.b16 %v2820
      %v3449 = vunpack.c.l.b16 %v2821
      %v3450 = vunpack.c.l.b16 %v2822
      %v3451 = vunpack.c.l.b16 %v2823
      %v3452 = vunpack.c.l.b16 %v2824
      %v3453 = vunpack.c.l.b16 %v2825
      %v3454 = vunpack.c.l.b16 %v2826
      %v3455 = vunpack.c.l.b16 %v2827
      %v3456 = vunpack.c.l.b16 %v2828
      %v3457 = vunpack.c.l.b16 %v2829
      %v3458 = vunpack.c.l.b16 %v2830
      %v3459 = vunpack.c.l.b16 %v2831
      %v3460 = vunpack.c.l.b16 %v2832
      %v3461 = vunpack.c.l.b16 %v2833
      %v3462 = vunpack.c.l.b16 %v2834
      %v3463 = vunpack.c.l.b16 %v2835
      %v3464 = vunpack.c.l.b16 %v2836
      %v3465 = vunpack.c.l.b16 %v2837
      %v3466 = vunpack.c.l.b16 %v2838
      %v3467 = vunpack.c.l.b16 %v2839
      %v3468 = vunpack.c.l.b16 %v2840
      %v3469 = vunpack.c.l.b16 %v2841
      %v3470 = vunpack.c.l.b16 %v2842
      %v3471 = vunpack.c.l.b16 %v2843
      %v3472 = vunpack.c.l.b16 %v2844
      %v3473 = vunpack.c.l.b16 %v2845
      %v3474 = vunpack.c.l.b16 %v2846
      %v3475 = vunpack.c.l.b16 %v2847
      %v3476 = vpack.c.b16 %v3333, %v3332
      %v3477 = vpack.c.b16 %v3335, %v3334
      %v3478 = vpack.c.b16 %v3337, %v3336
      %v3479 = vpack.c.b16 %v3339, %v3338
      %v3480 = vpack.c.b16 %v3341, %v3340
      %v3481 = vpack.c.b16 %v3343, %v3342
      %v3482 = vpack.c.b16 %v3345, %v3344
      %v3483 = vpack.c.b16 %v3347, %v3346
      %v3484 = vpack.c.b16 %v3349, %v3348
      %v3485 = vpack.c.b16 %v3351, %v3350
      %v3486 = vpack.c.b16 %v3353, %v3352
      %v3487 = vpack.c.b16 %v3355, %v3354
      %v3488 = vpack.c.b16 %v3357, %v3356
      %v3489 = vpack.c.b16 %v3359, %v3358
      %v3490 = vpack.c.b16 %v3361, %v3360
      %v3491 = vpack.c.b16 %v3363, %v3362
      %v3492 = vpack.c.b16 %v3365, %v3364
      %v3493 = vpack.c.b16 %v3367, %v3366
      %v3494 = vpack.c.b16 %v3369, %v3368
      %v3495 = vpack.c.b16 %v3371, %v3370
      %v3496 = vpack.c.b16 %v3373, %v3372
      %v3497 = vpack.c.b16 %v3375, %v3374
      %v3498 = vpack.c.b16 %v3377, %v3376
      %v3499 = vpack.c.b16 %v3379, %v3378
      %v3500 = vpack.c.b16 %v3381, %v3380
      %v3501 = vpack.c.b16 %v3383, %v3382
      %v3502 = vpack.c.b16 %v3385, %v3384
      %v3503 = vpack.c.b16 %v3387, %v3386
      %v3504 = vpack.c.b16 %v3389, %v3388
      %v3505 = vpack.c.b16 %v3391, %v3390
      %v3506 = vpack.c.b16 %v3393, %v3392
      %v3507 = vpack.c.b16 %v3395, %v3394
      %v3508 = vpack.c.b16 %v3397, %v3396
      %v3509 = vpack.c.b16 %v3399, %v3398
      %v3510 = vpack.c.b16 %v3401, %v3400
      %v3511 = vpack.c.b16 %v3403, %v3402
      %v3512 = vpack.c.b16 %v3405, %v3404
      %v3513 = vpack.c.b16 %v3407, %v3406
      %v3514 = vpack.c.b16 %v3409, %v3408
      %v3515 = vpack.c.b16 %v3411, %v3410
      %v3516 = vpack.c.b16 %v3413, %v3412
      %v3517 = vpack.c.b16 %v3415, %v3414
      %v3518 = vpack.c.b16 %v3417, %v3416
      %v3519 = vpack.c.b16 %v3419, %v3418
      %v3520 = vpack.c.b16 %v3421, %v3420
      %v3521 = vpack.c.b16 %v3423, %v3422
      %v3522 = vpack.c.b16 %v3425, %v3424
      %v3523 = vpack.c.b16 %v3427, %v3426
      %v3524 = vpack.c.b16 %v3429, %v3428
      %v3525 = vpack.c.b16 %v3431, %v3430
      %v3526 = vpack.c.b16 %v3433, %v3432
      %v3527 = vpack.c.b16 %v3435, %v3434
      %v3528 = vpack.c.b16 %v3437, %v3436
      %v3529 = vpack.c.b16 %v3439, %v3438
      %v3530 = vpack.c.b16 %v3441, %v3440
      %v3531 = vpack.c.b16 %v3443, %v3442
      %v3532 = vpack.c.b16 %v3445, %v3444
      %v3533 = vpack.c.b16 %v3447, %v3446
      %v3534 = vpack.c.b16 %v3449, %v3448
      %v3535 = vpack.c.b16 %v3451, %v3450
      %v3536 = vpack.c.b16 %v3453, %v3452
      %v3537 = vpack.c.b16 %v3455, %v3454
      %v3538 = vpack.c.b16 %v3457, %v3456
      %v3539 = vpack.c.b16 %v3459, %v3458
      %v3540 = vpack.c.b16 %v3461, %v3460
      %v3541 = vpack.c.b16 %v3463, %v3462
      %v3542 = vpack.c.b16 %v3465, %v3464
      %v3543 = vpack.c.b16 %v3467, %v3466
      %v3544 = vpack.c.b16 %v3469, %v3468
      %v3545 = vpack.c.b16 %v3471, %v3470
      %v3546 = vpack.c.b16 %v3473, %v3472
      %v3547 = vpack.c.b16 %v3475, %v3474
      %3620 = vmatprep.subr.bf16.mxu0 0
      %3621 = vmatpush1.bf16.msra.mxu0 %v3476
      %3622 = vmatprep.subr.bf16.mxu0 0
      %3623 = vmatpush1.bf16.msra.mxu0 %v3477
      %3624 = vmatprep.subr.bf16.mxu0 0
      %3625 = vmatpush1.bf16.msra.mxu0 %v3478
      %3626 = vmatprep.subr.bf16.mxu0 0
      %3627 = vmatpush1.bf16.msra.mxu0 %v3479
      %3628 = vmatprep.subr.bf16.mxu0 0
      %3629 = vmatpush1.bf16.msra.mxu0 %v3480
      %3630 = vmatprep.subr.bf16.mxu0 0
      %3631 = vmatpush1.bf16.msra.mxu0 %v3481
      %3632 = vmatprep.subr.bf16.mxu0 0
      %3633 = vmatpush1.bf16.msra.mxu0 %v3482
      %3634 = vmatprep.subr.bf16.mxu0 0
      %3635 = vmatpush1.bf16.msra.mxu0 %v3483
      %3636 = vmatprep.subr.bf16.mxu0 0
      %3637 = vmatpush1.bf16.msra.mxu0 %v3484
      %3638 = vmatprep.subr.bf16.mxu0 0
      %3639 = vmatpush1.bf16.msra.mxu0 %v3485
      %3640 = vmatprep.subr.bf16.mxu0 0
      %3641 = vmatpush1.bf16.msra.mxu0 %v3486
      %3642 = vmatprep.subr.bf16.mxu0 0
      %3643 = vmatpush1.bf16.msra.mxu0 %v3487
      %3644 = vmatprep.subr.bf16.mxu0 0
      %3645 = vmatpush1.bf16.msra.mxu0 %v3488
      %3646 = vmatprep.subr.bf16.mxu0 0
      %3647 = vmatpush1.bf16.msra.mxu0 %v3489
      %3648 = vmatprep.subr.bf16.mxu0 0
      %3649 = vmatpush1.bf16.msra.mxu0 %v3490
      %3650 = vmatprep.subr.bf16.mxu0 0
      %3651 = vmatpush1.bf16.msra.mxu0 %v3491
      %3652 = vmatprep.mubr.bf16.mxu0 0
      %3653 = vmatmul.mubr.bf16.gmra.mrb[0].mxu0 0
      %v3654 = vpop.f32.mrb[0].mxu0
      %v3655 = vadd.f32 0.0, %v3654
      %v3656 = vpop.f32.mrb[0].mxu0
      %v3657 = vpop.f32.mrb[0].mxu0
      %v3658 = vadd.f32 0.0, %v3657
      %v3659 = vpop.f32.mrb[0].mxu0
      %3660 = vmatprep.mubr.bf16.mxu0 %v2848
      %3661 = vmatmul.mubr.bf16.gmra.mrb[0].mxu0 %v3030
      %v3662 = vpop.f32.mrb[0].mxu0
      %v3663 = vadd.f32 0.0, %v3662
      %v3664 = vpop.f32.mrb[0].mxu0
      %v3665 = vpop.f32.mrb[0].mxu0
      %v3666 = vadd.f32 0.0, %v3665
      %v3667 = vpop.f32.mrb[0].mxu0
      %3668 = vmatprep.mubr.bf16.mxu0 %v2849
      %3669 = vmatmul.mubr.bf16.gmra.mrb[0].mxu0 %v2910
      %v3670 = vpop.f32.mrb[0].mxu0
      %v3671 = vadd.f32 0.0, %v3670
      %v3672 = vpop.f32.mrb[0].mxu0
      %v3673 = vpop.f32.mrb[0].mxu0
      %v3674 = vadd.f32 0.0, %v3673
      %v3675 = vpop.f32.mrb[0].mxu0
      %3676 = vmatprep.mubr.bf16.mxu0 %v2850
      %3677 = vmatmul.mubr.bf16.gmra.mrb[0].mxu0 %v2918
      %v3678 = vpop.f32.mrb[0].mxu0
      %v3679 = vadd.f32 0.0, %v3678
      %v3680 = vpop.f32.mrb[0].mxu0
      %v3681 = vpop.f32.mrb[0].mxu0
      %v3682 = vadd.f32 0.0, %v3681
      %v3683 = vpop.f32.mrb[0].mxu0
      %3684 = vmatprep.mubr.bf16.mxu0 %v2851
      %3685 = vmatmul.mubr.bf16.gmra.mrb[0].mxu0 %v2926
      %v3686 = vpop.f32.mrb[0].mxu0
      %v3687 = vadd.f32 0.0, %v3686
      %v3688 = vpop.f32.mrb[0].mxu0
      %v3689 = vpop.f32.mrb[0].mxu0
      %v3690 = vadd.f32 0.0, %v3689
      %v3691 = vpop.f32.mrb[0].mxu0
      %3692 = vmatprep.mubr.bf16.mxu0 %v2852
      %3693 = vmatmul.mubr.bf16.gmra.mrb[0].mxu0 %v2934
      %v3694 = vpop.f32.mrb[0].mxu0
      %v3695 = vadd.f32 0.0, %v3694
      %v3696 = vpop.f32.mrb[0].mxu0
      %v3697 = vpop.f32.mrb[0].mxu0
      %v3698 = vadd.f32 0.0, %v3697
      %v3699 = vpop.f32.mrb[0].mxu0
      %3700 = vmatprep.mubr.bf16.mxu0 %v2853
      %3701 = vmatmul.mubr.bf16.gmra.mrb[0].mxu0 %v2942
      %v3702 = vpop.f32.mrb[0].mxu0
      %v3703 = vadd.f32 0.0, %v3702
      %v3704 = vpop.f32.mrb[0].mxu0
      %v3705 = vpop.f32.mrb[0].mxu0
      %v3706 = vadd.f32 0.0, %v3705
      %v3707 = vpop.f32.mrb[0].mxu0
      %3708 = vmatprep.mubr.bf16.mxu0 %v2854
      %3709 = vmatmul.mubr.bf16.gmra.mrb[0].mxu0 %v2950
      %v3710 = vpop.f32.mrb[0].mxu0
      %v3711 = vadd.f32 0.0, %v3710
      %v3712 = vpop.f32.mrb[0].mxu0
      %v3713 = vpop.f32.mrb[0].mxu0
      %v3714 = vadd.f32 0.0, %v3713
      %v3715 = vpop.f32.mrb[0].mxu0
      %3716 = vmatprep.mubr.bf16.mxu0 %v2855
      %3717 = vmatmul.mubr.bf16.gmra.mrb[0].mxu0 %v2958
      %v3718 = vpop.f32.mrb[0].mxu0
      %v3719 = vadd.f32 0.0, %v3718
      %v3720 = vpop.f32.mrb[0].mxu0
      %v3721 = vpop.f32.mrb[0].mxu0
      %v3722 = vadd.f32 0.0, %v3721
      %v3723 = vpop.f32.mrb[0].mxu0
      %3724 = vmatprep.mubr.bf16.mxu0 %v2856
      %3725 = vmatmul.mubr.bf16.gmra.mrb[0].mxu0 %v2966
      %v3726 = vpop.f32.mrb[0].mxu0
      %v3727 = vadd.f32 0.0, %v3726
      %v3728 = vpop.f32.mrb[0].mxu0
      %v3729 = vpop.f32.mrb[0].mxu0
      %v3730 = vadd.f32 0.0, %v3729
      %v3731 = vpop.f32.mrb[0].mxu0
      %3732 = vmatprep.mubr.bf16.mxu0 %v2857
      %3733 = vmatmul.mubr.bf16.gmra.mrb[0].mxu0 %v2974
      %v3734 = vpop.f32.mrb[0].mxu0
      %v3735 = vadd.f32 0.0, %v3734
      %v3736 = vpop.f32.mrb[0].mxu0
      %v3737 = vpop.f32.mrb[0].mxu0
      %v3738 = vadd.f32 0.0, %v3737
      %v3739 = vpop.f32.mrb[0].mxu0
      %3740 = vmatprep.mubr.bf16.mxu0 %v2858
      %3741 = vmatmul.mubr.bf16.gmra.mrb[0].mxu0 %v2982
      %v3742 = vpop.f32.mrb[0].mxu0
      %v3743 = vadd.f32 0.0, %v3742
      %v3744 = vpop.f32.mrb[0].mxu0
      %v3745 = vpop.f32.mrb[0].mxu0
      %v3746 = vadd.f32 0.0, %v3745
      %v3747 = vpop.f32.mrb[0].mxu0
      %3748 = vmatprep.mubr.bf16.mxu0 %v2859
      %3749 = vmatmul.mubr.bf16.gmra.mrb[0].mxu0 %v2990
      %v3750 = vpop.f32.mrb[0].mxu0
      %v3751 = vadd.f32 0.0, %v3750
      %v3752 = vpop.f32.mrb[0].mxu0
      %v3753 = vpop.f32.mrb[0].mxu0
      %v3754 = vadd.f32 0.0, %v3753
      %v3755 = vpop.f32.mrb[0].mxu0
      %3756 = vmatprep.mubr.bf16.mxu0 %v2860
      %3757 = vmatmul.mubr.bf16.gmra.mrb[0].mxu0 %v2998
      %v3758 = vpop.f32.mrb[0].mxu0
      %v3759 = vadd.f32 0.0, %v3758
      %v3760 = vpop.f32.mrb[0].mxu0
      %v3761 = vpop.f32.mrb[0].mxu0
      %v3762 = vadd.f32 0.0, %v3761
      %v3763 = vpop.f32.mrb[0].mxu0
      %3764 = vmatprep.mubr.bf16.mxu0 %v2861
      %3765 = vmatmul.mubr.bf16.gmra.mrb[0].mxu0 %v3006
      %v3766 = vpop.f32.mrb[0].mxu0
      %v3767 = vadd.f32 0.0, %v3766
      %v3768 = vpop.f32.mrb[0].mxu0
      %v3769 = vpop.f32.mrb[0].mxu0
      %v3770 = vadd.f32 0.0, %v3769
      %v3771 = vpop.f32.mrb[0].mxu0
      %3772 = vmatprep.mubr.bf16.mxu0 %v2862
      %3773 = vmatmul.mubr.bf16.gmra.mrb[0].mxu0 %v3014
      %v3774 = vpop.f32.mrb[0].mxu0
      %v3775 = vadd.f32 0.0, %v3774
      %v3776 = vpop.f32.mrb[0].mxu0
      %v3777 = vpop.f32.mrb[0].mxu0
      %v3778 = vadd.f32 0.0, %v3777
      %v3779 = vpop.f32.mrb[0].mxu0
      %3780 = vdwg.mxu0
      %3781 = vmatprep.subr.bf16.mxu0 0
      %3782 = vmatpush1.bf16.msra.mxu0 %v3492
      %3783 = vmatprep.subr.bf16.mxu0 0
      %3784 = vmatpush1.bf16.msra.mxu0 %v3493
      %3785 = vmatprep.subr.bf16.mxu0 0
      %3786 = vmatpush1.bf16.msra.mxu0 %v3494
      %3787 = vmatprep.subr.bf16.mxu0 0
      %3788 = vmatpush1.bf16.msra.mxu0 %v3495
      %3789 = vmatprep.subr.bf16.mxu0 0
      %3790 = vmatpush1.bf16.msra.mxu0 %v3496
      %3791 = vmatprep.subr.bf16.mxu0 0
      %3792 = vmatpush1.bf16.msra.mxu0 %v3497
      %3793 = vmatprep.subr.bf16.mxu0 0
      %3794 = vmatpush1.bf16.msra.mxu0 %v3498
      %3795 = vmatprep.subr.bf16.mxu0 0
      %3796 = vmatpush1.bf16.msra.mxu0 %v3499
      %3797 = vmatprep.subr.bf16.mxu0 0
      %3798 = vmatpush1.bf16.msra.mxu0 %v3500
      %3799 = vmatprep.subr.bf16.mxu0 0
      %3800 = vmatpush1.bf16.msra.mxu0 %v3501
      %3801 = vmatprep.subr.bf16.mxu0 0
      %3802 = vmatpush1.bf16.msra.mxu0 %v3502
      %3803 = vmatprep.subr.bf16.mxu0 0
      %3804 = vmatpush1.bf16.msra.mxu0 %v3503
      %3805 = vmatprep.subr.bf16.mxu0 0
      %3806 = vmatpush1.bf16.msra.mxu0 %v3504
      %3807 = vmatprep.subr.bf16.mxu0 0
      %3808 = vmatpush1.bf16.msra.mxu0 %v3505
      %3809 = vmatprep.subr.bf16.mxu0 0
      %3810 = vmatpush1.bf16.msra.mxu0 %v3506
      %3811 = vmatprep.subr.bf16.mxu0 0
      %3812 = vmatpush1.bf16.msra.mxu0 %v3507
      %3813 = vmatprep.mubr.bf16.mxu0 %v3030
      %3814 = vmatmul.mubr.bf16.gmra.mrb[0].mxu0 %v3171
      %v3815 = vpop.f32.mrb[0].mxu0
      %v3816 = vadd.f32 %v3655, %v3815
      %v3817 = vpop.f32.mrb[0].mxu0
      %v3818 = vpop.f32.mrb[0].mxu0
      %v3819 = vadd.f32 %v3658, %v3818
      %v3820 = vpop.f32.mrb[0].mxu0
      %3821 = vmatprep.mubr.bf16.mxu0 %v2910
      %3822 = vmatmul.mubr.bf16.gmra.mrb[0].mxu0 %v3042
      %v3823 = vpop.f32.mrb[0].mxu0
      %v3824 = vadd.f32 %v3663, %v3823
      %v3825 = vpop.f32.mrb[0].mxu0
      %v3826 = vpop.f32.mrb[0].mxu0
      %v3827 = vadd.f32 %v3666, %v3826
      %v3828 = vpop.f32.mrb[0].mxu0
      %3829 = vmatprep.mubr.bf16.mxu0 %v2918
      %3830 = vmatmul.mubr.bf16.gmra.mrb[0].mxu0 %v3050
      %v3831 = vpop.f32.mrb[0].mxu0
      %v3832 = vadd.f32 %v3671, %v3831
      %v3833 = vpop.f32.mrb[0].mxu0
      %v3834 = vpop.f32.mrb[0].mxu0
      %v3835 = vadd.f32 %v3674, %v3834
      %v3836 = vpop.f32.mrb[0].mxu0
      %3837 = vmatprep.mubr.bf16.mxu0 %v2926
      %3838 = vmatmul.mubr.bf16.gmra.mrb[0].mxu0 %v3058
      %v3839 = vpop.f32.mrb[0].mxu0
      %v3840 = vadd.f32 %v3679, %v3839
      %v3841 = vpop.f32.mrb[0].mxu0
      %v3842 = vpop.f32.mrb[0].mxu0
      %v3843 = vadd.f32 %v3682, %v3842
      %v3844 = vpop.f32.mrb[0].mxu0
      %3845 = vmatprep.mubr.bf16.mxu0 %v2934
      %3846 = vmatmul.mubr.bf16.gmra.mrb[0].mxu0 %v3066
      %v3847 = vpop.f32.mrb[0].mxu0
      %v3848 = vadd.f32 %v3687, %v3847
      %v3849 = vpop.f32.mrb[0].mxu0
      %v3850 = vpop.f32.mrb[0].mxu0
      %v3851 = vadd.f32 %v3690, %v3850
      %v3852 = vpop.f32.mrb[0].mxu0
      %3853 = vmatprep.mubr.bf16.mxu0 %v2942
      %3854 = vmatmul.mubr.bf16.gmra.mrb[0].mxu0 %v3074
      %v3855 = vpop.f32.mrb[0].mxu0
      %v3856 = vadd.f32 %v3695, %v3855
      %v3857 = vpop.f32.mrb[0].mxu0
      %v3858 = vpop.f32.mrb[0].mxu0
      %v3859 = vadd.f32 %v3698, %v3858
      %v3860 = vpop.f32.mrb[0].mxu0
      %3861 = vmatprep.mubr.bf16.mxu0 %v2950
      %3862 = vmatmul.mubr.bf16.gmra.mrb[0].mxu0 %v3082
      %v3863 = vpop.f32.mrb[0].mxu0
      %v3864 = vadd.f32 %v3703, %v3863
      %v3865 = vpop.f32.mrb[0].mxu0
      %v3866 = vpop.f32.mrb[0].mxu0
      %v3867 = vadd.f32 %v3706, %v3866
      %v3868 = vpop.f32.mrb[0].mxu0
      %3869 = vmatprep.mubr.bf16.mxu0 %v2958
      %3870 = vmatmul.mubr.bf16.gmra.mrb[0].mxu0 %v3090
      %v3871 = vpop.f32.mrb[0].mxu0
      %v3872 = vadd.f32 %v3711, %v3871
      %v3873 = vpop.f32.mrb[0].mxu0
      %v3874 = vpop.f32.mrb[0].mxu0
      %v3875 = vadd.f32 %v3714, %v3874
      %v3876 = vpop.f32.mrb[0].mxu0
      %3877 = vmatprep.mubr.bf16.mxu0 %v2966
      %3878 = vmatmul.mubr.bf16.gmra.mrb[0].mxu0 %v3098
      %v3879 = vpop.f32.mrb[0].mxu0
      %v3880 = vadd.f32 %v3719, %v3879
      %v3881 = vpop.f32.mrb[0].mxu0
      %v3882 = vpop.f32.mrb[0].mxu0
      %v3883 = vadd.f32 %v3722, %v3882
      %v3884 = vpop.f32.mrb[0].mxu0
      %3885 = vmatprep.mubr.bf16.mxu0 %v2974
      %3886 = vmatmul.mubr.bf16.gmra.mrb[0].mxu0 %v3106
      %v3887 = vpop.f32.mrb[0].mxu0
      %v3888 = vadd.f32 %v3727, %v3887
      %v3889 = vpop.f32.mrb[0].mxu0
      %v3890 = vpop.f32.mrb[0].mxu0
      %v3891 = vadd.f32 %v3730, %v3890
      %v3892 = vpop.f32.mrb[0].mxu0
      %3893 = vmatprep.mubr.bf16.mxu0 %v2982
      %3894 = vmatmul.mubr.bf16.gmra.mrb[0].mxu0 %v3114
      %v3895 = vpop.f32.mrb[0].mxu0
      %v3896 = vadd.f32 %v3735, %v3895
      %v3897 = vpop.f32.mrb[0].mxu0
      %v3898 = vpop.f32.mrb[0].mxu0
      %v3899 = vadd.f32 %v3738, %v3898
      %v3900 = vpop.f32.mrb[0].mxu0
      %3901 = vmatprep.mubr.bf16.mxu0 %v2990
      %3902 = vmatmul.mubr.bf16.gmra.mrb[0].mxu0 %v3122
      %v3903 = vpop.f32.mrb[0].mxu0
      %v3904 = vadd.f32 %v3743, %v3903
      %v3905 = vpop.f32.mrb[0].mxu0
      %v3906 = vpop.f32.mrb[0].mxu0
      %v3907 = vadd.f32 %v3746, %v3906
      %v3908 = vpop.f32.mrb[0].mxu0
      %3909 = vmatprep.mubr.bf16.mxu0 %v2998
      %3910 = vmatmul.mubr.bf16.gmra.mrb[0].mxu0 %v3130
      %v3911 = vpop.f32.mrb[0].mxu0
      %v3912 = vadd.f32 %v3751, %v3911
      %v3913 = vpop.f32.mrb[0].mxu0
      %v3914 = vpop.f32.mrb[0].mxu0
      %v3915 = vadd.f32 %v3754, %v3914
      %v3916 = vpop.f32.mrb[0].mxu0
      %3917 = vmatprep.mubr.bf16.mxu0 %v3006
      %3918 = vmatmul.mubr.bf16.gmra.mrb[0].mxu0 %v3138
      %v3919 = vpop.f32.mrb[0].mxu0
      %v3920 = vadd.f32 %v3759, %v3919
      %v3921 = vpop.f32.mrb[0].mxu0
      %v3922 = vpop.f32.mrb[0].mxu0
      %v3923 = vadd.f32 %v3762, %v3922
      %v3924 = vpop.f32.mrb[0].mxu0
      %3925 = vmatprep.mubr.bf16.mxu0 %v3014
      %3926 = vmatmul.mubr.bf16.gmra.mrb[0].mxu0 %v3146
      %v3927 = vpop.f32.mrb[0].mxu0
      %v3928 = vadd.f32 %v3767, %v3927
      %v3929 = vpop.f32.mrb[0].mxu0
      %v3930 = vpop.f32.mrb[0].mxu0
      %v3931 = vadd.f32 %v3770, %v3930
      %v3932 = vpop.f32.mrb[0].mxu0
      %3933 = vmatprep.mubr.bf16.mxu0 %v3179
      %3934 = vmatmul.mubr.bf16.gmra.mrb[0].mxu0 %v3154
      %v3935 = vpop.f32.mrb[0].mxu0
      %v3936 = vadd.f32 %v3775, %v3935
      %v3937 = vpop.f32.mrb[0].mxu0
      %v3938 = vpop.f32.mrb[0].mxu0
      %v3939 = vadd.f32 %v3778, %v3938
      %v3940 = vpop.f32.mrb[0].mxu0
      %3941 = vdwg.mxu0
      %3942 = vmatprep.subr.bf16.mxu0 0
      %3943 = vmatpush1.bf16.msra.mxu0 %v3508
      %3944 = vmatprep.subr.bf16.mxu0 0
      %3945 = vmatpush1.bf16.msra.mxu0 %v3509
      %3946 = vmatprep.subr.bf16.mxu0 0
      %3947 = vmatpush1.bf16.msra.mxu0 %v3510
      %3948 = vmatprep.subr.bf16.mxu0 0
      %3949 = vmatpush1.bf16.msra.mxu0 %v3511
      %3950 = vmatprep.subr.bf16.mxu0 0
      %3951 = vmatpush1.bf16.msra.mxu0 %v3512
      %3952 = vmatprep.subr.bf16.mxu0 0
      %3953 = vmatpush1.bf16.msra.mxu0 %v3513
      %3954 = vmatprep.subr.bf16.mxu0 0
      %3955 = vmatpush1.bf16.msra.mxu0 %v3514
      %3956 = vmatprep.subr.bf16.mxu0 0
      %3957 = vmatpush1.bf16.msra.mxu0 %v3515
      %3958 = vmatprep.subr.bf16.mxu0 0
      %3959 = vmatpush1.bf16.msra.mxu0 %v3516
      %3960 = vmatprep.subr.bf16.mxu0 0
      %3961 = vmatpush1.bf16.msra.mxu0 %v3517
      %3962 = vmatprep.subr.bf16.mxu0 0
      %3963 = vmatpush1.bf16.msra.mxu0 %v3518
      %3964 = vmatprep.subr.bf16.mxu0 0
      %3965 = vmatpush1.bf16.msra.mxu0 %v3519
      %3966 = vmatprep.subr.bf16.mxu0 0
      %3967 = vmatpush1.bf16.msra.mxu0 %v3520
      %3968 = vmatprep.subr.bf16.mxu0 0
      %3969 = vmatpush1.bf16.msra.mxu0 %v3521
      %3970 = vmatprep.subr.bf16.mxu0 0
      %3971 = vmatpush1.bf16.msra.mxu0 %v3522
      %3972 = vmatprep.subr.bf16.mxu0 0
      %3973 = vmatpush1.bf16.msra.mxu0 %v3523
      %3974 = vmatprep.mubr.bf16.mxu0 %v3042
      %3975 = vmatmul.mubr.bf16.gmra.mrb[0].mxu0 %v2848
      %v3976 = vpop.f32.mrb[0].mxu0
      %v3977 = vadd.f32 %v3816, %v3976
      %v3978 = vpop.f32.mrb[0].mxu0
      %v3979 = vpop.f32.mrb[0].mxu0
      %v3980 = vadd.f32 %v3819, %v3979
      %v3981 = vpop.f32.mrb[0].mxu0
      %3982 = vmatprep.mubr.bf16.mxu0 %v3050
      %3983 = vmatmul.mubr.bf16.gmra.mrb[0].mxu0 %v2849
      %v3984 = vpop.f32.mrb[0].mxu0
      %v3985 = vadd.f32 %v3824, %v3984
      %v3986 = vpop.f32.mrb[0].mxu0
      %v3987 = vpop.f32.mrb[0].mxu0
      %v3988 = vadd.f32 %v3827, %v3987
      %v3989 = vpop.f32.mrb[0].mxu0
      %3990 = vmatprep.mubr.bf16.mxu0 %v3058
      %3991 = vmatmul.mubr.bf16.gmra.mrb[0].mxu0 %v2850
      %v3992 = vpop.f32.mrb[0].mxu0
      %v3993 = vadd.f32 %v3832, %v3992
      %v3994 = vpop.f32.mrb[0].mxu0
      %v3995 = vpop.f32.mrb[0].mxu0
      %v3996 = vadd.f32 %v3835, %v3995
      %v3997 = vpop.f32.mrb[0].mxu0
      %3998 = vmatprep.mubr.bf16.mxu0 %v3066
      %3999 = vmatmul.mubr.bf16.gmra.mrb[0].mxu0 %v2851
      %v4000 = vpop.f32.mrb[0].mxu0
      %v4001 = vadd.f32 %v3840, %v4000
      %v4002 = vpop.f32.mrb[0].mxu0
      %v4003 = vpop.f32.mrb[0].mxu0
      %v4004 = vadd.f32 %v3843, %v4003
      %v4005 = vpop.f32.mrb[0].mxu0
      %4006 = vmatprep.mubr.bf16.mxu0 %v3074
      %4007 = vmatmul.mubr.bf16.gmra.mrb[0].mxu0 %v2852
      %v4008 = vpop.f32.mrb[0].mxu0
      %v4009 = vadd.f32 %v3848, %v4008
      %v4010 = vpop.f32.mrb[0].mxu0
      %v4011 = vpop.f32.mrb[0].mxu0
      %v4012 = vadd.f32 %v3851, %v4011
      %v4013 = vpop.f32.mrb[0].mxu0
      %4014 = vmatprep.mubr.bf16.mxu0 %v3082
      %4015 = vmatmul.mubr.bf16.gmra.mrb[0].mxu0 %v2853
      %v4016 = vpop.f32.mrb[0].mxu0
      %v4017 = vadd.f32 %v3856, %v4016
      %v4018 = vpop.f32.mrb[0].mxu0
      %v4019 = vpop.f32.mrb[0].mxu0
      %v4020 = vadd.f32 %v3859, %v4019
      %v4021 = vpop.f32.mrb[0].mxu0
      %4022 = vmatprep.mubr.bf16.mxu0 %v3090
      %4023 = vmatmul.mubr.bf16.gmra.mrb[0].mxu0 %v2854
      %v4024 = vpop.f32.mrb[0].mxu0
      %v4025 = vadd.f32 %v3864, %v4024
      %v4026 = vpop.f32.mrb[0].mxu0
      %v4027 = vpop.f32.mrb[0].mxu0
      %v4028 = vadd.f32 %v3867, %v4027
      %v4029 = vpop.f32.mrb[0].mxu0
      %4030 = vmatprep.mubr.bf16.mxu0 %v3098
      %4031 = vmatmul.mubr.bf16.gmra.mrb[0].mxu0 %v2855
      %v4032 = vpop.f32.mrb[0].mxu0
      %v4033 = vadd.f32 %v3872, %v4032
      %v4034 = vpop.f32.mrb[0].mxu0
      %v4035 = vpop.f32.mrb[0].mxu0
      %v4036 = vadd.f32 %v3875, %v4035
      %v4037 = vpop.f32.mrb[0].mxu0
      %4038 = vmatprep.mubr.bf16.mxu0 %v3106
      %4039 = vmatmul.mubr.bf16.gmra.mrb[0].mxu0 %v2856
      %v4040 = vpop.f32.mrb[0].mxu0
      %v4041 = vadd.f32 %v3880, %v4040
      %v4042 = vpop.f32.mrb[0].mxu0
      %v4043 = vpop.f32.mrb[0].mxu0
      %v4044 = vadd.f32 %v3883, %v4043
      %v4045 = vpop.f32.mrb[0].mxu0
      %4046 = vmatprep.mubr.bf16.mxu0 %v3114
      %4047 = vmatmul.mubr.bf16.gmra.mrb[0].mxu0 %v2857
      %v4048 = vpop.f32.mrb[0].mxu0
      %v4049 = vadd.f32 %v3888, %v4048
      %v4050 = vpop.f32.mrb[0].mxu0
      %v4051 = vpop.f32.mrb[0].mxu0
      %v4052 = vadd.f32 %v3891, %v4051
      %v4053 = vpop.f32.mrb[0].mxu0
      %4054 = vmatprep.mubr.bf16.mxu0 %v3122
      %4055 = vmatmul.mubr.bf16.gmra.mrb[0].mxu0 %v2858
      %v4056 = vpop.f32.mrb[0].mxu0
      %v4057 = vadd.f32 %v3896, %v4056
      %v4058 = vpop.f32.mrb[0].mxu0
      %v4059 = vpop.f32.mrb[0].mxu0
      %v4060 = vadd.f32 %v3899, %v4059
      %v4061 = vpop.f32.mrb[0].mxu0
      %4062 = vmatprep.mubr.bf16.mxu0 %v3130
      %4063 = vmatmul.mubr.bf16.gmra.mrb[0].mxu0 %v2859
      %v4064 = vpop.f32.mrb[0].mxu0
      %v4065 = vadd.f32 %v3904, %v4064
      %v4066 = vpop.f32.mrb[0].mxu0
      %v4067 = vpop.f32.mrb[0].mxu0
      %v4068 = vadd.f32 %v3907, %v4067
      %v4069 = vpop.f32.mrb[0].mxu0
      %4070 = vmatprep.mubr.bf16.mxu0 %v3138
      %4071 = vmatmul.mubr.bf16.gmra.mrb[0].mxu0 %v2860
      %v4072 = vpop.f32.mrb[0].mxu0
      %v4073 = vadd.f32 %v3912, %v4072
      %v4074 = vpop.f32.mrb[0].mxu0
      %v4075 = vpop.f32.mrb[0].mxu0
      %v4076 = vadd.f32 %v3915, %v4075
      %v4077 = vpop.f32.mrb[0].mxu0
      %4078 = vmatprep.mubr.bf16.mxu0 %v3146
      %4079 = vmatmul.mubr.bf16.gmra.mrb[0].mxu0 %v2861
      %v4080 = vpop.f32.mrb[0].mxu0
      %v4081 = vadd.f32 %v3920, %v4080
      %v4082 = vpop.f32.mrb[0].mxu0
      %v4083 = vpop.f32.mrb[0].mxu0
      %v4084 = vadd.f32 %v3923, %v4083
      %v4085 = vpop.f32.mrb[0].mxu0
      %4086 = vmatprep.mubr.bf16.mxu0 %v3154
      %4087 = vmatmul.mubr.bf16.gmra.mrb[0].mxu0 %v2862
      %v4088 = vpop.f32.mrb[0].mxu0
      %v4089 = vadd.f32 %v3928, %v4088
      %v4090 = vpop.f32.mrb[0].mxu0
      %v4091 = vpop.f32.mrb[0].mxu0
      %v4092 = vadd.f32 %v3931, %v4091
      %v4093 = vpop.f32.mrb[0].mxu0
      %4094 = vmatprep.mubr.bf16.mxu0 %v3185
      %4095 = vmatmul.mubr.bf16.gmra.mrb[0].mxu0 %v2863
      %v4096 = vpop.f32.mrb[0].mxu0
      %v4097 = vadd.f32 %v3936, %v4096
      %v4098 = vpop.f32.mrb[0].mxu0
      %v4099 = vpop.f32.mrb[0].mxu0
      %v4100 = vadd.f32 %v3939, %v4099
      %v4101 = vpop.f32.mrb[0].mxu0
      %4102 = vdwg.mxu0
      %4103 = vmatprep.subr.bf16.mxu0 0
      %4104 = vmatpush1.bf16.msra.mxu0 %v3524
      %4105 = vmatprep.subr.bf16.mxu0 0
      %4106 = vmatpush1.bf16.msra.mxu0 %v3525
      %4107 = vmatprep.subr.bf16.mxu0 0
      %4108 = vmatpush1.bf16.msra.mxu0 %v3526
      %4109 = vmatprep.subr.bf16.mxu0 0
      %4110 = vmatpush1.bf16.msra.mxu0 %v3527
      %4111 = vmatprep.subr.bf16.mxu0 0
      %4112 = vmatpush1.bf16.msra.mxu0 %v3528
      %4113 = vmatprep.subr.bf16.mxu0 0
      %4114 = vmatpush1.bf16.msra.mxu0 %v3529
      %4115 = vmatprep.subr.bf16.mxu0 0
      %4116 = vmatpush1.bf16.msra.mxu0 %v3530
      %4117 = vmatprep.subr.bf16.mxu0 0
      %4118 = vmatpush1.bf16.msra.mxu0 %v3531
      %4119 = vmatprep.subr.bf16.mxu0 0
      %4120 = vmatpush1.bf16.msra.mxu0 %v3532
      %4121 = vmatprep.subr.bf16.mxu0 0
      %4122 = vmatpush1.bf16.msra.mxu0 %v3533
      %4123 = vmatprep.subr.bf16.mxu0 0
      %4124 = vmatpush1.bf16.msra.mxu0 %v3534
      %4125 = vmatprep.subr.bf16.mxu0 0
      %4126 = vmatpush1.bf16.msra.mxu0 %v3535
      %4127 = vmatprep.subr.bf16.mxu0 0
      %4128 = vmatpush1.bf16.msra.mxu0 %v3536
      %4129 = vmatprep.subr.bf16.mxu0 0
      %4130 = vmatpush1.bf16.msra.mxu0 %v3537
      %4131 = vmatprep.subr.bf16.mxu0 0
      %4132 = vmatpush1.bf16.msra.mxu0 %v3538
      %4133 = vmatprep.subr.bf16.mxu0 0
      %4134 = vmatpush1.bf16.msra.mxu0 %v3539
      %4135 = vmatprep.mubr.bf16.mxu0 %v2849
      %4136 = vmatmul.mubr.bf16.gmra.mrb[0].mxu0 %v2910
      %v4137 = vpop.f32.mrb[0].mxu0
      %v4138 = vadd.f32 %v3977, %v4137
      %v4139 = vpop.f32.mrb[0].mxu0
      %v4140 = vpop.f32.mrb[0].mxu0
      %v4141 = vadd.f32 %v3980, %v4140
      %v4142 = vpop.f32.mrb[0].mxu0
      %4143 = vmatprep.mubr.bf16.mxu0 %v2850
      %4144 = vmatmul.mubr.bf16.gmra.mrb[0].mxu0 %v2918
      %v4145 = vpop.f32.mrb[0].mxu0
      %v4146 = vadd.f32 %v3985, %v4145
      %v4147 = vpop.f32.mrb[0].mxu0
      %v4148 = vpop.f32.mrb[0].mxu0
      %v4149 = vadd.f32 %v3988, %v4148
      %v4150 = vpop.f32.mrb[0].mxu0
      %4151 = vmatprep.mubr.bf16.mxu0 %v2851
      %4152 = vmatmul.mubr.bf16.gmra.mrb[0].mxu0 %v2926
      %v4153 = vpop.f32.mrb[0].mxu0
      %v4154 = vadd.f32 %v3993, %v4153
      %v4155 = vpop.f32.mrb[0].mxu0
      %v4156 = vpop.f32.mrb[0].mxu0
      %v4157 = vadd.f32 %v3996, %v4156
      %v4158 = vpop.f32.mrb[0].mxu0
      %4159 = vmatprep.mubr.bf16.mxu0 %v2852
      %4160 = vmatmul.mubr.bf16.gmra.mrb[0].mxu0 %v2934
      %v4161 = vpop.f32.mrb[0].mxu0
      %v4162 = vadd.f32 %v4001, %v4161
      %v4163 = vpop.f32.mrb[0].mxu0
      %v4164 = vpop.f32.mrb[0].mxu0
      %v4165 = vadd.f32 %v4004, %v4164
      %v4166 = vpop.f32.mrb[0].mxu0
      %4167 = vmatprep.mubr.bf16.mxu0 %v2853
      %4168 = vmatmul.mubr.bf16.gmra.mrb[0].mxu0 %v2942
      %v4169 = vpop.f32.mrb[0].mxu0
      %v4170 = vadd.f32 %v4009, %v4169
      %v4171 = vpop.f32.mrb[0].mxu0
      %v4172 = vpop.f32.mrb[0].mxu0
      %v4173 = vadd.f32 %v4012, %v4172
      %v4174 = vpop.f32.mrb[0].mxu0
      %4175 = vmatprep.mubr.bf16.mxu0 %v2854
      %4176 = vmatmul.mubr.bf16.gmra.mrb[0].mxu0 %v2950
      %v4177 = vpop.f32.mrb[0].mxu0
      %v4178 = vadd.f32 %v4017, %v4177
      %v4179 = vpop.f32.mrb[0].mxu0
      %v4180 = vpop.f32.mrb[0].mxu0
      %v4181 = vadd.f32 %v4020, %v4180
      %v4182 = vpop.f32.mrb[0].mxu0
      %4183 = vmatprep.mubr.bf16.mxu0 %v2855
      %4184 = vmatmul.mubr.bf16.gmra.mrb[0].mxu0 %v2958
      %v4185 = vpop.f32.mrb[0].mxu0
      %v4186 = vadd.f32 %v4025, %v4185
      %v4187 = vpop.f32.mrb[0].mxu0
      %v4188 = vpop.f32.mrb[0].mxu0
      %v4189 = vadd.f32 %v4028, %v4188
      %v4190 = vpop.f32.mrb[0].mxu0
      %4191 = vmatprep.mubr.bf16.mxu0 %v2856
      %4192 = vmatmul.mubr.bf16.gmra.mrb[0].mxu0 %v2966
      %v4193 = vpop.f32.mrb[0].mxu0
      %v4194 = vadd.f32 %v4033, %v4193
      %v4195 = vpop.f32.mrb[0].mxu0
      %v4196 = vpop.f32.mrb[0].mxu0
      %v4197 = vadd.f32 %v4036, %v4196
      %v4198 = vpop.f32.mrb[0].mxu0
      %4199 = vmatprep.mubr.bf16.mxu0 %v2857
      %4200 = vmatmul.mubr.bf16.gmra.mrb[0].mxu0 %v2974
      %v4201 = vpop.f32.mrb[0].mxu0
      %v4202 = vadd.f32 %v4041, %v4201
      %v4203 = vpop.f32.mrb[0].mxu0
      %v4204 = vpop.f32.mrb[0].mxu0
      %v4205 = vadd.f32 %v4044, %v4204
      %v4206 = vpop.f32.mrb[0].mxu0
      %4207 = vmatprep.mubr.bf16.mxu0 %v2858
      %4208 = vmatmul.mubr.bf16.gmra.mrb[0].mxu0 %v2982
      %v4209 = vpop.f32.mrb[0].mxu0
      %v4210 = vadd.f32 %v4049, %v4209
      %v4211 = vpop.f32.mrb[0].mxu0
      %v4212 = vpop.f32.mrb[0].mxu0
      %v4213 = vadd.f32 %v4052, %v4212
      %v4214 = vpop.f32.mrb[0].mxu0
      %4215 = vmatprep.mubr.bf16.mxu0 %v2859
      %4216 = vmatmul.mubr.bf16.gmra.mrb[0].mxu0 %v2990
      %v4217 = vpop.f32.mrb[0].mxu0
      %v4218 = vadd.f32 %v4057, %v4217
      %v4219 = vpop.f32.mrb[0].mxu0
      %v4220 = vpop.f32.mrb[0].mxu0
      %v4221 = vadd.f32 %v4060, %v4220
      %v4222 = vpop.f32.mrb[0].mxu0
      %4223 = vmatprep.mubr.bf16.mxu0 %v2860
      %4224 = vmatmul.mubr.bf16.gmra.mrb[0].mxu0 %v2998
      %v4225 = vpop.f32.mrb[0].mxu0
      %v4226 = vadd.f32 %v4065, %v4225
      %v4227 = vpop.f32.mrb[0].mxu0
      %v4228 = vpop.f32.mrb[0].mxu0
      %v4229 = vadd.f32 %v4068, %v4228
      %v4230 = vpop.f32.mrb[0].mxu0
      %4231 = vmatprep.mubr.bf16.mxu0 %v2861
      %4232 = vmatmul.mubr.bf16.gmra.mrb[0].mxu0 %v3006
      %v4233 = vpop.f32.mrb[0].mxu0
      %v4234 = vadd.f32 %v4073, %v4233
      %v4235 = vpop.f32.mrb[0].mxu0
      %v4236 = vpop.f32.mrb[0].mxu0
      %v4237 = vadd.f32 %v4076, %v4236
      %v4238 = vpop.f32.mrb[0].mxu0
      %4239 = vmatprep.mubr.bf16.mxu0 %v2862
      %4240 = vmatmul.mubr.bf16.gmra.mrb[0].mxu0 %v3014
      %v4241 = vpop.f32.mrb[0].mxu0
      %v4242 = vadd.f32 %v4081, %v4241
      %v4243 = vpop.f32.mrb[0].mxu0
      %v4244 = vpop.f32.mrb[0].mxu0
      %v4245 = vadd.f32 %v4084, %v4244
      %v4246 = vpop.f32.mrb[0].mxu0
      %4247 = vmatprep.mubr.bf16.mxu0 %v2863
      %4248 = vmatmul.mubr.bf16.gmra.mrb[0].mxu0 %v3179
      %v4249 = vpop.f32.mrb[0].mxu0
      %v4250 = vadd.f32 %v4089, %v4249
      %v4251 = vpop.f32.mrb[0].mxu0
      %v4252 = vpop.f32.mrb[0].mxu0
      %v4253 = vadd.f32 %v4092, %v4252
      %v4254 = vpop.f32.mrb[0].mxu0
      %4255 = vmatprep.mubr.bf16.mxu0 0
      %4256 = vmatmul.mubr.bf16.gmra.mrb[0].mxu0 %v3187
      %v4257 = vpop.f32.mrb[0].mxu0
      %v4258 = vadd.f32 %v4097, %v4257
      %v4259 = vpop.f32.mrb[0].mxu0
      %v4260 = vpop.f32.mrb[0].mxu0
      %v4261 = vadd.f32 %v4100, %v4260
      %v4262 = vpop.f32.mrb[0].mxu0
      %4263 = vdwg.mxu0
      %4264 = vmatprep.subr.bf16.mxu0 0
      %4265 = vmatpush1.bf16.msra.mxu0 %v3540
      %4266 = vmatprep.subr.bf16.mxu0 0
      %4267 = vmatpush1.bf16.msra.mxu0 %v3541
      %4268 = vmatprep.subr.bf16.mxu0 0
      %4269 = vmatpush1.bf16.msra.mxu0 %v3542
      %4270 = vmatprep.subr.bf16.mxu0 0
      %4271 = vmatpush1.bf16.msra.mxu0 %v3543
      %4272 = vmatprep.subr.bf16.mxu0 0
      %4273 = vmatpush1.bf16.msra.mxu0 %v3544
      %4274 = vmatprep.subr.bf16.mxu0 0
      %4275 = vmatpush1.bf16.msra.mxu0 %v3545
      %4276 = vmatprep.subr.bf16.mxu0 0
      %4277 = vmatpush1.bf16.msra.mxu0 %v3546
      %4278 = vmatprep.subr.bf16.mxu0 0
      %4279 = vmatpush1.bf16.msra.mxu0 %v3547
      %4280 = vmatprep.subr.bf16.mxu0 0
      %4281 = vmatpush1.bf16.msra.mxu0 0
      %4282 = vmatprep.subr.bf16.mxu0 0
      %4283 = vmatpush1.bf16.msra.mxu0 0
      %4284 = vmatprep.subr.bf16.mxu0 0
      %4285 = vmatpush1.bf16.msra.mxu0 0
      %4286 = vmatprep.subr.bf16.mxu0 0
      %4287 = vmatpush1.bf16.msra.mxu0 0
      %4288 = vmatprep.subr.bf16.mxu0 0
      %4289 = vmatpush1.bf16.msra.mxu0 0
      %4290 = vmatprep.subr.bf16.mxu0 0
      %4291 = vmatpush1.bf16.msra.mxu0 0
      %4292 = vmatprep.subr.bf16.mxu0 0
      %4293 = vmatpush1.bf16.msra.mxu0 0
      %4294 = vmatprep.subr.bf16.mxu0 0
      %4295 = vmatpush1.bf16.msra.mxu0 0
      %4296 = vmatprep.mubr.bf16.mxu0 0
      %4297 = vmatmul.mubr.bf16.gmra.mrb[0].mxu0 %v3050
      %v4298 = vpop.f32.mrb[0].mxu0
      %v4299 = vadd.f32 %v4138, %v4298
      %v4300 = vpop.f32.mrb[0].mxu0
      %v4301 = vpop.f32.mrb[0].mxu0
      %v4302 = vadd.f32 %v4141, %v4301
      %v4303 = vpop.f32.mrb[0].mxu0
      %4304 = vmatprep.mubr.bf16.mxu0 0
      %4305 = vmatmul.mubr.bf16.gmra.mrb[0].mxu0 %v3058
      %v4306 = vpop.f32.mrb[0].mxu0
      %v4307 = vadd.f32 %v4146, %v4306
      %v4308 = vpop.f32.mrb[0].mxu0
      %v4309 = vpop.f32.mrb[0].mxu0
      %v4310 = vadd.f32 %v4149, %v4309
      %v4311 = vpop.f32.mrb[0].mxu0
      %4312 = vmatprep.mubr.bf16.mxu0 0
      %4313 = vmatmul.mubr.bf16.gmra.mrb[0].mxu0 %v3066
      %v4314 = vpop.f32.mrb[0].mxu0
      %v4315 = vadd.f32 %v4154, %v4314
      %v4316 = vpop.f32.mrb[0].mxu0
      %v4317 = vpop.f32.mrb[0].mxu0
      %v4318 = vadd.f32 %v4157, %v4317
      %v4319 = vpop.f32.mrb[0].mxu0
      %4320 = vmatprep.mubr.bf16.mxu0 0
      %4321 = vmatmul.mubr.bf16.gmra.mrb[0].mxu0 %v3074
      %v4322 = vpop.f32.mrb[0].mxu0
      %v4323 = vadd.f32 %v4162, %v4322
      %v4324 = vpop.f32.mrb[0].mxu0
      %v4325 = vpop.f32.mrb[0].mxu0
      %v4326 = vadd.f32 %v4165, %v4325
      %v4327 = vpop.f32.mrb[0].mxu0
      %4328 = vmatprep.mubr.bf16.mxu0 0
      %4329 = vmatmul.mubr.bf16.gmra.mrb[0].mxu0 %v3082
      %v4330 = vpop.f32.mrb[0].mxu0
      %v4331 = vadd.f32 %v4170, %v4330
      %v4332 = vpop.f32.mrb[0].mxu0
      %v4333 = vpop.f32.mrb[0].mxu0
      %v4334 = vadd.f32 %v4173, %v4333
      %v4335 = vpop.f32.mrb[0].mxu0
      %4336 = vmatprep.mubr.bf16.mxu0 0
      %4337 = vmatmul.mubr.bf16.gmra.mrb[0].mxu0 %v3090
      %v4338 = vpop.f32.mrb[0].mxu0
      %v4339 = vadd.f32 %v4178, %v4338
      %v4340 = vpop.f32.mrb[0].mxu0
      %v4341 = vpop.f32.mrb[0].mxu0
      %v4342 = vadd.f32 %v4181, %v4341
      %v4343 = vpop.f32.mrb[0].mxu0
      %4344 = vmatprep.mubr.bf16.mxu0 0
      %4345 = vmatmul.mubr.bf16.gmra.mrb[0].mxu0 %v3098
      %v4346 = vpop.f32.mrb[0].mxu0
      %v4347 = vadd.f32 %v4186, %v4346
      %v4348 = vpop.f32.mrb[0].mxu0
      %v4349 = vpop.f32.mrb[0].mxu0
      %v4350 = vadd.f32 %v4189, %v4349
      %v4351 = vpop.f32.mrb[0].mxu0
      %4352 = vmatprep.mubr.bf16.mxu0 0
      %4353 = vmatmul.mubr.bf16.gmra.mrb[0].mxu0 %v3106
      %v4354 = vpop.f32.mrb[0].mxu0
      %v4355 = vadd.f32 %v4194, %v4354
      %v4356 = vpop.f32.mrb[0].mxu0
      %v4357 = vpop.f32.mrb[0].mxu0
      %v4358 = vadd.f32 %v4197, %v4357
      %v4359 = vpop.f32.mrb[0].mxu0
      %4360 = vmatprep.mubr.bf16.mxu0 0
      %4361 = vmatmul.mubr.bf16.gmra.mrb[0].mxu0 %v3114
      %v4362 = vpop.f32.mrb[0].mxu0
      %v4363 = vadd.f32 %v4202, %v4362
      %v4364 = vpop.f32.mrb[0].mxu0
      %v4365 = vpop.f32.mrb[0].mxu0
      %v4366 = vadd.f32 %v4205, %v4365
      %v4367 = vpop.f32.mrb[0].mxu0
      %4368 = vmatprep.mubr.bf16.mxu0 0
      %4369 = vmatmul.mubr.bf16.gmra.mrb[0].mxu0 %v3122
      %v4370 = vpop.f32.mrb[0].mxu0
      %v4371 = vadd.f32 %v4210, %v4370
      %v4372 = vpop.f32.mrb[0].mxu0
      %v4373 = vpop.f32.mrb[0].mxu0
      %v4374 = vadd.f32 %v4213, %v4373
      %v4375 = vpop.f32.mrb[0].mxu0
      %4376 = vmatprep.mubr.bf16.mxu0 0
      %4377 = vmatmul.mubr.bf16.gmra.mrb[0].mxu0 %v3130
      %v4378 = vpop.f32.mrb[0].mxu0
      %v4379 = vadd.f32 %v4218, %v4378
      %v4380 = vpop.f32.mrb[0].mxu0
      %v4381 = vpop.f32.mrb[0].mxu0
      %v4382 = vadd.f32 %v4221, %v4381
      %v4383 = vpop.f32.mrb[0].mxu0
      %4384 = vmatprep.mubr.bf16.mxu0 0
      %4385 = vmatmul.mubr.bf16.gmra.mrb[0].mxu0 %v3138
      %v4386 = vpop.f32.mrb[0].mxu0
      %v4387 = vadd.f32 %v4226, %v4386
      %v4388 = vpop.f32.mrb[0].mxu0
      %v4389 = vpop.f32.mrb[0].mxu0
      %v4390 = vadd.f32 %v4229, %v4389
      %v4391 = vpop.f32.mrb[0].mxu0
      %4392 = vmatprep.mubr.bf16.mxu0 0
      %4393 = vmatmul.mubr.bf16.gmra.mrb[0].mxu0 %v3146
      %v4394 = vpop.f32.mrb[0].mxu0
      %v4395 = vadd.f32 %v4234, %v4394
      %v4396 = vpop.f32.mrb[0].mxu0
      %v4397 = vpop.f32.mrb[0].mxu0
      %v4398 = vadd.f32 %v4237, %v4397
      %v4399 = vpop.f32.mrb[0].mxu0
      %4400 = vmatprep.mubr.bf16.mxu0 0
      %4401 = vmatmul.mubr.bf16.gmra.mrb[0].mxu0 %v3154
      %v4402 = vpop.f32.mrb[0].mxu0
      %v4403 = vadd.f32 %v4242, %v4402
      %v4404 = vpop.f32.mrb[0].mxu0
      %v4405 = vpop.f32.mrb[0].mxu0
      %v4406 = vadd.f32 %v4245, %v4405
      %v4407 = vpop.f32.mrb[0].mxu0
      %4408 = vmatprep.mubr.bf16.mxu0 0
      %4409 = vmatmul.mubr.bf16.gmra.mrb[0].mxu0 %v3185
      %v4410 = vpop.f32.mrb[0].mxu0
      %v4411 = vadd.f32 %v4250, %v4410
      %v4412 = vpop.f32.mrb[0].mxu0
      %v4413 = vpop.f32.mrb[0].mxu0
      %v4414 = vadd.f32 %v4253, %v4413
      %v4415 = vpop.f32.mrb[0].mxu0
      %4416 = vmatprep.mubr.bf16.mxu0 0
      %4417 = vmatmul.mubr.bf16.gmra.mrb[0].mxu0 0
      %v4418 = vpop.f32.mrb[0].mxu0
      %v4419 = vadd.f32 %v4258, %v4418
      %v4420 = vpop.f32.mrb[0].mxu0
      %v4421 = vpop.f32.mrb[0].mxu0
      %v4422 = vadd.f32 %v4261, %v4421
      %v4423 = vpop.f32.mrb[0].mxu0
      %4424 = vdwg.mxu0
      %v4425 = vlaneseq
      %v4426 = vshrl.u32 %v4425, 7
      %v4427 = vsub.s32 2, %v4426
      %v4428 = vrot.slane %v872, %v4427
      %v4429 = vmul.f32 %v4299, %v4428
      %v4430 = vmul.f32 %v4302, %v4428
      %v4431 = vmul.f32 %v4307, %v4428
      %v4432 = vmul.f32 %v4310, %v4428
      %v4433 = vmul.f32 %v4315, %v4428
      %v4434 = vmul.f32 %v4318, %v4428
      %v4435 = vmul.f32 %v4323, %v4428
      %v4436 = vmul.f32 %v4326, %v4428
      %v4437 = vmul.f32 %v4331, %v4428
      %v4438 = vmul.f32 %v4334, %v4428
      %v4439 = vmul.f32 %v4339, %v4428
      %v4440 = vmul.f32 %v4342, %v4428
      %v4441 = vmul.f32 %v4347, %v4428
      %v4442 = vmul.f32 %v4350, %v4428
      %v4443 = vmul.f32 %v4355, %v4428
      %v4444 = vmul.f32 %v4358, %v4428
      %v4445 = vmul.f32 %v4363, %v4428
      %v4446 = vmul.f32 %v4366, %v4428
      %v4447 = vmul.f32 %v4371, %v4428
      %v4448 = vmul.f32 %v4374, %v4428
      %v4449 = vmul.f32 %v4379, %v4428
      %v4450 = vmul.f32 %v4382, %v4428
      %v4451 = vmul.f32 %v4387, %v4428
      %v4452 = vmul.f32 %v4390, %v4428
      %v4453 = vmul.f32 %v4395, %v4428
      %v4454 = vmul.f32 %v4398, %v4428
      %v4455 = vmul.f32 %v4403, %v4428
      %v4456 = vmul.f32 %v4406, %v4428
      %v4457 = vmul.f32 %v4411, %v4428
      %v4458 = vmul.f32 %v4414, %v4428
      %v4459 = vmul.f32 %v4419, %v4428
      %v4460 = vmul.f32 %v4422, %v4428
      %v4461 = vlaneseq
      %v4462 = vshrl.u32 %v4461, 7
      %v4463 = vsub.s32 3, %v4462
      %v4464 = vrot.slane %v872, %v4463
      %v4465 = vadd.f32 %v4429, %v4464
      %v4466 = vadd.f32 %v4430, %v4464
      %v4467 = vadd.f32 %v4431, %v4464
      %v4468 = vadd.f32 %v4432, %v4464
      %v4469 = vadd.f32 %v4433, %v4464
      %v4470 = vadd.f32 %v4434, %v4464
      %v4471 = vadd.f32 %v4435, %v4464
      %v4472 = vadd.f32 %v4436, %v4464
      %v4473 = vadd.f32 %v4437, %v4464
      %v4474 = vadd.f32 %v4438, %v4464
      %v4475 = vadd.f32 %v4439, %v4464
      %v4476 = vadd.f32 %v4440, %v4464
      %v4477 = vadd.f32 %v4441, %v4464
      %v4478 = vadd.f32 %v4442, %v4464
      %v4479 = vadd.f32 %v4443, %v4464
      %v4480 = vadd.f32 %v4444, %v4464
      %v4481 = vadd.f32 %v4445, %v4464
      %v4482 = vadd.f32 %v4446, %v4464
      %v4483 = vadd.f32 %v4447, %v4464
      %v4484 = vadd.f32 %v4448, %v4464
      %v4485 = vadd.f32 %v4449, %v4464
      %v4486 = vadd.f32 %v4450, %v4464
      %v4487 = vadd.f32 %v4451, %v4464
      %v4488 = vadd.f32 %v4452, %v4464
      %v4489 = vadd.f32 %v4453, %v4464
      %v4490 = vadd.f32 %v4454, %v4464
      %v4491 = vadd.f32 %v4455, %v4464
      %v4492 = vadd.f32 %v4456, %v4464
      %v4493 = vadd.f32 %v4457, %v4464
      %v4494 = vadd.f32 %v4458, %v4464
      %v4495 = vadd.f32 %v4459, %v4464
      %v4496 = vadd.f32 %v4460, %v4464
      %v4497 = vadd.f32 %v4465, %v840
      %v4498 = vadd.f32 %v4466, %v841
      %v4499 = vadd.f32 %v4467, %v842
      %v4500 = vadd.f32 %v4468, %v843
      %v4501 = vadd.f32 %v4469, %v844
      %v4502 = vadd.f32 %v4470, %v845
      %v4503 = vadd.f32 %v4471, %v846
      %v4504 = vadd.f32 %v4472, %v847
      %v4505 = vadd.f32 %v4473, %v848
      %v4506 = vadd.f32 %v4474, %v849
      %v4507 = vadd.f32 %v4475, %v850
      %v4508 = vadd.f32 %v4476, %v851
      %v4509 = vadd.f32 %v4477, %v852
      %v4510 = vadd.f32 %v4478, %v853
      %v4511 = vadd.f32 %v4479, %v854
      %v4512 = vadd.f32 %v4480, %v855
      %v4513 = vadd.f32 %v4481, %v856
      %v4514 = vadd.f32 %v4482, %v857
      %v4515 = vadd.f32 %v4483, %v858
      %v4516 = vadd.f32 %v4484, %v859
      %v4517 = vadd.f32 %v4485, %v860
      %v4518 = vadd.f32 %v4486, %v861
      %v4519 = vadd.f32 %v4487, %v862
      %v4520 = vadd.f32 %v4488, %v863
      %v4521 = vadd.f32 %v4489, %v864
      %v4522 = vadd.f32 %v4490, %v865
      %v4523 = vadd.f32 %v4491, %v866
      %v4524 = vadd.f32 %v4492, %v867
      %v4525 = vadd.f32 %v4493, %v868
      %v4526 = vadd.f32 %v4494, %v869
      %v4527 = vadd.f32 %v4495, %v870
      %v4528 = vadd.f32 %v4496, %v871
      %v4529 = vmax.f32 %v4497, 0.0
      %v4530 = vmax.f32 %v4498, 0.0
      %v4531 = vmax.f32 %v4499, 0.0
      %v4532 = vmax.f32 %v4500, 0.0
      %v4533 = vmax.f32 %v4501, 0.0
      %v4534 = vmax.f32 %v4502, 0.0
      %v4535 = vmax.f32 %v4503, 0.0
      %v4536 = vmax.f32 %v4504, 0.0
      %v4537 = vmax.f32 %v4505, 0.0
      %v4538 = vmax.f32 %v4506, 0.0
      %v4539 = vmax.f32 %v4507, 0.0
      %v4540 = vmax.f32 %v4508, 0.0
      %v4541 = vmax.f32 %v4509, 0.0
      %v4542 = vmax.f32 %v4510, 0.0
      %v4543 = vmax.f32 %v4511, 0.0
      %v4544 = vmax.f32 %v4512, 0.0
      %v4545 = vmax.f32 %v4513, 0.0
      %v4546 = vmax.f32 %v4514, 0.0
      %v4547 = vmax.f32 %v4515, 0.0
      %v4548 = vmax.f32 %v4516, 0.0
      %v4549 = vmax.f32 %v4517, 0.0
      %v4550 = vmax.f32 %v4518, 0.0
      %v4551 = vmax.f32 %v4519, 0.0
      %v4552 = vmax.f32 %v4520, 0.0
      %v4553 = vmax.f32 %v4521, 0.0
      %v4554 = vmax.f32 %v4522, 0.0
      %v4555 = vmax.f32 %v4523, 0.0
      %v4556 = vmax.f32 %v4524, 0.0
      %v4557 = vmax.f32 %v4525, 0.0
      %v4558 = vmax.f32 %v4526, 0.0
      %v4559 = vmax.f32 %v4527, 0.0
      %v4560 = vmax.f32 %v4528, 0.0
      %s4561 = scalar_lea.vmem %s3, 4
      %v4562 = vld [vmem:[%s4561] sm:$0xf]
      %s4563 = scalar_lea.vmem %s1, 576
      %v4564 = vld [vmem:[%s4563] sm:$0xf]
      %v4565 = vld [vmem:[%s4563 + $0x4] sm:$0xf]
      %v4566 = vld [vmem:[%s4563 + $0x8] sm:$0xf]
      %v4567 = vld [vmem:[%s4563 + $0xc] sm:$0xf]
      %v4568 = vld [vmem:[%s4563 + $0x10] sm:$0xf]
      %v4569 = vld [vmem:[%s4563 + $0x14] sm:$0xf]
      %v4570 = vld [vmem:[%s4563 + $0x18] sm:$0xf]
      %v4571 = vld [vmem:[%s4563 + $0x1c] sm:$0xf]
      %v4572 = vld [vmem:[%s4563 + $0x20] sm:$0xf]
      %v4573 = vld [vmem:[%s4563 + $0x24] sm:$0xf]
      %v4574 = vld [vmem:[%s4563 + $0x28] sm:$0xf]
      %v4575 = vld [vmem:[%s4563 + $0x2c] sm:$0xf]
      %v4576 = vld [vmem:[%s4563 + $0x30] sm:$0xf]
      %v4577 = vld [vmem:[%s4563 + $0x34] sm:$0xf]
      %v4578 = vld [vmem:[%s4563 + $0x38] sm:$0xf]
      %v4579 = vld [vmem:[%s4563 + $0x3c] sm:$0xf]
      %v4580 = vld [vmem:[%s4563 + $0x40] sm:$0xf]
      %v4581 = vld [vmem:[%s4563 + $0x44] sm:$0xf]
      %v4582 = vld [vmem:[%s4563 + $0x48] sm:$0xf]
      %v4583 = vld [vmem:[%s4563 + $0x4c] sm:$0xf]
      %v4584 = vld [vmem:[%s4563 + $0x50] sm:$0xf]
      %v4585 = vld [vmem:[%s4563 + $0x54] sm:$0xf]
      %v4586 = vld [vmem:[%s4563 + $0x58] sm:$0xf]
      %v4587 = vld [vmem:[%s4563 + $0x5c] sm:$0xf]
      %v4588 = vld [vmem:[%s4563 + $0x60] sm:$0xf]
      %v4589 = vld [vmem:[%s4563 + $0x64] sm:$0xf]
      %v4590 = vld [vmem:[%s4563 + $0x68] sm:$0xf]
      %v4591 = vld [vmem:[%s4563 + $0x6c] sm:$0xf]
      %v4592 = vld [vmem:[%s4563 + $0x70] sm:$0xf]
      %v4593 = vld [vmem:[%s4563 + $0x74] sm:$0xf]
      %v4594 = vld [vmem:[%s4563 + $0x78] sm:$0xf]
      %v4595 = vld [vmem:[%s4563 + $0x7c] sm:$0xf]
      %v4596 = vld [vmem:[%s4563 + $0x80] sm:$0xf]
      %v4597 = vld [vmem:[%s4563 + $0x84] sm:$0xf]
      %v4598 = vld [vmem:[%s4563 + $0x88] sm:$0xf]
      %v4599 = vld [vmem:[%s4563 + $0x8c] sm:$0xf]
      %v4600 = vld [vmem:[%s4563 + $0x90] sm:$0xf]
      %v4601 = vld [vmem:[%s4563 + $0x94] sm:$0xf]
      %v4602 = vld [vmem:[%s4563 + $0x98] sm:$0xf]
      %v4603 = vld [vmem:[%s4563 + $0x9c] sm:$0xf]
      %v4604 = vld [vmem:[%s4563 + $0xa0] sm:$0xf]
      %v4605 = vld [vmem:[%s4563 + $0xa4] sm:$0xf]
      %v4606 = vld [vmem:[%s4563 + $0xa8] sm:$0xf]
      %v4607 = vld [vmem:[%s4563 + $0xac] sm:$0xf]
      %v4608 = vld [vmem:[%s4563 + $0xb0] sm:$0xf]
      %v4609 = vld [vmem:[%s4563 + $0xb4] sm:$0xf]
      %v4610 = vld [vmem:[%s4563 + $0xb8] sm:$0xf]
      %v4611 = vld [vmem:[%s4563 + $0xbc] sm:$0xf]
      %v4612 = vld [vmem:[%s4563 + $0xc0] sm:$0xf]
      %v4613 = vld [vmem:[%s4563 + $0xc4] sm:$0xf]
      %v4614 = vld [vmem:[%s4563 + $0xc8] sm:$0xf]
      %v4615 = vld [vmem:[%s4563 + $0xcc] sm:$0xf]
      %v4616 = vld [vmem:[%s4563 + $0xd0] sm:$0xf]
      %v4617 = vld [vmem:[%s4563 + $0xd4] sm:$0xf]
      %v4618 = vld [vmem:[%s4563 + $0xd8] sm:$0xf]
      %v4619 = vld [vmem:[%s4563 + $0xdc] sm:$0xf]
      %v4620 = vld [vmem:[%s4563 + $0xe0] sm:$0xf]
      %v4621 = vld [vmem:[%s4563 + $0xe4] sm:$0xf]
      %v4622 = vld [vmem:[%s4563 + $0xe8] sm:$0xf]
      %v4623 = vld [vmem:[%s4563 + $0xec] sm:$0xf]
      %v4624 = vld [vmem:[%s4563 + $0xf0] sm:$0xf]
      %v4625 = vld [vmem:[%s4563 + $0xf4] sm:$0xf]
      %v4626 = vld [vmem:[%s4563 + $0xf8] sm:$0xf]
      %v4627 = vld [vmem:[%s4563 + $0xfc] sm:$0xf]
      %v4628 = vld [vmem:[%s4563 + $0x100] sm:$0xf]
      %v4629 = vld [vmem:[%s4563 + $0x104] sm:$0xf]
      %v4630 = vld [vmem:[%s4563 + $0x108] sm:$0xf]
      %v4631 = vld [vmem:[%s4563 + $0x10c] sm:$0xf]
      %v4632 = vld [vmem:[%s4563 + $0x110] sm:$0xf]
      %v4633 = vld [vmem:[%s4563 + $0x114] sm:$0xf]
      %v4634 = vld [vmem:[%s4563 + $0x118] sm:$0xf]
      %v4635 = vld [vmem:[%s4563 + $0x11c] sm:$0xf]
      %v4636 = vld [vmem:[%s4563 + $0x120] sm:$0xf]
      %v4637 = vld [vmem:[%s4563 + $0x124] sm:$0xf]
      %v4638 = vld [vmem:[%s4563 + $0x128] sm:$0xf]
      %v4639 = vld [vmem:[%s4563 + $0x12c] sm:$0xf]
      %v4640 = vld [vmem:[%s4563 + $0x130] sm:$0xf]
      %v4641 = vld [vmem:[%s4563 + $0x134] sm:$0xf]
      %v4642 = vld [vmem:[%s4563 + $0x138] sm:$0xf]
      %v4643 = vld [vmem:[%s4563 + $0x13c] sm:$0xf]
      %v4644 = vld [vmem:[%s4563 + $0x140] sm:$0xf]
      %v4645 = vld [vmem:[%s4563 + $0x144] sm:$0xf]
      %v4646 = vld [vmem:[%s4563 + $0x148] sm:$0xf]
      %v4647 = vld [vmem:[%s4563 + $0x14c] sm:$0xf]
      %v4648 = vld [vmem:[%s4563 + $0x150] sm:$0xf]
      %v4649 = vld [vmem:[%s4563 + $0x154] sm:$0xf]
      %v4650 = vld [vmem:[%s4563 + $0x158] sm:$0xf]
      %v4651 = vld [vmem:[%s4563 + $0x15c] sm:$0xf]
      %v4652 = vld [vmem:[%s4563 + $0x160] sm:$0xf]
      %v4653 = vld [vmem:[%s4563 + $0x164] sm:$0xf]
      %v4654 = vld [vmem:[%s4563 + $0x168] sm:$0xf]
      %v4655 = vld [vmem:[%s4563 + $0x16c] sm:$0xf]
      %v4656 = vld [vmem:[%s4563 + $0x170] sm:$0xf]
      %v4657 = vld [vmem:[%s4563 + $0x174] sm:$0xf]
      %v4658 = vld [vmem:[%s4563 + $0x178] sm:$0xf]
      %v4659 = vld [vmem:[%s4563 + $0x17c] sm:$0xf]
      %v4660 = vld [vmem:[%s4563 + $0x180] sm:$0xf]
      %v4661 = vld [vmem:[%s4563 + $0x184] sm:$0xf]
      %v4662 = vld [vmem:[%s4563 + $0x188] sm:$0xf]
      %v4663 = vld [vmem:[%s4563 + $0x18c] sm:$0xf]
      %v4664 = vld [vmem:[%s4563 + $0x190] sm:$0xf]
      %v4665 = vld [vmem:[%s4563 + $0x194] sm:$0xf]
      %v4666 = vld [vmem:[%s4563 + $0x198] sm:$0xf]
      %v4667 = vld [vmem:[%s4563 + $0x19c] sm:$0xf]
      %v4668 = vld [vmem:[%s4563 + $0x1a0] sm:$0xf]
      %v4669 = vld [vmem:[%s4563 + $0x1a4] sm:$0xf]
      %v4670 = vld [vmem:[%s4563 + $0x1a8] sm:$0xf]
      %v4671 = vld [vmem:[%s4563 + $0x1ac] sm:$0xf]
      %v4672 = vld [vmem:[%s4563 + $0x1b0] sm:$0xf]
      %v4673 = vld [vmem:[%s4563 + $0x1b4] sm:$0xf]
      %v4674 = vld [vmem:[%s4563 + $0x1b8] sm:$0xf]
      %v4675 = vld [vmem:[%s4563 + $0x1bc] sm:$0xf]
      %v4676 = vld [vmem:[%s4563 + $0x1c0] sm:$0xf]
      %v4677 = vld [vmem:[%s4563 + $0x1c4] sm:$0xf]
      %v4678 = vld [vmem:[%s4563 + $0x1c8] sm:$0xf]
      %v4679 = vld [vmem:[%s4563 + $0x1cc] sm:$0xf]
      %v4680 = vld [vmem:[%s4563 + $0x1d0] sm:$0xf]
      %v4681 = vld [vmem:[%s4563 + $0x1d4] sm:$0xf]
      %v4682 = vld [vmem:[%s4563 + $0x1d8] sm:$0xf]
      %v4683 = vld [vmem:[%s4563 + $0x1dc] sm:$0xf]
      %v4684 = vld [vmem:[%s4563 + $0x1e0] sm:$0xf]
      %v4685 = vld [vmem:[%s4563 + $0x1e4] sm:$0xf]
      %v4686 = vld [vmem:[%s4563 + $0x1e8] sm:$0xf]
      %v4687 = vld [vmem:[%s4563 + $0x1ec] sm:$0xf]
      %v4688 = vld [vmem:[%s4563 + $0x1f0] sm:$0xf]
      %v4689 = vld [vmem:[%s4563 + $0x1f4] sm:$0xf]
      %v4690 = vld [vmem:[%s4563 + $0x1f8] sm:$0xf]
      %v4691 = vld [vmem:[%s4563 + $0x1fc] sm:$0xf]
      %v4692 = vld [vmem:[%s4563 + $0x200] sm:$0xf]
      %v4693 = vld [vmem:[%s4563 + $0x204] sm:$0xf]
      %v4694 = vld [vmem:[%s4563 + $0x208] sm:$0xf]
      %v4695 = vld [vmem:[%s4563 + $0x20c] sm:$0xf]
      %v4696 = vld [vmem:[%s4563 + $0x210] sm:$0xf]
      %v4697 = vld [vmem:[%s4563 + $0x214] sm:$0xf]
      %v4698 = vld [vmem:[%s4563 + $0x218] sm:$0xf]
      %v4699 = vld [vmem:[%s4563 + $0x21c] sm:$0xf]
      %v4700 = vld [vmem:[%s4563 + $0x220] sm:$0xf]
      %v4701 = vld [vmem:[%s4563 + $0x224] sm:$0xf]
      %v4702 = vld [vmem:[%s4563 + $0x228] sm:$0xf]
      %v4703 = vld [vmem:[%s4563 + $0x22c] sm:$0xf]
      %v4704 = vld [vmem:[%s4563 + $0x230] sm:$0xf]
      %v4705 = vld [vmem:[%s4563 + $0x234] sm:$0xf]
      %v4706 = vld [vmem:[%s4563 + $0x238] sm:$0xf]
      %v4707 = vld [vmem:[%s4563 + $0x23c] sm:$0xf]
      %v4708 = vpack.c.bf16 %v4530, %v4529
      %v4709 = vpack.c.bf16 %v4532, %v4531
      %v4710 = vpack.c.bf16 %v4534, %v4533
      %v4711 = vpack.c.bf16 %v4536, %v4535
      %v4712 = vpack.c.bf16 %v4538, %v4537
      %v4713 = vpack.c.bf16 %v4540, %v4539
      %v4714 = vpack.c.bf16 %v4542, %v4541
      %v4715 = vpack.c.bf16 %v4544, %v4543
      %v4716 = vpack.c.bf16 %v4546, %v4545
      %v4717 = vpack.c.bf16 %v4548, %v4547
      %v4718 = vpack.c.bf16 %v4550, %v4549
      %v4719 = vpack.c.bf16 %v4552, %v4551
      %v4720 = vpack.c.bf16 %v4554, %v4553
      %v4721 = vpack.c.bf16 %v4556, %v4555
      %v4722 = vpack.c.bf16 %v4558, %v4557
      %v4723 = vpack.c.bf16 %v4560, %v4559
      %v4724 = vmul.bf16 %v4708, %v712
      %v4725 = vmul.bf16 %v4709, %v713
      %v4726 = vmul.bf16 %v4710, %v714
      %v4727 = vmul.bf16 %v4711, %v715
      %v4728 = vmul.bf16 %v4712, %v716
      %v4729 = vmul.bf16 %v4713, %v717
      %v4730 = vmul.bf16 %v4714, %v718
      %v4731 = vmul.bf16 %v4715, %v719
      %v4732 = vmul.bf16 %v4716, %v720
      %v4733 = vmul.bf16 %v4717, %v721
      %v4734 = vmul.bf16 %v4718, %v722
      %v4735 = vmul.bf16 %v4719, %v723
      %v4736 = vmul.bf16 %v4720, %v724
      %v4737 = vmul.bf16 %v4721, %v725
      %v4738 = vmul.bf16 %v4722, %v726
      %v4739 = vmul.bf16 %v4723, %v727
      %v4740 = vmul.bf16 %v4708, %v824
      %v4741 = vmul.bf16 %v4709, %v825
      %v4742 = vmul.bf16 %v4710, %v826
      %v4743 = vmul.bf16 %v4711, %v827
      %v4744 = vmul.bf16 %v4712, %v828
      %v4745 = vmul.bf16 %v4713, %v829
      %v4746 = vmul.bf16 %v4714, %v830
      %v4747 = vmul.bf16 %v4715, %v831
      %v4748 = vmul.bf16 %v4716, %v832
      %v4749 = vmul.bf16 %v4717, %v833
      %v4750 = vmul.bf16 %v4718, %v834
      %v4751 = vmul.bf16 %v4719, %v835
      %v4752 = vmul.bf16 %v4720, %v836
      %v4753 = vmul.bf16 %v4721, %v837
      %v4754 = vmul.bf16 %v4722, %v838
      %v4755 = vmul.bf16 %v4723, %v839
      %v4757 = vshrl.u32 %v4724, 16
      %v4759 = vrot.slane %v4757, 7
      %v4760 = vshll.u32 %v4724, 16
      %v4762 = vor.u32 %v4759, %v4760
      %v4764 = vshrl.u32 %v4725, 16
      %v4766 = vrot.slane %v4764, 7
      %v4767 = vshll.u32 %v4725, 16
      %v4769 = vor.u32 %v4766, %v4767
      %v4770 = vsel %vm1065, %v4759, %v4769
      %v4772 = vshrl.u32 %v4726, 16
      %v4774 = vrot.slane %v4772, 7
      %v4775 = vshll.u32 %v4726, 16
      %v4777 = vor.u32 %v4774, %v4775
      %v4778 = vsel %vm1065, %v4766, %v4777
      %v4780 = vshrl.u32 %v4727, 16
      %v4782 = vrot.slane %v4780, 7
      %v4783 = vshll.u32 %v4727, 16
      %v4785 = vor.u32 %v4782, %v4783
      %v4786 = vsel %vm1065, %v4774, %v4785
      %v4788 = vshrl.u32 %v4728, 16
      %v4790 = vrot.slane %v4788, 7
      %v4791 = vshll.u32 %v4728, 16
      %v4793 = vor.u32 %v4790, %v4791
      %v4794 = vsel %vm1065, %v4782, %v4793
      %v4796 = vshrl.u32 %v4729, 16
      %v4798 = vrot.slane %v4796, 7
      %v4799 = vshll.u32 %v4729, 16
      %v4801 = vor.u32 %v4798, %v4799
      %v4802 = vsel %vm1065, %v4790, %v4801
      %v4804 = vshrl.u32 %v4730, 16
      %v4806 = vrot.slane %v4804, 7
      %v4807 = vshll.u32 %v4730, 16
      %v4809 = vor.u32 %v4806, %v4807
      %v4810 = vsel %vm1065, %v4798, %v4809
      %v4812 = vshrl.u32 %v4731, 16
      %v4814 = vrot.slane %v4812, 7
      %v4815 = vshll.u32 %v4731, 16
      %v4817 = vor.u32 %v4814, %v4815
      %v4818 = vsel %vm1065, %v4806, %v4817
      %v4820 = vshrl.u32 %v4732, 16
      %v4822 = vrot.slane %v4820, 7
      %v4823 = vshll.u32 %v4732, 16
      %v4825 = vor.u32 %v4822, %v4823
      %v4826 = vsel %vm1065, %v4814, %v4825
      %v4828 = vshrl.u32 %v4733, 16
      %v4830 = vrot.slane %v4828, 7
      %v4831 = vshll.u32 %v4733, 16
      %v4833 = vor.u32 %v4830, %v4831
      %v4834 = vsel %vm1065, %v4822, %v4833
      %v4836 = vshrl.u32 %v4734, 16
      %v4838 = vrot.slane %v4836, 7
      %v4839 = vshll.u32 %v4734, 16
      %v4841 = vor.u32 %v4838, %v4839
      %v4842 = vsel %vm1065, %v4830, %v4841
      %v4844 = vshrl.u32 %v4735, 16
      %v4846 = vrot.slane %v4844, 7
      %v4847 = vshll.u32 %v4735, 16
      %v4849 = vor.u32 %v4846, %v4847
      %v4850 = vsel %vm1065, %v4838, %v4849
      %v4852 = vshrl.u32 %v4736, 16
      %v4854 = vrot.slane %v4852, 7
      %v4855 = vshll.u32 %v4736, 16
      %v4857 = vor.u32 %v4854, %v4855
      %v4858 = vsel %vm1065, %v4846, %v4857
      %v4860 = vshrl.u32 %v4737, 16
      %v4862 = vrot.slane %v4860, 7
      %v4863 = vshll.u32 %v4737, 16
      %v4865 = vor.u32 %v4862, %v4863
      %v4866 = vsel %vm1065, %v4854, %v4865
      %v4868 = vshrl.u32 %v4738, 16
      %v4870 = vrot.slane %v4868, 7
      %v4871 = vshll.u32 %v4738, 16
      %v4873 = vor.u32 %v4870, %v4871
      %v4874 = vsel %vm1065, %v4862, %v4873
      %v4890 = vsel %vm1201, 0, %v4762
      %v4892 = vshll.u32 %v4740, 16
      %v4894 = vrot.slane %v4892, 1
      %v4895 = vshrl.u32 %v4740, 16
      %v4897 = vor.u32 %v4895, %v4894
      %v4899 = vshll.u32 %v4741, 16
      %v4901 = vrot.slane %v4899, 1
      %v4902 = vsel %vm1203, %v4897, %v4901
      %v4903 = vshrl.u32 %v4741, 16
      %v4905 = vor.u32 %v4903, %v4901
      %v4907 = vshll.u32 %v4742, 16
      %v4909 = vrot.slane %v4907, 1
      %v4910 = vsel %vm1203, %v4905, %v4909
      %v4911 = vshrl.u32 %v4742, 16
      %v4913 = vor.u32 %v4911, %v4909
      %v4915 = vshll.u32 %v4743, 16
      %v4917 = vrot.slane %v4915, 1
      %v4918 = vsel %vm1203, %v4913, %v4917
      %v4919 = vshrl.u32 %v4743, 16
      %v4921 = vor.u32 %v4919, %v4917
      %v4923 = vshll.u32 %v4744, 16
      %v4925 = vrot.slane %v4923, 1
      %v4926 = vsel %vm1203, %v4921, %v4925
      %v4927 = vshrl.u32 %v4744, 16
      %v4929 = vor.u32 %v4927, %v4925
      %v4931 = vshll.u32 %v4745, 16
      %v4933 = vrot.slane %v4931, 1
      %v4934 = vsel %vm1203, %v4929, %v4933
      %v4935 = vshrl.u32 %v4745, 16
      %v4937 = vor.u32 %v4935, %v4933
      %v4939 = vshll.u32 %v4746, 16
      %v4941 = vrot.slane %v4939, 1
      %v4942 = vsel %vm1203, %v4937, %v4941
      %v4943 = vshrl.u32 %v4746, 16
      %v4945 = vor.u32 %v4943, %v4941
      %v4947 = vshll.u32 %v4747, 16
      %v4949 = vrot.slane %v4947, 1
      %v4950 = vsel %vm1203, %v4945, %v4949
      %v4951 = vshrl.u32 %v4747, 16
      %v4953 = vor.u32 %v4951, %v4949
      %v4955 = vshll.u32 %v4748, 16
      %v4957 = vrot.slane %v4955, 1
      %v4958 = vsel %vm1203, %v4953, %v4957
      %v4959 = vshrl.u32 %v4748, 16
      %v4961 = vor.u32 %v4959, %v4957
      %v4963 = vshll.u32 %v4749, 16
      %v4965 = vrot.slane %v4963, 1
      %v4966 = vsel %vm1203, %v4961, %v4965
      %v4967 = vshrl.u32 %v4749, 16
      %v4969 = vor.u32 %v4967, %v4965
      %v4971 = vshll.u32 %v4750, 16
      %v4973 = vrot.slane %v4971, 1
      %v4974 = vsel %vm1203, %v4969, %v4973
      %v4975 = vshrl.u32 %v4750, 16
      %v4977 = vor.u32 %v4975, %v4973
      %v4979 = vshll.u32 %v4751, 16
      %v4981 = vrot.slane %v4979, 1
      %v4982 = vsel %vm1203, %v4977, %v4981
      %v4983 = vshrl.u32 %v4751, 16
      %v4985 = vor.u32 %v4983, %v4981
      %v4987 = vshll.u32 %v4752, 16
      %v4989 = vrot.slane %v4987, 1
      %v4990 = vsel %vm1203, %v4985, %v4989
      %v4991 = vshrl.u32 %v4752, 16
      %v4993 = vor.u32 %v4991, %v4989
      %v4995 = vshll.u32 %v4753, 16
      %v4997 = vrot.slane %v4995, 1
      %v4998 = vsel %vm1203, %v4993, %v4997
      %v4999 = vshrl.u32 %v4753, 16
      %v5001 = vor.u32 %v4999, %v4997
      %v5003 = vshll.u32 %v4754, 16
      %v5005 = vrot.slane %v5003, 1
      %v5006 = vsel %vm1203, %v5001, %v5005
      %v5007 = vshrl.u32 %v4754, 16
      %v5009 = vor.u32 %v5007, %v5005
      %v5011 = vshll.u32 %v4755, 16
      %v5013 = vrot.slane %v5011, 1
      %v5014 = vsel %vm1203, %v5009, %v5013
      %v5031 = vsel %vm1345, 0, %v4894
      %v5033 = vshrl.u32 %v4739, 16
      %v5035 = vrot.slane %v5033, 7
      %v5036 = vshll.u32 %v4739, 16
      %v5038 = vor.u32 %v5035, %v5036
      %v5039 = vsel %vm1065, %v4870, %v5038
      %v5041 = vshrl.u32 %v4755, 16
      %v5043 = vor.u32 %v5041, %v5013
      %v5045 = vsel %vm1345, %v5043, 0
      %v5047 = vsel %vm1201, %v5035, 0
      %v5192 = vunpack.c.l.b16 %v4564
      %v5193 = vunpack.c.l.b16 %v4565
      %v5194 = vunpack.c.l.b16 %v4566
      %v5195 = vunpack.c.l.b16 %v4567
      %v5196 = vunpack.c.l.b16 %v4568
      %v5197 = vunpack.c.l.b16 %v4569
      %v5198 = vunpack.c.l.b16 %v4570
      %v5199 = vunpack.c.l.b16 %v4571
      %v5200 = vunpack.c.l.b16 %v4572
      %v5201 = vunpack.c.l.b16 %v4573
      %v5202 = vunpack.c.l.b16 %v4574
      %v5203 = vunpack.c.l.b16 %v4575
      %v5204 = vunpack.c.l.b16 %v4576
      %v5205 = vunpack.c.l.b16 %v4577
      %v5206 = vunpack.c.l.b16 %v4578
      %v5207 = vunpack.c.l.b16 %v4579
      %v5208 = vunpack.c.l.b16 %v4580
      %v5209 = vunpack.c.l.b16 %v4581
      %v5210 = vunpack.c.l.b16 %v4582
      %v5211 = vunpack.c.l.b16 %v4583
      %v5212 = vunpack.c.l.b16 %v4584
      %v5213 = vunpack.c.l.b16 %v4585
      %v5214 = vunpack.c.l.b16 %v4586
      %v5215 = vunpack.c.l.b16 %v4587
      %v5216 = vunpack.c.l.b16 %v4588
      %v5217 = vunpack.c.l.b16 %v4589
      %v5218 = vunpack.c.l.b16 %v4590
      %v5219 = vunpack.c.l.b16 %v4591
      %v5220 = vunpack.c.l.b16 %v4592
      %v5221 = vunpack.c.l.b16 %v4593
      %v5222 = vunpack.c.l.b16 %v4594
      %v5223 = vunpack.c.l.b16 %v4595
      %v5224 = vunpack.c.l.b16 %v4596
      %v5225 = vunpack.c.l.b16 %v4597
      %v5226 = vunpack.c.l.b16 %v4598
      %v5227 = vunpack.c.l.b16 %v4599
      %v5228 = vunpack.c.l.b16 %v4600
      %v5229 = vunpack.c.l.b16 %v4601
      %v5230 = vunpack.c.l.b16 %v4602
      %v5231 = vunpack.c.l.b16 %v4603
      %v5232 = vunpack.c.l.b16 %v4604
      %v5233 = vunpack.c.l.b16 %v4605
      %v5234 = vunpack.c.l.b16 %v4606
      %v5235 = vunpack.c.l.b16 %v4607
      %v5236 = vunpack.c.l.b16 %v4608
      %v5237 = vunpack.c.l.b16 %v4609
      %v5238 = vunpack.c.l.b16 %v4610
      %v5239 = vunpack.c.l.b16 %v4611
      %v5240 = vunpack.c.l.b16 %v4612
      %v5241 = vunpack.c.l.b16 %v4613
      %v5242 = vunpack.c.l.b16 %v4614
      %v5243 = vunpack.c.l.b16 %v4615
      %v5244 = vunpack.c.l.b16 %v4616
      %v5245 = vunpack.c.l.b16 %v4617
      %v5246 = vunpack.c.l.b16 %v4618
      %v5247 = vunpack.c.l.b16 %v4619
      %v5248 = vunpack.c.l.b16 %v4620
      %v5249 = vunpack.c.l.b16 %v4621
      %v5250 = vunpack.c.l.b16 %v4622
      %v5251 = vunpack.c.l.b16 %v4623
      %v5252 = vunpack.c.l.b16 %v4624
      %v5253 = vunpack.c.l.b16 %v4625
      %v5254 = vunpack.c.l.b16 %v4626
      %v5255 = vunpack.c.l.b16 %v4627
      %v5256 = vunpack.c.l.b16 %v4628
      %v5257 = vunpack.c.l.b16 %v4629
      %v5258 = vunpack.c.l.b16 %v4630
      %v5259 = vunpack.c.l.b16 %v4631
      %v5260 = vunpack.c.l.b16 %v4632
      %v5261 = vunpack.c.l.b16 %v4633
      %v5262 = vunpack.c.l.b16 %v4634
      %v5263 = vunpack.c.l.b16 %v4635
      %v5264 = vunpack.c.l.b16 %v4636
      %v5265 = vunpack.c.l.b16 %v4637
      %v5266 = vunpack.c.l.b16 %v4638
      %v5267 = vunpack.c.l.b16 %v4639
      %v5268 = vunpack.c.l.b16 %v4640
      %v5269 = vunpack.c.l.b16 %v4641
      %v5270 = vunpack.c.l.b16 %v4642
      %v5271 = vunpack.c.l.b16 %v4643
      %v5272 = vunpack.c.l.b16 %v4644
      %v5273 = vunpack.c.l.b16 %v4645
      %v5274 = vunpack.c.l.b16 %v4646
      %v5275 = vunpack.c.l.b16 %v4647
      %v5276 = vunpack.c.l.b16 %v4648
      %v5277 = vunpack.c.l.b16 %v4649
      %v5278 = vunpack.c.l.b16 %v4650
      %v5279 = vunpack.c.l.b16 %v4651
      %v5280 = vunpack.c.l.b16 %v4652
      %v5281 = vunpack.c.l.b16 %v4653
      %v5282 = vunpack.c.l.b16 %v4654
      %v5283 = vunpack.c.l.b16 %v4655
      %v5284 = vunpack.c.l.b16 %v4656
      %v5285 = vunpack.c.l.b16 %v4657
      %v5286 = vunpack.c.l.b16 %v4658
      %v5287 = vunpack.c.l.b16 %v4659
      %v5288 = vunpack.c.l.b16 %v4660
      %v5289 = vunpack.c.l.b16 %v4661
      %v5290 = vunpack.c.l.b16 %v4662
      %v5291 = vunpack.c.l.b16 %v4663
      %v5292 = vunpack.c.l.b16 %v4664
      %v5293 = vunpack.c.l.b16 %v4665
      %v5294 = vunpack.c.l.b16 %v4666
      %v5295 = vunpack.c.l.b16 %v4667
      %v5296 = vunpack.c.l.b16 %v4668
      %v5297 = vunpack.c.l.b16 %v4669
      %v5298 = vunpack.c.l.b16 %v4670
      %v5299 = vunpack.c.l.b16 %v4671
      %v5300 = vunpack.c.l.b16 %v4672
      %v5301 = vunpack.c.l.b16 %v4673
      %v5302 = vunpack.c.l.b16 %v4674
      %v5303 = vunpack.c.l.b16 %v4675
      %v5304 = vunpack.c.l.b16 %v4676
      %v5305 = vunpack.c.l.b16 %v4677
      %v5306 = vunpack.c.l.b16 %v4678
      %v5307 = vunpack.c.l.b16 %v4679
      %v5308 = vunpack.c.l.b16 %v4680
      %v5309 = vunpack.c.l.b16 %v4681
      %v5310 = vunpack.c.l.b16 %v4682
      %v5311 = vunpack.c.l.b16 %v4683
      %v5312 = vunpack.c.l.b16 %v4684
      %v5313 = vunpack.c.l.b16 %v4685
      %v5314 = vunpack.c.l.b16 %v4686
      %v5315 = vunpack.c.l.b16 %v4687
      %v5316 = vunpack.c.l.b16 %v4688
      %v5317 = vunpack.c.l.b16 %v4689
      %v5318 = vunpack.c.l.b16 %v4690
      %v5319 = vunpack.c.l.b16 %v4691
      %v5320 = vunpack.c.l.b16 %v4692
      %v5321 = vunpack.c.l.b16 %v4693
      %v5322 = vunpack.c.l.b16 %v4694
      %v5323 = vunpack.c.l.b16 %v4695
      %v5324 = vunpack.c.l.b16 %v4696
      %v5325 = vunpack.c.l.b16 %v4697
      %v5326 = vunpack.c.l.b16 %v4698
      %v5327 = vunpack.c.l.b16 %v4699
      %v5328 = vunpack.c.l.b16 %v4700
      %v5329 = vunpack.c.l.b16 %v4701
      %v5330 = vunpack.c.l.b16 %v4702
      %v5331 = vunpack.c.l.b16 %v4703
      %v5332 = vunpack.c.l.b16 %v4704
      %v5333 = vunpack.c.l.b16 %v4705
      %v5334 = vunpack.c.l.b16 %v4706
      %v5335 = vunpack.c.l.b16 %v4707
      %v5336 = vpack.c.b16 %v5193, %v5192
      %v5337 = vpack.c.b16 %v5195, %v5194
      %v5338 = vpack.c.b16 %v5197, %v5196
      %v5339 = vpack.c.b16 %v5199, %v5198
      %v5340 = vpack.c.b16 %v5201, %v5200
      %v5341 = vpack.c.b16 %v5203, %v5202
      %v5342 = vpack.c.b16 %v5205, %v5204
      %v5343 = vpack.c.b16 %v5207, %v5206
      %v5344 = vpack.c.b16 %v5209, %v5208
      %v5345 = vpack.c.b16 %v5211, %v5210
      %v5346 = vpack.c.b16 %v5213, %v5212
      %v5347 = vpack.c.b16 %v5215, %v5214
      %v5348 = vpack.c.b16 %v5217, %v5216
      %v5349 = vpack.c.b16 %v5219, %v5218
      %v5350 = vpack.c.b16 %v5221, %v5220
      %v5351 = vpack.c.b16 %v5223, %v5222
      %v5352 = vpack.c.b16 %v5225, %v5224
      %v5353 = vpack.c.b16 %v5227, %v5226
      %v5354 = vpack.c.b16 %v5229, %v5228
      %v5355 = vpack.c.b16 %v5231, %v5230
      %v5356 = vpack.c.b16 %v5233, %v5232
      %v5357 = vpack.c.b16 %v5235, %v5234
      %v5358 = vpack.c.b16 %v5237, %v5236
      %v5359 = vpack.c.b16 %v5239, %v5238
      %v5360 = vpack.c.b16 %v5241, %v5240
      %v5361 = vpack.c.b16 %v5243, %v5242
      %v5362 = vpack.c.b16 %v5245, %v5244
      %v5363 = vpack.c.b16 %v5247, %v5246
      %v5364 = vpack.c.b16 %v5249, %v5248
      %v5365 = vpack.c.b16 %v5251, %v5250
      %v5366 = vpack.c.b16 %v5253, %v5252
      %v5367 = vpack.c.b16 %v5255, %v5254
      %v5368 = vpack.c.b16 %v5257, %v5256
      %v5369 = vpack.c.b16 %v5259, %v5258
      %v5370 = vpack.c.b16 %v5261, %v5260
      %v5371 = vpack.c.b16 %v5263, %v5262
      %v5372 = vpack.c.b16 %v5265, %v5264
      %v5373 = vpack.c.b16 %v5267, %v5266
      %v5374 = vpack.c.b16 %v5269, %v5268
      %v5375 = vpack.c.b16 %v5271, %v5270
      %v5376 = vpack.c.b16 %v5273, %v5272
      %v5377 = vpack.c.b16 %v5275, %v5274
      %v5378 = vpack.c.b16 %v5277, %v5276
      %v5379 = vpack.c.b16 %v5279, %v5278
      %v5380 = vpack.c.b16 %v5281, %v5280
      %v5381 = vpack.c.b16 %v5283, %v5282
      %v5382 = vpack.c.b16 %v5285, %v5284
      %v5383 = vpack.c.b16 %v5287, %v5286
      %v5384 = vpack.c.b16 %v5289, %v5288
      %v5385 = vpack.c.b16 %v5291, %v5290
      %v5386 = vpack.c.b16 %v5293, %v5292
      %v5387 = vpack.c.b16 %v5295, %v5294
      %v5388 = vpack.c.b16 %v5297, %v5296
      %v5389 = vpack.c.b16 %v5299, %v5298
      %v5390 = vpack.c.b16 %v5301, %v5300
      %v5391 = vpack.c.b16 %v5303, %v5302
      %v5392 = vpack.c.b16 %v5305, %v5304
      %v5393 = vpack.c.b16 %v5307, %v5306
      %v5394 = vpack.c.b16 %v5309, %v5308
      %v5395 = vpack.c.b16 %v5311, %v5310
      %v5396 = vpack.c.b16 %v5313, %v5312
      %v5397 = vpack.c.b16 %v5315, %v5314
      %v5398 = vpack.c.b16 %v5317, %v5316
      %v5399 = vpack.c.b16 %v5319, %v5318
      %v5400 = vpack.c.b16 %v5321, %v5320
      %v5401 = vpack.c.b16 %v5323, %v5322
      %v5402 = vpack.c.b16 %v5325, %v5324
      %v5403 = vpack.c.b16 %v5327, %v5326
      %v5404 = vpack.c.b16 %v5329, %v5328
      %v5405 = vpack.c.b16 %v5331, %v5330
      %v5406 = vpack.c.b16 %v5333, %v5332
      %v5407 = vpack.c.b16 %v5335, %v5334
      %5480 = vmatprep.subr.bf16.mxu0 0
      %5481 = vmatpush1.bf16.msra.mxu0 %v5336
      %5482 = vmatprep.subr.bf16.mxu0 0
      %5483 = vmatpush1.bf16.msra.mxu0 %v5337
      %5484 = vmatprep.subr.bf16.mxu0 0
      %5485 = vmatpush1.bf16.msra.mxu0 %v5338
      %5486 = vmatprep.subr.bf16.mxu0 0
      %5487 = vmatpush1.bf16.msra.mxu0 %v5339
      %5488 = vmatprep.subr.bf16.mxu0 0
      %5489 = vmatpush1.bf16.msra.mxu0 %v5340
      %5490 = vmatprep.subr.bf16.mxu0 0
      %5491 = vmatpush1.bf16.msra.mxu0 %v5341
      %5492 = vmatprep.subr.bf16.mxu0 0
      %5493 = vmatpush1.bf16.msra.mxu0 %v5342
      %5494 = vmatprep.subr.bf16.mxu0 0
      %5495 = vmatpush1.bf16.msra.mxu0 %v5343
      %5496 = vmatprep.subr.bf16.mxu0 0
      %5497 = vmatpush1.bf16.msra.mxu0 %v5344
      %5498 = vmatprep.subr.bf16.mxu0 0
      %5499 = vmatpush1.bf16.msra.mxu0 %v5345
      %5500 = vmatprep.subr.bf16.mxu0 0
      %5501 = vmatpush1.bf16.msra.mxu0 %v5346
      %5502 = vmatprep.subr.bf16.mxu0 0
      %5503 = vmatpush1.bf16.msra.mxu0 %v5347
      %5504 = vmatprep.subr.bf16.mxu0 0
      %5505 = vmatpush1.bf16.msra.mxu0 %v5348
      %5506 = vmatprep.subr.bf16.mxu0 0
      %5507 = vmatpush1.bf16.msra.mxu0 %v5349
      %5508 = vmatprep.subr.bf16.mxu0 0
      %5509 = vmatpush1.bf16.msra.mxu0 %v5350
      %5510 = vmatprep.subr.bf16.mxu0 0
      %5511 = vmatpush1.bf16.msra.mxu0 %v5351
      %5512 = vmatprep.mubr.bf16.mxu0 0
      %5513 = vmatmul.mubr.bf16.gmra.mrb[0].mxu0 0
      %v5514 = vpop.f32.mrb[0].mxu0
      %v5515 = vadd.f32 0.0, %v5514
      %v5516 = vpop.f32.mrb[0].mxu0
      %v5517 = vpop.f32.mrb[0].mxu0
      %v5518 = vadd.f32 0.0, %v5517
      %v5519 = vpop.f32.mrb[0].mxu0
      %5520 = vmatprep.mubr.bf16.mxu0 %v4708
      %5521 = vmatmul.mubr.bf16.gmra.mrb[0].mxu0 %v4890
      %v5522 = vpop.f32.mrb[0].mxu0
      %v5523 = vadd.f32 0.0, %v5522
      %v5524 = vpop.f32.mrb[0].mxu0
      %v5525 = vpop.f32.mrb[0].mxu0
      %v5526 = vadd.f32 0.0, %v5525
      %v5527 = vpop.f32.mrb[0].mxu0
      %5528 = vmatprep.mubr.bf16.mxu0 %v4709
      %5529 = vmatmul.mubr.bf16.gmra.mrb[0].mxu0 %v4770
      %v5530 = vpop.f32.mrb[0].mxu0
      %v5531 = vadd.f32 0.0, %v5530
      %v5532 = vpop.f32.mrb[0].mxu0
      %v5533 = vpop.f32.mrb[0].mxu0
      %v5534 = vadd.f32 0.0, %v5533
      %v5535 = vpop.f32.mrb[0].mxu0
      %5536 = vmatprep.mubr.bf16.mxu0 %v4710
      %5537 = vmatmul.mubr.bf16.gmra.mrb[0].mxu0 %v4778
      %v5538 = vpop.f32.mrb[0].mxu0
      %v5539 = vadd.f32 0.0, %v5538
      %v5540 = vpop.f32.mrb[0].mxu0
      %v5541 = vpop.f32.mrb[0].mxu0
      %v5542 = vadd.f32 0.0, %v5541
      %v5543 = vpop.f32.mrb[0].mxu0
      %5544 = vmatprep.mubr.bf16.mxu0 %v4711
      %5545 = vmatmul.mubr.bf16.gmra.mrb[0].mxu0 %v4786
      %v5546 = vpop.f32.mrb[0].mxu0
      %v5547 = vadd.f32 0.0, %v5546
      %v5548 = vpop.f32.mrb[0].mxu0
      %v5549 = vpop.f32.mrb[0].mxu0
      %v5550 = vadd.f32 0.0, %v5549
      %v5551 = vpop.f32.mrb[0].mxu0
      %5552 = vmatprep.mubr.bf16.mxu0 %v4712
      %5553 = vmatmul.mubr.bf16.gmra.mrb[0].mxu0 %v4794
      %v5554 = vpop.f32.mrb[0].mxu0
      %v5555 = vadd.f32 0.0, %v5554
      %v5556 = vpop.f32.mrb[0].mxu0
      %v5557 = vpop.f32.mrb[0].mxu0
      %v5558 = vadd.f32 0.0, %v5557
      %v5559 = vpop.f32.mrb[0].mxu0
      %5560 = vmatprep.mubr.bf16.mxu0 %v4713
      %5561 = vmatmul.mubr.bf16.gmra.mrb[0].mxu0 %v4802
      %v5562 = vpop.f32.mrb[0].mxu0
      %v5563 = vadd.f32 0.0, %v5562
      %v5564 = vpop.f32.mrb[0].mxu0
      %v5565 = vpop.f32.mrb[0].mxu0
      %v5566 = vadd.f32 0.0, %v5565
      %v5567 = vpop.f32.mrb[0].mxu0
      %5568 = vmatprep.mubr.bf16.mxu0 %v4714
      %5569 = vmatmul.mubr.bf16.gmra.mrb[0].mxu0 %v4810
      %v5570 = vpop.f32.mrb[0].mxu0
      %v5571 = vadd.f32 0.0, %v5570
      %v5572 = vpop.f32.mrb[0].mxu0
      %v5573 = vpop.f32.mrb[0].mxu0
      %v5574 = vadd.f32 0.0, %v5573
      %v5575 = vpop.f32.mrb[0].mxu0
      %5576 = vmatprep.mubr.bf16.mxu0 %v4715
      %5577 = vmatmul.mubr.bf16.gmra.mrb[0].mxu0 %v4818
      %v5578 = vpop.f32.mrb[0].mxu0
      %v5579 = vadd.f32 0.0, %v5578
      %v5580 = vpop.f32.mrb[0].mxu0
      %v5581 = vpop.f32.mrb[0].mxu0
      %v5582 = vadd.f32 0.0, %v5581
      %v5583 = vpop.f32.mrb[0].mxu0
      %5584 = vmatprep.mubr.bf16.mxu0 %v4716
      %5585 = vmatmul.mubr.bf16.gmra.mrb[0].mxu0 %v4826
      %v5586 = vpop.f32.mrb[0].mxu0
      %v5587 = vadd.f32 0.0, %v5586
      %v5588 = vpop.f32.mrb[0].mxu0
      %v5589 = vpop.f32.mrb[0].mxu0
      %v5590 = vadd.f32 0.0, %v5589
      %v5591 = vpop.f32.mrb[0].mxu0
      %5592 = vmatprep.mubr.bf16.mxu0 %v4717
      %5593 = vmatmul.mubr.bf16.gmra.mrb[0].mxu0 %v4834
      %v5594 = vpop.f32.mrb[0].mxu0
      %v5595 = vadd.f32 0.0, %v5594
      %v5596 = vpop.f32.mrb[0].mxu0
      %v5597 = vpop.f32.mrb[0].mxu0
      %v5598 = vadd.f32 0.0, %v5597
      %v5599 = vpop.f32.mrb[0].mxu0
      %5600 = vmatprep.mubr.bf16.mxu0 %v4718
      %5601 = vmatmul.mubr.bf16.gmra.mrb[0].mxu0 %v4842
      %v5602 = vpop.f32.mrb[0].mxu0
      %v5603 = vadd.f32 0.0, %v5602
      %v5604 = vpop.f32.mrb[0].mxu0
      %v5605 = vpop.f32.mrb[0].mxu0
      %v5606 = vadd.f32 0.0, %v5605
      %v5607 = vpop.f32.mrb[0].mxu0
      %5608 = vmatprep.mubr.bf16.mxu0 %v4719
      %5609 = vmatmul.mubr.bf16.gmra.mrb[0].mxu0 %v4850
      %v5610 = vpop.f32.mrb[0].mxu0
      %v5611 = vadd.f32 0.0, %v5610
      %v5612 = vpop.f32.mrb[0].mxu0
      %v5613 = vpop.f32.mrb[0].mxu0
      %v5614 = vadd.f32 0.0, %v5613
      %v5615 = vpop.f32.mrb[0].mxu0
      %5616 = vmatprep.mubr.bf16.mxu0 %v4720
      %5617 = vmatmul.mubr.bf16.gmra.mrb[0].mxu0 %v4858
      %v5618 = vpop.f32.mrb[0].mxu0
      %v5619 = vadd.f32 0.0, %v5618
      %v5620 = vpop.f32.mrb[0].mxu0
      %v5621 = vpop.f32.mrb[0].mxu0
      %v5622 = vadd.f32 0.0, %v5621
      %v5623 = vpop.f32.mrb[0].mxu0
      %5624 = vmatprep.mubr.bf16.mxu0 %v4721
      %5625 = vmatmul.mubr.bf16.gmra.mrb[0].mxu0 %v4866
      %v5626 = vpop.f32.mrb[0].mxu0
      %v5627 = vadd.f32 0.0, %v5626
      %v5628 = vpop.f32.mrb[0].mxu0
      %v5629 = vpop.f32.mrb[0].mxu0
      %v5630 = vadd.f32 0.0, %v5629
      %v5631 = vpop.f32.mrb[0].mxu0
      %5632 = vmatprep.mubr.bf16.mxu0 %v4722
      %5633 = vmatmul.mubr.bf16.gmra.mrb[0].mxu0 %v4874
      %v5634 = vpop.f32.mrb[0].mxu0
      %v5635 = vadd.f32 0.0, %v5634
      %v5636 = vpop.f32.mrb[0].mxu0
      %v5637 = vpop.f32.mrb[0].mxu0
      %v5638 = vadd.f32 0.0, %v5637
      %v5639 = vpop.f32.mrb[0].mxu0
      %5640 = vdwg.mxu0
      %5641 = vmatprep.subr.bf16.mxu0 0
      %5642 = vmatpush1.bf16.msra.mxu0 %v5352
      %5643 = vmatprep.subr.bf16.mxu0 0
      %5644 = vmatpush1.bf16.msra.mxu0 %v5353
      %5645 = vmatprep.subr.bf16.mxu0 0
      %5646 = vmatpush1.bf16.msra.mxu0 %v5354
      %5647 = vmatprep.subr.bf16.mxu0 0
      %5648 = vmatpush1.bf16.msra.mxu0 %v5355
      %5649 = vmatprep.subr.bf16.mxu0 0
      %5650 = vmatpush1.bf16.msra.mxu0 %v5356
      %5651 = vmatprep.subr.bf16.mxu0 0
      %5652 = vmatpush1.bf16.msra.mxu0 %v5357
      %5653 = vmatprep.subr.bf16.mxu0 0
      %5654 = vmatpush1.bf16.msra.mxu0 %v5358
      %5655 = vmatprep.subr.bf16.mxu0 0
      %5656 = vmatpush1.bf16.msra.mxu0 %v5359
      %5657 = vmatprep.subr.bf16.mxu0 0
      %5658 = vmatpush1.bf16.msra.mxu0 %v5360
      %5659 = vmatprep.subr.bf16.mxu0 0
      %5660 = vmatpush1.bf16.msra.mxu0 %v5361
      %5661 = vmatprep.subr.bf16.mxu0 0
      %5662 = vmatpush1.bf16.msra.mxu0 %v5362
      %5663 = vmatprep.subr.bf16.mxu0 0
      %5664 = vmatpush1.bf16.msra.mxu0 %v5363
      %5665 = vmatprep.subr.bf16.mxu0 0
      %5666 = vmatpush1.bf16.msra.mxu0 %v5364
      %5667 = vmatprep.subr.bf16.mxu0 0
      %5668 = vmatpush1.bf16.msra.mxu0 %v5365
      %5669 = vmatprep.subr.bf16.mxu0 0
      %5670 = vmatpush1.bf16.msra.mxu0 %v5366
      %5671 = vmatprep.subr.bf16.mxu0 0
      %5672 = vmatpush1.bf16.msra.mxu0 %v5367
      %5673 = vmatprep.mubr.bf16.mxu0 %v4890
      %5674 = vmatmul.mubr.bf16.gmra.mrb[0].mxu0 %v5031
      %v5675 = vpop.f32.mrb[0].mxu0
      %v5676 = vadd.f32 %v5515, %v5675
      %v5677 = vpop.f32.mrb[0].mxu0
      %v5678 = vpop.f32.mrb[0].mxu0
      %v5679 = vadd.f32 %v5518, %v5678
      %v5680 = vpop.f32.mrb[0].mxu0
      %5681 = vmatprep.mubr.bf16.mxu0 %v4770
      %5682 = vmatmul.mubr.bf16.gmra.mrb[0].mxu0 %v4902
      %v5683 = vpop.f32.mrb[0].mxu0
      %v5684 = vadd.f32 %v5523, %v5683
      %v5685 = vpop.f32.mrb[0].mxu0
      %v5686 = vpop.f32.mrb[0].mxu0
      %v5687 = vadd.f32 %v5526, %v5686
      %v5688 = vpop.f32.mrb[0].mxu0
      %5689 = vmatprep.mubr.bf16.mxu0 %v4778
      %5690 = vmatmul.mubr.bf16.gmra.mrb[0].mxu0 %v4910
      %v5691 = vpop.f32.mrb[0].mxu0
      %v5692 = vadd.f32 %v5531, %v5691
      %v5693 = vpop.f32.mrb[0].mxu0
      %v5694 = vpop.f32.mrb[0].mxu0
      %v5695 = vadd.f32 %v5534, %v5694
      %v5696 = vpop.f32.mrb[0].mxu0
      %5697 = vmatprep.mubr.bf16.mxu0 %v4786
      %5698 = vmatmul.mubr.bf16.gmra.mrb[0].mxu0 %v4918
      %v5699 = vpop.f32.mrb[0].mxu0
      %v5700 = vadd.f32 %v5539, %v5699
      %v5701 = vpop.f32.mrb[0].mxu0
      %v5702 = vpop.f32.mrb[0].mxu0
      %v5703 = vadd.f32 %v5542, %v5702
      %v5704 = vpop.f32.mrb[0].mxu0
      %5705 = vmatprep.mubr.bf16.mxu0 %v4794
      %5706 = vmatmul.mubr.bf16.gmra.mrb[0].mxu0 %v4926
      %v5707 = vpop.f32.mrb[0].mxu0
      %v5708 = vadd.f32 %v5547, %v5707
      %v5709 = vpop.f32.mrb[0].mxu0
      %v5710 = vpop.f32.mrb[0].mxu0
      %v5711 = vadd.f32 %v5550, %v5710
      %v5712 = vpop.f32.mrb[0].mxu0
      %5713 = vmatprep.mubr.bf16.mxu0 %v4802
      %5714 = vmatmul.mubr.bf16.gmra.mrb[0].mxu0 %v4934
      %v5715 = vpop.f32.mrb[0].mxu0
      %v5716 = vadd.f32 %v5555, %v5715
      %v5717 = vpop.f32.mrb[0].mxu0
      %v5718 = vpop.f32.mrb[0].mxu0
      %v5719 = vadd.f32 %v5558, %v5718
      %v5720 = vpop.f32.mrb[0].mxu0
      %5721 = vmatprep.mubr.bf16.mxu0 %v4810
      %5722 = vmatmul.mubr.bf16.gmra.mrb[0].mxu0 %v4942
      %v5723 = vpop.f32.mrb[0].mxu0
      %v5724 = vadd.f32 %v5563, %v5723
      %v5725 = vpop.f32.mrb[0].mxu0
      %v5726 = vpop.f32.mrb[0].mxu0
      %v5727 = vadd.f32 %v5566, %v5726
      %v5728 = vpop.f32.mrb[0].mxu0
      %5729 = vmatprep.mubr.bf16.mxu0 %v4818
      %5730 = vmatmul.mubr.bf16.gmra.mrb[0].mxu0 %v4950
      %v5731 = vpop.f32.mrb[0].mxu0
      %v5732 = vadd.f32 %v5571, %v5731
      %v5733 = vpop.f32.mrb[0].mxu0
      %v5734 = vpop.f32.mrb[0].mxu0
      %v5735 = vadd.f32 %v5574, %v5734
      %v5736 = vpop.f32.mrb[0].mxu0
      %5737 = vmatprep.mubr.bf16.mxu0 %v4826
      %5738 = vmatmul.mubr.bf16.gmra.mrb[0].mxu0 %v4958
      %v5739 = vpop.f32.mrb[0].mxu0
      %v5740 = vadd.f32 %v5579, %v5739
      %v5741 = vpop.f32.mrb[0].mxu0
      %v5742 = vpop.f32.mrb[0].mxu0
      %v5743 = vadd.f32 %v5582, %v5742
      %v5744 = vpop.f32.mrb[0].mxu0
      %5745 = vmatprep.mubr.bf16.mxu0 %v4834
      %5746 = vmatmul.mubr.bf16.gmra.mrb[0].mxu0 %v4966
      %v5747 = vpop.f32.mrb[0].mxu0
      %v5748 = vadd.f32 %v5587, %v5747
      %v5749 = vpop.f32.mrb[0].mxu0
      %v5750 = vpop.f32.mrb[0].mxu0
      %v5751 = vadd.f32 %v5590, %v5750
      %v5752 = vpop.f32.mrb[0].mxu0
      %5753 = vmatprep.mubr.bf16.mxu0 %v4842
      %5754 = vmatmul.mubr.bf16.gmra.mrb[0].mxu0 %v4974
      %v5755 = vpop.f32.mrb[0].mxu0
      %v5756 = vadd.f32 %v5595, %v5755
      %v5757 = vpop.f32.mrb[0].mxu0
      %v5758 = vpop.f32.mrb[0].mxu0
      %v5759 = vadd.f32 %v5598, %v5758
      %v5760 = vpop.f32.mrb[0].mxu0
      %5761 = vmatprep.mubr.bf16.mxu0 %v4850
      %5762 = vmatmul.mubr.bf16.gmra.mrb[0].mxu0 %v4982
      %v5763 = vpop.f32.mrb[0].mxu0
      %v5764 = vadd.f32 %v5603, %v5763
      %v5765 = vpop.f32.mrb[0].mxu0
      %v5766 = vpop.f32.mrb[0].mxu0
      %v5767 = vadd.f32 %v5606, %v5766
      %v5768 = vpop.f32.mrb[0].mxu0
      %5769 = vmatprep.mubr.bf16.mxu0 %v4858
      %5770 = vmatmul.mubr.bf16.gmra.mrb[0].mxu0 %v4990
      %v5771 = vpop.f32.mrb[0].mxu0
      %v5772 = vadd.f32 %v5611, %v5771
      %v5773 = vpop.f32.mrb[0].mxu0
      %v5774 = vpop.f32.mrb[0].mxu0
      %v5775 = vadd.f32 %v5614, %v5774
      %v5776 = vpop.f32.mrb[0].mxu0
      %5777 = vmatprep.mubr.bf16.mxu0 %v4866
      %5778 = vmatmul.mubr.bf16.gmra.mrb[0].mxu0 %v4998
      %v5779 = vpop.f32.mrb[0].mxu0
      %v5780 = vadd.f32 %v5619, %v5779
      %v5781 = vpop.f32.mrb[0].mxu0
      %v5782 = vpop.f32.mrb[0].mxu0
      %v5783 = vadd.f32 %v5622, %v5782
      %v5784 = vpop.f32.mrb[0].mxu0
      %5785 = vmatprep.mubr.bf16.mxu0 %v4874
      %5786 = vmatmul.mubr.bf16.gmra.mrb[0].mxu0 %v5006
      %v5787 = vpop.f32.mrb[0].mxu0
      %v5788 = vadd.f32 %v5627, %v5787
      %v5789 = vpop.f32.mrb[0].mxu0
      %v5790 = vpop.f32.mrb[0].mxu0
      %v5791 = vadd.f32 %v5630, %v5790
      %v5792 = vpop.f32.mrb[0].mxu0
      %5793 = vmatprep.mubr.bf16.mxu0 %v5039
      %5794 = vmatmul.mubr.bf16.gmra.mrb[0].mxu0 %v5014
      %v5795 = vpop.f32.mrb[0].mxu0
      %v5796 = vadd.f32 %v5635, %v5795
      %v5797 = vpop.f32.mrb[0].mxu0
      %v5798 = vpop.f32.mrb[0].mxu0
      %v5799 = vadd.f32 %v5638, %v5798
      %v5800 = vpop.f32.mrb[0].mxu0
      %5801 = vdwg.mxu0
      %5802 = vmatprep.subr.bf16.mxu0 0
      %5803 = vmatpush1.bf16.msra.mxu0 %v5368
      %5804 = vmatprep.subr.bf16.mxu0 0
      %5805 = vmatpush1.bf16.msra.mxu0 %v5369
      %5806 = vmatprep.subr.bf16.mxu0 0
      %5807 = vmatpush1.bf16.msra.mxu0 %v5370
      %5808 = vmatprep.subr.bf16.mxu0 0
      %5809 = vmatpush1.bf16.msra.mxu0 %v5371
      %5810 = vmatprep.subr.bf16.mxu0 0
      %5811 = vmatpush1.bf16.msra.mxu0 %v5372
      %5812 = vmatprep.subr.bf16.mxu0 0
      %5813 = vmatpush1.bf16.msra.mxu0 %v5373
      %5814 = vmatprep.subr.bf16.mxu0 0
      %5815 = vmatpush1.bf16.msra.mxu0 %v5374
      %5816 = vmatprep.subr.bf16.mxu0 0
      %5817 = vmatpush1.bf16.msra.mxu0 %v5375
      %5818 = vmatprep.subr.bf16.mxu0 0
      %5819 = vmatpush1.bf16.msra.mxu0 %v5376
      %5820 = vmatprep.subr.bf16.mxu0 0
      %5821 = vmatpush1.bf16.msra.mxu0 %v5377
      %5822 = vmatprep.subr.bf16.mxu0 0
      %5823 = vmatpush1.bf16.msra.mxu0 %v5378
      %5824 = vmatprep.subr.bf16.mxu0 0
      %5825 = vmatpush1.bf16.msra.mxu0 %v5379
      %5826 = vmatprep.subr.bf16.mxu0 0
      %5827 = vmatpush1.bf16.msra.mxu0 %v5380
      %5828 = vmatprep.subr.bf16.mxu0 0
      %5829 = vmatpush1.bf16.msra.mxu0 %v5381
      %5830 = vmatprep.subr.bf16.mxu0 0
      %5831 = vmatpush1.bf16.msra.mxu0 %v5382
      %5832 = vmatprep.subr.bf16.mxu0 0
      %5833 = vmatpush1.bf16.msra.mxu0 %v5383
      %5834 = vmatprep.mubr.bf16.mxu0 %v4902
      %5835 = vmatmul.mubr.bf16.gmra.mrb[0].mxu0 %v4708
      %v5836 = vpop.f32.mrb[0].mxu0
      %v5837 = vadd.f32 %v5676, %v5836
      %v5838 = vpop.f32.mrb[0].mxu0
      %v5839 = vpop.f32.mrb[0].mxu0
      %v5840 = vadd.f32 %v5679, %v5839
      %v5841 = vpop.f32.mrb[0].mxu0
      %5842 = vmatprep.mubr.bf16.mxu0 %v4910
      %5843 = vmatmul.mubr.bf16.gmra.mrb[0].mxu0 %v4709
      %v5844 = vpop.f32.mrb[0].mxu0
      %v5845 = vadd.f32 %v5684, %v5844
      %v5846 = vpop.f32.mrb[0].mxu0
      %v5847 = vpop.f32.mrb[0].mxu0
      %v5848 = vadd.f32 %v5687, %v5847
      %v5849 = vpop.f32.mrb[0].mxu0
      %5850 = vmatprep.mubr.bf16.mxu0 %v4918
      %5851 = vmatmul.mubr.bf16.gmra.mrb[0].mxu0 %v4710
      %v5852 = vpop.f32.mrb[0].mxu0
      %v5853 = vadd.f32 %v5692, %v5852
      %v5854 = vpop.f32.mrb[0].mxu0
      %v5855 = vpop.f32.mrb[0].mxu0
      %v5856 = vadd.f32 %v5695, %v5855
      %v5857 = vpop.f32.mrb[0].mxu0
      %5858 = vmatprep.mubr.bf16.mxu0 %v4926
      %5859 = vmatmul.mubr.bf16.gmra.mrb[0].mxu0 %v4711
      %v5860 = vpop.f32.mrb[0].mxu0
      %v5861 = vadd.f32 %v5700, %v5860
      %v5862 = vpop.f32.mrb[0].mxu0
      %v5863 = vpop.f32.mrb[0].mxu0
      %v5864 = vadd.f32 %v5703, %v5863
      %v5865 = vpop.f32.mrb[0].mxu0
      %5866 = vmatprep.mubr.bf16.mxu0 %v4934
      %5867 = vmatmul.mubr.bf16.gmra.mrb[0].mxu0 %v4712
      %v5868 = vpop.f32.mrb[0].mxu0
      %v5869 = vadd.f32 %v5708, %v5868
      %v5870 = vpop.f32.mrb[0].mxu0
      %v5871 = vpop.f32.mrb[0].mxu0
      %v5872 = vadd.f32 %v5711, %v5871
      %v5873 = vpop.f32.mrb[0].mxu0
      %5874 = vmatprep.mubr.bf16.mxu0 %v4942
      %5875 = vmatmul.mubr.bf16.gmra.mrb[0].mxu0 %v4713
      %v5876 = vpop.f32.mrb[0].mxu0
      %v5877 = vadd.f32 %v5716, %v5876
      %v5878 = vpop.f32.mrb[0].mxu0
      %v5879 = vpop.f32.mrb[0].mxu0
      %v5880 = vadd.f32 %v5719, %v5879
      %v5881 = vpop.f32.mrb[0].mxu0
      %5882 = vmatprep.mubr.bf16.mxu0 %v4950
      %5883 = vmatmul.mubr.bf16.gmra.mrb[0].mxu0 %v4714
      %v5884 = vpop.f32.mrb[0].mxu0
      %v5885 = vadd.f32 %v5724, %v5884
      %v5886 = vpop.f32.mrb[0].mxu0
      %v5887 = vpop.f32.mrb[0].mxu0
      %v5888 = vadd.f32 %v5727, %v5887
      %v5889 = vpop.f32.mrb[0].mxu0
      %5890 = vmatprep.mubr.bf16.mxu0 %v4958
      %5891 = vmatmul.mubr.bf16.gmra.mrb[0].mxu0 %v4715
      %v5892 = vpop.f32.mrb[0].mxu0
      %v5893 = vadd.f32 %v5732, %v5892
      %v5894 = vpop.f32.mrb[0].mxu0
      %v5895 = vpop.f32.mrb[0].mxu0
      %v5896 = vadd.f32 %v5735, %v5895
      %v5897 = vpop.f32.mrb[0].mxu0
      %5898 = vmatprep.mubr.bf16.mxu0 %v4966
      %5899 = vmatmul.mubr.bf16.gmra.mrb[0].mxu0 %v4716
      %v5900 = vpop.f32.mrb[0].mxu0
      %v5901 = vadd.f32 %v5740, %v5900
      %v5902 = vpop.f32.mrb[0].mxu0
      %v5903 = vpop.f32.mrb[0].mxu0
      %v5904 = vadd.f32 %v5743, %v5903
      %v5905 = vpop.f32.mrb[0].mxu0
      %5906 = vmatprep.mubr.bf16.mxu0 %v4974
      %5907 = vmatmul.mubr.bf16.gmra.mrb[0].mxu0 %v4717
      %v5908 = vpop.f32.mrb[0].mxu0
      %v5909 = vadd.f32 %v5748, %v5908
      %v5910 = vpop.f32.mrb[0].mxu0
      %v5911 = vpop.f32.mrb[0].mxu0
      %v5912 = vadd.f32 %v5751, %v5911
      %v5913 = vpop.f32.mrb[0].mxu0
      %5914 = vmatprep.mubr.bf16.mxu0 %v4982
      %5915 = vmatmul.mubr.bf16.gmra.mrb[0].mxu0 %v4718
      %v5916 = vpop.f32.mrb[0].mxu0
      %v5917 = vadd.f32 %v5756, %v5916
      %v5918 = vpop.f32.mrb[0].mxu0
      %v5919 = vpop.f32.mrb[0].mxu0
      %v5920 = vadd.f32 %v5759, %v5919
      %v5921 = vpop.f32.mrb[0].mxu0
      %5922 = vmatprep.mubr.bf16.mxu0 %v4990
      %5923 = vmatmul.mubr.bf16.gmra.mrb[0].mxu0 %v4719
      %v5924 = vpop.f32.mrb[0].mxu0
      %v5925 = vadd.f32 %v5764, %v5924
      %v5926 = vpop.f32.mrb[0].mxu0
      %v5927 = vpop.f32.mrb[0].mxu0
      %v5928 = vadd.f32 %v5767, %v5927
      %v5929 = vpop.f32.mrb[0].mxu0
      %5930 = vmatprep.mubr.bf16.mxu0 %v4998
      %5931 = vmatmul.mubr.bf16.gmra.mrb[0].mxu0 %v4720
      %v5932 = vpop.f32.mrb[0].mxu0
      %v5933 = vadd.f32 %v5772, %v5932
      %v5934 = vpop.f32.mrb[0].mxu0
      %v5935 = vpop.f32.mrb[0].mxu0
      %v5936 = vadd.f32 %v5775, %v5935
      %v5937 = vpop.f32.mrb[0].mxu0
      %5938 = vmatprep.mubr.bf16.mxu0 %v5006
      %5939 = vmatmul.mubr.bf16.gmra.mrb[0].mxu0 %v4721
      %v5940 = vpop.f32.mrb[0].mxu0
      %v5941 = vadd.f32 %v5780, %v5940
      %v5942 = vpop.f32.mrb[0].mxu0
      %v5943 = vpop.f32.mrb[0].mxu0
      %v5944 = vadd.f32 %v5783, %v5943
      %v5945 = vpop.f32.mrb[0].mxu0
      %5946 = vmatprep.mubr.bf16.mxu0 %v5014
      %5947 = vmatmul.mubr.bf16.gmra.mrb[0].mxu0 %v4722
      %v5948 = vpop.f32.mrb[0].mxu0
      %v5949 = vadd.f32 %v5788, %v5948
      %v5950 = vpop.f32.mrb[0].mxu0
      %v5951 = vpop.f32.mrb[0].mxu0
      %v5952 = vadd.f32 %v5791, %v5951
      %v5953 = vpop.f32.mrb[0].mxu0
      %5954 = vmatprep.mubr.bf16.mxu0 %v5045
      %5955 = vmatmul.mubr.bf16.gmra.mrb[0].mxu0 %v4723
      %v5956 = vpop.f32.mrb[0].mxu0
      %v5957 = vadd.f32 %v5796, %v5956
      %v5958 = vpop.f32.mrb[0].mxu0
      %v5959 = vpop.f32.mrb[0].mxu0
      %v5960 = vadd.f32 %v5799, %v5959
      %v5961 = vpop.f32.mrb[0].mxu0
      %5962 = vdwg.mxu0
      %5963 = vmatprep.subr.bf16.mxu0 0
      %5964 = vmatpush1.bf16.msra.mxu0 %v5384
      %5965 = vmatprep.subr.bf16.mxu0 0
      %5966 = vmatpush1.bf16.msra.mxu0 %v5385
      %5967 = vmatprep.subr.bf16.mxu0 0
      %5968 = vmatpush1.bf16.msra.mxu0 %v5386
      %5969 = vmatprep.subr.bf16.mxu0 0
      %5970 = vmatpush1.bf16.msra.mxu0 %v5387
      %5971 = vmatprep.subr.bf16.mxu0 0
      %5972 = vmatpush1.bf16.msra.mxu0 %v5388
      %5973 = vmatprep.subr.bf16.mxu0 0
      %5974 = vmatpush1.bf16.msra.mxu0 %v5389
      %5975 = vmatprep.subr.bf16.mxu0 0
      %5976 = vmatpush1.bf16.msra.mxu0 %v5390
      %5977 = vmatprep.subr.bf16.mxu0 0
      %5978 = vmatpush1.bf16.msra.mxu0 %v5391
      %5979 = vmatprep.subr.bf16.mxu0 0
      %5980 = vmatpush1.bf16.msra.mxu0 %v5392
      %5981 = vmatprep.subr.bf16.mxu0 0
      %5982 = vmatpush1.bf16.msra.mxu0 %v5393
      %5983 = vmatprep.subr.bf16.mxu0 0
      %5984 = vmatpush1.bf16.msra.mxu0 %v5394
      %5985 = vmatprep.subr.bf16.mxu0 0
      %5986 = vmatpush1.bf16.msra.mxu0 %v5395
      %5987 = vmatprep.subr.bf16.mxu0 0
      %5988 = vmatpush1.bf16.msra.mxu0 %v5396
      %5989 = vmatprep.subr.bf16.mxu0 0
      %5990 = vmatpush1.bf16.msra.mxu0 %v5397
      %5991 = vmatprep.subr.bf16.mxu0 0
      %5992 = vmatpush1.bf16.msra.mxu0 %v5398
      %5993 = vmatprep.subr.bf16.mxu0 0
      %5994 = vmatpush1.bf16.msra.mxu0 %v5399
      %5995 = vmatprep.mubr.bf16.mxu0 %v4709
      %5996 = vmatmul.mubr.bf16.gmra.mrb[0].mxu0 %v4770
      %v5997 = vpop.f32.mrb[0].mxu0
      %v5998 = vadd.f32 %v5837, %v5997
      %v5999 = vpop.f32.mrb[0].mxu0
      %v6000 = vpop.f32.mrb[0].mxu0
      %v6001 = vadd.f32 %v5840, %v6000
      %v6002 = vpop.f32.mrb[0].mxu0
      %6003 = vmatprep.mubr.bf16.mxu0 %v4710
      %6004 = vmatmul.mubr.bf16.gmra.mrb[0].mxu0 %v4778
      %v6005 = vpop.f32.mrb[0].mxu0
      %v6006 = vadd.f32 %v5845, %v6005
      %v6007 = vpop.f32.mrb[0].mxu0
      %v6008 = vpop.f32.mrb[0].mxu0
      %v6009 = vadd.f32 %v5848, %v6008
      %v6010 = vpop.f32.mrb[0].mxu0
      %6011 = vmatprep.mubr.bf16.mxu0 %v4711
      %6012 = vmatmul.mubr.bf16.gmra.mrb[0].mxu0 %v4786
      %v6013 = vpop.f32.mrb[0].mxu0
      %v6014 = vadd.f32 %v5853, %v6013
      %v6015 = vpop.f32.mrb[0].mxu0
      %v6016 = vpop.f32.mrb[0].mxu0
      %v6017 = vadd.f32 %v5856, %v6016
      %v6018 = vpop.f32.mrb[0].mxu0
      %6019 = vmatprep.mubr.bf16.mxu0 %v4712
      %6020 = vmatmul.mubr.bf16.gmra.mrb[0].mxu0 %v4794
      %v6021 = vpop.f32.mrb[0].mxu0
      %v6022 = vadd.f32 %v5861, %v6021
      %v6023 = vpop.f32.mrb[0].mxu0
      %v6024 = vpop.f32.mrb[0].mxu0
      %v6025 = vadd.f32 %v5864, %v6024
      %v6026 = vpop.f32.mrb[0].mxu0
      %6027 = vmatprep.mubr.bf16.mxu0 %v4713
      %6028 = vmatmul.mubr.bf16.gmra.mrb[0].mxu0 %v4802
      %v6029 = vpop.f32.mrb[0].mxu0
      %v6030 = vadd.f32 %v5869, %v6029
      %v6031 = vpop.f32.mrb[0].mxu0
      %v6032 = vpop.f32.mrb[0].mxu0
      %v6033 = vadd.f32 %v5872, %v6032
      %v6034 = vpop.f32.mrb[0].mxu0
      %6035 = vmatprep.mubr.bf16.mxu0 %v4714
      %6036 = vmatmul.mubr.bf16.gmra.mrb[0].mxu0 %v4810
      %v6037 = vpop.f32.mrb[0].mxu0
      %v6038 = vadd.f32 %v5877, %v6037
      %v6039 = vpop.f32.mrb[0].mxu0
      %v6040 = vpop.f32.mrb[0].mxu0
      %v6041 = vadd.f32 %v5880, %v6040
      %v6042 = vpop.f32.mrb[0].mxu0
      %6043 = vmatprep.mubr.bf16.mxu0 %v4715
      %6044 = vmatmul.mubr.bf16.gmra.mrb[0].mxu0 %v4818
      %v6045 = vpop.f32.mrb[0].mxu0
      %v6046 = vadd.f32 %v5885, %v6045
      %v6047 = vpop.f32.mrb[0].mxu0
      %v6048 = vpop.f32.mrb[0].mxu0
      %v6049 = vadd.f32 %v5888, %v6048
      %v6050 = vpop.f32.mrb[0].mxu0
      %6051 = vmatprep.mubr.bf16.mxu0 %v4716
      %6052 = vmatmul.mubr.bf16.gmra.mrb[0].mxu0 %v4826
      %v6053 = vpop.f32.mrb[0].mxu0
      %v6054 = vadd.f32 %v5893, %v6053
      %v6055 = vpop.f32.mrb[0].mxu0
      %v6056 = vpop.f32.mrb[0].mxu0
      %v6057 = vadd.f32 %v5896, %v6056
      %v6058 = vpop.f32.mrb[0].mxu0
      %6059 = vmatprep.mubr.bf16.mxu0 %v4717
      %6060 = vmatmul.mubr.bf16.gmra.mrb[0].mxu0 %v4834
      %v6061 = vpop.f32.mrb[0].mxu0
      %v6062 = vadd.f32 %v5901, %v6061
      %v6063 = vpop.f32.mrb[0].mxu0
      %v6064 = vpop.f32.mrb[0].mxu0
      %v6065 = vadd.f32 %v5904, %v6064
      %v6066 = vpop.f32.mrb[0].mxu0
      %6067 = vmatprep.mubr.bf16.mxu0 %v4718
      %6068 = vmatmul.mubr.bf16.gmra.mrb[0].mxu0 %v4842
      %v6069 = vpop.f32.mrb[0].mxu0
      %v6070 = vadd.f32 %v5909, %v6069
      %v6071 = vpop.f32.mrb[0].mxu0
      %v6072 = vpop.f32.mrb[0].mxu0
      %v6073 = vadd.f32 %v5912, %v6072
      %v6074 = vpop.f32.mrb[0].mxu0
      %6075 = vmatprep.mubr.bf16.mxu0 %v4719
      %6076 = vmatmul.mubr.bf16.gmra.mrb[0].mxu0 %v4850
      %v6077 = vpop.f32.mrb[0].mxu0
      %v6078 = vadd.f32 %v5917, %v6077
      %v6079 = vpop.f32.mrb[0].mxu0
      %v6080 = vpop.f32.mrb[0].mxu0
      %v6081 = vadd.f32 %v5920, %v6080
      %v6082 = vpop.f32.mrb[0].mxu0
      %6083 = vmatprep.mubr.bf16.mxu0 %v4720
      %6084 = vmatmul.mubr.bf16.gmra.mrb[0].mxu0 %v4858
      %v6085 = vpop.f32.mrb[0].mxu0
      %v6086 = vadd.f32 %v5925, %v6085
      %v6087 = vpop.f32.mrb[0].mxu0
      %v6088 = vpop.f32.mrb[0].mxu0
      %v6089 = vadd.f32 %v5928, %v6088
      %v6090 = vpop.f32.mrb[0].mxu0
      %6091 = vmatprep.mubr.bf16.mxu0 %v4721
      %6092 = vmatmul.mubr.bf16.gmra.mrb[0].mxu0 %v4866
      %v6093 = vpop.f32.mrb[0].mxu0
      %v6094 = vadd.f32 %v5933, %v6093
      %v6095 = vpop.f32.mrb[0].mxu0
      %v6096 = vpop.f32.mrb[0].mxu0
      %v6097 = vadd.f32 %v5936, %v6096
      %v6098 = vpop.f32.mrb[0].mxu0
      %6099 = vmatprep.mubr.bf16.mxu0 %v4722
      %6100 = vmatmul.mubr.bf16.gmra.mrb[0].mxu0 %v4874
      %v6101 = vpop.f32.mrb[0].mxu0
      %v6102 = vadd.f32 %v5941, %v6101
      %v6103 = vpop.f32.mrb[0].mxu0
      %v6104 = vpop.f32.mrb[0].mxu0
      %v6105 = vadd.f32 %v5944, %v6104
      %v6106 = vpop.f32.mrb[0].mxu0
      %6107 = vmatprep.mubr.bf16.mxu0 %v4723
      %6108 = vmatmul.mubr.bf16.gmra.mrb[0].mxu0 %v5039
      %v6109 = vpop.f32.mrb[0].mxu0
      %v6110 = vadd.f32 %v5949, %v6109
      %v6111 = vpop.f32.mrb[0].mxu0
      %v6112 = vpop.f32.mrb[0].mxu0
      %v6113 = vadd.f32 %v5952, %v6112
      %v6114 = vpop.f32.mrb[0].mxu0
      %6115 = vmatprep.mubr.bf16.mxu0 0
      %6116 = vmatmul.mubr.bf16.gmra.mrb[0].mxu0 %v5047
      %v6117 = vpop.f32.mrb[0].mxu0
      %v6118 = vadd.f32 %v5957, %v6117
      %v6119 = vpop.f32.mrb[0].mxu0
      %v6120 = vpop.f32.mrb[0].mxu0
      %v6121 = vadd.f32 %v5960, %v6120
      %v6122 = vpop.f32.mrb[0].mxu0
      %6123 = vdwg.mxu0
      %6124 = vmatprep.subr.bf16.mxu0 0
      %6125 = vmatpush1.bf16.msra.mxu0 %v5400
      %6126 = vmatprep.subr.bf16.mxu0 0
      %6127 = vmatpush1.bf16.msra.mxu0 %v5401
      %6128 = vmatprep.subr.bf16.mxu0 0
      %6129 = vmatpush1.bf16.msra.mxu0 %v5402
      %6130 = vmatprep.subr.bf16.mxu0 0
      %6131 = vmatpush1.bf16.msra.mxu0 %v5403
      %6132 = vmatprep.subr.bf16.mxu0 0
      %6133 = vmatpush1.bf16.msra.mxu0 %v5404
      %6134 = vmatprep.subr.bf16.mxu0 0
      %6135 = vmatpush1.bf16.msra.mxu0 %v5405
      %6136 = vmatprep.subr.bf16.mxu0 0
      %6137 = vmatpush1.bf16.msra.mxu0 %v5406
      %6138 = vmatprep.subr.bf16.mxu0 0
      %6139 = vmatpush1.bf16.msra.mxu0 %v5407
      %6140 = vmatprep.subr.bf16.mxu0 0
      %6141 = vmatpush1.bf16.msra.mxu0 0
      %6142 = vmatprep.subr.bf16.mxu0 0
      %6143 = vmatpush1.bf16.msra.mxu0 0
      %6144 = vmatprep.subr.bf16.mxu0 0
      %6145 = vmatpush1.bf16.msra.mxu0 0
      %6146 = vmatprep.subr.bf16.mxu0 0
      %6147 = vmatpush1.bf16.msra.mxu0 0
      %6148 = vmatprep.subr.bf16.mxu0 0
      %6149 = vmatpush1.bf16.msra.mxu0 0
      %6150 = vmatprep.subr.bf16.mxu0 0
      %6151 = vmatpush1.bf16.msra.mxu0 0
      %6152 = vmatprep.subr.bf16.mxu0 0
      %6153 = vmatpush1.bf16.msra.mxu0 0
      %6154 = vmatprep.subr.bf16.mxu0 0
      %6155 = vmatpush1.bf16.msra.mxu0 0
      %6156 = vmatprep.mubr.bf16.mxu0 0
      %6157 = vmatmul.mubr.bf16.gmra.mrb[0].mxu0 %v4910
      %v6158 = vpop.f32.mrb[0].mxu0
      %v6159 = vadd.f32 %v5998, %v6158
      %v6160 = vpop.f32.mrb[0].mxu0
      %v6161 = vpop.f32.mrb[0].mxu0
      %v6162 = vadd.f32 %v6001, %v6161
      %v6163 = vpop.f32.mrb[0].mxu0
      %6164 = vmatprep.mubr.bf16.mxu0 0
      %6165 = vmatmul.mubr.bf16.gmra.mrb[0].mxu0 %v4918
      %v6166 = vpop.f32.mrb[0].mxu0
      %v6167 = vadd.f32 %v6006, %v6166
      %v6168 = vpop.f32.mrb[0].mxu0
      %v6169 = vpop.f32.mrb[0].mxu0
      %v6170 = vadd.f32 %v6009, %v6169
      %v6171 = vpop.f32.mrb[0].mxu0
      %6172 = vmatprep.mubr.bf16.mxu0 0
      %6173 = vmatmul.mubr.bf16.gmra.mrb[0].mxu0 %v4926
      %v6174 = vpop.f32.mrb[0].mxu0
      %v6175 = vadd.f32 %v6014, %v6174
      %v6176 = vpop.f32.mrb[0].mxu0
      %v6177 = vpop.f32.mrb[0].mxu0
      %v6178 = vadd.f32 %v6017, %v6177
      %v6179 = vpop.f32.mrb[0].mxu0
      %6180 = vmatprep.mubr.bf16.mxu0 0
      %6181 = vmatmul.mubr.bf16.gmra.mrb[0].mxu0 %v4934
      %v6182 = vpop.f32.mrb[0].mxu0
      %v6183 = vadd.f32 %v6022, %v6182
      %v6184 = vpop.f32.mrb[0].mxu0
      %v6185 = vpop.f32.mrb[0].mxu0
      %v6186 = vadd.f32 %v6025, %v6185
      %v6187 = vpop.f32.mrb[0].mxu0
      %6188 = vmatprep.mubr.bf16.mxu0 0
      %6189 = vmatmul.mubr.bf16.gmra.mrb[0].mxu0 %v4942
      %v6190 = vpop.f32.mrb[0].mxu0
      %v6191 = vadd.f32 %v6030, %v6190
      %v6192 = vpop.f32.mrb[0].mxu0
      %v6193 = vpop.f32.mrb[0].mxu0
      %v6194 = vadd.f32 %v6033, %v6193
      %v6195 = vpop.f32.mrb[0].mxu0
      %6196 = vmatprep.mubr.bf16.mxu0 0
      %6197 = vmatmul.mubr.bf16.gmra.mrb[0].mxu0 %v4950
      %v6198 = vpop.f32.mrb[0].mxu0
      %v6199 = vadd.f32 %v6038, %v6198
      %v6200 = vpop.f32.mrb[0].mxu0
      %v6201 = vpop.f32.mrb[0].mxu0
      %v6202 = vadd.f32 %v6041, %v6201
      %v6203 = vpop.f32.mrb[0].mxu0
      %6204 = vmatprep.mubr.bf16.mxu0 0
      %6205 = vmatmul.mubr.bf16.gmra.mrb[0].mxu0 %v4958
      %v6206 = vpop.f32.mrb[0].mxu0
      %v6207 = vadd.f32 %v6046, %v6206
      %v6208 = vpop.f32.mrb[0].mxu0
      %v6209 = vpop.f32.mrb[0].mxu0
      %v6210 = vadd.f32 %v6049, %v6209
      %v6211 = vpop.f32.mrb[0].mxu0
      %6212 = vmatprep.mubr.bf16.mxu0 0
      %6213 = vmatmul.mubr.bf16.gmra.mrb[0].mxu0 %v4966
      %v6214 = vpop.f32.mrb[0].mxu0
      %v6215 = vadd.f32 %v6054, %v6214
      %v6216 = vpop.f32.mrb[0].mxu0
      %v6217 = vpop.f32.mrb[0].mxu0
      %v6218 = vadd.f32 %v6057, %v6217
      %v6219 = vpop.f32.mrb[0].mxu0
      %6220 = vmatprep.mubr.bf16.mxu0 0
      %6221 = vmatmul.mubr.bf16.gmra.mrb[0].mxu0 %v4974
      %v6222 = vpop.f32.mrb[0].mxu0
      %v6223 = vadd.f32 %v6062, %v6222
      %v6224 = vpop.f32.mrb[0].mxu0
      %v6225 = vpop.f32.mrb[0].mxu0
      %v6226 = vadd.f32 %v6065, %v6225
      %v6227 = vpop.f32.mrb[0].mxu0
      %6228 = vmatprep.mubr.bf16.mxu0 0
      %6229 = vmatmul.mubr.bf16.gmra.mrb[0].mxu0 %v4982
      %v6230 = vpop.f32.mrb[0].mxu0
      %v6231 = vadd.f32 %v6070, %v6230
      %v6232 = vpop.f32.mrb[0].mxu0
      %v6233 = vpop.f32.mrb[0].mxu0
      %v6234 = vadd.f32 %v6073, %v6233
      %v6235 = vpop.f32.mrb[0].mxu0
      %6236 = vmatprep.mubr.bf16.mxu0 0
      %6237 = vmatmul.mubr.bf16.gmra.mrb[0].mxu0 %v4990
      %v6238 = vpop.f32.mrb[0].mxu0
      %v6239 = vadd.f32 %v6078, %v6238
      %v6240 = vpop.f32.mrb[0].mxu0
      %v6241 = vpop.f32.mrb[0].mxu0
      %v6242 = vadd.f32 %v6081, %v6241
      %v6243 = vpop.f32.mrb[0].mxu0
      %6244 = vmatprep.mubr.bf16.mxu0 0
      %6245 = vmatmul.mubr.bf16.gmra.mrb[0].mxu0 %v4998
      %v6246 = vpop.f32.mrb[0].mxu0
      %v6247 = vadd.f32 %v6086, %v6246
      %v6248 = vpop.f32.mrb[0].mxu0
      %v6249 = vpop.f32.mrb[0].mxu0
      %v6250 = vadd.f32 %v6089, %v6249
      %v6251 = vpop.f32.mrb[0].mxu0
      %6252 = vmatprep.mubr.bf16.mxu0 0
      %6253 = vmatmul.mubr.bf16.gmra.mrb[0].mxu0 %v5006
      %v6254 = vpop.f32.mrb[0].mxu0
      %v6255 = vadd.f32 %v6094, %v6254
      %v6256 = vpop.f32.mrb[0].mxu0
      %v6257 = vpop.f32.mrb[0].mxu0
      %v6258 = vadd.f32 %v6097, %v6257
      %v6259 = vpop.f32.mrb[0].mxu0
      %6260 = vmatprep.mubr.bf16.mxu0 0
      %6261 = vmatmul.mubr.bf16.gmra.mrb[0].mxu0 %v5014
      %v6262 = vpop.f32.mrb[0].mxu0
      %v6263 = vadd.f32 %v6102, %v6262
      %v6264 = vpop.f32.mrb[0].mxu0
      %v6265 = vpop.f32.mrb[0].mxu0
      %v6266 = vadd.f32 %v6105, %v6265
      %v6267 = vpop.f32.mrb[0].mxu0
      %6268 = vmatprep.mubr.bf16.mxu0 0
      %6269 = vmatmul.mubr.bf16.gmra.mrb[0].mxu0 %v5045
      %v6270 = vpop.f32.mrb[0].mxu0
      %v6271 = vadd.f32 %v6110, %v6270
      %v6272 = vpop.f32.mrb[0].mxu0
      %v6273 = vpop.f32.mrb[0].mxu0
      %v6274 = vadd.f32 %v6113, %v6273
      %v6275 = vpop.f32.mrb[0].mxu0
      %6276 = vmatprep.mubr.bf16.mxu0 0
      %6277 = vmatmul.mubr.bf16.gmra.mrb[0].mxu0 0
      %v6278 = vpop.f32.mrb[0].mxu0
      %v6279 = vadd.f32 %v6118, %v6278
      %v6280 = vpop.f32.mrb[0].mxu0
      %v6281 = vpop.f32.mrb[0].mxu0
      %v6282 = vadd.f32 %v6121, %v6281
      %v6283 = vpop.f32.mrb[0].mxu0
      %6284 = vdwg.mxu0
      %v6285 = vlaneseq
      %v6286 = vshrl.u32 %v6285, 7
      %v6287 = vsub.s32 0, %v6286
      %v6288 = vrot.slane %v4562, %v6287
      %v6289 = vmul.f32 %v6159, %v6288
      %v6290 = vmul.f32 %v6162, %v6288
      %v6291 = vmul.f32 %v6167, %v6288
      %v6292 = vmul.f32 %v6170, %v6288
      %v6293 = vmul.f32 %v6175, %v6288
      %v6294 = vmul.f32 %v6178, %v6288
      %v6295 = vmul.f32 %v6183, %v6288
      %v6296 = vmul.f32 %v6186, %v6288
      %v6297 = vmul.f32 %v6191, %v6288
      %v6298 = vmul.f32 %v6194, %v6288
      %v6299 = vmul.f32 %v6199, %v6288
      %v6300 = vmul.f32 %v6202, %v6288
      %v6301 = vmul.f32 %v6207, %v6288
      %v6302 = vmul.f32 %v6210, %v6288
      %v6303 = vmul.f32 %v6215, %v6288
      %v6304 = vmul.f32 %v6218, %v6288
      %v6305 = vmul.f32 %v6223, %v6288
      %v6306 = vmul.f32 %v6226, %v6288
      %v6307 = vmul.f32 %v6231, %v6288
      %v6308 = vmul.f32 %v6234, %v6288
      %v6309 = vmul.f32 %v6239, %v6288
      %v6310 = vmul.f32 %v6242, %v6288
      %v6311 = vmul.f32 %v6247, %v6288
      %v6312 = vmul.f32 %v6250, %v6288
      %v6313 = vmul.f32 %v6255, %v6288
      %v6314 = vmul.f32 %v6258, %v6288
      %v6315 = vmul.f32 %v6263, %v6288
      %v6316 = vmul.f32 %v6266, %v6288
      %v6317 = vmul.f32 %v6271, %v6288
      %v6318 = vmul.f32 %v6274, %v6288
      %v6319 = vmul.f32 %v6279, %v6288
      %v6320 = vmul.f32 %v6282, %v6288
      %v6321 = vlaneseq
      %v6322 = vshrl.u32 %v6321, 7
      %v6323 = vsub.s32 1, %v6322
      %v6324 = vrot.slane %v4562, %v6323
      %v6325 = vadd.f32 %v6289, %v6324
      %v6326 = vadd.f32 %v6290, %v6324
      %v6327 = vadd.f32 %v6291, %v6324
      %v6328 = vadd.f32 %v6292, %v6324
      %v6329 = vadd.f32 %v6293, %v6324
      %v6330 = vadd.f32 %v6294, %v6324
      %v6331 = vadd.f32 %v6295, %v6324
      %v6332 = vadd.f32 %v6296, %v6324
      %v6333 = vadd.f32 %v6297, %v6324
      %v6334 = vadd.f32 %v6298, %v6324
      %v6335 = vadd.f32 %v6299, %v6324
      %v6336 = vadd.f32 %v6300, %v6324
      %v6337 = vadd.f32 %v6301, %v6324
      %v6338 = vadd.f32 %v6302, %v6324
      %v6339 = vadd.f32 %v6303, %v6324
      %v6340 = vadd.f32 %v6304, %v6324
      %v6341 = vadd.f32 %v6305, %v6324
      %v6342 = vadd.f32 %v6306, %v6324
      %v6343 = vadd.f32 %v6307, %v6324
      %v6344 = vadd.f32 %v6308, %v6324
      %v6345 = vadd.f32 %v6309, %v6324
      %v6346 = vadd.f32 %v6310, %v6324
      %v6347 = vadd.f32 %v6311, %v6324
      %v6348 = vadd.f32 %v6312, %v6324
      %v6349 = vadd.f32 %v6313, %v6324
      %v6350 = vadd.f32 %v6314, %v6324
      %v6351 = vadd.f32 %v6315, %v6324
      %v6352 = vadd.f32 %v6316, %v6324
      %v6353 = vadd.f32 %v6317, %v6324
      %v6354 = vadd.f32 %v6318, %v6324
      %v6355 = vadd.f32 %v6319, %v6324
      %v6356 = vadd.f32 %v6320, %v6324
      %v6357 = vmax.f32 %v6325, 0.0
      %v6358 = vmax.f32 %v6326, 0.0
      %v6359 = vmax.f32 %v6327, 0.0
      %v6360 = vmax.f32 %v6328, 0.0
      %v6361 = vmax.f32 %v6329, 0.0
      %v6362 = vmax.f32 %v6330, 0.0
      %v6363 = vmax.f32 %v6331, 0.0
      %v6364 = vmax.f32 %v6332, 0.0
      %v6365 = vmax.f32 %v6333, 0.0
      %v6366 = vmax.f32 %v6334, 0.0
      %v6367 = vmax.f32 %v6335, 0.0
      %v6368 = vmax.f32 %v6336, 0.0
      %v6369 = vmax.f32 %v6337, 0.0
      %v6370 = vmax.f32 %v6338, 0.0
      %v6371 = vmax.f32 %v6339, 0.0
      %v6372 = vmax.f32 %v6340, 0.0
      %v6373 = vmax.f32 %v6341, 0.0
      %v6374 = vmax.f32 %v6342, 0.0
      %v6375 = vmax.f32 %v6343, 0.0
      %v6376 = vmax.f32 %v6344, 0.0
      %v6377 = vmax.f32 %v6345, 0.0
      %v6378 = vmax.f32 %v6346, 0.0
      %v6379 = vmax.f32 %v6347, 0.0
      %v6380 = vmax.f32 %v6348, 0.0
      %v6381 = vmax.f32 %v6349, 0.0
      %v6382 = vmax.f32 %v6350, 0.0
      %v6383 = vmax.f32 %v6351, 0.0
      %v6384 = vmax.f32 %v6352, 0.0
      %v6385 = vmax.f32 %v6353, 0.0
      %v6386 = vmax.f32 %v6354, 0.0
      %v6387 = vmax.f32 %v6355, 0.0
      %v6388 = vmax.f32 %v6356, 0.0
      %s6389 = scalar_lea.vmem %s2, 576
      %v6390 = vld [vmem:[%s6389] sm:$0xf]
      %v6391 = vld [vmem:[%s6389 + $0x4] sm:$0xf]
      %v6392 = vld [vmem:[%s6389 + $0x8] sm:$0xf]
      %v6393 = vld [vmem:[%s6389 + $0xc] sm:$0xf]
      %v6394 = vld [vmem:[%s6389 + $0x10] sm:$0xf]
      %v6395 = vld [vmem:[%s6389 + $0x14] sm:$0xf]
      %v6396 = vld [vmem:[%s6389 + $0x18] sm:$0xf]
      %v6397 = vld [vmem:[%s6389 + $0x1c] sm:$0xf]
      %v6398 = vld [vmem:[%s6389 + $0x20] sm:$0xf]
      %v6399 = vld [vmem:[%s6389 + $0x24] sm:$0xf]
      %v6400 = vld [vmem:[%s6389 + $0x28] sm:$0xf]
      %v6401 = vld [vmem:[%s6389 + $0x2c] sm:$0xf]
      %v6402 = vld [vmem:[%s6389 + $0x30] sm:$0xf]
      %v6403 = vld [vmem:[%s6389 + $0x34] sm:$0xf]
      %v6404 = vld [vmem:[%s6389 + $0x38] sm:$0xf]
      %v6405 = vld [vmem:[%s6389 + $0x3c] sm:$0xf]
      %v6406 = vld [vmem:[%s6389 + $0x40] sm:$0xf]
      %v6407 = vld [vmem:[%s6389 + $0x44] sm:$0xf]
      %v6408 = vld [vmem:[%s6389 + $0x48] sm:$0xf]
      %v6409 = vld [vmem:[%s6389 + $0x4c] sm:$0xf]
      %v6410 = vld [vmem:[%s6389 + $0x50] sm:$0xf]
      %v6411 = vld [vmem:[%s6389 + $0x54] sm:$0xf]
      %v6412 = vld [vmem:[%s6389 + $0x58] sm:$0xf]
      %v6413 = vld [vmem:[%s6389 + $0x5c] sm:$0xf]
      %v6414 = vld [vmem:[%s6389 + $0x60] sm:$0xf]
      %v6415 = vld [vmem:[%s6389 + $0x64] sm:$0xf]
      %v6416 = vld [vmem:[%s6389 + $0x68] sm:$0xf]
      %v6417 = vld [vmem:[%s6389 + $0x6c] sm:$0xf]
      %v6418 = vld [vmem:[%s6389 + $0x70] sm:$0xf]
      %v6419 = vld [vmem:[%s6389 + $0x74] sm:$0xf]
      %v6420 = vld [vmem:[%s6389 + $0x78] sm:$0xf]
      %v6421 = vld [vmem:[%s6389 + $0x7c] sm:$0xf]
      %v6422 = vld [vmem:[%s6389 + $0x80] sm:$0xf]
      %v6423 = vld [vmem:[%s6389 + $0x84] sm:$0xf]
      %v6424 = vld [vmem:[%s6389 + $0x88] sm:$0xf]
      %v6425 = vld [vmem:[%s6389 + $0x8c] sm:$0xf]
      %v6426 = vld [vmem:[%s6389 + $0x90] sm:$0xf]
      %v6427 = vld [vmem:[%s6389 + $0x94] sm:$0xf]
      %v6428 = vld [vmem:[%s6389 + $0x98] sm:$0xf]
      %v6429 = vld [vmem:[%s6389 + $0x9c] sm:$0xf]
      %v6430 = vld [vmem:[%s6389 + $0xa0] sm:$0xf]
      %v6431 = vld [vmem:[%s6389 + $0xa4] sm:$0xf]
      %v6432 = vld [vmem:[%s6389 + $0xa8] sm:$0xf]
      %v6433 = vld [vmem:[%s6389 + $0xac] sm:$0xf]
      %v6434 = vld [vmem:[%s6389 + $0xb0] sm:$0xf]
      %v6435 = vld [vmem:[%s6389 + $0xb4] sm:$0xf]
      %v6436 = vld [vmem:[%s6389 + $0xb8] sm:$0xf]
      %v6437 = vld [vmem:[%s6389 + $0xbc] sm:$0xf]
      %v6438 = vld [vmem:[%s6389 + $0xc0] sm:$0xf]
      %v6439 = vld [vmem:[%s6389 + $0xc4] sm:$0xf]
      %v6440 = vld [vmem:[%s6389 + $0xc8] sm:$0xf]
      %v6441 = vld [vmem:[%s6389 + $0xcc] sm:$0xf]
      %v6442 = vld [vmem:[%s6389 + $0xd0] sm:$0xf]
      %v6443 = vld [vmem:[%s6389 + $0xd4] sm:$0xf]
      %v6444 = vld [vmem:[%s6389 + $0xd8] sm:$0xf]
      %v6445 = vld [vmem:[%s6389 + $0xdc] sm:$0xf]
      %v6446 = vld [vmem:[%s6389 + $0xe0] sm:$0xf]
      %v6447 = vld [vmem:[%s6389 + $0xe4] sm:$0xf]
      %v6448 = vld [vmem:[%s6389 + $0xe8] sm:$0xf]
      %v6449 = vld [vmem:[%s6389 + $0xec] sm:$0xf]
      %v6450 = vld [vmem:[%s6389 + $0xf0] sm:$0xf]
      %v6451 = vld [vmem:[%s6389 + $0xf4] sm:$0xf]
      %v6452 = vld [vmem:[%s6389 + $0xf8] sm:$0xf]
      %v6453 = vld [vmem:[%s6389 + $0xfc] sm:$0xf]
      %v6454 = vld [vmem:[%s6389 + $0x100] sm:$0xf]
      %v6455 = vld [vmem:[%s6389 + $0x104] sm:$0xf]
      %v6456 = vld [vmem:[%s6389 + $0x108] sm:$0xf]
      %v6457 = vld [vmem:[%s6389 + $0x10c] sm:$0xf]
      %v6458 = vld [vmem:[%s6389 + $0x110] sm:$0xf]
      %v6459 = vld [vmem:[%s6389 + $0x114] sm:$0xf]
      %v6460 = vld [vmem:[%s6389 + $0x118] sm:$0xf]
      %v6461 = vld [vmem:[%s6389 + $0x11c] sm:$0xf]
      %v6462 = vld [vmem:[%s6389 + $0x120] sm:$0xf]
      %v6463 = vld [vmem:[%s6389 + $0x124] sm:$0xf]
      %v6464 = vld [vmem:[%s6389 + $0x128] sm:$0xf]
      %v6465 = vld [vmem:[%s6389 + $0x12c] sm:$0xf]
      %v6466 = vld [vmem:[%s6389 + $0x130] sm:$0xf]
      %v6467 = vld [vmem:[%s6389 + $0x134] sm:$0xf]
      %v6468 = vld [vmem:[%s6389 + $0x138] sm:$0xf]
      %v6469 = vld [vmem:[%s6389 + $0x13c] sm:$0xf]
      %v6470 = vld [vmem:[%s6389 + $0x140] sm:$0xf]
      %v6471 = vld [vmem:[%s6389 + $0x144] sm:$0xf]
      %v6472 = vld [vmem:[%s6389 + $0x148] sm:$0xf]
      %v6473 = vld [vmem:[%s6389 + $0x14c] sm:$0xf]
      %v6474 = vld [vmem:[%s6389 + $0x150] sm:$0xf]
      %v6475 = vld [vmem:[%s6389 + $0x154] sm:$0xf]
      %v6476 = vld [vmem:[%s6389 + $0x158] sm:$0xf]
      %v6477 = vld [vmem:[%s6389 + $0x15c] sm:$0xf]
      %v6478 = vld [vmem:[%s6389 + $0x160] sm:$0xf]
      %v6479 = vld [vmem:[%s6389 + $0x164] sm:$0xf]
      %v6480 = vld [vmem:[%s6389 + $0x168] sm:$0xf]
      %v6481 = vld [vmem:[%s6389 + $0x16c] sm:$0xf]
      %v6482 = vld [vmem:[%s6389 + $0x170] sm:$0xf]
      %v6483 = vld [vmem:[%s6389 + $0x174] sm:$0xf]
      %v6484 = vld [vmem:[%s6389 + $0x178] sm:$0xf]
      %v6485 = vld [vmem:[%s6389 + $0x17c] sm:$0xf]
      %v6486 = vld [vmem:[%s6389 + $0x180] sm:$0xf]
      %v6487 = vld [vmem:[%s6389 + $0x184] sm:$0xf]
      %v6488 = vld [vmem:[%s6389 + $0x188] sm:$0xf]
      %v6489 = vld [vmem:[%s6389 + $0x18c] sm:$0xf]
      %v6490 = vld [vmem:[%s6389 + $0x190] sm:$0xf]
      %v6491 = vld [vmem:[%s6389 + $0x194] sm:$0xf]
      %v6492 = vld [vmem:[%s6389 + $0x198] sm:$0xf]
      %v6493 = vld [vmem:[%s6389 + $0x19c] sm:$0xf]
      %v6494 = vld [vmem:[%s6389 + $0x1a0] sm:$0xf]
      %v6495 = vld [vmem:[%s6389 + $0x1a4] sm:$0xf]
      %v6496 = vld [vmem:[%s6389 + $0x1a8] sm:$0xf]
      %v6497 = vld [vmem:[%s6389 + $0x1ac] sm:$0xf]
      %v6498 = vld [vmem:[%s6389 + $0x1b0] sm:$0xf]
      %v6499 = vld [vmem:[%s6389 + $0x1b4] sm:$0xf]
      %v6500 = vld [vmem:[%s6389 + $0x1b8] sm:$0xf]
      %v6501 = vld [vmem:[%s6389 + $0x1bc] sm:$0xf]
      %v6502 = vld [vmem:[%s6389 + $0x1c0] sm:$0xf]
      %v6503 = vld [vmem:[%s6389 + $0x1c4] sm:$0xf]
      %v6504 = vld [vmem:[%s6389 + $0x1c8] sm:$0xf]
      %v6505 = vld [vmem:[%s6389 + $0x1cc] sm:$0xf]
      %v6506 = vld [vmem:[%s6389 + $0x1d0] sm:$0xf]
      %v6507 = vld [vmem:[%s6389 + $0x1d4] sm:$0xf]
      %v6508 = vld [vmem:[%s6389 + $0x1d8] sm:$0xf]
      %v6509 = vld [vmem:[%s6389 + $0x1dc] sm:$0xf]
      %v6510 = vld [vmem:[%s6389 + $0x1e0] sm:$0xf]
      %v6511 = vld [vmem:[%s6389 + $0x1e4] sm:$0xf]
      %v6512 = vld [vmem:[%s6389 + $0x1e8] sm:$0xf]
      %v6513 = vld [vmem:[%s6389 + $0x1ec] sm:$0xf]
      %v6514 = vld [vmem:[%s6389 + $0x1f0] sm:$0xf]
      %v6515 = vld [vmem:[%s6389 + $0x1f4] sm:$0xf]
      %v6516 = vld [vmem:[%s6389 + $0x1f8] sm:$0xf]
      %v6517 = vld [vmem:[%s6389 + $0x1fc] sm:$0xf]
      %v6518 = vld [vmem:[%s6389 + $0x200] sm:$0xf]
      %v6519 = vld [vmem:[%s6389 + $0x204] sm:$0xf]
      %v6520 = vld [vmem:[%s6389 + $0x208] sm:$0xf]
      %v6521 = vld [vmem:[%s6389 + $0x20c] sm:$0xf]
      %v6522 = vld [vmem:[%s6389 + $0x210] sm:$0xf]
      %v6523 = vld [vmem:[%s6389 + $0x214] sm:$0xf]
      %v6524 = vld [vmem:[%s6389 + $0x218] sm:$0xf]
      %v6525 = vld [vmem:[%s6389 + $0x21c] sm:$0xf]
      %v6526 = vld [vmem:[%s6389 + $0x220] sm:$0xf]
      %v6527 = vld [vmem:[%s6389 + $0x224] sm:$0xf]
      %v6528 = vld [vmem:[%s6389 + $0x228] sm:$0xf]
      %v6529 = vld [vmem:[%s6389 + $0x22c] sm:$0xf]
      %v6530 = vld [vmem:[%s6389 + $0x230] sm:$0xf]
      %v6531 = vld [vmem:[%s6389 + $0x234] sm:$0xf]
      %v6532 = vld [vmem:[%s6389 + $0x238] sm:$0xf]
      %v6533 = vld [vmem:[%s6389 + $0x23c] sm:$0xf]
      %v6534 = vpack.c.bf16 %v6358, %v6357
      %v6535 = vpack.c.bf16 %v6360, %v6359
      %v6536 = vpack.c.bf16 %v6362, %v6361
      %v6537 = vpack.c.bf16 %v6364, %v6363
      %v6538 = vpack.c.bf16 %v6366, %v6365
      %v6539 = vpack.c.bf16 %v6368, %v6367
      %v6540 = vpack.c.bf16 %v6370, %v6369
      %v6541 = vpack.c.bf16 %v6372, %v6371
      %v6542 = vpack.c.bf16 %v6374, %v6373
      %v6543 = vpack.c.bf16 %v6376, %v6375
      %v6544 = vpack.c.bf16 %v6378, %v6377
      %v6545 = vpack.c.bf16 %v6380, %v6379
      %v6546 = vpack.c.bf16 %v6382, %v6381
      %v6547 = vpack.c.bf16 %v6384, %v6383
      %v6548 = vpack.c.bf16 %v6386, %v6385
      %v6549 = vpack.c.bf16 %v6388, %v6387
      %v6550 = vmul.bf16 %v6534, %v712
      %v6551 = vmul.bf16 %v6535, %v713
      %v6552 = vmul.bf16 %v6536, %v714
      %v6553 = vmul.bf16 %v6537, %v715
      %v6554 = vmul.bf16 %v6538, %v716
      %v6555 = vmul.bf16 %v6539, %v717
      %v6556 = vmul.bf16 %v6540, %v718
      %v6557 = vmul.bf16 %v6541, %v719
      %v6558 = vmul.bf16 %v6542, %v720
      %v6559 = vmul.bf16 %v6543, %v721
      %v6560 = vmul.bf16 %v6544, %v722
      %v6561 = vmul.bf16 %v6545, %v723
      %v6562 = vmul.bf16 %v6546, %v724
      %v6563 = vmul.bf16 %v6547, %v725
      %v6564 = vmul.bf16 %v6548, %v726
      %v6565 = vmul.bf16 %v6549, %v727
      %v6566 = vmul.bf16 %v6534, %v824
      %v6567 = vmul.bf16 %v6535, %v825
      %v6568 = vmul.bf16 %v6536, %v826
      %v6569 = vmul.bf16 %v6537, %v827
      %v6570 = vmul.bf16 %v6538, %v828
      %v6571 = vmul.bf16 %v6539, %v829
      %v6572 = vmul.bf16 %v6540, %v830
      %v6573 = vmul.bf16 %v6541, %v831
      %v6574 = vmul.bf16 %v6542, %v832
      %v6575 = vmul.bf16 %v6543, %v833
      %v6576 = vmul.bf16 %v6544, %v834
      %v6577 = vmul.bf16 %v6545, %v835
      %v6578 = vmul.bf16 %v6546, %v836
      %v6579 = vmul.bf16 %v6547, %v837
      %v6580 = vmul.bf16 %v6548, %v838
      %v6581 = vmul.bf16 %v6549, %v839
      %v6583 = vshrl.u32 %v6550, 16
      %v6585 = vrot.slane %v6583, 7
      %v6586 = vshll.u32 %v6550, 16
      %v6588 = vor.u32 %v6585, %v6586
      %v6590 = vshrl.u32 %v6551, 16
      %v6592 = vrot.slane %v6590, 7
      %v6593 = vshll.u32 %v6551, 16
      %v6595 = vor.u32 %v6592, %v6593
      %v6596 = vsel %vm1065, %v6585, %v6595
      %v6598 = vshrl.u32 %v6552, 16
      %v6600 = vrot.slane %v6598, 7
      %v6601 = vshll.u32 %v6552, 16
      %v6603 = vor.u32 %v6600, %v6601
      %v6604 = vsel %vm1065, %v6592, %v6603
      %v6606 = vshrl.u32 %v6553, 16
      %v6608 = vrot.slane %v6606, 7
      %v6609 = vshll.u32 %v6553, 16
      %v6611 = vor.u32 %v6608, %v6609
      %v6612 = vsel %vm1065, %v6600, %v6611
      %v6614 = vshrl.u32 %v6554, 16
      %v6616 = vrot.slane %v6614, 7
      %v6617 = vshll.u32 %v6554, 16
      %v6619 = vor.u32 %v6616, %v6617
      %v6620 = vsel %vm1065, %v6608, %v6619
      %v6622 = vshrl.u32 %v6555, 16
      %v6624 = vrot.slane %v6622, 7
      %v6625 = vshll.u32 %v6555, 16
      %v6627 = vor.u32 %v6624, %v6625
      %v6628 = vsel %vm1065, %v6616, %v6627
      %v6630 = vshrl.u32 %v6556, 16
      %v6632 = vrot.slane %v6630, 7
      %v6633 = vshll.u32 %v6556, 16
      %v6635 = vor.u32 %v6632, %v6633
      %v6636 = vsel %vm1065, %v6624, %v6635
      %v6638 = vshrl.u32 %v6557, 16
      %v6640 = vrot.slane %v6638, 7
      %v6641 = vshll.u32 %v6557, 16
      %v6643 = vor.u32 %v6640, %v6641
      %v6644 = vsel %vm1065, %v6632, %v6643
      %v6646 = vshrl.u32 %v6558, 16
      %v6648 = vrot.slane %v6646, 7
      %v6649 = vshll.u32 %v6558, 16
      %v6651 = vor.u32 %v6648, %v6649
      %v6652 = vsel %vm1065, %v6640, %v6651
      %v6654 = vshrl.u32 %v6559, 16
      %v6656 = vrot.slane %v6654, 7
      %v6657 = vshll.u32 %v6559, 16
      %v6659 = vor.u32 %v6656, %v6657
      %v6660 = vsel %vm1065, %v6648, %v6659
      %v6662 = vshrl.u32 %v6560, 16
      %v6664 = vrot.slane %v6662, 7
      %v6665 = vshll.u32 %v6560, 16
      %v6667 = vor.u32 %v6664, %v6665
      %v6668 = vsel %vm1065, %v6656, %v6667
      %v6670 = vshrl.u32 %v6561, 16
      %v6672 = vrot.slane %v6670, 7
      %v6673 = vshll.u32 %v6561, 16
      %v6675 = vor.u32 %v6672, %v6673
      %v6676 = vsel %vm1065, %v6664, %v6675
      %v6678 = vshrl.u32 %v6562, 16
      %v6680 = vrot.slane %v6678, 7
      %v6681 = vshll.u32 %v6562, 16
      %v6683 = vor.u32 %v6680, %v6681
      %v6684 = vsel %vm1065, %v6672, %v6683
      %v6686 = vshrl.u32 %v6563, 16
      %v6688 = vrot.slane %v6686, 7
      %v6689 = vshll.u32 %v6563, 16
      %v6691 = vor.u32 %v6688, %v6689
      %v6692 = vsel %vm1065, %v6680, %v6691
      %v6694 = vshrl.u32 %v6564, 16
      %v6696 = vrot.slane %v6694, 7
      %v6697 = vshll.u32 %v6564, 16
      %v6699 = vor.u32 %v6696, %v6697
      %v6700 = vsel %vm1065, %v6688, %v6699
      %v6716 = vsel %vm1201, 0, %v6588
      %v6718 = vshll.u32 %v6566, 16
      %v6720 = vrot.slane %v6718, 1
      %v6721 = vshrl.u32 %v6566, 16
      %v6723 = vor.u32 %v6721, %v6720
      %v6725 = vshll.u32 %v6567, 16
      %v6727 = vrot.slane %v6725, 1
      %v6728 = vsel %vm1203, %v6723, %v6727
      %v6729 = vshrl.u32 %v6567, 16
      %v6731 = vor.u32 %v6729, %v6727
      %v6733 = vshll.u32 %v6568, 16
      %v6735 = vrot.slane %v6733, 1
      %v6736 = vsel %vm1203, %v6731, %v6735
      %v6737 = vshrl.u32 %v6568, 16
      %v6739 = vor.u32 %v6737, %v6735
      %v6741 = vshll.u32 %v6569, 16
      %v6743 = vrot.slane %v6741, 1
      %v6744 = vsel %vm1203, %v6739, %v6743
      %v6745 = vshrl.u32 %v6569, 16
      %v6747 = vor.u32 %v6745, %v6743
      %v6749 = vshll.u32 %v6570, 16
      %v6751 = vrot.slane %v6749, 1
      %v6752 = vsel %vm1203, %v6747, %v6751
      %v6753 = vshrl.u32 %v6570, 16
      %v6755 = vor.u32 %v6753, %v6751
      %v6757 = vshll.u32 %v6571, 16
      %v6759 = vrot.slane %v6757, 1
      %v6760 = vsel %vm1203, %v6755, %v6759
      %v6761 = vshrl.u32 %v6571, 16
      %v6763 = vor.u32 %v6761, %v6759
      %v6765 = vshll.u32 %v6572, 16
      %v6767 = vrot.slane %v6765, 1
      %v6768 = vsel %vm1203, %v6763, %v6767
      %v6769 = vshrl.u32 %v6572, 16
      %v6771 = vor.u32 %v6769, %v6767
      %v6773 = vshll.u32 %v6573, 16
      %v6775 = vrot.slane %v6773, 1
      %v6776 = vsel %vm1203, %v6771, %v6775
      %v6777 = vshrl.u32 %v6573, 16
      %v6779 = vor.u32 %v6777, %v6775
      %v6781 = vshll.u32 %v6574, 16
      %v6783 = vrot.slane %v6781, 1
      %v6784 = vsel %vm1203, %v6779, %v6783
      %v6785 = vshrl.u32 %v6574, 16
      %v6787 = vor.u32 %v6785, %v6783
      %v6789 = vshll.u32 %v6575, 16
      %v6791 = vrot.slane %v6789, 1
      %v6792 = vsel %vm1203, %v6787, %v6791
      %v6793 = vshrl.u32 %v6575, 16
      %v6795 = vor.u32 %v6793, %v6791
      %v6797 = vshll.u32 %v6576, 16
      %v6799 = vrot.slane %v6797, 1
      %v6800 = vsel %vm1203, %v6795, %v6799
      %v6801 = vshrl.u32 %v6576, 16
      %v6803 = vor.u32 %v6801, %v6799
      %v6805 = vshll.u32 %v6577, 16
      %v6807 = vrot.slane %v6805, 1
      %v6808 = vsel %vm1203, %v6803, %v6807
      %v6809 = vshrl.u32 %v6577, 16
      %v6811 = vor.u32 %v6809, %v6807
      %v6813 = vshll.u32 %v6578, 16
      %v6815 = vrot.slane %v6813, 1
      %v6816 = vsel %vm1203, %v6811, %v6815
      %v6817 = vshrl.u32 %v6578, 16
      %v6819 = vor.u32 %v6817, %v6815
      %v6821 = vshll.u32 %v6579, 16
      %v6823 = vrot.slane %v6821, 1
      %v6824 = vsel %vm1203, %v6819, %v6823
      %v6825 = vshrl.u32 %v6579, 16
      %v6827 = vor.u32 %v6825, %v6823
      %v6829 = vshll.u32 %v6580, 16
      %v6831 = vrot.slane %v6829, 1
      %v6832 = vsel %vm1203, %v6827, %v6831
      %v6833 = vshrl.u32 %v6580, 16
      %v6835 = vor.u32 %v6833, %v6831
      %v6837 = vshll.u32 %v6581, 16
      %v6839 = vrot.slane %v6837, 1
      %v6840 = vsel %vm1203, %v6835, %v6839
      %v6857 = vsel %vm1345, 0, %v6720
      %v6859 = vshrl.u32 %v6565, 16
      %v6861 = vrot.slane %v6859, 7
      %v6862 = vshll.u32 %v6565, 16
      %v6864 = vor.u32 %v6861, %v6862
      %v6865 = vsel %vm1065, %v6696, %v6864
      %v6867 = vshrl.u32 %v6581, 16
      %v6869 = vor.u32 %v6867, %v6839
      %v6871 = vsel %vm1345, %v6869, 0
      %v6873 = vsel %vm1201, %v6861, 0
      %v7018 = vunpack.c.l.b16 %v6390
      %v7019 = vunpack.c.l.b16 %v6391
      %v7020 = vunpack.c.l.b16 %v6392
      %v7021 = vunpack.c.l.b16 %v6393
      %v7022 = vunpack.c.l.b16 %v6394
      %v7023 = vunpack.c.l.b16 %v6395
      %v7024 = vunpack.c.l.b16 %v6396
      %v7025 = vunpack.c.l.b16 %v6397
      %v7026 = vunpack.c.l.b16 %v6398
      %v7027 = vunpack.c.l.b16 %v6399
      %v7028 = vunpack.c.l.b16 %v6400
      %v7029 = vunpack.c.l.b16 %v6401
      %v7030 = vunpack.c.l.b16 %v6402
      %v7031 = vunpack.c.l.b16 %v6403
      %v7032 = vunpack.c.l.b16 %v6404
      %v7033 = vunpack.c.l.b16 %v6405
      %v7034 = vunpack.c.l.b16 %v6406
      %v7035 = vunpack.c.l.b16 %v6407
      %v7036 = vunpack.c.l.b16 %v6408
      %v7037 = vunpack.c.l.b16 %v6409
      %v7038 = vunpack.c.l.b16 %v6410
      %v7039 = vunpack.c.l.b16 %v6411
      %v7040 = vunpack.c.l.b16 %v6412
      %v7041 = vunpack.c.l.b16 %v6413
      %v7042 = vunpack.c.l.b16 %v6414
      %v7043 = vunpack.c.l.b16 %v6415
      %v7044 = vunpack.c.l.b16 %v6416
      %v7045 = vunpack.c.l.b16 %v6417
      %v7046 = vunpack.c.l.b16 %v6418
      %v7047 = vunpack.c.l.b16 %v6419
      %v7048 = vunpack.c.l.b16 %v6420
      %v7049 = vunpack.c.l.b16 %v6421
      %v7050 = vunpack.c.l.b16 %v6422
      %v7051 = vunpack.c.l.b16 %v6423
      %v7052 = vunpack.c.l.b16 %v6424
      %v7053 = vunpack.c.l.b16 %v6425
      %v7054 = vunpack.c.l.b16 %v6426
      %v7055 = vunpack.c.l.b16 %v6427
      %v7056 = vunpack.c.l.b16 %v6428
      %v7057 = vunpack.c.l.b16 %v6429
      %v7058 = vunpack.c.l.b16 %v6430
      %v7059 = vunpack.c.l.b16 %v6431
      %v7060 = vunpack.c.l.b16 %v6432
      %v7061 = vunpack.c.l.b16 %v6433
      %v7062 = vunpack.c.l.b16 %v6434
      %v7063 = vunpack.c.l.b16 %v6435
      %v7064 = vunpack.c.l.b16 %v6436
      %v7065 = vunpack.c.l.b16 %v6437
      %v7066 = vunpack.c.l.b16 %v6438
      %v7067 = vunpack.c.l.b16 %v6439
      %v7068 = vunpack.c.l.b16 %v6440
      %v7069 = vunpack.c.l.b16 %v6441
      %v7070 = vunpack.c.l.b16 %v6442
      %v7071 = vunpack.c.l.b16 %v6443
      %v7072 = vunpack.c.l.b16 %v6444
      %v7073 = vunpack.c.l.b16 %v6445
      %v7074 = vunpack.c.l.b16 %v6446
      %v7075 = vunpack.c.l.b16 %v6447
      %v7076 = vunpack.c.l.b16 %v6448
      %v7077 = vunpack.c.l.b16 %v6449
      %v7078 = vunpack.c.l.b16 %v6450
      %v7079 = vunpack.c.l.b16 %v6451
      %v7080 = vunpack.c.l.b16 %v6452
      %v7081 = vunpack.c.l.b16 %v6453
      %v7082 = vunpack.c.l.b16 %v6454
      %v7083 = vunpack.c.l.b16 %v6455
      %v7084 = vunpack.c.l.b16 %v6456
      %v7085 = vunpack.c.l.b16 %v6457
      %v7086 = vunpack.c.l.b16 %v6458
      %v7087 = vunpack.c.l.b16 %v6459
      %v7088 = vunpack.c.l.b16 %v6460
      %v7089 = vunpack.c.l.b16 %v6461
      %v7090 = vunpack.c.l.b16 %v6462
      %v7091 = vunpack.c.l.b16 %v6463
      %v7092 = vunpack.c.l.b16 %v6464
      %v7093 = vunpack.c.l.b16 %v6465
      %v7094 = vunpack.c.l.b16 %v6466
      %v7095 = vunpack.c.l.b16 %v6467
      %v7096 = vunpack.c.l.b16 %v6468
      %v7097 = vunpack.c.l.b16 %v6469
      %v7098 = vunpack.c.l.b16 %v6470
      %v7099 = vunpack.c.l.b16 %v6471
      %v7100 = vunpack.c.l.b16 %v6472
      %v7101 = vunpack.c.l.b16 %v6473
      %v7102 = vunpack.c.l.b16 %v6474
      %v7103 = vunpack.c.l.b16 %v6475
      %v7104 = vunpack.c.l.b16 %v6476
      %v7105 = vunpack.c.l.b16 %v6477
      %v7106 = vunpack.c.l.b16 %v6478
      %v7107 = vunpack.c.l.b16 %v6479
      %v7108 = vunpack.c.l.b16 %v6480
      %v7109 = vunpack.c.l.b16 %v6481
      %v7110 = vunpack.c.l.b16 %v6482
      %v7111 = vunpack.c.l.b16 %v6483
      %v7112 = vunpack.c.l.b16 %v6484
      %v7113 = vunpack.c.l.b16 %v6485
      %v7114 = vunpack.c.l.b16 %v6486
      %v7115 = vunpack.c.l.b16 %v6487
      %v7116 = vunpack.c.l.b16 %v6488
      %v7117 = vunpack.c.l.b16 %v6489
      %v7118 = vunpack.c.l.b16 %v6490
      %v7119 = vunpack.c.l.b16 %v6491
      %v7120 = vunpack.c.l.b16 %v6492
      %v7121 = vunpack.c.l.b16 %v6493
      %v7122 = vunpack.c.l.b16 %v6494
      %v7123 = vunpack.c.l.b16 %v6495
      %v7124 = vunpack.c.l.b16 %v6496
      %v7125 = vunpack.c.l.b16 %v6497
      %v7126 = vunpack.c.l.b16 %v6498
      %v7127 = vunpack.c.l.b16 %v6499
      %v7128 = vunpack.c.l.b16 %v6500
      %v7129 = vunpack.c.l.b16 %v6501
      %v7130 = vunpack.c.l.b16 %v6502
      %v7131 = vunpack.c.l.b16 %v6503
      %v7132 = vunpack.c.l.b16 %v6504
      %v7133 = vunpack.c.l.b16 %v6505
      %v7134 = vunpack.c.l.b16 %v6506
      %v7135 = vunpack.c.l.b16 %v6507
      %v7136 = vunpack.c.l.b16 %v6508
      %v7137 = vunpack.c.l.b16 %v6509
      %v7138 = vunpack.c.l.b16 %v6510
      %v7139 = vunpack.c.l.b16 %v6511
      %v7140 = vunpack.c.l.b16 %v6512
      %v7141 = vunpack.c.l.b16 %v6513
      %v7142 = vunpack.c.l.b16 %v6514
      %v7143 = vunpack.c.l.b16 %v6515
      %v7144 = vunpack.c.l.b16 %v6516
      %v7145 = vunpack.c.l.b16 %v6517
      %v7146 = vunpack.c.l.b16 %v6518
      %v7147 = vunpack.c.l.b16 %v6519
      %v7148 = vunpack.c.l.b16 %v6520
      %v7149 = vunpack.c.l.b16 %v6521
      %v7150 = vunpack.c.l.b16 %v6522
      %v7151 = vunpack.c.l.b16 %v6523
      %v7152 = vunpack.c.l.b16 %v6524
      %v7153 = vunpack.c.l.b16 %v6525
      %v7154 = vunpack.c.l.b16 %v6526
      %v7155 = vunpack.c.l.b16 %v6527
      %v7156 = vunpack.c.l.b16 %v6528
      %v7157 = vunpack.c.l.b16 %v6529
      %v7158 = vunpack.c.l.b16 %v6530
      %v7159 = vunpack.c.l.b16 %v6531
      %v7160 = vunpack.c.l.b16 %v6532
      %v7161 = vunpack.c.l.b16 %v6533
      %v7162 = vpack.c.b16 %v7019, %v7018
      %v7163 = vpack.c.b16 %v7021, %v7020
      %v7164 = vpack.c.b16 %v7023, %v7022
      %v7165 = vpack.c.b16 %v7025, %v7024
      %v7166 = vpack.c.b16 %v7027, %v7026
      %v7167 = vpack.c.b16 %v7029, %v7028
      %v7168 = vpack.c.b16 %v7031, %v7030
      %v7169 = vpack.c.b16 %v7033, %v7032
      %v7170 = vpack.c.b16 %v7035, %v7034
      %v7171 = vpack.c.b16 %v7037, %v7036
      %v7172 = vpack.c.b16 %v7039, %v7038
      %v7173 = vpack.c.b16 %v7041, %v7040
      %v7174 = vpack.c.b16 %v7043, %v7042
      %v7175 = vpack.c.b16 %v7045, %v7044
      %v7176 = vpack.c.b16 %v7047, %v7046
      %v7177 = vpack.c.b16 %v7049, %v7048
      %v7178 = vpack.c.b16 %v7051, %v7050
      %v7179 = vpack.c.b16 %v7053, %v7052
      %v7180 = vpack.c.b16 %v7055, %v7054
      %v7181 = vpack.c.b16 %v7057, %v7056
      %v7182 = vpack.c.b16 %v7059, %v7058
      %v7183 = vpack.c.b16 %v7061, %v7060
      %v7184 = vpack.c.b16 %v7063, %v7062
      %v7185 = vpack.c.b16 %v7065, %v7064
      %v7186 = vpack.c.b16 %v7067, %v7066
      %v7187 = vpack.c.b16 %v7069, %v7068
      %v7188 = vpack.c.b16 %v7071, %v7070
      %v7189 = vpack.c.b16 %v7073, %v7072
      %v7190 = vpack.c.b16 %v7075, %v7074
      %v7191 = vpack.c.b16 %v7077, %v7076
      %v7192 = vpack.c.b16 %v7079, %v7078
      %v7193 = vpack.c.b16 %v7081, %v7080
      %v7194 = vpack.c.b16 %v7083, %v7082
      %v7195 = vpack.c.b16 %v7085, %v7084
      %v7196 = vpack.c.b16 %v7087, %v7086
      %v7197 = vpack.c.b16 %v7089, %v7088
      %v7198 = vpack.c.b16 %v7091, %v7090
      %v7199 = vpack.c.b16 %v7093, %v7092
      %v7200 = vpack.c.b16 %v7095, %v7094
      %v7201 = vpack.c.b16 %v7097, %v7096
      %v7202 = vpack.c.b16 %v7099, %v7098
      %v7203 = vpack.c.b16 %v7101, %v7100
      %v7204 = vpack.c.b16 %v7103, %v7102
      %v7205 = vpack.c.b16 %v7105, %v7104
      %v7206 = vpack.c.b16 %v7107, %v7106
      %v7207 = vpack.c.b16 %v7109, %v7108
      %v7208 = vpack.c.b16 %v7111, %v7110
      %v7209 = vpack.c.b16 %v7113, %v7112
      %v7210 = vpack.c.b16 %v7115, %v7114
      %v7211 = vpack.c.b16 %v7117, %v7116
      %v7212 = vpack.c.b16 %v7119, %v7118
      %v7213 = vpack.c.b16 %v7121, %v7120
      %v7214 = vpack.c.b16 %v7123, %v7122
      %v7215 = vpack.c.b16 %v7125, %v7124
      %v7216 = vpack.c.b16 %v7127, %v7126
      %v7217 = vpack.c.b16 %v7129, %v7128
      %v7218 = vpack.c.b16 %v7131, %v7130
      %v7219 = vpack.c.b16 %v7133, %v7132
      %v7220 = vpack.c.b16 %v7135, %v7134
      %v7221 = vpack.c.b16 %v7137, %v7136
      %v7222 = vpack.c.b16 %v7139, %v7138
      %v7223 = vpack.c.b16 %v7141, %v7140
      %v7224 = vpack.c.b16 %v7143, %v7142
      %v7225 = vpack.c.b16 %v7145, %v7144
      %v7226 = vpack.c.b16 %v7147, %v7146
      %v7227 = vpack.c.b16 %v7149, %v7148
      %v7228 = vpack.c.b16 %v7151, %v7150
      %v7229 = vpack.c.b16 %v7153, %v7152
      %v7230 = vpack.c.b16 %v7155, %v7154
      %v7231 = vpack.c.b16 %v7157, %v7156
      %v7232 = vpack.c.b16 %v7159, %v7158
      %v7233 = vpack.c.b16 %v7161, %v7160
      %7306 = vmatprep.subr.bf16.mxu0 0
      %7307 = vmatpush1.bf16.msra.mxu0 %v7162
      %7308 = vmatprep.subr.bf16.mxu0 0
      %7309 = vmatpush1.bf16.msra.mxu0 %v7163
      %7310 = vmatprep.subr.bf16.mxu0 0
      %7311 = vmatpush1.bf16.msra.mxu0 %v7164
      %7312 = vmatprep.subr.bf16.mxu0 0
      %7313 = vmatpush1.bf16.msra.mxu0 %v7165
      %7314 = vmatprep.subr.bf16.mxu0 0
      %7315 = vmatpush1.bf16.msra.mxu0 %v7166
      %7316 = vmatprep.subr.bf16.mxu0 0
      %7317 = vmatpush1.bf16.msra.mxu0 %v7167
      %7318 = vmatprep.subr.bf16.mxu0 0
      %7319 = vmatpush1.bf16.msra.mxu0 %v7168
      %7320 = vmatprep.subr.bf16.mxu0 0
      %7321 = vmatpush1.bf16.msra.mxu0 %v7169
      %7322 = vmatprep.subr.bf16.mxu0 0
      %7323 = vmatpush1.bf16.msra.mxu0 %v7170
      %7324 = vmatprep.subr.bf16.mxu0 0
      %7325 = vmatpush1.bf16.msra.mxu0 %v7171
      %7326 = vmatprep.subr.bf16.mxu0 0
      %7327 = vmatpush1.bf16.msra.mxu0 %v7172
      %7328 = vmatprep.subr.bf16.mxu0 0
      %7329 = vmatpush1.bf16.msra.mxu0 %v7173
      %7330 = vmatprep.subr.bf16.mxu0 0
      %7331 = vmatpush1.bf16.msra.mxu0 %v7174
      %7332 = vmatprep.subr.bf16.mxu0 0
      %7333 = vmatpush1.bf16.msra.mxu0 %v7175
      %7334 = vmatprep.subr.bf16.mxu0 0
      %7335 = vmatpush1.bf16.msra.mxu0 %v7176
      %7336 = vmatprep.subr.bf16.mxu0 0
      %7337 = vmatpush1.bf16.msra.mxu0 %v7177
      %7338 = vmatprep.mubr.bf16.mxu0 0
      %7339 = vmatmul.mubr.bf16.gmra.mrb[0].mxu0 0
      %v7340 = vpop.f32.mrb[0].mxu0
      %v7341 = vadd.f32 0.0, %v7340
      %v7342 = vpop.f32.mrb[0].mxu0
      %v7343 = vpop.f32.mrb[0].mxu0
      %v7344 = vadd.f32 0.0, %v7343
      %v7345 = vpop.f32.mrb[0].mxu0
      %7346 = vmatprep.mubr.bf16.mxu0 %v6534
      %7347 = vmatmul.mubr.bf16.gmra.mrb[0].mxu0 %v6716
      %v7348 = vpop.f32.mrb[0].mxu0
      %v7349 = vadd.f32 0.0, %v7348
      %v7350 = vpop.f32.mrb[0].mxu0
      %v7351 = vpop.f32.mrb[0].mxu0
      %v7352 = vadd.f32 0.0, %v7351
      %v7353 = vpop.f32.mrb[0].mxu0
      %7354 = vmatprep.mubr.bf16.mxu0 %v6535
      %7355 = vmatmul.mubr.bf16.gmra.mrb[0].mxu0 %v6596
      %v7356 = vpop.f32.mrb[0].mxu0
      %v7357 = vadd.f32 0.0, %v7356
      %v7358 = vpop.f32.mrb[0].mxu0
      %v7359 = vpop.f32.mrb[0].mxu0
      %v7360 = vadd.f32 0.0, %v7359
      %v7361 = vpop.f32.mrb[0].mxu0
      %7362 = vmatprep.mubr.bf16.mxu0 %v6536
      %7363 = vmatmul.mubr.bf16.gmra.mrb[0].mxu0 %v6604
      %v7364 = vpop.f32.mrb[0].mxu0
      %v7365 = vadd.f32 0.0, %v7364
      %v7366 = vpop.f32.mrb[0].mxu0
      %v7367 = vpop.f32.mrb[0].mxu0
      %v7368 = vadd.f32 0.0, %v7367
      %v7369 = vpop.f32.mrb[0].mxu0
      %7370 = vmatprep.mubr.bf16.mxu0 %v6537
      %7371 = vmatmul.mubr.bf16.gmra.mrb[0].mxu0 %v6612
      %v7372 = vpop.f32.mrb[0].mxu0
      %v7373 = vadd.f32 0.0, %v7372
      %v7374 = vpop.f32.mrb[0].mxu0
      %v7375 = vpop.f32.mrb[0].mxu0
      %v7376 = vadd.f32 0.0, %v7375
      %v7377 = vpop.f32.mrb[0].mxu0
      %7378 = vmatprep.mubr.bf16.mxu0 %v6538
      %7379 = vmatmul.mubr.bf16.gmra.mrb[0].mxu0 %v6620
      %v7380 = vpop.f32.mrb[0].mxu0
      %v7381 = vadd.f32 0.0, %v7380
      %v7382 = vpop.f32.mrb[0].mxu0
      %v7383 = vpop.f32.mrb[0].mxu0
      %v7384 = vadd.f32 0.0, %v7383
      %v7385 = vpop.f32.mrb[0].mxu0
      %7386 = vmatprep.mubr.bf16.mxu0 %v6539
      %7387 = vmatmul.mubr.bf16.gmra.mrb[0].mxu0 %v6628
      %v7388 = vpop.f32.mrb[0].mxu0
      %v7389 = vadd.f32 0.0, %v7388
      %v7390 = vpop.f32.mrb[0].mxu0
      %v7391 = vpop.f32.mrb[0].mxu0
      %v7392 = vadd.f32 0.0, %v7391
      %v7393 = vpop.f32.mrb[0].mxu0
      %7394 = vmatprep.mubr.bf16.mxu0 %v6540
      %7395 = vmatmul.mubr.bf16.gmra.mrb[0].mxu0 %v6636
      %v7396 = vpop.f32.mrb[0].mxu0
      %v7397 = vadd.f32 0.0, %v7396
      %v7398 = vpop.f32.mrb[0].mxu0
      %v7399 = vpop.f32.mrb[0].mxu0
      %v7400 = vadd.f32 0.0, %v7399
      %v7401 = vpop.f32.mrb[0].mxu0
      %7402 = vmatprep.mubr.bf16.mxu0 %v6541
      %7403 = vmatmul.mubr.bf16.gmra.mrb[0].mxu0 %v6644
      %v7404 = vpop.f32.mrb[0].mxu0
      %v7405 = vadd.f32 0.0, %v7404
      %v7406 = vpop.f32.mrb[0].mxu0
      %v7407 = vpop.f32.mrb[0].mxu0
      %v7408 = vadd.f32 0.0, %v7407
      %v7409 = vpop.f32.mrb[0].mxu0
      %7410 = vmatprep.mubr.bf16.mxu0 %v6542
      %7411 = vmatmul.mubr.bf16.gmra.mrb[0].mxu0 %v6652
      %v7412 = vpop.f32.mrb[0].mxu0
      %v7413 = vadd.f32 0.0, %v7412
      %v7414 = vpop.f32.mrb[0].mxu0
      %v7415 = vpop.f32.mrb[0].mxu0
      %v7416 = vadd.f32 0.0, %v7415
      %v7417 = vpop.f32.mrb[0].mxu0
      %7418 = vmatprep.mubr.bf16.mxu0 %v6543
      %7419 = vmatmul.mubr.bf16.gmra.mrb[0].mxu0 %v6660
      %v7420 = vpop.f32.mrb[0].mxu0
      %v7421 = vadd.f32 0.0, %v7420
      %v7422 = vpop.f32.mrb[0].mxu0
      %v7423 = vpop.f32.mrb[0].mxu0
      %v7424 = vadd.f32 0.0, %v7423
      %v7425 = vpop.f32.mrb[0].mxu0
      %7426 = vmatprep.mubr.bf16.mxu0 %v6544
      %7427 = vmatmul.mubr.bf16.gmra.mrb[0].mxu0 %v6668
      %v7428 = vpop.f32.mrb[0].mxu0
      %v7429 = vadd.f32 0.0, %v7428
      %v7430 = vpop.f32.mrb[0].mxu0
      %v7431 = vpop.f32.mrb[0].mxu0
      %v7432 = vadd.f32 0.0, %v7431
      %v7433 = vpop.f32.mrb[0].mxu0
      %7434 = vmatprep.mubr.bf16.mxu0 %v6545
      %7435 = vmatmul.mubr.bf16.gmra.mrb[0].mxu0 %v6676
      %v7436 = vpop.f32.mrb[0].mxu0
      %v7437 = vadd.f32 0.0, %v7436
      %v7438 = vpop.f32.mrb[0].mxu0
      %v7439 = vpop.f32.mrb[0].mxu0
      %v7440 = vadd.f32 0.0, %v7439
      %v7441 = vpop.f32.mrb[0].mxu0
      %7442 = vmatprep.mubr.bf16.mxu0 %v6546
      %7443 = vmatmul.mubr.bf16.gmra.mrb[0].mxu0 %v6684
      %v7444 = vpop.f32.mrb[0].mxu0
      %v7445 = vadd.f32 0.0, %v7444
      %v7446 = vpop.f32.mrb[0].mxu0
      %v7447 = vpop.f32.mrb[0].mxu0
      %v7448 = vadd.f32 0.0, %v7447
      %v7449 = vpop.f32.mrb[0].mxu0
      %7450 = vmatprep.mubr.bf16.mxu0 %v6547
      %7451 = vmatmul.mubr.bf16.gmra.mrb[0].mxu0 %v6692
      %v7452 = vpop.f32.mrb[0].mxu0
      %v7453 = vadd.f32 0.0, %v7452
      %v7454 = vpop.f32.mrb[0].mxu0
      %v7455 = vpop.f32.mrb[0].mxu0
      %v7456 = vadd.f32 0.0, %v7455
      %v7457 = vpop.f32.mrb[0].mxu0
      %7458 = vmatprep.mubr.bf16.mxu0 %v6548
      %7459 = vmatmul.mubr.bf16.gmra.mrb[0].mxu0 %v6700
      %v7460 = vpop.f32.mrb[0].mxu0
      %v7461 = vadd.f32 0.0, %v7460
      %v7462 = vpop.f32.mrb[0].mxu0
      %v7463 = vpop.f32.mrb[0].mxu0
      %v7464 = vadd.f32 0.0, %v7463
      %v7465 = vpop.f32.mrb[0].mxu0
      %7466 = vdwg.mxu0
      %7467 = vmatprep.subr.bf16.mxu0 0
      %7468 = vmatpush1.bf16.msra.mxu0 %v7178
      %7469 = vmatprep.subr.bf16.mxu0 0
      %7470 = vmatpush1.bf16.msra.mxu0 %v7179
      %7471 = vmatprep.subr.bf16.mxu0 0
      %7472 = vmatpush1.bf16.msra.mxu0 %v7180
      %7473 = vmatprep.subr.bf16.mxu0 0
      %7474 = vmatpush1.bf16.msra.mxu0 %v7181
      %7475 = vmatprep.subr.bf16.mxu0 0
      %7476 = vmatpush1.bf16.msra.mxu0 %v7182
      %7477 = vmatprep.subr.bf16.mxu0 0
      %7478 = vmatpush1.bf16.msra.mxu0 %v7183
      %7479 = vmatprep.subr.bf16.mxu0 0
      %7480 = vmatpush1.bf16.msra.mxu0 %v7184
      %7481 = vmatprep.subr.bf16.mxu0 0
      %7482 = vmatpush1.bf16.msra.mxu0 %v7185
      %7483 = vmatprep.subr.bf16.mxu0 0
      %7484 = vmatpush1.bf16.msra.mxu0 %v7186
      %7485 = vmatprep.subr.bf16.mxu0 0
      %7486 = vmatpush1.bf16.msra.mxu0 %v7187
      %7487 = vmatprep.subr.bf16.mxu0 0
      %7488 = vmatpush1.bf16.msra.mxu0 %v7188
      %7489 = vmatprep.subr.bf16.mxu0 0
      %7490 = vmatpush1.bf16.msra.mxu0 %v7189
      %7491 = vmatprep.subr.bf16.mxu0 0
      %7492 = vmatpush1.bf16.msra.mxu0 %v7190
      %7493 = vmatprep.subr.bf16.mxu0 0
      %7494 = vmatpush1.bf16.msra.mxu0 %v7191
      %7495 = vmatprep.subr.bf16.mxu0 0
      %7496 = vmatpush1.bf16.msra.mxu0 %v7192
      %7497 = vmatprep.subr.bf16.mxu0 0
      %7498 = vmatpush1.bf16.msra.mxu0 %v7193
      %7499 = vmatprep.mubr.bf16.mxu0 %v6716
      %7500 = vmatmul.mubr.bf16.gmra.mrb[0].mxu0 %v6857
      %v7501 = vpop.f32.mrb[0].mxu0
      %v7502 = vadd.f32 %v7341, %v7501
      %v7503 = vpop.f32.mrb[0].mxu0
      %v7504 = vpop.f32.mrb[0].mxu0
      %v7505 = vadd.f32 %v7344, %v7504
      %v7506 = vpop.f32.mrb[0].mxu0
      %7507 = vmatprep.mubr.bf16.mxu0 %v6596
      %7508 = vmatmul.mubr.bf16.gmra.mrb[0].mxu0 %v6728
      %v7509 = vpop.f32.mrb[0].mxu0
      %v7510 = vadd.f32 %v7349, %v7509
      %v7511 = vpop.f32.mrb[0].mxu0
      %v7512 = vpop.f32.mrb[0].mxu0
      %v7513 = vadd.f32 %v7352, %v7512
      %v7514 = vpop.f32.mrb[0].mxu0
      %7515 = vmatprep.mubr.bf16.mxu0 %v6604
      %7516 = vmatmul.mubr.bf16.gmra.mrb[0].mxu0 %v6736
      %v7517 = vpop.f32.mrb[0].mxu0
      %v7518 = vadd.f32 %v7357, %v7517
      %v7519 = vpop.f32.mrb[0].mxu0
      %v7520 = vpop.f32.mrb[0].mxu0
      %v7521 = vadd.f32 %v7360, %v7520
      %v7522 = vpop.f32.mrb[0].mxu0
      %7523 = vmatprep.mubr.bf16.mxu0 %v6612
      %7524 = vmatmul.mubr.bf16.gmra.mrb[0].mxu0 %v6744
      %v7525 = vpop.f32.mrb[0].mxu0
      %v7526 = vadd.f32 %v7365, %v7525
      %v7527 = vpop.f32.mrb[0].mxu0
      %v7528 = vpop.f32.mrb[0].mxu0
      %v7529 = vadd.f32 %v7368, %v7528
      %v7530 = vpop.f32.mrb[0].mxu0
      %7531 = vmatprep.mubr.bf16.mxu0 %v6620
      %7532 = vmatmul.mubr.bf16.gmra.mrb[0].mxu0 %v6752
      %v7533 = vpop.f32.mrb[0].mxu0
      %v7534 = vadd.f32 %v7373, %v7533
      %v7535 = vpop.f32.mrb[0].mxu0
      %v7536 = vpop.f32.mrb[0].mxu0
      %v7537 = vadd.f32 %v7376, %v7536
      %v7538 = vpop.f32.mrb[0].mxu0
      %7539 = vmatprep.mubr.bf16.mxu0 %v6628
      %7540 = vmatmul.mubr.bf16.gmra.mrb[0].mxu0 %v6760
      %v7541 = vpop.f32.mrb[0].mxu0
      %v7542 = vadd.f32 %v7381, %v7541
      %v7543 = vpop.f32.mrb[0].mxu0
      %v7544 = vpop.f32.mrb[0].mxu0
      %v7545 = vadd.f32 %v7384, %v7544
      %v7546 = vpop.f32.mrb[0].mxu0
      %7547 = vmatprep.mubr.bf16.mxu0 %v6636
      %7548 = vmatmul.mubr.bf16.gmra.mrb[0].mxu0 %v6768
      %v7549 = vpop.f32.mrb[0].mxu0
      %v7550 = vadd.f32 %v7389, %v7549
      %v7551 = vpop.f32.mrb[0].mxu0
      %v7552 = vpop.f32.mrb[0].mxu0
      %v7553 = vadd.f32 %v7392, %v7552
      %v7554 = vpop.f32.mrb[0].mxu0
      %7555 = vmatprep.mubr.bf16.mxu0 %v6644
      %7556 = vmatmul.mubr.bf16.gmra.mrb[0].mxu0 %v6776
      %v7557 = vpop.f32.mrb[0].mxu0
      %v7558 = vadd.f32 %v7397, %v7557
      %v7559 = vpop.f32.mrb[0].mxu0
      %v7560 = vpop.f32.mrb[0].mxu0
      %v7561 = vadd.f32 %v7400, %v7560
      %v7562 = vpop.f32.mrb[0].mxu0
      %7563 = vmatprep.mubr.bf16.mxu0 %v6652
      %7564 = vmatmul.mubr.bf16.gmra.mrb[0].mxu0 %v6784
      %v7565 = vpop.f32.mrb[0].mxu0
      %v7566 = vadd.f32 %v7405, %v7565
      %v7567 = vpop.f32.mrb[0].mxu0
      %v7568 = vpop.f32.mrb[0].mxu0
      %v7569 = vadd.f32 %v7408, %v7568
      %v7570 = vpop.f32.mrb[0].mxu0
      %7571 = vmatprep.mubr.bf16.mxu0 %v6660
      %7572 = vmatmul.mubr.bf16.gmra.mrb[0].mxu0 %v6792
      %v7573 = vpop.f32.mrb[0].mxu0
      %v7574 = vadd.f32 %v7413, %v7573
      %v7575 = vpop.f32.mrb[0].mxu0
      %v7576 = vpop.f32.mrb[0].mxu0
      %v7577 = vadd.f32 %v7416, %v7576
      %v7578 = vpop.f32.mrb[0].mxu0
      %7579 = vmatprep.mubr.bf16.mxu0 %v6668
      %7580 = vmatmul.mubr.bf16.gmra.mrb[0].mxu0 %v6800
      %v7581 = vpop.f32.mrb[0].mxu0
      %v7582 = vadd.f32 %v7421, %v7581
      %v7583 = vpop.f32.mrb[0].mxu0
      %v7584 = vpop.f32.mrb[0].mxu0
      %v7585 = vadd.f32 %v7424, %v7584
      %v7586 = vpop.f32.mrb[0].mxu0
      %7587 = vmatprep.mubr.bf16.mxu0 %v6676
      %7588 = vmatmul.mubr.bf16.gmra.mrb[0].mxu0 %v6808
      %v7589 = vpop.f32.mrb[0].mxu0
      %v7590 = vadd.f32 %v7429, %v7589
      %v7591 = vpop.f32.mrb[0].mxu0
      %v7592 = vpop.f32.mrb[0].mxu0
      %v7593 = vadd.f32 %v7432, %v7592
      %v7594 = vpop.f32.mrb[0].mxu0
      %7595 = vmatprep.mubr.bf16.mxu0 %v6684
      %7596 = vmatmul.mubr.bf16.gmra.mrb[0].mxu0 %v6816
      %v7597 = vpop.f32.mrb[0].mxu0
      %v7598 = vadd.f32 %v7437, %v7597
      %v7599 = vpop.f32.mrb[0].mxu0
      %v7600 = vpop.f32.mrb[0].mxu0
      %v7601 = vadd.f32 %v7440, %v7600
      %v7602 = vpop.f32.mrb[0].mxu0
      %7603 = vmatprep.mubr.bf16.mxu0 %v6692
      %7604 = vmatmul.mubr.bf16.gmra.mrb[0].mxu0 %v6824
      %v7605 = vpop.f32.mrb[0].mxu0
      %v7606 = vadd.f32 %v7445, %v7605
      %v7607 = vpop.f32.mrb[0].mxu0
      %v7608 = vpop.f32.mrb[0].mxu0
      %v7609 = vadd.f32 %v7448, %v7608
      %v7610 = vpop.f32.mrb[0].mxu0
      %7611 = vmatprep.mubr.bf16.mxu0 %v6700
      %7612 = vmatmul.mubr.bf16.gmra.mrb[0].mxu0 %v6832
      %v7613 = vpop.f32.mrb[0].mxu0
      %v7614 = vadd.f32 %v7453, %v7613
      %v7615 = vpop.f32.mrb[0].mxu0
      %v7616 = vpop.f32.mrb[0].mxu0
      %v7617 = vadd.f32 %v7456, %v7616
      %v7618 = vpop.f32.mrb[0].mxu0
      %7619 = vmatprep.mubr.bf16.mxu0 %v6865
      %7620 = vmatmul.mubr.bf16.gmra.mrb[0].mxu0 %v6840
      %v7621 = vpop.f32.mrb[0].mxu0
      %v7622 = vadd.f32 %v7461, %v7621
      %v7623 = vpop.f32.mrb[0].mxu0
      %v7624 = vpop.f32.mrb[0].mxu0
      %v7625 = vadd.f32 %v7464, %v7624
      %v7626 = vpop.f32.mrb[0].mxu0
      %7627 = vdwg.mxu0
      %7628 = vmatprep.subr.bf16.mxu0 0
      %7629 = vmatpush1.bf16.msra.mxu0 %v7194
      %7630 = vmatprep.subr.bf16.mxu0 0
      %7631 = vmatpush1.bf16.msra.mxu0 %v7195
      %7632 = vmatprep.subr.bf16.mxu0 0
      %7633 = vmatpush1.bf16.msra.mxu0 %v7196
      %7634 = vmatprep.subr.bf16.mxu0 0
      %7635 = vmatpush1.bf16.msra.mxu0 %v7197
      %7636 = vmatprep.subr.bf16.mxu0 0
      %7637 = vmatpush1.bf16.msra.mxu0 %v7198
      %7638 = vmatprep.subr.bf16.mxu0 0
      %7639 = vmatpush1.bf16.msra.mxu0 %v7199
      %7640 = vmatprep.subr.bf16.mxu0 0
      %7641 = vmatpush1.bf16.msra.mxu0 %v7200
      %7642 = vmatprep.subr.bf16.mxu0 0
      %7643 = vmatpush1.bf16.msra.mxu0 %v7201
      %7644 = vmatprep.subr.bf16.mxu0 0
      %7645 = vmatpush1.bf16.msra.mxu0 %v7202
      %7646 = vmatprep.subr.bf16.mxu0 0
      %7647 = vmatpush1.bf16.msra.mxu0 %v7203
      %7648 = vmatprep.subr.bf16.mxu0 0
      %7649 = vmatpush1.bf16.msra.mxu0 %v7204
      %7650 = vmatprep.subr.bf16.mxu0 0
      %7651 = vmatpush1.bf16.msra.mxu0 %v7205
      %7652 = vmatprep.subr.bf16.mxu0 0
      %7653 = vmatpush1.bf16.msra.mxu0 %v7206
      %7654 = vmatprep.subr.bf16.mxu0 0
      %7655 = vmatpush1.bf16.msra.mxu0 %v7207
      %7656 = vmatprep.subr.bf16.mxu0 0
      %7657 = vmatpush1.bf16.msra.mxu0 %v7208
      %7658 = vmatprep.subr.bf16.mxu0 0
      %7659 = vmatpush1.bf16.msra.mxu0 %v7209
      %7660 = vmatprep.mubr.bf16.mxu0 %v6728
      %7661 = vmatmul.mubr.bf16.gmra.mrb[0].mxu0 %v6534
      %v7662 = vpop.f32.mrb[0].mxu0
      %v7663 = vadd.f32 %v7502, %v7662
      %v7664 = vpop.f32.mrb[0].mxu0
      %v7665 = vpop.f32.mrb[0].mxu0
      %v7666 = vadd.f32 %v7505, %v7665
      %v7667 = vpop.f32.mrb[0].mxu0
      %7668 = vmatprep.mubr.bf16.mxu0 %v6736
      %7669 = vmatmul.mubr.bf16.gmra.mrb[0].mxu0 %v6535
      %v7670 = vpop.f32.mrb[0].mxu0
      %v7671 = vadd.f32 %v7510, %v7670
      %v7672 = vpop.f32.mrb[0].mxu0
      %v7673 = vpop.f32.mrb[0].mxu0
      %v7674 = vadd.f32 %v7513, %v7673
      %v7675 = vpop.f32.mrb[0].mxu0
      %7676 = vmatprep.mubr.bf16.mxu0 %v6744
      %7677 = vmatmul.mubr.bf16.gmra.mrb[0].mxu0 %v6536
      %v7678 = vpop.f32.mrb[0].mxu0
      %v7679 = vadd.f32 %v7518, %v7678
      %v7680 = vpop.f32.mrb[0].mxu0
      %v7681 = vpop.f32.mrb[0].mxu0
      %v7682 = vadd.f32 %v7521, %v7681
      %v7683 = vpop.f32.mrb[0].mxu0
      %7684 = vmatprep.mubr.bf16.mxu0 %v6752
      %7685 = vmatmul.mubr.bf16.gmra.mrb[0].mxu0 %v6537
      %v7686 = vpop.f32.mrb[0].mxu0
      %v7687 = vadd.f32 %v7526, %v7686
      %v7688 = vpop.f32.mrb[0].mxu0
      %v7689 = vpop.f32.mrb[0].mxu0
      %v7690 = vadd.f32 %v7529, %v7689
      %v7691 = vpop.f32.mrb[0].mxu0
      %7692 = vmatprep.mubr.bf16.mxu0 %v6760
      %7693 = vmatmul.mubr.bf16.gmra.mrb[0].mxu0 %v6538
      %v7694 = vpop.f32.mrb[0].mxu0
      %v7695 = vadd.f32 %v7534, %v7694
      %v7696 = vpop.f32.mrb[0].mxu0
      %v7697 = vpop.f32.mrb[0].mxu0
      %v7698 = vadd.f32 %v7537, %v7697
      %v7699 = vpop.f32.mrb[0].mxu0
      %7700 = vmatprep.mubr.bf16.mxu0 %v6768
      %7701 = vmatmul.mubr.bf16.gmra.mrb[0].mxu0 %v6539
      %v7702 = vpop.f32.mrb[0].mxu0
      %v7703 = vadd.f32 %v7542, %v7702
      %v7704 = vpop.f32.mrb[0].mxu0
      %v7705 = vpop.f32.mrb[0].mxu0
      %v7706 = vadd.f32 %v7545, %v7705
      %v7707 = vpop.f32.mrb[0].mxu0
      %7708 = vmatprep.mubr.bf16.mxu0 %v6776
      %7709 = vmatmul.mubr.bf16.gmra.mrb[0].mxu0 %v6540
      %v7710 = vpop.f32.mrb[0].mxu0
      %v7711 = vadd.f32 %v7550, %v7710
      %v7712 = vpop.f32.mrb[0].mxu0
      %v7713 = vpop.f32.mrb[0].mxu0
      %v7714 = vadd.f32 %v7553, %v7713
      %v7715 = vpop.f32.mrb[0].mxu0
      %7716 = vmatprep.mubr.bf16.mxu0 %v6784
      %7717 = vmatmul.mubr.bf16.gmra.mrb[0].mxu0 %v6541
      %v7718 = vpop.f32.mrb[0].mxu0
      %v7719 = vadd.f32 %v7558, %v7718
      %v7720 = vpop.f32.mrb[0].mxu0
      %v7721 = vpop.f32.mrb[0].mxu0
      %v7722 = vadd.f32 %v7561, %v7721
      %v7723 = vpop.f32.mrb[0].mxu0
      %7724 = vmatprep.mubr.bf16.mxu0 %v6792
      %7725 = vmatmul.mubr.bf16.gmra.mrb[0].mxu0 %v6542
      %v7726 = vpop.f32.mrb[0].mxu0
      %v7727 = vadd.f32 %v7566, %v7726
      %v7728 = vpop.f32.mrb[0].mxu0
      %v7729 = vpop.f32.mrb[0].mxu0
      %v7730 = vadd.f32 %v7569, %v7729
      %v7731 = vpop.f32.mrb[0].mxu0
      %7732 = vmatprep.mubr.bf16.mxu0 %v6800
      %7733 = vmatmul.mubr.bf16.gmra.mrb[0].mxu0 %v6543
      %v7734 = vpop.f32.mrb[0].mxu0
      %v7735 = vadd.f32 %v7574, %v7734
      %v7736 = vpop.f32.mrb[0].mxu0
      %v7737 = vpop.f32.mrb[0].mxu0
      %v7738 = vadd.f32 %v7577, %v7737
      %v7739 = vpop.f32.mrb[0].mxu0
      %7740 = vmatprep.mubr.bf16.mxu0 %v6808
      %7741 = vmatmul.mubr.bf16.gmra.mrb[0].mxu0 %v6544
      %v7742 = vpop.f32.mrb[0].mxu0
      %v7743 = vadd.f32 %v7582, %v7742
      %v7744 = vpop.f32.mrb[0].mxu0
      %v7745 = vpop.f32.mrb[0].mxu0
      %v7746 = vadd.f32 %v7585, %v7745
      %v7747 = vpop.f32.mrb[0].mxu0
      %7748 = vmatprep.mubr.bf16.mxu0 %v6816
      %7749 = vmatmul.mubr.bf16.gmra.mrb[0].mxu0 %v6545
      %v7750 = vpop.f32.mrb[0].mxu0
      %v7751 = vadd.f32 %v7590, %v7750
      %v7752 = vpop.f32.mrb[0].mxu0
      %v7753 = vpop.f32.mrb[0].mxu0
      %v7754 = vadd.f32 %v7593, %v7753
      %v7755 = vpop.f32.mrb[0].mxu0
      %7756 = vmatprep.mubr.bf16.mxu0 %v6824
      %7757 = vmatmul.mubr.bf16.gmra.mrb[0].mxu0 %v6546
      %v7758 = vpop.f32.mrb[0].mxu0
      %v7759 = vadd.f32 %v7598, %v7758
      %v7760 = vpop.f32.mrb[0].mxu0
      %v7761 = vpop.f32.mrb[0].mxu0
      %v7762 = vadd.f32 %v7601, %v7761
      %v7763 = vpop.f32.mrb[0].mxu0
      %7764 = vmatprep.mubr.bf16.mxu0 %v6832
      %7765 = vmatmul.mubr.bf16.gmra.mrb[0].mxu0 %v6547
      %v7766 = vpop.f32.mrb[0].mxu0
      %v7767 = vadd.f32 %v7606, %v7766
      %v7768 = vpop.f32.mrb[0].mxu0
      %v7769 = vpop.f32.mrb[0].mxu0
      %v7770 = vadd.f32 %v7609, %v7769
      %v7771 = vpop.f32.mrb[0].mxu0
      %7772 = vmatprep.mubr.bf16.mxu0 %v6840
      %7773 = vmatmul.mubr.bf16.gmra.mrb[0].mxu0 %v6548
      %v7774 = vpop.f32.mrb[0].mxu0
      %v7775 = vadd.f32 %v7614, %v7774
      %v7776 = vpop.f32.mrb[0].mxu0
      %v7777 = vpop.f32.mrb[0].mxu0
      %v7778 = vadd.f32 %v7617, %v7777
      %v7779 = vpop.f32.mrb[0].mxu0
      %7780 = vmatprep.mubr.bf16.mxu0 %v6871
      %7781 = vmatmul.mubr.bf16.gmra.mrb[0].mxu0 %v6549
      %v7782 = vpop.f32.mrb[0].mxu0
      %v7783 = vadd.f32 %v7622, %v7782
      %v7784 = vpop.f32.mrb[0].mxu0
      %v7785 = vpop.f32.mrb[0].mxu0
      %v7786 = vadd.f32 %v7625, %v7785
      %v7787 = vpop.f32.mrb[0].mxu0
      %7788 = vdwg.mxu0
      %7789 = vmatprep.subr.bf16.mxu0 0
      %7790 = vmatpush1.bf16.msra.mxu0 %v7210
      %7791 = vmatprep.subr.bf16.mxu0 0
      %7792 = vmatpush1.bf16.msra.mxu0 %v7211
      %7793 = vmatprep.subr.bf16.mxu0 0
      %7794 = vmatpush1.bf16.msra.mxu0 %v7212
      %7795 = vmatprep.subr.bf16.mxu0 0
      %7796 = vmatpush1.bf16.msra.mxu0 %v7213
      %7797 = vmatprep.subr.bf16.mxu0 0
      %7798 = vmatpush1.bf16.msra.mxu0 %v7214
      %7799 = vmatprep.subr.bf16.mxu0 0
      %7800 = vmatpush1.bf16.msra.mxu0 %v7215
      %7801 = vmatprep.subr.bf16.mxu0 0
      %7802 = vmatpush1.bf16.msra.mxu0 %v7216
      %7803 = vmatprep.subr.bf16.mxu0 0
      %7804 = vmatpush1.bf16.msra.mxu0 %v7217
      %7805 = vmatprep.subr.bf16.mxu0 0
      %7806 = vmatpush1.bf16.msra.mxu0 %v7218
      %7807 = vmatprep.subr.bf16.mxu0 0
      %7808 = vmatpush1.bf16.msra.mxu0 %v7219
      %7809 = vmatprep.subr.bf16.mxu0 0
      %7810 = vmatpush1.bf16.msra.mxu0 %v7220
      %7811 = vmatprep.subr.bf16.mxu0 0
      %7812 = vmatpush1.bf16.msra.mxu0 %v7221
      %7813 = vmatprep.subr.bf16.mxu0 0
      %7814 = vmatpush1.bf16.msra.mxu0 %v7222
      %7815 = vmatprep.subr.bf16.mxu0 0
      %7816 = vmatpush1.bf16.msra.mxu0 %v7223
      %7817 = vmatprep.subr.bf16.mxu0 0
      %7818 = vmatpush1.bf16.msra.mxu0 %v7224
      %7819 = vmatprep.subr.bf16.mxu0 0
      %7820 = vmatpush1.bf16.msra.mxu0 %v7225
      %7821 = vmatprep.mubr.bf16.mxu0 %v6535
      %7822 = vmatmul.mubr.bf16.gmra.mrb[0].mxu0 %v6596
      %v7823 = vpop.f32.mrb[0].mxu0
      %v7824 = vadd.f32 %v7663, %v7823
      %v7825 = vpop.f32.mrb[0].mxu0
      %v7826 = vpop.f32.mrb[0].mxu0
      %v7827 = vadd.f32 %v7666, %v7826
      %v7828 = vpop.f32.mrb[0].mxu0
      %7829 = vmatprep.mubr.bf16.mxu0 %v6536
      %7830 = vmatmul.mubr.bf16.gmra.mrb[0].mxu0 %v6604
      %v7831 = vpop.f32.mrb[0].mxu0
      %v7832 = vadd.f32 %v7671, %v7831
      %v7833 = vpop.f32.mrb[0].mxu0
      %v7834 = vpop.f32.mrb[0].mxu0
      %v7835 = vadd.f32 %v7674, %v7834
      %v7836 = vpop.f32.mrb[0].mxu0
      %7837 = vmatprep.mubr.bf16.mxu0 %v6537
      %7838 = vmatmul.mubr.bf16.gmra.mrb[0].mxu0 %v6612
      %v7839 = vpop.f32.mrb[0].mxu0
      %v7840 = vadd.f32 %v7679, %v7839
      %v7841 = vpop.f32.mrb[0].mxu0
      %v7842 = vpop.f32.mrb[0].mxu0
      %v7843 = vadd.f32 %v7682, %v7842
      %v7844 = vpop.f32.mrb[0].mxu0
      %7845 = vmatprep.mubr.bf16.mxu0 %v6538
      %7846 = vmatmul.mubr.bf16.gmra.mrb[0].mxu0 %v6620
      %v7847 = vpop.f32.mrb[0].mxu0
      %v7848 = vadd.f32 %v7687, %v7847
      %v7849 = vpop.f32.mrb[0].mxu0
      %v7850 = vpop.f32.mrb[0].mxu0
      %v7851 = vadd.f32 %v7690, %v7850
      %v7852 = vpop.f32.mrb[0].mxu0
      %7853 = vmatprep.mubr.bf16.mxu0 %v6539
      %7854 = vmatmul.mubr.bf16.gmra.mrb[0].mxu0 %v6628
      %v7855 = vpop.f32.mrb[0].mxu0
      %v7856 = vadd.f32 %v7695, %v7855
      %v7857 = vpop.f32.mrb[0].mxu0
      %v7858 = vpop.f32.mrb[0].mxu0
      %v7859 = vadd.f32 %v7698, %v7858
      %v7860 = vpop.f32.mrb[0].mxu0
      %7861 = vmatprep.mubr.bf16.mxu0 %v6540
      %7862 = vmatmul.mubr.bf16.gmra.mrb[0].mxu0 %v6636
      %v7863 = vpop.f32.mrb[0].mxu0
      %v7864 = vadd.f32 %v7703, %v7863
      %v7865 = vpop.f32.mrb[0].mxu0
      %v7866 = vpop.f32.mrb[0].mxu0
      %v7867 = vadd.f32 %v7706, %v7866
      %v7868 = vpop.f32.mrb[0].mxu0
      %7869 = vmatprep.mubr.bf16.mxu0 %v6541
      %7870 = vmatmul.mubr.bf16.gmra.mrb[0].mxu0 %v6644
      %v7871 = vpop.f32.mrb[0].mxu0
      %v7872 = vadd.f32 %v7711, %v7871
      %v7873 = vpop.f32.mrb[0].mxu0
      %v7874 = vpop.f32.mrb[0].mxu0
      %v7875 = vadd.f32 %v7714, %v7874
      %v7876 = vpop.f32.mrb[0].mxu0
      %7877 = vmatprep.mubr.bf16.mxu0 %v6542
      %7878 = vmatmul.mubr.bf16.gmra.mrb[0].mxu0 %v6652
      %v7879 = vpop.f32.mrb[0].mxu0
      %v7880 = vadd.f32 %v7719, %v7879
      %v7881 = vpop.f32.mrb[0].mxu0
      %v7882 = vpop.f32.mrb[0].mxu0
      %v7883 = vadd.f32 %v7722, %v7882
      %v7884 = vpop.f32.mrb[0].mxu0
      %7885 = vmatprep.mubr.bf16.mxu0 %v6543
      %7886 = vmatmul.mubr.bf16.gmra.mrb[0].mxu0 %v6660
      %v7887 = vpop.f32.mrb[0].mxu0
      %v7888 = vadd.f32 %v7727, %v7887
      %v7889 = vpop.f32.mrb[0].mxu0
      %v7890 = vpop.f32.mrb[0].mxu0
      %v7891 = vadd.f32 %v7730, %v7890
      %v7892 = vpop.f32.mrb[0].mxu0
      %7893 = vmatprep.mubr.bf16.mxu0 %v6544
      %7894 = vmatmul.mubr.bf16.gmra.mrb[0].mxu0 %v6668
      %v7895 = vpop.f32.mrb[0].mxu0
      %v7896 = vadd.f32 %v7735, %v7895
      %v7897 = vpop.f32.mrb[0].mxu0
      %v7898 = vpop.f32.mrb[0].mxu0
      %v7899 = vadd.f32 %v7738, %v7898
      %v7900 = vpop.f32.mrb[0].mxu0
      %7901 = vmatprep.mubr.bf16.mxu0 %v6545
      %7902 = vmatmul.mubr.bf16.gmra.mrb[0].mxu0 %v6676
      %v7903 = vpop.f32.mrb[0].mxu0
      %v7904 = vadd.f32 %v7743, %v7903
      %v7905 = vpop.f32.mrb[0].mxu0
      %v7906 = vpop.f32.mrb[0].mxu0
      %v7907 = vadd.f32 %v7746, %v7906
      %v7908 = vpop.f32.mrb[0].mxu0
      %7909 = vmatprep.mubr.bf16.mxu0 %v6546
      %7910 = vmatmul.mubr.bf16.gmra.mrb[0].mxu0 %v6684
      %v7911 = vpop.f32.mrb[0].mxu0
      %v7912 = vadd.f32 %v7751, %v7911
      %v7913 = vpop.f32.mrb[0].mxu0
      %v7914 = vpop.f32.mrb[0].mxu0
      %v7915 = vadd.f32 %v7754, %v7914
      %v7916 = vpop.f32.mrb[0].mxu0
      %7917 = vmatprep.mubr.bf16.mxu0 %v6547
      %7918 = vmatmul.mubr.bf16.gmra.mrb[0].mxu0 %v6692
      %v7919 = vpop.f32.mrb[0].mxu0
      %v7920 = vadd.f32 %v7759, %v7919
      %v7921 = vpop.f32.mrb[0].mxu0
      %v7922 = vpop.f32.mrb[0].mxu0
      %v7923 = vadd.f32 %v7762, %v7922
      %v7924 = vpop.f32.mrb[0].mxu0
      %7925 = vmatprep.mubr.bf16.mxu0 %v6548
      %7926 = vmatmul.mubr.bf16.gmra.mrb[0].mxu0 %v6700
      %v7927 = vpop.f32.mrb[0].mxu0
      %v7928 = vadd.f32 %v7767, %v7927
      %v7929 = vpop.f32.mrb[0].mxu0
      %v7930 = vpop.f32.mrb[0].mxu0
      %v7931 = vadd.f32 %v7770, %v7930
      %v7932 = vpop.f32.mrb[0].mxu0
      %7933 = vmatprep.mubr.bf16.mxu0 %v6549
      %7934 = vmatmul.mubr.bf16.gmra.mrb[0].mxu0 %v6865
      %v7935 = vpop.f32.mrb[0].mxu0
      %v7936 = vadd.f32 %v7775, %v7935
      %v7937 = vpop.f32.mrb[0].mxu0
      %v7938 = vpop.f32.mrb[0].mxu0
      %v7939 = vadd.f32 %v7778, %v7938
      %v7940 = vpop.f32.mrb[0].mxu0
      %7941 = vmatprep.mubr.bf16.mxu0 0
      %7942 = vmatmul.mubr.bf16.gmra.mrb[0].mxu0 %v6873
      %v7943 = vpop.f32.mrb[0].mxu0
      %v7944 = vadd.f32 %v7783, %v7943
      %v7945 = vpop.f32.mrb[0].mxu0
      %v7946 = vpop.f32.mrb[0].mxu0
      %v7947 = vadd.f32 %v7786, %v7946
      %v7948 = vpop.f32.mrb[0].mxu0
      %7949 = vdwg.mxu0
      %7950 = vmatprep.subr.bf16.mxu0 0
      %7951 = vmatpush1.bf16.msra.mxu0 %v7226
      %7952 = vmatprep.subr.bf16.mxu0 0
      %7953 = vmatpush1.bf16.msra.mxu0 %v7227
      %7954 = vmatprep.subr.bf16.mxu0 0
      %7955 = vmatpush1.bf16.msra.mxu0 %v7228
      %7956 = vmatprep.subr.bf16.mxu0 0
      %7957 = vmatpush1.bf16.msra.mxu0 %v7229
      %7958 = vmatprep.subr.bf16.mxu0 0
      %7959 = vmatpush1.bf16.msra.mxu0 %v7230
      %7960 = vmatprep.subr.bf16.mxu0 0
      %7961 = vmatpush1.bf16.msra.mxu0 %v7231
      %7962 = vmatprep.subr.bf16.mxu0 0
      %7963 = vmatpush1.bf16.msra.mxu0 %v7232
      %7964 = vmatprep.subr.bf16.mxu0 0
      %7965 = vmatpush1.bf16.msra.mxu0 %v7233
      %7966 = vmatprep.subr.bf16.mxu0 0
      %7967 = vmatpush1.bf16.msra.mxu0 0
      %7968 = vmatprep.subr.bf16.mxu0 0
      %7969 = vmatpush1.bf16.msra.mxu0 0
      %7970 = vmatprep.subr.bf16.mxu0 0
      %7971 = vmatpush1.bf16.msra.mxu0 0
      %7972 = vmatprep.subr.bf16.mxu0 0
      %7973 = vmatpush1.bf16.msra.mxu0 0
      %7974 = vmatprep.subr.bf16.mxu0 0
      %7975 = vmatpush1.bf16.msra.mxu0 0
      %7976 = vmatprep.subr.bf16.mxu0 0
      %7977 = vmatpush1.bf16.msra.mxu0 0
      %7978 = vmatprep.subr.bf16.mxu0 0
      %7979 = vmatpush1.bf16.msra.mxu0 0
      %7980 = vmatprep.subr.bf16.mxu0 0
      %7981 = vmatpush1.bf16.msra.mxu0 0
      %7982 = vmatprep.mubr.bf16.mxu0 0
      %7983 = vmatmul.mubr.bf16.gmra.mrb[0].mxu0 %v6736
      %v7984 = vpop.f32.mrb[0].mxu0
      %v7985 = vadd.f32 %v7824, %v7984
      %v7986 = vpop.f32.mrb[0].mxu0
      %v7987 = vpop.f32.mrb[0].mxu0
      %v7988 = vadd.f32 %v7827, %v7987
      %v7989 = vpop.f32.mrb[0].mxu0
      %7990 = vmatprep.mubr.bf16.mxu0 0
      %7991 = vmatmul.mubr.bf16.gmra.mrb[0].mxu0 %v6744
      %v7992 = vpop.f32.mrb[0].mxu0
      %v7993 = vadd.f32 %v7832, %v7992
      %v7994 = vpop.f32.mrb[0].mxu0
      %v7995 = vpop.f32.mrb[0].mxu0
      %v7996 = vadd.f32 %v7835, %v7995
      %v7997 = vpop.f32.mrb[0].mxu0
      %7998 = vmatprep.mubr.bf16.mxu0 0
      %7999 = vmatmul.mubr.bf16.gmra.mrb[0].mxu0 %v6752
      %v8000 = vpop.f32.mrb[0].mxu0
      %v8001 = vadd.f32 %v7840, %v8000
      %v8002 = vpop.f32.mrb[0].mxu0
      %v8003 = vpop.f32.mrb[0].mxu0
      %v8004 = vadd.f32 %v7843, %v8003
      %v8005 = vpop.f32.mrb[0].mxu0
      %8006 = vmatprep.mubr.bf16.mxu0 0
      %8007 = vmatmul.mubr.bf16.gmra.mrb[0].mxu0 %v6760
      %v8008 = vpop.f32.mrb[0].mxu0
      %v8009 = vadd.f32 %v7848, %v8008
      %v8010 = vpop.f32.mrb[0].mxu0
      %v8011 = vpop.f32.mrb[0].mxu0
      %v8012 = vadd.f32 %v7851, %v8011
      %v8013 = vpop.f32.mrb[0].mxu0
      %8014 = vmatprep.mubr.bf16.mxu0 0
      %8015 = vmatmul.mubr.bf16.gmra.mrb[0].mxu0 %v6768
      %v8016 = vpop.f32.mrb[0].mxu0
      %v8017 = vadd.f32 %v7856, %v8016
      %v8018 = vpop.f32.mrb[0].mxu0
      %v8019 = vpop.f32.mrb[0].mxu0
      %v8020 = vadd.f32 %v7859, %v8019
      %v8021 = vpop.f32.mrb[0].mxu0
      %8022 = vmatprep.mubr.bf16.mxu0 0
      %8023 = vmatmul.mubr.bf16.gmra.mrb[0].mxu0 %v6776
      %v8024 = vpop.f32.mrb[0].mxu0
      %v8025 = vadd.f32 %v7864, %v8024
      %v8026 = vpop.f32.mrb[0].mxu0
      %v8027 = vpop.f32.mrb[0].mxu0
      %v8028 = vadd.f32 %v7867, %v8027
      %v8029 = vpop.f32.mrb[0].mxu0
      %8030 = vmatprep.mubr.bf16.mxu0 0
      %8031 = vmatmul.mubr.bf16.gmra.mrb[0].mxu0 %v6784
      %v8032 = vpop.f32.mrb[0].mxu0
      %v8033 = vadd.f32 %v7872, %v8032
      %v8034 = vpop.f32.mrb[0].mxu0
      %v8035 = vpop.f32.mrb[0].mxu0
      %v8036 = vadd.f32 %v7875, %v8035
      %v8037 = vpop.f32.mrb[0].mxu0
      %8038 = vmatprep.mubr.bf16.mxu0 0
      %8039 = vmatmul.mubr.bf16.gmra.mrb[0].mxu0 %v6792
      %v8040 = vpop.f32.mrb[0].mxu0
      %v8041 = vadd.f32 %v7880, %v8040
      %v8042 = vpop.f32.mrb[0].mxu0
      %v8043 = vpop.f32.mrb[0].mxu0
      %v8044 = vadd.f32 %v7883, %v8043
      %v8045 = vpop.f32.mrb[0].mxu0
      %8046 = vmatprep.mubr.bf16.mxu0 0
      %8047 = vmatmul.mubr.bf16.gmra.mrb[0].mxu0 %v6800
      %v8048 = vpop.f32.mrb[0].mxu0
      %v8049 = vadd.f32 %v7888, %v8048
      %v8050 = vpop.f32.mrb[0].mxu0
      %v8051 = vpop.f32.mrb[0].mxu0
      %v8052 = vadd.f32 %v7891, %v8051
      %v8053 = vpop.f32.mrb[0].mxu0
      %8054 = vmatprep.mubr.bf16.mxu0 0
      %8055 = vmatmul.mubr.bf16.gmra.mrb[0].mxu0 %v6808
      %v8056 = vpop.f32.mrb[0].mxu0
      %v8057 = vadd.f32 %v7896, %v8056
      %v8058 = vpop.f32.mrb[0].mxu0
      %v8059 = vpop.f32.mrb[0].mxu0
      %v8060 = vadd.f32 %v7899, %v8059
      %v8061 = vpop.f32.mrb[0].mxu0
      %8062 = vmatprep.mubr.bf16.mxu0 0
      %8063 = vmatmul.mubr.bf16.gmra.mrb[0].mxu0 %v6816
      %v8064 = vpop.f32.mrb[0].mxu0
      %v8065 = vadd.f32 %v7904, %v8064
      %v8066 = vpop.f32.mrb[0].mxu0
      %v8067 = vpop.f32.mrb[0].mxu0
      %v8068 = vadd.f32 %v7907, %v8067
      %v8069 = vpop.f32.mrb[0].mxu0
      %8070 = vmatprep.mubr.bf16.mxu0 0
      %8071 = vmatmul.mubr.bf16.gmra.mrb[0].mxu0 %v6824
      %v8072 = vpop.f32.mrb[0].mxu0
      %v8073 = vadd.f32 %v7912, %v8072
      %v8074 = vpop.f32.mrb[0].mxu0
      %v8075 = vpop.f32.mrb[0].mxu0
      %v8076 = vadd.f32 %v7915, %v8075
      %v8077 = vpop.f32.mrb[0].mxu0
      %8078 = vmatprep.mubr.bf16.mxu0 0
      %8079 = vmatmul.mubr.bf16.gmra.mrb[0].mxu0 %v6832
      %v8080 = vpop.f32.mrb[0].mxu0
      %v8081 = vadd.f32 %v7920, %v8080
      %v8082 = vpop.f32.mrb[0].mxu0
      %v8083 = vpop.f32.mrb[0].mxu0
      %v8084 = vadd.f32 %v7923, %v8083
      %v8085 = vpop.f32.mrb[0].mxu0
      %8086 = vmatprep.mubr.bf16.mxu0 0
      %8087 = vmatmul.mubr.bf16.gmra.mrb[0].mxu0 %v6840
      %v8088 = vpop.f32.mrb[0].mxu0
      %v8089 = vadd.f32 %v7928, %v8088
      %v8090 = vpop.f32.mrb[0].mxu0
      %v8091 = vpop.f32.mrb[0].mxu0
      %v8092 = vadd.f32 %v7931, %v8091
      %v8093 = vpop.f32.mrb[0].mxu0
      %8094 = vmatprep.mubr.bf16.mxu0 0
      %8095 = vmatmul.mubr.bf16.gmra.mrb[0].mxu0 %v6871
      %v8096 = vpop.f32.mrb[0].mxu0
      %v8097 = vadd.f32 %v7936, %v8096
      %v8098 = vpop.f32.mrb[0].mxu0
      %v8099 = vpop.f32.mrb[0].mxu0
      %v8100 = vadd.f32 %v7939, %v8099
      %v8101 = vpop.f32.mrb[0].mxu0
      %8102 = vmatprep.mubr.bf16.mxu0 0
      %8103 = vmatmul.mubr.bf16.gmra.mrb[0].mxu0 0
      %v8104 = vpop.f32.mrb[0].mxu0
      %v8105 = vadd.f32 %v7944, %v8104
      %v8106 = vpop.f32.mrb[0].mxu0
      %v8107 = vpop.f32.mrb[0].mxu0
      %v8108 = vadd.f32 %v7947, %v8107
      %v8109 = vpop.f32.mrb[0].mxu0
      %8110 = vdwg.mxu0
      %v8111 = vlaneseq
      %v8112 = vshrl.u32 %v8111, 7
      %v8113 = vsub.s32 2, %v8112
      %v8114 = vrot.slane %v4562, %v8113
      %v8115 = vmul.f32 %v7985, %v8114
      %v8116 = vmul.f32 %v7988, %v8114
      %v8117 = vmul.f32 %v7993, %v8114
      %v8118 = vmul.f32 %v7996, %v8114
      %v8119 = vmul.f32 %v8001, %v8114
      %v8120 = vmul.f32 %v8004, %v8114
      %v8121 = vmul.f32 %v8009, %v8114
      %v8122 = vmul.f32 %v8012, %v8114
      %v8123 = vmul.f32 %v8017, %v8114
      %v8124 = vmul.f32 %v8020, %v8114
      %v8125 = vmul.f32 %v8025, %v8114
      %v8126 = vmul.f32 %v8028, %v8114
      %v8127 = vmul.f32 %v8033, %v8114
      %v8128 = vmul.f32 %v8036, %v8114
      %v8129 = vmul.f32 %v8041, %v8114
      %v8130 = vmul.f32 %v8044, %v8114
      %v8131 = vmul.f32 %v8049, %v8114
      %v8132 = vmul.f32 %v8052, %v8114
      %v8133 = vmul.f32 %v8057, %v8114
      %v8134 = vmul.f32 %v8060, %v8114
      %v8135 = vmul.f32 %v8065, %v8114
      %v8136 = vmul.f32 %v8068, %v8114
      %v8137 = vmul.f32 %v8073, %v8114
      %v8138 = vmul.f32 %v8076, %v8114
      %v8139 = vmul.f32 %v8081, %v8114
      %v8140 = vmul.f32 %v8084, %v8114
      %v8141 = vmul.f32 %v8089, %v8114
      %v8142 = vmul.f32 %v8092, %v8114
      %v8143 = vmul.f32 %v8097, %v8114
      %v8144 = vmul.f32 %v8100, %v8114
      %v8145 = vmul.f32 %v8105, %v8114
      %v8146 = vmul.f32 %v8108, %v8114
      %v8147 = vlaneseq
      %v8148 = vshrl.u32 %v8147, 7
      %v8149 = vsub.s32 3, %v8148
      %v8150 = vrot.slane %v4562, %v8149
      %v8151 = vadd.f32 %v8115, %v8150
      %v8152 = vadd.f32 %v8116, %v8150
      %v8153 = vadd.f32 %v8117, %v8150
      %v8154 = vadd.f32 %v8118, %v8150
      %v8155 = vadd.f32 %v8119, %v8150
      %v8156 = vadd.f32 %v8120, %v8150
      %v8157 = vadd.f32 %v8121, %v8150
      %v8158 = vadd.f32 %v8122, %v8150
      %v8159 = vadd.f32 %v8123, %v8150
      %v8160 = vadd.f32 %v8124, %v8150
      %v8161 = vadd.f32 %v8125, %v8150
      %v8162 = vadd.f32 %v8126, %v8150
      %v8163 = vadd.f32 %v8127, %v8150
      %v8164 = vadd.f32 %v8128, %v8150
      %v8165 = vadd.f32 %v8129, %v8150
      %v8166 = vadd.f32 %v8130, %v8150
      %v8167 = vadd.f32 %v8131, %v8150
      %v8168 = vadd.f32 %v8132, %v8150
      %v8169 = vadd.f32 %v8133, %v8150
      %v8170 = vadd.f32 %v8134, %v8150
      %v8171 = vadd.f32 %v8135, %v8150
      %v8172 = vadd.f32 %v8136, %v8150
      %v8173 = vadd.f32 %v8137, %v8150
      %v8174 = vadd.f32 %v8138, %v8150
      %v8175 = vadd.f32 %v8139, %v8150
      %v8176 = vadd.f32 %v8140, %v8150
      %v8177 = vadd.f32 %v8141, %v8150
      %v8178 = vadd.f32 %v8142, %v8150
      %v8179 = vadd.f32 %v8143, %v8150
      %v8180 = vadd.f32 %v8144, %v8150
      %v8181 = vadd.f32 %v8145, %v8150
      %v8182 = vadd.f32 %v8146, %v8150
      %v8183 = vadd.f32 %v8151, %v4529
      %v8184 = vadd.f32 %v8152, %v4530
      %v8185 = vadd.f32 %v8153, %v4531
      %v8186 = vadd.f32 %v8154, %v4532
      %v8187 = vadd.f32 %v8155, %v4533
      %v8188 = vadd.f32 %v8156, %v4534
      %v8189 = vadd.f32 %v8157, %v4535
      %v8190 = vadd.f32 %v8158, %v4536
      %v8191 = vadd.f32 %v8159, %v4537
      %v8192 = vadd.f32 %v8160, %v4538
      %v8193 = vadd.f32 %v8161, %v4539
      %v8194 = vadd.f32 %v8162, %v4540
      %v8195 = vadd.f32 %v8163, %v4541
      %v8196 = vadd.f32 %v8164, %v4542
      %v8197 = vadd.f32 %v8165, %v4543
      %v8198 = vadd.f32 %v8166, %v4544
      %v8199 = vadd.f32 %v8167, %v4545
      %v8200 = vadd.f32 %v8168, %v4546
      %v8201 = vadd.f32 %v8169, %v4547
      %v8202 = vadd.f32 %v8170, %v4548
      %v8203 = vadd.f32 %v8171, %v4549
      %v8204 = vadd.f32 %v8172, %v4550
      %v8205 = vadd.f32 %v8173, %v4551
      %v8206 = vadd.f32 %v8174, %v4552
      %v8207 = vadd.f32 %v8175, %v4553
      %v8208 = vadd.f32 %v8176, %v4554
      %v8209 = vadd.f32 %v8177, %v4555
      %v8210 = vadd.f32 %v8178, %v4556
      %v8211 = vadd.f32 %v8179, %v4557
      %v8212 = vadd.f32 %v8180, %v4558
      %v8213 = vadd.f32 %v8181, %v4559
      %v8214 = vadd.f32 %v8182, %v4560
      %v8215 = vmax.f32 %v8183, 0.0
      %v8216 = vmax.f32 %v8184, 0.0
      %v8217 = vmax.f32 %v8185, 0.0
      %v8218 = vmax.f32 %v8186, 0.0
      %v8219 = vmax.f32 %v8187, 0.0
      %v8220 = vmax.f32 %v8188, 0.0
      %v8221 = vmax.f32 %v8189, 0.0
      %v8222 = vmax.f32 %v8190, 0.0
      %v8223 = vmax.f32 %v8191, 0.0
      %v8224 = vmax.f32 %v8192, 0.0
      %v8225 = vmax.f32 %v8193, 0.0
      %v8226 = vmax.f32 %v8194, 0.0
      %v8227 = vmax.f32 %v8195, 0.0
      %v8228 = vmax.f32 %v8196, 0.0
      %v8229 = vmax.f32 %v8197, 0.0
      %v8230 = vmax.f32 %v8198, 0.0
      %v8231 = vmax.f32 %v8199, 0.0
      %v8232 = vmax.f32 %v8200, 0.0
      %v8233 = vmax.f32 %v8201, 0.0
      %v8234 = vmax.f32 %v8202, 0.0
      %v8235 = vmax.f32 %v8203, 0.0
      %v8236 = vmax.f32 %v8204, 0.0
      %v8237 = vmax.f32 %v8205, 0.0
      %v8238 = vmax.f32 %v8206, 0.0
      %v8239 = vmax.f32 %v8207, 0.0
      %v8240 = vmax.f32 %v8208, 0.0
      %v8241 = vmax.f32 %v8209, 0.0
      %v8242 = vmax.f32 %v8210, 0.0
      %v8243 = vmax.f32 %v8211, 0.0
      %v8244 = vmax.f32 %v8212, 0.0
      %v8245 = vmax.f32 %v8213, 0.0
      %v8246 = vmax.f32 %v8214, 0.0
      %8247 = vst [vmem:[%s197] sm:$0xff] %v8215
      %8248 = vst [vmem:[%s197 + $0x8] sm:$0xff] %v8216
      %8249 = vst [vmem:[%s197 + $0x10] sm:$0xff] %v8217
      %8250 = vst [vmem:[%s197 + $0x18] sm:$0xff] %v8218
      %8251 = vst [vmem:[%s197 + $0x20] sm:$0xff] %v8219
      %8252 = vst [vmem:[%s197 + $0x28] sm:$0xff] %v8220
      %8253 = vst [vmem:[%s197 + $0x30] sm:$0xff] %v8221
      %8254 = vst [vmem:[%s197 + $0x38] sm:$0xff] %v8222
      %8255 = vst [vmem:[%s197 + $0x40] sm:$0xff] %v8223
      %8256 = vst [vmem:[%s197 + $0x48] sm:$0xff] %v8224
      %8257 = vst [vmem:[%s197 + $0x50] sm:$0xff] %v8225
      %8258 = vst [vmem:[%s197 + $0x58] sm:$0xff] %v8226
      %8259 = vst [vmem:[%s197 + $0x60] sm:$0xff] %v8227
      %8260 = vst [vmem:[%s197 + $0x68] sm:$0xff] %v8228
      %8261 = vst [vmem:[%s197 + $0x70] sm:$0xff] %v8229
      %8262 = vst [vmem:[%s197 + $0x78] sm:$0xff] %v8230
      %8263 = vst [vmem:[%s197 + $0x80] sm:$0xff] %v8231
      %8264 = vst [vmem:[%s197 + $0x88] sm:$0xff] %v8232
      %8265 = vst [vmem:[%s197 + $0x90] sm:$0xff] %v8233
      %8266 = vst [vmem:[%s197 + $0x98] sm:$0xff] %v8234
      %8267 = vst [vmem:[%s197 + $0xa0] sm:$0xff] %v8235
      %8268 = vst [vmem:[%s197 + $0xa8] sm:$0xff] %v8236
      %8269 = vst [vmem:[%s197 + $0xb0] sm:$0xff] %v8237
      %8270 = vst [vmem:[%s197 + $0xb8] sm:$0xff] %v8238
      %8271 = vst [vmem:[%s197 + $0xc0] sm:$0xff] %v8239
      %8272 = vst [vmem:[%s197 + $0xc8] sm:$0xff] %v8240
      %8273 = vst [vmem:[%s197 + $0xd0] sm:$0xff] %v8241
      %8274 = vst [vmem:[%s197 + $0xd8] sm:$0xff] %v8242
      %8275 = vst [vmem:[%s197 + $0xe0] sm:$0xff] %v8243
      %8276 = vst [vmem:[%s197 + $0xe8] sm:$0xff] %v8244
      %8277 = vst [vmem:[%s197 + $0xf0] sm:$0xff] %v8245
      %8278 = vst [vmem:[%s197 + $0xf8] sm:$0xff] %v8246
      %p8279 = scmp.lt.s32.totalorder %s15, 1
      %s8280 = scalar_select %p8279, %s15, 1
      %s8281 = smul.addr %s8280, 32
      %s8282 = smul.addr %s8281, 8
      %s8283 = scalar_lea.vmem %s4, %s8282
      // Predicated region
      $region37: #{_lambda_.1} parent=35 // pred_check
        %p8284 = pneg %p122
      $region38: #{_lambda_.1} parent=35 // pred_check_branch
        %8286 = sbr.rel (%p8284) target = $region40
      $region39: #{_lambda_.1} parent=35 // pred_region
        _
      $region40: #{_lambda_.1} parent=35 // pred_fallthru
        _
    $region36: #{_lambda_.1} parent=5 // pred_fallthru
      _
    %p8287 = scmp.le.s32.totalorder 2, %s10
    // Predicated region
    $region41: #{_lambda_.1} parent=5 // pred_check
      %p8288 = pneg %p8287
    $region42: #{_lambda_.1} parent=5 // pred_check_branch
      %8290 = sbr.rel (%p8288) target = $region44
    $region43: #{_lambda_.1} parent=5 // pred_region
      %s8291 = ssub.s32 %s10, 2
      // Predicated region
      $region45: #{_lambda_.1} parent=43 // pred_check
        %p8292 = pneg %p128
      $region46: #{_lambda_.1} parent=43 // pred_check_branch
        %8294 = sbr.rel (%p8292) target = $region48
      $region47: #{_lambda_.1} parent=43 // pred_region
        %p8295 = scmp.lt.s32.totalorder %s16, 1
        %s8296 = scalar_select %p8295, %s16, 1
        %s8297 = smul.addr %s8296, 32
        %s8298 = smul.addr %s8297, 8
        %s8299 = scalar_lea.vmem %s4, %s8298
      $region48: #{_lambda_.1} parent=43 // pred_fallthru
        _
    $region44: #{_lambda_.1} parent=5 // pred_fallthru
      _
  $region6: #{_lambda_.1} parent=0 // loop_footer
    %s14 = sadd.s32 1, %s10
  $region7: #{_lambda_.1} parent=0 // loop_footer_branch
    %9 = sbr.rel target = $region3
  $region8: #{_lambda_.1} parent=0 // loop_exit
    _

</llo_original>
